<compile_context>
chip_gen: v5e
topology: v5e:2x2
jax: 0.10.0
libtpu: 0.0.40
codegen_flags: <defaults>
</compile_context>

<pallas_src>
import math
import jax
import jax.numpy as jnp
import numpy as np
from jax import lax
from jax.experimental import pallas as pl
from jax.experimental.pallas import tpu as pltpu

EPS = 1e-5
NEG_SLOPE = 0.2
INV_SQRT2 = 1.0 / math.sqrt(2.0)
# Default MXU input precision (accumulation is always f32, elementwise math f32).
MXU_DTYPE_DEFAULT = jnp.bfloat16


def _default_vmem_limit():
    """v5e/v6e have 128 MiB physical VMEM -> raise the scoped limit so the
    HBM-roofline kernels can use large tiles; v7x only has 64 MiB per core."""
    try:
        kind = jax.devices()[0].device_kind.lower()
    except Exception:
        kind = ""
    if ("v5" in kind) or ("v6" in kind):
        return 96 * 1024 * 1024
    return 48 * 1024 * 1024          # v7x / unknown: stay well under 64 MiB


VMEM_LIMIT = _default_vmem_limit()


# ----------------------------------------------------------------------------
# tile-size helpers
# ----------------------------------------------------------------------------
def _pick_row_tile(m, target):
    """Largest multiple-of-8 divisor of m that is <= target; if none exists,
    take the smallest multiple-of-8 divisor above target (bounded search)
    before falling back to the full extent."""
    if m <= target:
        return m
    start = target - (target % 8)
    for t in range(start, 7, -8):
        if m % t == 0:
            return t
    for t in range(start + 8, min(m, 16 * target), 8):
        if m % t == 0:
            return t
    return m                         # TODO(synk): masked ragged tiles for awkward m


def _pick_lane_tile(c, target=256):
    """Cout tile: full C if small, else a 128-multiple divisor <= target."""
    if c <= target:
        return c
    for t in range(target - target % 128, 127, -128):
        if c % t == 0:
            return t
    return c


# ----------------------------------------------------------------------------
# Kernel 1: per-channel batch statistics for norm1 (one-pass sum / sumsq),
# tiled over M with an accumulator output resident across the reduction axis.
# ----------------------------------------------------------------------------
def _stats_kernel(x_ref, o_ref):
    x = x_ref[...].astype(jnp.float32)                        # (tm, C)
    s = jnp.sum(x, axis=0, keepdims=True)                     # (1, C)
    sq = jnp.sum(x * x, axis=0, keepdims=True)                # (1, C)

    @pl.when(pl.program_id(0) == 0)
    def _():
        o_ref[...] = jnp.zeros_like(o_ref)

    o_ref[...] += jnp.concatenate([s, sq], axis=0)            # (2, C)


def batch_channel_stats(x_nhwc, tm_target=1024):
    N, H, W, C = x_nhwc.shape
    M = N * H * W
    tm = _pick_row_tile(M, tm_target)
    xf = x_nhwc.reshape(M, C)
    stats = pl.pallas_call(
        _stats_kernel,
        out_shape=jax.ShapeDtypeStruct((2, C), jnp.float32),
        grid=(pl.cdiv(M, tm),),
        in_specs=[pl.BlockSpec((tm, C), lambda i: (i, 0))],
        out_specs=pl.BlockSpec((2, C), lambda i: (0, 0)),
        compiler_params=pltpu.CompilerParams(
            dimension_semantics=("arbitrary",),
            vmem_limit_bytes=VMEM_LIMIT),
    )(xf)
    mean = stats[0] / M
    # NOTE: E[x^2]-mean^2 can cancel for large-mean inputs; acceptable here
    # since the activations feeding BN are ~unit scale.  Guard keeps var >= 0.
    var = jnp.maximum(stats[1] / M - mean * mean, 0.0)
    return mean, var


def bn_scale_shift(mean, var, gamma, beta):
    """Fold BN into a per-channel affine: y = x*scale + shift."""
    inv = lax.rsqrt(var + EPS)
    scale = gamma * inv
    shift = beta - mean * scale
    return (scale.reshape(1, -1).astype(jnp.float32),
            shift.reshape(1, -1).astype(jnp.float32))


# ----------------------------------------------------------------------------
# Kernel 2: fused  BN(scale/shift) -> LeakyReLU(0.2) -> zero-pad(2) ->
# 5x5 conv (stride 1), computed as 5 accumulated matmuls (K = 5*Cin per kh tap)
# on a kw-im2col slab that is built once per image and cached in VMEM across
# Cout tiles.  Optional fused residual epilogue  out = (conv + shortcut)/sqrt(2)
# and optional fused per-channel sum/sumsq of the conv output (for norm2).
# Grid: (N parallel, Cout-tiles arbitrary/inner).
# TODO(synk): H-row tiling with a 2-row halo (manual make_async_copy double
# buffer) for images where a full (Hin,Win,5*Cin) slab no longer fits VMEM.
# ----------------------------------------------------------------------------
def _make_conv5x5_kernel(Hin, Win, Cin, tc, fuse_residual, emit_stats, mxu_dtype):
    K = 5
    KC = K * Cin
    HW = Hin * Win

    def kernel(*refs):
        x_ref, scale_ref, shift_ref, w_ref, b_ref = refs[:5]
        idx = 5
        sc_ref = None
        if fuse_residual:
            sc_ref = refs[idx]; idx += 1
        out_ref = refs[idx]; idx += 1
        stats_ref = None
        if emit_stats:
            stats_ref = refs[idx]; idx += 1
        wpad_ref, xw_ref = refs[idx], refs[idx + 1]

        # ---- build fused BN + LeakyReLU + zero-halo + kw-im2col slab once per
        # image (co == 0) and keep it VMEM-resident across all Cout tiles. ----
        @pl.when(pl.program_id(1) == 0)
        def _build():
            xv = x_ref[0].astype(jnp.float32)                          # (Hin,Win,Cin)
            y = (xv * scale_ref[...].reshape(1, 1, Cin)
                 + shift_ref[...].reshape(1, 1, Cin))
            y = jnp.where(y >= 0, y, NEG_SLOPE * y).astype(mxu_dtype)
            # W-direction 2px zero halo.  Borders are re-zeroed on EVERY rebuild
            # (not gated on grid iteration (0,0)), so there is no stale-VMEM
            # hazard when the parallel N axis is sharded across cores (v7x).
            zc = jnp.zeros((Hin, 2, Cin), mxu_dtype)
            wpad_ref[pl.ds(0, Hin), pl.ds(0, 2), :] = zc
            wpad_ref[pl.ds(0, Hin), pl.ds(Win + 2, 2), :] = zc
            wpad_ref[pl.ds(0, Hin), pl.ds(2, Win), :] = y
            yp = wpad_ref[...]                                         # (Hin,Win+4,Cin)
            # kw-direction im2col: 5 lane-concat slabs, K = 5*Cin contraction.
            xw = jnp.concatenate(
                [lax.slice(yp, (0, kw, 0), (Hin, kw + Win, Cin)) for kw in range(K)],
                axis=-1)                                               # (Hin,Win,5*Cin)
            # H-direction 2-row zero halo + body.
            zr = jnp.zeros((2, Win, KC), mxu_dtype)
            xw_ref[pl.ds(0, 2), :, :] = zr
            xw_ref[pl.ds(Hin + 2, 2), :, :] = zr
            xw_ref[pl.ds(2, Hin), :, :] = xw

        # ---- 5x5 conv as 5 accumulated MXU matmuls (one per kh tap). ---------
        acc = jnp.zeros((HW, tc), jnp.float32)
        for kh in range(K):
            xkh = xw_ref[pl.ds(kh, Hin), :, :].reshape(HW, KC)
            acc = acc + jnp.dot(xkh, w_ref[kh],
                                preferred_element_type=jnp.float32)
        acc = acc + b_ref[...].astype(jnp.float32)

        if emit_stats:
            # per-(image, channel-tile) sum / sum-of-squares of the conv output
            # so norm2's batch statistics need no extra HBM pass over h.
            stats_ref[0] = jnp.concatenate(
                [jnp.sum(acc, axis=0, keepdims=True),
                 jnp.sum(acc * acc, axis=0, keepdims=True)], axis=0)

        if fuse_residual:
            acc = (acc + sc_ref[0].astype(jnp.float32)) * INV_SQRT2

        out_ref[0] = acc.astype(out_ref.dtype)

    return kernel


def conv5x5_bn_act(x_nhwc, w_pt, b, in_scale, in_shift, shortcut=None,
                   emit_stats=False, cout_tile_target=256,
                   mxu_dtype=MXU_DTYPE_DEFAULT):
    """w_pt: PyTorch-layout (Cout, Cin, 5, 5); b: (Cout,).
    in_scale/in_shift: (1, Cin) folded BatchNorm affine, applied together with
    LeakyReLU(0.2) to the input inside the kernel.
    shortcut (optional): (N, H, W, Cout) fused as (conv + shortcut)/sqrt(2).
    emit_stats: also return per-image per-channel (sum, sumsq) of the conv
    output, shape (N, 2, Cout)."""
    N, Hin, Win, Cin = x_nhwc.shape
    Cout = w_pt.shape[0]
    K = 5
    HW = Hin * Win
    tc = _pick_lane_tile(Cout, cout_tile_target)
    n_co = Cout // tc

    # (Cout, Cin, 5, 5) -> (kh, kw, Cin, Cout) -> (5, 5*Cin, Cout).
    w3d = jnp.transpose(w_pt, (2, 3, 1, 0)).reshape(K, K * Cin, Cout).astype(mxu_dtype)
    b2d = b.reshape(1, Cout).astype(jnp.float32)

    fuse = shortcut is not None
    kernel = _make_conv5x5_kernel(Hin, Win, Cin, tc, fuse, emit_stats, mxu_dtype)

    # NOTE(v7x): x/scale/shift/weight blocks are constant along the inner co
    # axis; pipeline_mode=pl.Buffered(1) on them would drop the second buffer
    # and free a few MiB on the 64-MiB parts.
    in_specs = [
        pl.BlockSpec((1, Hin, Win, Cin), lambda n, co: (n, 0, 0, 0)),
        pl.BlockSpec((1, Cin), lambda n, co: (0, 0)),
        pl.BlockSpec((1, Cin), lambda n, co: (0, 0)),
        pl.BlockSpec((K, K * Cin, tc), lambda n, co: (0, 0, co)),
        pl.BlockSpec((1, tc), lambda n, co: (0, co)),
    ]
    args = [x_nhwc, in_scale, in_shift, w3d, b2d]
    if fuse:
        in_specs.append(pl.BlockSpec((1, HW, tc), lambda n, co: (n, 0, co)))
        args.append(shortcut.reshape(N, HW, Cout))

    main_shape = jax.ShapeDtypeStruct((N, HW, Cout), x_nhwc.dtype)
    main_spec = pl.BlockSpec((1, HW, tc), lambda n, co: (n, 0, co))
    if emit_stats:
        out_shape = (main_shape, jax.ShapeDtypeStruct((N, 2, Cout), jnp.float32))
        out_specs = (main_spec, pl.BlockSpec((1, 2, tc), lambda n, co: (n, 0, co)))
    else:
        out_shape = main_shape
        out_specs = main_spec

    res = pl.pallas_call(
        kernel,
        out_shape=out_shape,
        grid=(N, n_co),
        in_specs=in_specs,
        out_specs=out_specs,
        scratch_shapes=[
            pltpu.VMEM((Hin, Win + 4, Cin), mxu_dtype),        # W-halo pad buffer
            pltpu.VMEM((Hin + 4, Win, K * Cin), mxu_dtype),    # cached kw-im2col slab
        ],
        compiler_params=pltpu.CompilerParams(
            dimension_semantics=("parallel", "arbitrary"),
            vmem_limit_bytes=VMEM_LIMIT),
    )(*args)

    if emit_stats:
        out, stats = res
        return out.reshape(N, Hin, Win, Cout), stats
    return res.reshape(N, Hin, Win, Cout)


# ----------------------------------------------------------------------------
# Kernel 3: 1x1 conv (learned shortcut, no bias) as a tiled matmul over M.
# ----------------------------------------------------------------------------
def _make_conv1x1_kernel(mxu_dtype):
    def kernel(x_ref, w_ref, o_ref):
        o_ref[...] = jnp.dot(x_ref[...].astype(mxu_dtype), w_ref[...],
                             preferred_element_type=jnp.float32).astype(o_ref.dtype)
    return kernel


def conv1x1(x_nhwc, w_pt, tm_target=2048, mxu_dtype=MXU_DTYPE_DEFAULT):
    N, H, W, Cin = x_nhwc.shape
    Cout = w_pt.shape[0]
    M = N * H * W
    tm = _pick_row_tile(M, tm_target)
    w = w_pt.reshape(Cout, Cin).T.astype(mxu_dtype)           # (Cin, Cout)
    xf = x_nhwc.reshape(M, Cin)
    out = pl.pallas_call(
        _make_conv1x1_kernel(mxu_dtype),
        out_shape=jax.ShapeDtypeStruct((M, Cout), x_nhwc.dtype),
        grid=(M // tm,),
        in_specs=[pl.BlockSpec((tm, Cin), lambda i: (i, 0)),
                  pl.BlockSpec((Cin, Cout), lambda i: (0, 0))],
        out_specs=pl.BlockSpec((tm, Cout), lambda i: (i, 0)),
        compiler_params=pltpu.CompilerParams(
            dimension_semantics=("parallel",),
            vmem_limit_bytes=VMEM_LIMIT),
    )(xf, w)
    return out.reshape(N, H, W, Cout)


# ----------------------------------------------------------------------------
# Glue: nearest-neighbor 2x upsample (pure data movement, plain JAX).
# TODO(synk): fold the 2x nearest repeat into conv1's in-kernel input prep and
# the shortcut repeat into conv2's epilogue to drop this HBM pass; needs a
# sublane-interleaving repeat that lowers safely on all generations.
# ----------------------------------------------------------------------------
def upsample_nearest_2x(x_nhwc):
    return jnp.repeat(jnp.repeat(x_nhwc, 2, axis=1), 2, axis=2)


# ----------------------------------------------------------------------------
# GenResBlk forward (matches the PyTorch module semantics).
# ----------------------------------------------------------------------------
def gen_res_blk_forward(params, x_nchw, upsample=False, mxu_dtype=MXU_DTYPE_DEFAULT):
    x = jnp.transpose(x_nchw, (0, 2, 3, 1))                   # NCHW -> NHWC
    Cin = x.shape[-1]
    Cout = params["conv1_w"].shape[0]
    learned_sc = Cin != Cout

    # norm1 batch stats over the *pre-upsample* input (PyTorch order).
    mean1, var1 = batch_channel_stats(x)
    scale1, shift1 = bn_scale_shift(mean1, var1,
                                    params["norm1_gamma"], params["norm1_beta"])

    # normalize+act are elementwise per-channel, so they commute with nearest
    # upsample: upsample the raw input once, keep norm1+act fused in conv1.
    x_in = upsample_nearest_2x(x) if upsample else x

    # residual: [norm1+act fused] -> conv1; conv1 also emits per-channel
    # sum/sumsq of its output, so norm2 needs no extra pass over h.
    h, hstats = conv5x5_bn_act(x_in, params["conv1_w"], params["conv1_b"],
                               scale1, shift1, emit_stats=True,
                               mxu_dtype=mxu_dtype)
    Mh = h.shape[0] * h.shape[1] * h.shape[2]
    tot = jnp.sum(hstats, axis=0)                              # (2, Cout)
    mean2 = tot[0] / Mh
    var2 = jnp.maximum(tot[1] / Mh - mean2 * mean2, 0.0)
    scale2, shift2 = bn_scale_shift(mean2, var2,
                                    params["norm2_gamma"], params["norm2_beta"])

    # shortcut: (upsampled) input, optionally through the learned 1x1 conv.
    s = conv1x1(x_in, params["conv1x1_w"], mxu_dtype=mxu_dtype) if learned_sc else x_in

    # conv2 with fused [norm2+act] on the input and fused (out + s)/sqrt(2).
    out = conv5x5_bn_act(h, params["conv2_w"], params["conv2_b"],
                         scale2, shift2, shortcut=s, mxu_dtype=mxu_dtype)
    return jnp.transpose(out, (0, 3, 1, 2))                   # NHWC -> NCHW


# ----------------------------------------------------------------------------
# Pure-JAX reference for validation.
# ----------------------------------------------------------------------------
def _ref_forward(params, x_nchw, upsample=False):
    x = jnp.transpose(x_nchw, (0, 2, 3, 1))
    dim_in = x.shape[-1]
    dim_out = params["conv1_w"].shape[0]

    def bn_act_ref(z, g, b):
        m = jnp.mean(z, axis=(0, 1, 2), keepdims=True)
        v = jnp.mean((z - m) ** 2, axis=(0, 1, 2), keepdims=True)
        y = (z - m) * lax.rsqrt(v + EPS) * g + b
        return jnp.where(y >= 0, y, NEG_SLOPE * y)

    def conv_ref(z, w_pt, b=None):
        w = jnp.transpose(w_pt, (2, 3, 1, 0))
        y = lax.conv_general_dilated(
            z, w, (1, 1), "SAME",
            dimension_numbers=("NHWC", "HWIO", "NHWC"),
            precision=lax.Precision.HIGHEST)
        if b is not None:
            y = y + b
        return y

    h = bn_act_ref(x, params["norm1_gamma"], params["norm1_beta"])
    if upsample:
        h = upsample_nearest_2x(h)
    h = conv_ref(h, params["conv1_w"], params["conv1_b"])
    h = bn_act_ref(h, params["norm2_gamma"], params["norm2_beta"])
    h = conv_ref(h, params["conv2_w"], params["conv2_b"])

    s = x
    if upsample:
        s = upsample_nearest_2x(s)
    if dim_in != dim_out:
        s = conv_ref(s, params["conv1x1_w"])

    out = (h + s) / math.sqrt(2.0)
    return jnp.transpose(out, (0, 3, 1, 2))


def init_params(key, dim_in, dim_out):
    k1, k2, k3, k4, k5 = jax.random.split(key, 5)
    params = {
        "conv1_w": 0.1 * jax.random.normal(k1, (dim_out, dim_in, 5, 5), jnp.float32),
        "conv1_b": 0.1 * jax.random.normal(k2, (dim_out,), jnp.float32),
        "conv2_w": 0.1 * jax.random.normal(k3, (dim_out, dim_out, 5, 5), jnp.float32),
        "conv2_b": 0.1 * jax.random.normal(k4, (dim_out,), jnp.float32),
        "norm1_gamma": jnp.ones((dim_in,), jnp.float32),
        "norm1_beta": jnp.zeros((dim_in,), jnp.float32),
        "norm2_gamma": jnp.ones((dim_out,), jnp.float32),
        "norm2_beta": jnp.zeros((dim_out,), jnp.float32),
    }
    if dim_in != dim_out:
        params["conv1x1_w"] = 0.1 * jax.random.normal(
            k5, (dim_out, dim_in, 1, 1), jnp.float32)
    return params


if __name__ == "__main__":
    key = jax.random.PRNGKey(0)
    kx, kp = jax.random.split(key)

    N, H, W = 2, 16, 16
    fwd = jax.jit(gen_res_blk_forward, static_argnames=("upsample", "mxu_dtype"))

    # (dim_in, dim_out, upsample, mxu_dtype, tolerance)
    cases = [
        (4, 8, False, jnp.float32, 5e-3),     # f32 MXU path: tight check
        (4, 8, False, jnp.bfloat16, 3e-2),    # bf16 MXU path (default perf config)
        (4, 8, True,  jnp.bfloat16, 3e-2),    # upsample + learned 1x1 shortcut
        (8, 8, True,  jnp.bfloat16, 3e-2),    # identity shortcut
    ]
    for dim_in, dim_out, upsample, mxu_dtype, tol in cases:
        x = jax.random.normal(kx, (N, dim_in, H, W), jnp.float32)   # NCHW like PyTorch
        params = init_params(kp, dim_in, dim_out)

        out = jax.block_until_ready(
            fwd(params, x, upsample=upsample, mxu_dtype=mxu_dtype))
        ref = jax.block_until_ready(_ref_forward(params, x, upsample=upsample))
        np.testing.assert_allclose(np.asarray(out), np.asarray(ref),
                                   rtol=tol, atol=tol)
        f = 2 if upsample else 1
        assert out.shape == (N, dim_out, H * f, W * f), (out.shape, upsample)

    print("KERNEL_OK")
</pallas_src>

<mosaic_0001>
module attributes {stable_mosaic.version = 11 : i64} {
  func.func @_stats_kernel(%arg0: i32, %arg1: memref<512x4xf32, #tpu.memory_space<vmem>>, %arg2: memref<2x4xf32, #tpu.memory_space<vmem>>) attributes {dimension_semantics = [#tpu.dimension_semantics<arbitrary>], iteration_bounds = array<i64: 1>, scalar_prefetch = 0 : i64, scratch_operands = 0 : i64, tpu.core_type = #tpu.core_type<tc>, window_params = [{transform_indices = @transform_0, window_bounds = array<i64: 512, 4>}, {pipeline_mode = #tpu.pipeline_mode<synchronous>, transform_indices = @transform_1, window_bounds = array<i64: 2, 4>}]} {
    %c0 = arith.constant 0 : index
    %c0_0 = arith.constant 0 : index
    %0 = vector.load %arg1[%c0, %c0_0] : memref<512x4xf32, #tpu.memory_space<vmem>>, vector<512x4xf32>
    %cst = arith.constant dense<0.000000e+00> : vector<4xf32>
    %1 = vector.multi_reduction <add>, %0, %cst [0] : vector<512x4xf32> to vector<4xf32>
    %2 = vector.shape_cast %1 : vector<4xf32> to vector<1x4xf32>
    %3 = arith.mulf %0, %0 : vector<512x4xf32>
    %cst_1 = arith.constant dense<0.000000e+00> : vector<4xf32>
    %4 = vector.multi_reduction <add>, %3, %cst_1 [0] : vector<512x4xf32> to vector<4xf32>
    %5 = vector.shape_cast %4 : vector<4xf32> to vector<1x4xf32>
    %c0_i32 = arith.constant 0 : i32
    %6 = arith.cmpi eq, %arg0, %c0_i32 : i32
    %7 = arith.extui %6 : i1 to i32
    %c0_i32_2 = arith.constant 0 : i32
    %8 = arith.cmpi ne, %7, %c0_i32_2 : i32
    scf.if %8 {
      %cst_7 = arith.constant 0.000000e+00 : f32
      %13 = vector.broadcast %cst_7 : f32 to vector<2x4xf32>
      %c0_8 = arith.constant 0 : index
      %c0_9 = arith.constant 0 : index
      %14 = vector.load %arg2[%c0_8, %c0_9] : memref<2x4xf32, #tpu.memory_space<vmem>>, vector<2x4xf32>
      tpu.vector_store %arg2[%c0_8, %c0_9], %13 {strides = array<i32>} : memref<2x4xf32, #tpu.memory_space<vmem>>, vector<2x4xf32>,
    } else {
    }
    %c0_3 = arith.constant 0 : index
    %c0_4 = arith.constant 0 : index
    %9 = vector.load %arg2[%c0_3, %c0_4] : memref<2x4xf32, #tpu.memory_space<vmem>>, vector<2x4xf32>
    %10 = tpu.concatenate %2, %5 in 0 : vector<1x4xf32>, vector<1x4xf32> -> vector<2x4xf32>
    %11 = arith.addf %9, %10 : vector<2x4xf32>
    %c0_5 = arith.constant 0 : index
    %c0_6 = arith.constant 0 : index
    %12 = vector.load %arg2[%c0_5, %c0_6] : memref<2x4xf32, #tpu.memory_space<vmem>>, vector<2x4xf32>
    tpu.vector_store %arg2[%c0_5, %c0_6], %11 {strides = array<i32>} : memref<2x4xf32, #tpu.memory_space<vmem>>, vector<2x4xf32>,
    return
  }
  func.func @transform_0(%arg0: i32) -> (i32, i32) {
    %c0_i32 = arith.constant 0 : i32
    %c0_i32_0 = arith.constant 0 : i32
    return %arg0, %c0_i32 : i32, i32
  }
  func.func @transform_1(%arg0: i32) -> (i32, i32) {
    %c0_i32 = arith.constant 0 : i32
    %c0_i32_0 = arith.constant 0 : i32
    %c0_i32_1 = arith.constant 0 : i32
    return %c0_i32, %c0_i32_0 : i32, i32
  }
}

module attributes {stable_mosaic.version = 11 : i64} {
  func.func @kernel(%arg0: i32, %arg1: i32, %arg2: memref<1x16x16x4xf32, #tpu.memory_space<vmem>>, %arg3: memref<1x4xf32, #tpu.memory_space<vmem>>, %arg4: memref<1x4xf32, #tpu.memory_space<vmem>>, %arg5: memref<5x20x8xf32, #tpu.memory_space<vmem>>, %arg6: memref<1x8xf32, #tpu.memory_space<vmem>>, %arg7: memref<1x256x8xf32, #tpu.memory_space<vmem>>, %arg8: memref<1x2x8xf32, #tpu.memory_space<vmem>>, %arg9: memref<16x20x4xf32, #tpu.memory_space<vmem>>, %arg10: memref<20x16x20xf32, #tpu.memory_space<vmem>>) attributes {dimension_semantics = [#tpu.dimension_semantics<parallel>, #tpu.dimension_semantics<arbitrary>], iteration_bounds = array<i64: 2, 1>, scalar_prefetch = 0 : i64, scratch_operands = 2 : i64, tpu.core_type = #tpu.core_type<tc>, window_params = [{transform_indices = @transform_0, window_bounds = array<i64: 1, 16, 16, 4>}, {pipeline_mode = #tpu.pipeline_mode<synchronous>, transform_indices = @transform_1, window_bounds = array<i64: 1, 4>}, {pipeline_mode = #tpu.pipeline_mode<synchronous>, transform_indices = @transform_2, window_bounds = array<i64: 1, 4>}, {transform_indices = @transform_3, window_bounds = array<i64: 5, 20, 8>}, {transform_indices = @transform_4, window_bounds = array<i64: 1, 8>}, {transform_indices = @transform_5, window_bounds = array<i64: 1, 256, 8>}, {transform_indices = @transform_6, window_bounds = array<i64: 1, 2, 8>}]} {
    %c0_i32 = arith.constant 0 : i32
    %0 = arith.cmpi eq, %arg1, %c0_i32 : i32
    %1 = arith.extui %0 : i1 to i32
    %c0_i32_0 = arith.constant 0 : i32
    %2 = arith.cmpi ne, %1, %c0_i32_0 : i32
    scf.if %2 {
      %c0_41 = arith.constant 0 : index
      %c0_42 = arith.constant 0 : index
      %c0_43 = arith.constant 0 : index
      %c0_44 = arith.constant 0 : index
      %49 = vector.load %arg2[%c0_41, %c0_42, %c0_43, %c0_44] : memref<1x16x16x4xf32, #tpu.memory_space<vmem>>, vector<1x16x16x4xf32>
      %50 = vector.shape_cast %49 : vector<1x16x16x4xf32> to vector<16x16x4xf32>
      %c0_45 = arith.constant 0 : index
      %c0_46 = arith.constant 0 : index
      %51 = vector.load %arg3[%c0_45, %c0_46] : memref<1x4xf32, #tpu.memory_space<vmem>>, vector<1x4xf32>
      %52 = vector.shape_cast %51 : vector<1x4xf32> to vector<1x1x4xf32>
      %53 = vector.broadcast %52 : vector<1x1x4xf32> to vector<16x16x4xf32>
      %54 = arith.mulf %50, %53 : vector<16x16x4xf32>
      %c0_47 = arith.constant 0 : index
      %c0_48 = arith.constant 0 : index
      %55 = vector.load %arg4[%c0_47, %c0_48] : memref<1x4xf32, #tpu.memory_space<vmem>>, vector<1x4xf32>
      %56 = vector.shape_cast %55 : vector<1x4xf32> to vector<1x1x4xf32>
      %57 = vector.broadcast %56 : vector<1x1x4xf32> to vector<16x16x4xf32>
      %58 = arith.addf %54, %57 : vector<16x16x4xf32>
      %cst_49 = arith.constant 0.000000e+00 : f32
      %59 = vector.broadcast %cst_49 : f32 to vector<16x16x4xf32>
      %60 = arith.cmpf oge, %58, %59 : vector<16x16x4xf32>
      %cst_50 = arith.constant 2.000000e-01 : f32
      %61 = vector.broadcast %cst_50 : f32 to vector<16x16x4xf32>
      %62 = arith.mulf %61, %58 : vector<16x16x4xf32>
      %63 = arith.select %60, %58, %62 : vector<16x16x4xi1>, vector<16x16x4xf32>
      %cst_51 = arith.constant 0.000000e+00 : f32
      %64 = vector.broadcast %cst_51 : f32 to vector<16x2x4xf32>
      %c0_52 = arith.constant 0 : index
      %c0_53 = arith.constant 0 : index
      %c0_54 = arith.constant 0 : index
      %65 = vector.load %arg9[%c0_52, %c0_53, %c0_54] : memref<16x20x4xf32, #tpu.memory_space<vmem>>, vector<16x2x4xf32>
      tpu.vector_store %arg9[%c0_52, %c0_53, %c0_54], %64 {strides = array<i32>} : memref<16x20x4xf32, #tpu.memory_space<vmem>>, vector<16x2x4xf32>,
      %c0_55 = arith.constant 0 : index
      %c18 = arith.constant 18 : index
      %c0_56 = arith.constant 0 : index
      %66 = vector.load %arg9[%c0_55, %c18, %c0_56] : memref<16x20x4xf32, #tpu.memory_space<vmem>>, vector<16x2x4xf32>
      tpu.vector_store %arg9[%c0_55, %c18, %c0_56], %64 {strides = array<i32>} : memref<16x20x4xf32, #tpu.memory_space<vmem>>, vector<16x2x4xf32>,
      %c0_57 = arith.constant 0 : index
      %c2_58 = arith.constant 2 : index
      %c0_59 = arith.constant 0 : index
      %67 = vector.load %arg9[%c0_57, %c2_58, %c0_59] : memref<16x20x4xf32, #tpu.memory_space<vmem>>, vector<16x16x4xf32>
      tpu.vector_store %arg9[%c0_57, %c2_58, %c0_59], %63 {strides = array<i32>} : memref<16x20x4xf32, #tpu.memory_space<vmem>>, vector<16x16x4xf32>,
      %c0_60 = arith.constant 0 : index
      %c0_61 = arith.constant 0 : index
      %c0_62 = arith.constant 0 : index
      %68 = vector.load %arg9[%c0_60, %c0_61, %c0_62] : memref<16x20x4xf32, #tpu.memory_space<vmem>>, vector<16x20x4xf32>
      %69 = vector.extract_strided_slice %68 {offsets = [0, 0, 0], sizes = [16, 16, 4], strides = [1, 1, 1]} : vector<16x20x4xf32> to vector<16x16x4xf32>
      %70 = vector.extract_strided_slice %68 {offsets = [0, 1, 0], sizes = [16, 16, 4], strides = [1, 1, 1]} : vector<16x20x4xf32> to vector<16x16x4xf32>
      %71 = vector.extract_strided_slice %68 {offsets = [0, 2, 0], sizes = [16, 16, 4], strides = [1, 1, 1]} : vector<16x20x4xf32> to vector<16x16x4xf32>
      %72 = vector.extract_strided_slice %68 {offsets = [0, 3, 0], sizes = [16, 16, 4], strides = [1, 1, 1]} : vector<16x20x4xf32> to vector<16x16x4xf32>
      %73 = vector.extract_strided_slice %68 {offsets = [0, 4, 0], sizes = [16, 16, 4], strides = [1, 1, 1]} : vector<16x20x4xf32> to vector<16x16x4xf32>
      %74 = tpu.concatenate %69, %70, %71, %72, %73 in 2 : vector<16x16x4xf32>, vector<16x16x4xf32>, vector<16x16x4xf32>, vector<16x16x4xf32>, vector<16x16x4xf32> -> vector<16x16x20xf32>
      %cst_63 = arith.constant 0.000000e+00 : f32
      %75 = vector.broadcast %cst_63 : f32 to vector<2x16x20xf32>
      %c0_64 = arith.constant 0 : index
      %c0_65 = arith.constant 0 : index
      %c0_66 = arith.constant 0 : index
      %76 = vector.load %arg10[%c0_64, %c0_65, %c0_66] : memref<20x16x20xf32, #tpu.memory_space<vmem>>, vector<2x16x20xf32>
      tpu.vector_store %arg10[%c0_64, %c0_65, %c0_66], %75 {strides = array<i32>} : memref<20x16x20xf32, #tpu.memory_space<vmem>>, vector<2x16x20xf32>,
      %c18_67 = arith.constant 18 : index
      %c0_68 = arith.constant 0 : index
      %c0_69 = arith.constant 0 : index
      %77 = vector.load %arg10[%c18_67, %c0_68, %c0_69] : memref<20x16x20xf32, #tpu.memory_space<vmem>>, vector<2x16x20xf32>
      tpu.vector_store %arg10[%c18_67, %c0_68, %c0_69], %75 {strides = array<i32>} : memref<20x16x20xf32, #tpu.memory_space<vmem>>, vector<2x16x20xf32>,
      %c2_70 = arith.constant 2 : index
      %c0_71 = arith.constant 0 : index
      %c0_72 = arith.constant 0 : index
      %78 = vector.load %arg10[%c2_70, %c0_71, %c0_72] : memref<20x16x20xf32, #tpu.memory_space<vmem>>, vector<16x16x20xf32>
      tpu.vector_store %arg10[%c2_70, %c0_71, %c0_72], %74 {strides = array<i32>} : memref<20x16x20xf32, #tpu.memory_space<vmem>>, vector<16x16x20xf32>,
    } else {
    }
    %cst = arith.constant 0.000000e+00 : f32
    %3 = vector.broadcast %cst : f32 to vector<256x8xf32>
    %c0 = arith.constant 0 : index
    %c0_1 = arith.constant 0 : index
    %c0_2 = arith.constant 0 : index
    %4 = vector.load %arg10[%c0, %c0_1, %c0_2] : memref<20x16x20xf32, #tpu.memory_space<vmem>>, vector<16x16x20xf32>
    %5 = vector.shape_cast %4 : vector<16x16x20xf32> to vector<256x20xf32>
    %c0_3 = arith.constant 0 : index
    %c0_4 = arith.constant 0 : index
    %c0_5 = arith.constant 0 : index
    %6 = vector.load %arg5[%c0_3, %c0_4, %c0_5] : memref<5x20x8xf32, #tpu.memory_space<vmem>>, vector<1x20x8xf32>
    %7 = vector.shape_cast %6 : vector<1x20x8xf32> to vector<20x8xf32>
    %cst_6 = arith.constant dense<0.000000e+00> : vector<256x8xf32>
    %8 = tpu.matmul %5, %7, %cst_6 {dimension_numbers = #tpu.dot_dimension_numbers<[1], [0], [0], [1], [0, 0, 1, 1], [], []>} : vector<256x20xf32>, vector<20x8xf32>, vector<256x8xf32> -> vector<256x8xf32>
    %9 = arith.addf %3, %8 : vector<256x8xf32>
    %c1 = arith.constant 1 : index
    %c0_7 = arith.constant 0 : index
    %c0_8 = arith.constant 0 : index
    %10 = vector.load %arg10[%c1, %c0_7, %c0_8] : memref<20x16x20xf32, #tpu.memory_space<vmem>>, vector<16x16x20xf32>
    %11 = vector.shape_cast %10 : vector<16x16x20xf32> to vector<256x20xf32>
    %c1_9 = arith.constant 1 : index
    %c0_10 = arith.constant 0 : index
    %c0_11 = arith.constant 0 : index
    %12 = vector.load %arg5[%c1_9, %c0_10, %c0_11] : memref<5x20x8xf32, #tpu.memory_space<vmem>>, vector<1x20x8xf32>
    %13 = vector.shape_cast %12 : vector<1x20x8xf32> to vector<20x8xf32>
    %cst_12 = arith.constant dense<0.000000e+00> : vector<256x8xf32>
    %14 = tpu.matmul %11, %13, %cst_12 {dimension_numbers = #tpu.dot_dimension_numbers<[1], [0], [0], [1], [0, 0, 1, 1], [], []>} : vector<256x20xf32>, vector<20x8xf32>, vector<256x8xf32> -> vector<256x8xf32>
    %15 = arith.addf %9, %14 : vector<256x8xf32>
    %c2 = arith.constant 2 : index
    %c0_13 = arith.constant 0 : index
    %c0_14 = arith.constant 0 : index
    %16 = vector.load %arg10[%c2, %c0_13, %c0_14] : memref<20x16x20xf32, #tpu.memory_space<vmem>>, vector<16x16x20xf32>
    %17 = vector.shape_cast %16 : vector<16x16x20xf32> to vector<256x20xf32>
    %c2_15 = arith.constant 2 : index
    %c0_16 = arith.constant 0 : index
    %c0_17 = arith.constant 0 : index
    %18 = vector.load %arg5[%c2_15, %c0_16, %c0_17] : memref<5x20x8xf32, #tpu.memory_space<vmem>>, vector<1x20x8xf32>
    %19 = vector.shape_cast %18 : vector<1x20x8xf32> to vector<20x8xf32>
    %cst_18 = arith.constant dense<0.000000e+00> : vector<256x8xf32>
    %20 = tpu.matmul %17, %19, %cst_18 {dimension_numbers = #tpu.dot_dimension_numbers<[1], [0], [0], [1], [0, 0, 1, 1], [], []>} : vector<256x20xf32>, vector<20x8xf32>, vector<256x8xf32> -> vector<256x8xf32>
    %21 = arith.addf %15, %20 : vector<256x8xf32>
    %c3 = arith.constant 3 : index
    %c0_19 = arith.constant 0 : index
    %c0_20 = arith.constant 0 : index
    %22 = vector.load %arg10[%c3, %c0_19, %c0_20] : memref<20x16x20xf32, #tpu.memory_space<vmem>>, vector<16x16x20xf32>
    %23 = vector.shape_cast %22 : vector<16x16x20xf32> to vector<256x20xf32>
    %c3_21 = arith.constant 3 : index
    %c0_22 = arith.constant 0 : index
    %c0_23 = arith.constant 0 : index
    %24 = vector.load %arg5[%c3_21, %c0_22, %c0_23] : memref<5x20x8xf32, #tpu.memory_space<vmem>>, vector<1x20x8xf32>
    %25 = vector.shape_cast %24 : vector<1x20x8xf32> to vector<20x8xf32>
    %cst_24 = arith.constant dense<0.000000e+00> : vector<256x8xf32>
    %26 = tpu.matmul %23, %25, %cst_24 {dimension_numbers = #tpu.dot_dimension_numbers<[1], [0], [0], [1], [0, 0, 1, 1], [], []>} : vector<256x20xf32>, vector<20x8xf32>, vector<256x8xf32> -> vector<256x8xf32>
    %27 = arith.addf %21, %26 : vector<256x8xf32>
    %c4 = arith.constant 4 : index
    %c0_25 = arith.constant 0 : index
    %c0_26 = arith.constant 0 : index
    %28 = vector.load %arg10[%c4, %c0_25, %c0_26] : memref<20x16x20xf32, #tpu.memory_space<vmem>>, vector<16x16x20xf32>
    %29 = vector.shape_cast %28 : vector<16x16x20xf32> to vector<256x20xf32>
    %c4_27 = arith.constant 4 : index
    %c0_28 = arith.constant 0 : index
    %c0_29 = arith.constant 0 : index
    %30 = vector.load %arg5[%c4_27, %c0_28, %c0_29] : memref<5x20x8xf32, #tpu.memory_space<vmem>>, vector<1x20x8xf32>
    %31 = vector.shape_cast %30 : vector<1x20x8xf32> to vector<20x8xf32>
    %cst_30 = arith.constant dense<0.000000e+00> : vector<256x8xf32>
    %32 = tpu.matmul %29, %31, %cst_30 {dimension_numbers = #tpu.dot_dimension_numbers<[1], [0], [0], [1], [0, 0, 1, 1], [], []>} : vector<256x20xf32>, vector<20x8xf32>, vector<256x8xf32> -> vector<256x8xf32>
    %33 = arith.addf %27, %32 : vector<256x8xf32>
    %c0_31 = arith.constant 0 : index
    %c0_32 = arith.constant 0 : index
    %34 = vector.load %arg6[%c0_31, %c0_32] : memref<1x8xf32, #tpu.memory_space<vmem>>, vector<1x8xf32>
    %35 = vector.broadcast %34 : vector<1x8xf32> to vector<256x8xf32>
    %36 = arith.addf %33, %35 : vector<256x8xf32>
    %cst_33 = arith.constant dense<0.000000e+00> : vector<8xf32>
    %37 = vector.multi_reduction <add>, %36, %cst_33 [0] : vector<256x8xf32> to vector<8xf32>
    %38 = vector.shape_cast %37 : vector<8xf32> to vector<1x8xf32>
    %39 = arith.mulf %36, %36 : vector<256x8xf32>
    %cst_34 = arith.constant dense<0.000000e+00> : vector<8xf32>
    %40 = vector.multi_reduction <add>, %39, %cst_34 [0] : vector<256x8xf32> to vector<8xf32>
    %41 = vector.shape_cast %40 : vector<8xf32> to vector<1x8xf32>
    %42 = tpu.concatenate %38, %41 in 0 : vector<1x8xf32>, vector<1x8xf32> -> vector<2x8xf32>
    %c0_35 = arith.constant 0 : index
    %c0_36 = arith.constant 0 : index
    %c0_37 = arith.constant 0 : index
    %43 = vector.load %arg8[%c0_35, %c0_36, %c0_37] : memref<1x2x8xf32, #tpu.memory_space<vmem>>, vector<1x2x8xf32>
    %44 = vector.shape_cast %43 : vector<1x2x8xf32> to vector<2x8xf32>
    %45 = vector.shape_cast %42 : vector<2x8xf32> to vector<1x2x8xf32>
    tpu.vector_store %arg8[%c0_35, %c0_36, %c0_37], %45 {strides = array<i32>} : memref<1x2x8xf32, #tpu.memory_space<vmem>>, vector<1x2x8xf32>,
    %c0_38 = arith.constant 0 : index
    %c0_39 = arith.constant 0 : index
    %c0_40 = arith.constant 0 : index
    %46 = vector.load %arg7[%c0_38, %c0_39, %c0_40] : memref<1x256x8xf32, #tpu.memory_space<vmem>>, vector<1x256x8xf32>
    %47 = vector.shape_cast %46 : vector<1x256x8xf32> to vector<256x8xf32>
    %48 = vector.shape_cast %36 : vector<256x8xf32> to vector<1x256x8xf32>
    tpu.vector_store %arg7[%c0_38, %c0_39, %c0_40], %48 {strides = array<i32>} : memref<1x256x8xf32, #tpu.memory_space<vmem>>, vector<1x256x8xf32>,
    return
  }
  func.func @transform_0(%arg0: i32, %arg1: i32) -> (i32, i32, i32, i32) {
    %c0_i32 = arith.constant 0 : i32
    %c0_i32_0 = arith.constant 0 : i32
    %c0_i32_1 = arith.constant 0 : i32
    %c0_i32_2 = arith.constant 0 : i32
    return %arg0, %c0_i32, %c0_i32_0, %c0_i32_1 : i32, i32, i32, i32
  }
  func.func @transform_1(%arg0: i32, %arg1: i32) -> (i32, i32) {
    %c0_i32 = arith.constant 0 : i32
    %c0_i32_0 = arith.constant 0 : i32
    %c0_i32_1 = arith.constant 0 : i32
    return %c0_i32, %c0_i32_0 : i32, i32
  }
  func.func @transform_2(%arg0: i32, %arg1: i32) -> (i32, i32) {
    %c0_i32 = arith.constant 0 : i32
    %c0_i32_0 = arith.constant 0 : i32
    %c0_i32_1 = arith.constant 0 : i32
    return %c0_i32, %c0_i32_0 : i32, i32
  }
  func.func @transform_3(%arg0: i32, %arg1: i32) -> (i32, i32, i32) {
    %c0_i32 = arith.constant 0 : i32
    %c0_i32_0 = arith.constant 0 : i32
    %c0_i32_1 = arith.constant 0 : i32
    return %c0_i32, %c0_i32_0, %arg1 : i32, i32, i32
  }
  func.func @transform_4(%arg0: i32, %arg1: i32) -> (i32, i32) {
    %c0_i32 = arith.constant 0 : i32
    %c0_i32_0 = arith.constant 0 : i32
    return %c0_i32, %arg1 : i32, i32
  }
  func.func @transform_5(%arg0: i32, %arg1: i32) -> (i32, i32, i32) {
    %c0_i32 = arith.constant 0 : i32
    %c0_i32_0 = arith.constant 0 : i32
    return %arg0, %c0_i32, %arg1 : i32, i32, i32
  }
  func.func @transform_6(%arg0: i32, %arg1: i32) -> (i32, i32, i32) {
    %c0_i32 = arith.constant 0 : i32
    %c0_i32_0 = arith.constant 0 : i32
    return %arg0, %c0_i32, %arg1 : i32, i32, i32
  }
}

module attributes {stable_mosaic.version = 11 : i64} {
  func.func @kernel(%arg0: i32, %arg1: memref<512x4xf32, #tpu.memory_space<vmem>>, %arg2: memref<4x8xf32, #tpu.memory_space<vmem>>, %arg3: memref<512x8xf32, #tpu.memory_space<vmem>>) attributes {dimension_semantics = [#tpu.dimension_semantics<parallel>], iteration_bounds = array<i64: 1>, scalar_prefetch = 0 : i64, scratch_operands = 0 : i64, tpu.core_type = #tpu.core_type<tc>, window_params = [{transform_indices = @transform_0, window_bounds = array<i64: 512, 4>}, {pipeline_mode = #tpu.pipeline_mode<synchronous>, transform_indices = @transform_1, window_bounds = array<i64: 4, 8>}, {transform_indices = @transform_2, window_bounds = array<i64: 512, 8>}]} {
    %c0 = arith.constant 0 : index
    %c0_0 = arith.constant 0 : index
    %0 = vector.load %arg1[%c0, %c0_0] : memref<512x4xf32, #tpu.memory_space<vmem>>, vector<512x4xf32>
    %c0_1 = arith.constant 0 : index
    %c0_2 = arith.constant 0 : index
    %1 = vector.load %arg2[%c0_1, %c0_2] : memref<4x8xf32, #tpu.memory_space<vmem>>, vector<4x8xf32>
    %cst = arith.constant dense<0.000000e+00> : vector<512x8xf32>
    %2 = tpu.matmul %0, %1, %cst {dimension_numbers = #tpu.dot_dimension_numbers<[1], [0], [0], [1], [0, 0, 1, 1], [], []>} : vector<512x4xf32>, vector<4x8xf32>, vector<512x8xf32> -> vector<512x8xf32>
    %c0_3 = arith.constant 0 : index
    %c0_4 = arith.constant 0 : index
    %3 = vector.load %arg3[%c0_3, %c0_4] : memref<512x8xf32, #tpu.memory_space<vmem>>, vector<512x8xf32>
    tpu.vector_store %arg3[%c0_3, %c0_4], %2 {strides = array<i32>} : memref<512x8xf32, #tpu.memory_space<vmem>>, vector<512x8xf32>,
    return
  }
  func.func @transform_0(%arg0: i32) -> (i32, i32) {
    %c0_i32 = arith.constant 0 : i32
    %c0_i32_0 = arith.constant 0 : i32
    return %arg0, %c0_i32 : i32, i32
  }
  func.func @transform_1(%arg0: i32) -> (i32, i32) {
    %c0_i32 = arith.constant 0 : i32
    %c0_i32_0 = arith.constant 0 : i32
    %c0_i32_1 = arith.constant 0 : i32
    return %c0_i32, %c0_i32_0 : i32, i32
  }
  func.func @transform_2(%arg0: i32) -> (i32, i32) {
    %c0_i32 = arith.constant 0 : i32
    %c0_i32_0 = arith.constant 0 : i32
    return %arg0, %c0_i32 : i32, i32
  }
}

module attributes {stable_mosaic.version = 11 : i64} {
  func.func @kernel(%arg0: i32, %arg1: i32, %arg2: memref<1x16x16x8xf32, #tpu.memory_space<vmem>>, %arg3: memref<1x8xf32, #tpu.memory_space<vmem>>, %arg4: memref<1x8xf32, #tpu.memory_space<vmem>>, %arg5: memref<5x40x8xf32, #tpu.memory_space<vmem>>, %arg6: memref<1x8xf32, #tpu.memory_space<vmem>>, %arg7: memref<1x256x8xf32, #tpu.memory_space<vmem>>, %arg8: memref<1x256x8xf32, #tpu.memory_space<vmem>>, %arg9: memref<16x20x8xf32, #tpu.memory_space<vmem>>, %arg10: memref<20x16x40xf32, #tpu.memory_space<vmem>>) attributes {dimension_semantics = [#tpu.dimension_semantics<parallel>, #tpu.dimension_semantics<arbitrary>], iteration_bounds = array<i64: 2, 1>, scalar_prefetch = 0 : i64, scratch_operands = 2 : i64, tpu.core_type = #tpu.core_type<tc>, window_params = [{transform_indices = @transform_0, window_bounds = array<i64: 1, 16, 16, 8>}, {pipeline_mode = #tpu.pipeline_mode<synchronous>, transform_indices = @transform_1, window_bounds = array<i64: 1, 8>}, {pipeline_mode = #tpu.pipeline_mode<synchronous>, transform_indices = @transform_2, window_bounds = array<i64: 1, 8>}, {transform_indices = @transform_3, window_bounds = array<i64: 5, 40, 8>}, {transform_indices = @transform_4, window_bounds = array<i64: 1, 8>}, {transform_indices = @transform_5, window_bounds = array<i64: 1, 256, 8>}, {transform_indices = @transform_6, window_bounds = array<i64: 1, 256, 8>}]} {
    %c0_i32 = arith.constant 0 : i32
    %0 = arith.cmpi eq, %arg1, %c0_i32 : i32
    %1 = arith.extui %0 : i1 to i32
    %c0_i32_0 = arith.constant 0 : i32
    %2 = arith.cmpi ne, %1, %c0_i32_0 : i32
    scf.if %2 {
      %c0_40 = arith.constant 0 : index
      %c0_41 = arith.constant 0 : index
      %c0_42 = arith.constant 0 : index
      %c0_43 = arith.constant 0 : index
      %45 = vector.load %arg2[%c0_40, %c0_41, %c0_42, %c0_43] : memref<1x16x16x8xf32, #tpu.memory_space<vmem>>, vector<1x16x16x8xf32>
      %46 = vector.shape_cast %45 : vector<1x16x16x8xf32> to vector<16x16x8xf32>
      %c0_44 = arith.constant 0 : index
      %c0_45 = arith.constant 0 : index
      %47 = vector.load %arg3[%c0_44, %c0_45] : memref<1x8xf32, #tpu.memory_space<vmem>>, vector<1x8xf32>
      %48 = vector.shape_cast %47 : vector<1x8xf32> to vector<1x1x8xf32>
      %49 = vector.broadcast %48 : vector<1x1x8xf32> to vector<16x16x8xf32>
      %50 = arith.mulf %46, %49 : vector<16x16x8xf32>
      %c0_46 = arith.constant 0 : index
      %c0_47 = arith.constant 0 : index
      %51 = vector.load %arg4[%c0_46, %c0_47] : memref<1x8xf32, #tpu.memory_space<vmem>>, vector<1x8xf32>
      %52 = vector.shape_cast %51 : vector<1x8xf32> to vector<1x1x8xf32>
      %53 = vector.broadcast %52 : vector<1x1x8xf32> to vector<16x16x8xf32>
      %54 = arith.addf %50, %53 : vector<16x16x8xf32>
      %cst_48 = arith.constant 0.000000e+00 : f32
      %55 = vector.broadcast %cst_48 : f32 to vector<16x16x8xf32>
      %56 = arith.cmpf oge, %54, %55 : vector<16x16x8xf32>
      %cst_49 = arith.constant 2.000000e-01 : f32
      %57 = vector.broadcast %cst_49 : f32 to vector<16x16x8xf32>
      %58 = arith.mulf %57, %54 : vector<16x16x8xf32>
      %59 = arith.select %56, %54, %58 : vector<16x16x8xi1>, vector<16x16x8xf32>
      %cst_50 = arith.constant 0.000000e+00 : f32
      %60 = vector.broadcast %cst_50 : f32 to vector<16x2x8xf32>
      %c0_51 = arith.constant 0 : index
      %c0_52 = arith.constant 0 : index
      %c0_53 = arith.constant 0 : index
      %61 = vector.load %arg9[%c0_51, %c0_52, %c0_53] : memref<16x20x8xf32, #tpu.memory_space<vmem>>, vector<16x2x8xf32>
      tpu.vector_store %arg9[%c0_51, %c0_52, %c0_53], %60 {strides = array<i32>} : memref<16x20x8xf32, #tpu.memory_space<vmem>>, vector<16x2x8xf32>,
      %c0_54 = arith.constant 0 : index
      %c18 = arith.constant 18 : index
      %c0_55 = arith.constant 0 : index
      %62 = vector.load %arg9[%c0_54, %c18, %c0_55] : memref<16x20x8xf32, #tpu.memory_space<vmem>>, vector<16x2x8xf32>
      tpu.vector_store %arg9[%c0_54, %c18, %c0_55], %60 {strides = array<i32>} : memref<16x20x8xf32, #tpu.memory_space<vmem>>, vector<16x2x8xf32>,
      %c0_56 = arith.constant 0 : index
      %c2_57 = arith.constant 2 : index
      %c0_58 = arith.constant 0 : index
      %63 = vector.load %arg9[%c0_56, %c2_57, %c0_58] : memref<16x20x8xf32, #tpu.memory_space<vmem>>, vector<16x16x8xf32>
      tpu.vector_store %arg9[%c0_56, %c2_57, %c0_58], %59 {strides = array<i32>} : memref<16x20x8xf32, #tpu.memory_space<vmem>>, vector<16x16x8xf32>,
      %c0_59 = arith.constant 0 : index
      %c0_60 = arith.constant 0 : index
      %c0_61 = arith.constant 0 : index
      %64 = vector.load %arg9[%c0_59, %c0_60, %c0_61] : memref<16x20x8xf32, #tpu.memory_space<vmem>>, vector<16x20x8xf32>
      %65 = vector.extract_strided_slice %64 {offsets = [0, 0, 0], sizes = [16, 16, 8], strides = [1, 1, 1]} : vector<16x20x8xf32> to vector<16x16x8xf32>
      %66 = vector.extract_strided_slice %64 {offsets = [0, 1, 0], sizes = [16, 16, 8], strides = [1, 1, 1]} : vector<16x20x8xf32> to vector<16x16x8xf32>
      %67 = vector.extract_strided_slice %64 {offsets = [0, 2, 0], sizes = [16, 16, 8], strides = [1, 1, 1]} : vector<16x20x8xf32> to vector<16x16x8xf32>
      %68 = vector.extract_strided_slice %64 {offsets = [0, 3, 0], sizes = [16, 16, 8], strides = [1, 1, 1]} : vector<16x20x8xf32> to vector<16x16x8xf32>
      %69 = vector.extract_strided_slice %64 {offsets = [0, 4, 0], sizes = [16, 16, 8], strides = [1, 1, 1]} : vector<16x20x8xf32> to vector<16x16x8xf32>
      %70 = tpu.concatenate %65, %66, %67, %68, %69 in 2 : vector<16x16x8xf32>, vector<16x16x8xf32>, vector<16x16x8xf32>, vector<16x16x8xf32>, vector<16x16x8xf32> -> vector<16x16x40xf32>
      %cst_62 = arith.constant 0.000000e+00 : f32
      %71 = vector.broadcast %cst_62 : f32 to vector<2x16x40xf32>
      %c0_63 = arith.constant 0 : index
      %c0_64 = arith.constant 0 : index
      %c0_65 = arith.constant 0 : index
      %72 = vector.load %arg10[%c0_63, %c0_64, %c0_65] : memref<20x16x40xf32, #tpu.memory_space<vmem>>, vector<2x16x40xf32>
      tpu.vector_store %arg10[%c0_63, %c0_64, %c0_65], %71 {strides = array<i32>} : memref<20x16x40xf32, #tpu.memory_space<vmem>>, vector<2x16x40xf32>,
      %c18_66 = arith.constant 18 : index
      %c0_67 = arith.constant 0 : index
      %c0_68 = arith.constant 0 : index
      %73 = vector.load %arg10[%c18_66, %c0_67, %c0_68] : memref<20x16x40xf32, #tpu.memory_space<vmem>>, vector<2x16x40xf32>
      tpu.vector_store %arg10[%c18_66, %c0_67, %c0_68], %71 {strides = array<i32>} : memref<20x16x40xf32, #tpu.memory_space<vmem>>, vector<2x16x40xf32>,
      %c2_69 = arith.constant 2 : index
      %c0_70 = arith.constant 0 : index
      %c0_71 = arith.constant 0 : index
      %74 = vector.load %arg10[%c2_69, %c0_70, %c0_71] : memref<20x16x40xf32, #tpu.memory_space<vmem>>, vector<16x16x40xf32>
      tpu.vector_store %arg10[%c2_69, %c0_70, %c0_71], %70 {strides = array<i32>} : memref<20x16x40xf32, #tpu.memory_space<vmem>>, vector<16x16x40xf32>,
    } else {
    }
    %cst = arith.constant 0.000000e+00 : f32
    %3 = vector.broadcast %cst : f32 to vector<256x8xf32>
    %c0 = arith.constant 0 : index
    %c0_1 = arith.constant 0 : index
    %c0_2 = arith.constant 0 : index
    %4 = vector.load %arg10[%c0, %c0_1, %c0_2] : memref<20x16x40xf32, #tpu.memory_space<vmem>>, vector<16x16x40xf32>
    %5 = vector.shape_cast %4 : vector<16x16x40xf32> to vector<256x40xf32>
    %c0_3 = arith.constant 0 : index
    %c0_4 = arith.constant 0 : index
    %c0_5 = arith.constant 0 : index
    %6 = vector.load %arg5[%c0_3, %c0_4, %c0_5] : memref<5x40x8xf32, #tpu.memory_space<vmem>>, vector<1x40x8xf32>
    %7 = vector.shape_cast %6 : vector<1x40x8xf32> to vector<40x8xf32>
    %cst_6 = arith.constant dense<0.000000e+00> : vector<256x8xf32>
    %8 = tpu.matmul %5, %7, %cst_6 {dimension_numbers = #tpu.dot_dimension_numbers<[1], [0], [0], [1], [0, 0, 1, 1], [], []>} : vector<256x40xf32>, vector<40x8xf32>, vector<256x8xf32> -> vector<256x8xf32>
    %9 = arith.addf %3, %8 : vector<256x8xf32>
    %c1 = arith.constant 1 : index
    %c0_7 = arith.constant 0 : index
    %c0_8 = arith.constant 0 : index
    %10 = vector.load %arg10[%c1, %c0_7, %c0_8] : memref<20x16x40xf32, #tpu.memory_space<vmem>>, vector<16x16x40xf32>
    %11 = vector.shape_cast %10 : vector<16x16x40xf32> to vector<256x40xf32>
    %c1_9 = arith.constant 1 : index
    %c0_10 = arith.constant 0 : index
    %c0_11 = arith.constant 0 : index
    %12 = vector.load %arg5[%c1_9, %c0_10, %c0_11] : memref<5x40x8xf32, #tpu.memory_space<vmem>>, vector<1x40x8xf32>
    %13 = vector.shape_cast %12 : vector<1x40x8xf32> to vector<40x8xf32>
    %cst_12 = arith.constant dense<0.000000e+00> : vector<256x8xf32>
    %14 = tpu.matmul %11, %13, %cst_12 {dimension_numbers = #tpu.dot_dimension_numbers<[1], [0], [0], [1], [0, 0, 1, 1], [], []>} : vector<256x40xf32>, vector<40x8xf32>, vector<256x8xf32> -> vector<256x8xf32>
    %15 = arith.addf %9, %14 : vector<256x8xf32>
    %c2 = arith.constant 2 : index
    %c0_13 = arith.constant 0 : index
    %c0_14 = arith.constant 0 : index
    %16 = vector.load %arg10[%c2, %c0_13, %c0_14] : memref<20x16x40xf32, #tpu.memory_space<vmem>>, vector<16x16x40xf32>
    %17 = vector.shape_cast %16 : vector<16x16x40xf32> to vector<256x40xf32>
    %c2_15 = arith.constant 2 : index
    %c0_16 = arith.constant 0 : index
    %c0_17 = arith.constant 0 : index
    %18 = vector.load %arg5[%c2_15, %c0_16, %c0_17] : memref<5x40x8xf32, #tpu.memory_space<vmem>>, vector<1x40x8xf32>
    %19 = vector.shape_cast %18 : vector<1x40x8xf32> to vector<40x8xf32>
    %cst_18 = arith.constant dense<0.000000e+00> : vector<256x8xf32>
    %20 = tpu.matmul %17, %19, %cst_18 {dimension_numbers = #tpu.dot_dimension_numbers<[1], [0], [0], [1], [0, 0, 1, 1], [], []>} : vector<256x40xf32>, vector<40x8xf32>, vector<256x8xf32> -> vector<256x8xf32>
    %21 = arith.addf %15, %20 : vector<256x8xf32>
    %c3 = arith.constant 3 : index
    %c0_19 = arith.constant 0 : index
    %c0_20 = arith.constant 0 : index
    %22 = vector.load %arg10[%c3, %c0_19, %c0_20] : memref<20x16x40xf32, #tpu.memory_space<vmem>>, vector<16x16x40xf32>
    %23 = vector.shape_cast %22 : vector<16x16x40xf32> to vector<256x40xf32>
    %c3_21 = arith.constant 3 : index
    %c0_22 = arith.constant 0 : index
    %c0_23 = arith.constant 0 : index
    %24 = vector.load %arg5[%c3_21, %c0_22, %c0_23] : memref<5x40x8xf32, #tpu.memory_space<vmem>>, vector<1x40x8xf32>
    %25 = vector.shape_cast %24 : vector<1x40x8xf32> to vector<40x8xf32>
    %cst_24 = arith.constant dense<0.000000e+00> : vector<256x8xf32>
    %26 = tpu.matmul %23, %25, %cst_24 {dimension_numbers = #tpu.dot_dimension_numbers<[1], [0], [0], [1], [0, 0, 1, 1], [], []>} : vector<256x40xf32>, vector<40x8xf32>, vector<256x8xf32> -> vector<256x8xf32>
    %27 = arith.addf %21, %26 : vector<256x8xf32>
    %c4 = arith.constant 4 : index
    %c0_25 = arith.constant 0 : index
    %c0_26 = arith.constant 0 : index
    %28 = vector.load %arg10[%c4, %c0_25, %c0_26] : memref<20x16x40xf32, #tpu.memory_space<vmem>>, vector<16x16x40xf32>
    %29 = vector.shape_cast %28 : vector<16x16x40xf32> to vector<256x40xf32>
    %c4_27 = arith.constant 4 : index
    %c0_28 = arith.constant 0 : index
    %c0_29 = arith.constant 0 : index
    %30 = vector.load %arg5[%c4_27, %c0_28, %c0_29] : memref<5x40x8xf32, #tpu.memory_space<vmem>>, vector<1x40x8xf32>
    %31 = vector.shape_cast %30 : vector<1x40x8xf32> to vector<40x8xf32>
    %cst_30 = arith.constant dense<0.000000e+00> : vector<256x8xf32>
    %32 = tpu.matmul %29, %31, %cst_30 {dimension_numbers = #tpu.dot_dimension_numbers<[1], [0], [0], [1], [0, 0, 1, 1], [], []>} : vector<256x40xf32>, vector<40x8xf32>, vector<256x8xf32> -> vector<256x8xf32>
    %33 = arith.addf %27, %32 : vector<256x8xf32>
    %c0_31 = arith.constant 0 : index
    %c0_32 = arith.constant 0 : index
    %34 = vector.load %arg6[%c0_31, %c0_32] : memref<1x8xf32, #tpu.memory_space<vmem>>, vector<1x8xf32>
    %35 = vector.broadcast %34 : vector<1x8xf32> to vector<256x8xf32>
    %36 = arith.addf %33, %35 : vector<256x8xf32>
    %c0_33 = arith.constant 0 : index
    %c0_34 = arith.constant 0 : index
    %c0_35 = arith.constant 0 : index
    %37 = vector.load %arg7[%c0_33, %c0_34, %c0_35] : memref<1x256x8xf32, #tpu.memory_space<vmem>>, vector<1x256x8xf32>
    %38 = vector.shape_cast %37 : vector<1x256x8xf32> to vector<256x8xf32>
    %39 = arith.addf %36, %38 : vector<256x8xf32>
    %cst_36 = arith.constant 0.707106769 : f32
    %40 = vector.broadcast %cst_36 : f32 to vector<256x8xf32>
    %41 = arith.mulf %39, %40 : vector<256x8xf32>
    %c0_37 = arith.constant 0 : index
    %c0_38 = arith.constant 0 : index
    %c0_39 = arith.constant 0 : index
    %42 = vector.load %arg8[%c0_37, %c0_38, %c0_39] : memref<1x256x8xf32, #tpu.memory_space<vmem>>, vector<1x256x8xf32>
    %43 = vector.shape_cast %42 : vector<1x256x8xf32> to vector<256x8xf32>
    %44 = vector.shape_cast %41 : vector<256x8xf32> to vector<1x256x8xf32>
    tpu.vector_store %arg8[%c0_37, %c0_38, %c0_39], %44 {strides = array<i32>} : memref<1x256x8xf32, #tpu.memory_space<vmem>>, vector<1x256x8xf32>,
    return
  }
  func.func @transform_0(%arg0: i32, %arg1: i32) -> (i32, i32, i32, i32) {
    %c0_i32 = arith.constant 0 : i32
    %c0_i32_0 = arith.constant 0 : i32
    %c0_i32_1 = arith.constant 0 : i32
    %c0_i32_2 = arith.constant 0 : i32
    return %arg0, %c0_i32, %c0_i32_0, %c0_i32_1 : i32, i32, i32, i32
  }
  func.func @transform_1(%arg0: i32, %arg1: i32) -> (i32, i32) {
    %c0_i32 = arith.constant 0 : i32
    %c0_i32_0 = arith.constant 0 : i32
    %c0_i32_1 = arith.constant 0 : i32
    return %c0_i32, %c0_i32_0 : i32, i32
  }
  func.func @transform_2(%arg0: i32, %arg1: i32) -> (i32, i32) {
    %c0_i32 = arith.constant 0 : i32
    %c0_i32_0 = arith.constant 0 : i32
    %c0_i32_1 = arith.constant 0 : i32
    return %c0_i32, %c0_i32_0 : i32, i32
  }
  func.func @transform_3(%arg0: i32, %arg1: i32) -> (i32, i32, i32) {
    %c0_i32 = arith.constant 0 : i32
    %c0_i32_0 = arith.constant 0 : i32
    %c0_i32_1 = arith.constant 0 : i32
    return %c0_i32, %c0_i32_0, %arg1 : i32, i32, i32
  }
  func.func @transform_4(%arg0: i32, %arg1: i32) -> (i32, i32) {
    %c0_i32 = arith.constant 0 : i32
    %c0_i32_0 = arith.constant 0 : i32
    return %c0_i32, %arg1 : i32, i32
  }
  func.func @transform_5(%arg0: i32, %arg1: i32) -> (i32, i32, i32) {
    %c0_i32 = arith.constant 0 : i32
    %c0_i32_0 = arith.constant 0 : i32
    return %arg0, %c0_i32, %arg1 : i32, i32, i32
  }
  func.func @transform_6(%arg0: i32, %arg1: i32) -> (i32, i32, i32) {
    %c0_i32 = arith.constant 0 : i32
    %c0_i32_0 = arith.constant 0 : i32
    return %arg0, %c0_i32, %arg1 : i32, i32, i32
  }
}

</mosaic_0001>

<llo_original>
// kernel: gen_res_blk_forward.4
$region0: #{gen_res_blk_forward.4}
  #allocation0 [shape = 'u32[]', space=smem, size = 0x4, offset = 0x4, fixed_abs, tag = 'smem constant byte address 0x4 - core index']
  #allocation1 [shape = 'u32[72,128]{1,0:T(1,128)}', space=vmem, size = 0x9000, scoped, tag = 'internal scratch']
  %s0 = inlined_call_operand.vmem [shape: f32[512,4], index: 0, kind: input, shape index: {}]
  %s1 = inlined_call_operand.vmem [shape: f32[2,4], index: 1, kind: output, shape index: {}]
  %s2 = sld [smem:[#allocation0]]
  $region18: #{gen_res_blk_forward.4} parent=0
    _
  %s4 = ssub.s32 1, %s2
  %s5 = scalar_select 0, %s4, %s2
  // Predicated region
  $region2: #{gen_res_blk_forward.4} parent=0 // pred_check
    _
  $region3: #{gen_res_blk_forward.4} parent=0 // pred_check_branch
    %7 = sbr.rel (0) target = $region5
  $region4: #{gen_res_blk_forward.4} parent=0 // pred_region
    _
  $region5: #{gen_res_blk_forward.4} parent=0 // pred_fallthru
    _
  %v8 = vld [vmem:[%s0] sm:$0xff]
  %v9 = vld [vmem:[%s0 + $0x8] sm:$0xff]
  %v10 = vld [vmem:[%s0 + $0x10] sm:$0xff]
  %v11 = vld [vmem:[%s0 + $0x18] sm:$0xff]
  %v12 = vld [vmem:[%s0 + $0x20] sm:$0xff]
  %v13 = vld [vmem:[%s0 + $0x28] sm:$0xff]
  %v14 = vld [vmem:[%s0 + $0x30] sm:$0xff]
  %v15 = vld [vmem:[%s0 + $0x38] sm:$0xff]
  %v16 = vld [vmem:[%s0 + $0x40] sm:$0xff]
  %v17 = vld [vmem:[%s0 + $0x48] sm:$0xff]
  %v18 = vld [vmem:[%s0 + $0x50] sm:$0xff]
  %v19 = vld [vmem:[%s0 + $0x58] sm:$0xff]
  %v20 = vld [vmem:[%s0 + $0x60] sm:$0xff]
  %v21 = vld [vmem:[%s0 + $0x68] sm:$0xff]
  %v22 = vld [vmem:[%s0 + $0x70] sm:$0xff]
  %v23 = vld [vmem:[%s0 + $0x78] sm:$0xff]
  %v24 = vld [vmem:[%s0 + $0x80] sm:$0xff]
  %v25 = vld [vmem:[%s0 + $0x88] sm:$0xff]
  %v26 = vld [vmem:[%s0 + $0x90] sm:$0xff]
  %v27 = vld [vmem:[%s0 + $0x98] sm:$0xff]
  %v28 = vld [vmem:[%s0 + $0xa0] sm:$0xff]
  %v29 = vld [vmem:[%s0 + $0xa8] sm:$0xff]
  %v30 = vld [vmem:[%s0 + $0xb0] sm:$0xff]
  %v31 = vld [vmem:[%s0 + $0xb8] sm:$0xff]
  %v32 = vld [vmem:[%s0 + $0xc0] sm:$0xff]
  %v33 = vld [vmem:[%s0 + $0xc8] sm:$0xff]
  %v34 = vld [vmem:[%s0 + $0xd0] sm:$0xff]
  %v35 = vld [vmem:[%s0 + $0xd8] sm:$0xff]
  %v36 = vld [vmem:[%s0 + $0xe0] sm:$0xff]
  %v37 = vld [vmem:[%s0 + $0xe8] sm:$0xff]
  %v38 = vld [vmem:[%s0 + $0xf0] sm:$0xff]
  %v39 = vld [vmem:[%s0 + $0xf8] sm:$0xff]
  %v40 = vld [vmem:[%s0 + $0x100] sm:$0xff]
  %v41 = vld [vmem:[%s0 + $0x108] sm:$0xff]
  %v42 = vld [vmem:[%s0 + $0x110] sm:$0xff]
  %v43 = vld [vmem:[%s0 + $0x118] sm:$0xff]
  %v44 = vld [vmem:[%s0 + $0x120] sm:$0xff]
  %v45 = vld [vmem:[%s0 + $0x128] sm:$0xff]
  %v46 = vld [vmem:[%s0 + $0x130] sm:$0xff]
  %v47 = vld [vmem:[%s0 + $0x138] sm:$0xff]
  %v48 = vld [vmem:[%s0 + $0x140] sm:$0xff]
  %v49 = vld [vmem:[%s0 + $0x148] sm:$0xff]
  %v50 = vld [vmem:[%s0 + $0x150] sm:$0xff]
  %v51 = vld [vmem:[%s0 + $0x158] sm:$0xff]
  %v52 = vld [vmem:[%s0 + $0x160] sm:$0xff]
  %v53 = vld [vmem:[%s0 + $0x168] sm:$0xff]
  %v54 = vld [vmem:[%s0 + $0x170] sm:$0xff]
  %v55 = vld [vmem:[%s0 + $0x178] sm:$0xff]
  %v56 = vld [vmem:[%s0 + $0x180] sm:$0xff]
  %v57 = vld [vmem:[%s0 + $0x188] sm:$0xff]
  %v58 = vld [vmem:[%s0 + $0x190] sm:$0xff]
  %v59 = vld [vmem:[%s0 + $0x198] sm:$0xff]
  %v60 = vld [vmem:[%s0 + $0x1a0] sm:$0xff]
  %v61 = vld [vmem:[%s0 + $0x1a8] sm:$0xff]
  %v62 = vld [vmem:[%s0 + $0x1b0] sm:$0xff]
  %v63 = vld [vmem:[%s0 + $0x1b8] sm:$0xff]
  %v64 = vld [vmem:[%s0 + $0x1c0] sm:$0xff]
  %v65 = vld [vmem:[%s0 + $0x1c8] sm:$0xff]
  %v66 = vld [vmem:[%s0 + $0x1d0] sm:$0xff]
  %v67 = vld [vmem:[%s0 + $0x1d8] sm:$0xff]
  %v68 = vld [vmem:[%s0 + $0x1e0] sm:$0xff]
  %v69 = vld [vmem:[%s0 + $0x1e8] sm:$0xff]
  %v70 = vld [vmem:[%s0 + $0x1f0] sm:$0xff]
  %v71 = vld [vmem:[%s0 + $0x1f8] sm:$0xff]
  %vm72 = vcmask 31744
  %v73 = vsel %vm72, %v8, 0.0
  %v74 = vsel %vm72, %v9, 0.0
  %v75 = vadd.f32 %v73, %v74
  %v76 = vsel %vm72, %v10, 0.0
  %v77 = vadd.f32 %v75, %v76
  %v78 = vsel %vm72, %v11, 0.0
  %v79 = vadd.f32 %v77, %v78
  %v80 = vsel %vm72, %v12, 0.0
  %v81 = vadd.f32 %v79, %v80
  %v82 = vsel %vm72, %v13, 0.0
  %v83 = vadd.f32 %v81, %v82
  %v84 = vsel %vm72, %v14, 0.0
  %v85 = vadd.f32 %v83, %v84
  %v86 = vsel %vm72, %v15, 0.0
  %v87 = vadd.f32 %v85, %v86
  %v88 = vsel %vm72, %v16, 0.0
  %v89 = vadd.f32 %v87, %v88
  %v90 = vsel %vm72, %v17, 0.0
  %v91 = vadd.f32 %v89, %v90
  %v92 = vsel %vm72, %v18, 0.0
  %v93 = vadd.f32 %v91, %v92
  %v94 = vsel %vm72, %v19, 0.0
  %v95 = vadd.f32 %v93, %v94
  %v96 = vsel %vm72, %v20, 0.0
  %v97 = vadd.f32 %v95, %v96
  %v98 = vsel %vm72, %v21, 0.0
  %v99 = vadd.f32 %v97, %v98
  %v100 = vsel %vm72, %v22, 0.0
  %v101 = vadd.f32 %v99, %v100
  %v102 = vsel %vm72, %v23, 0.0
  %v103 = vadd.f32 %v101, %v102
  %v104 = vsel %vm72, %v24, 0.0
  %v105 = vadd.f32 %v103, %v104
  %v106 = vsel %vm72, %v25, 0.0
  %v107 = vadd.f32 %v105, %v106
  %v108 = vsel %vm72, %v26, 0.0
  %v109 = vadd.f32 %v107, %v108
  %v110 = vsel %vm72, %v27, 0.0
  %v111 = vadd.f32 %v109, %v110
  %v112 = vsel %vm72, %v28, 0.0
  %v113 = vadd.f32 %v111, %v112
  %v114 = vsel %vm72, %v29, 0.0
  %v115 = vadd.f32 %v113, %v114
  %v116 = vsel %vm72, %v30, 0.0
  %v117 = vadd.f32 %v115, %v116
  %v118 = vsel %vm72, %v31, 0.0
  %v119 = vadd.f32 %v117, %v118
  %v120 = vsel %vm72, %v32, 0.0
  %v121 = vadd.f32 %v119, %v120
  %v122 = vsel %vm72, %v33, 0.0
  %v123 = vadd.f32 %v121, %v122
  %v124 = vsel %vm72, %v34, 0.0
  %v125 = vadd.f32 %v123, %v124
  %v126 = vsel %vm72, %v35, 0.0
  %v127 = vadd.f32 %v125, %v126
  %v128 = vsel %vm72, %v36, 0.0
  %v129 = vadd.f32 %v127, %v128
  %v130 = vsel %vm72, %v37, 0.0
  %v131 = vadd.f32 %v129, %v130
  %v132 = vsel %vm72, %v38, 0.0
  %v133 = vadd.f32 %v131, %v132
  %v134 = vsel %vm72, %v39, 0.0
  %v135 = vadd.f32 %v133, %v134
  %v136 = vsel %vm72, %v40, 0.0
  %v137 = vadd.f32 %v135, %v136
  %v138 = vsel %vm72, %v41, 0.0
  %v139 = vadd.f32 %v137, %v138
  %v140 = vsel %vm72, %v42, 0.0
  %v141 = vadd.f32 %v139, %v140
  %v142 = vsel %vm72, %v43, 0.0
  %v143 = vadd.f32 %v141, %v142
  %v144 = vsel %vm72, %v44, 0.0
  %v145 = vadd.f32 %v143, %v144
  %v146 = vsel %vm72, %v45, 0.0
  %v147 = vadd.f32 %v145, %v146
  %v148 = vsel %vm72, %v46, 0.0
  %v149 = vadd.f32 %v147, %v148
  %v150 = vsel %vm72, %v47, 0.0
  %v151 = vadd.f32 %v149, %v150
  %v152 = vsel %vm72, %v48, 0.0
  %v153 = vadd.f32 %v151, %v152
  %v154 = vsel %vm72, %v49, 0.0
  %v155 = vadd.f32 %v153, %v154
  %v156 = vsel %vm72, %v50, 0.0
  %v157 = vadd.f32 %v155, %v156
  %v158 = vsel %vm72, %v51, 0.0
  %v159 = vadd.f32 %v157, %v158
  %v160 = vsel %vm72, %v52, 0.0
  %v161 = vadd.f32 %v159, %v160
  %v162 = vsel %vm72, %v53, 0.0
  %v163 = vadd.f32 %v161, %v162
  %v164 = vsel %vm72, %v54, 0.0
  %v165 = vadd.f32 %v163, %v164
  %v166 = vsel %vm72, %v55, 0.0
  %v167 = vadd.f32 %v165, %v166
  %v168 = vsel %vm72, %v56, 0.0
  %v169 = vadd.f32 %v167, %v168
  %v170 = vsel %vm72, %v57, 0.0
  %v171 = vadd.f32 %v169, %v170
  %v172 = vsel %vm72, %v58, 0.0
  %v173 = vadd.f32 %v171, %v172
  %v174 = vsel %vm72, %v59, 0.0
  %v175 = vadd.f32 %v173, %v174
  %v176 = vsel %vm72, %v60, 0.0
  %v177 = vadd.f32 %v175, %v176
  %v178 = vsel %vm72, %v61, 0.0
  %v179 = vadd.f32 %v177, %v178
  %v180 = vsel %vm72, %v62, 0.0
  %v181 = vadd.f32 %v179, %v180
  %v182 = vsel %vm72, %v63, 0.0
  %v183 = vadd.f32 %v181, %v182
  %v184 = vsel %vm72, %v64, 0.0
  %v185 = vadd.f32 %v183, %v184
  %v186 = vsel %vm72, %v65, 0.0
  %v187 = vadd.f32 %v185, %v186
  %v188 = vsel %vm72, %v66, 0.0
  %v189 = vadd.f32 %v187, %v188
  %v190 = vsel %vm72, %v67, 0.0
  %v191 = vadd.f32 %v189, %v190
  %v192 = vsel %vm72, %v68, 0.0
  %v193 = vadd.f32 %v191, %v192
  %v194 = vsel %vm72, %v69, 0.0
  %v195 = vadd.f32 %v193, %v194
  %v196 = vsel %vm72, %v70, 0.0
  %v197 = vadd.f32 %v195, %v196
  %v198 = vsel %vm72, %v71, 0.0
  %v199 = vadd.f32 %v197, %v198
  %v200 = vrot.slane %v199, 4
  %v201 = vadd.f32 %v199, %v200
  %v202 = vrot.slane %v201, 2
  %v203 = vadd.f32 %v201, %v202
  %v204 = vrot.slane %v203, 1
  %v205 = vadd.f32 %v203, %v204
  %v206 = vmul.f32 %v8, %v8
  %v207 = vmul.f32 %v9, %v9
  %v208 = vmul.f32 %v10, %v10
  %v209 = vmul.f32 %v11, %v11
  %v210 = vmul.f32 %v12, %v12
  %v211 = vmul.f32 %v13, %v13
  %v212 = vmul.f32 %v14, %v14
  %v213 = vmul.f32 %v15, %v15
  %v214 = vmul.f32 %v16, %v16
  %v215 = vmul.f32 %v17, %v17
  %v216 = vmul.f32 %v18, %v18
  %v217 = vmul.f32 %v19, %v19
  %v218 = vmul.f32 %v20, %v20
  %v219 = vmul.f32 %v21, %v21
  %v220 = vmul.f32 %v22, %v22
  %v221 = vmul.f32 %v23, %v23
  %v222 = vmul.f32 %v24, %v24
  %v223 = vmul.f32 %v25, %v25
  %v224 = vmul.f32 %v26, %v26
  %v225 = vmul.f32 %v27, %v27
  %v226 = vmul.f32 %v28, %v28
  %v227 = vmul.f32 %v29, %v29
  %v228 = vmul.f32 %v30, %v30
  %v229 = vmul.f32 %v31, %v31
  %v230 = vmul.f32 %v32, %v32
  %v231 = vmul.f32 %v33, %v33
  %v232 = vmul.f32 %v34, %v34
  %v233 = vmul.f32 %v35, %v35
  %v234 = vmul.f32 %v36, %v36
  %v235 = vmul.f32 %v37, %v37
  %v236 = vmul.f32 %v38, %v38
  %v237 = vmul.f32 %v39, %v39
  %v238 = vmul.f32 %v40, %v40
  %v239 = vmul.f32 %v41, %v41
  %v240 = vmul.f32 %v42, %v42
  %v241 = vmul.f32 %v43, %v43
  %v242 = vmul.f32 %v44, %v44
  %v243 = vmul.f32 %v45, %v45
  %v244 = vmul.f32 %v46, %v46
  %v245 = vmul.f32 %v47, %v47
  %v246 = vmul.f32 %v48, %v48
  %v247 = vmul.f32 %v49, %v49
  %v248 = vmul.f32 %v50, %v50
  %v249 = vmul.f32 %v51, %v51
  %v250 = vmul.f32 %v52, %v52
  %v251 = vmul.f32 %v53, %v53
  %v252 = vmul.f32 %v54, %v54
  %v253 = vmul.f32 %v55, %v55
  %v254 = vmul.f32 %v56, %v56
  %v255 = vmul.f32 %v57, %v57
  %v256 = vmul.f32 %v58, %v58
  %v257 = vmul.f32 %v59, %v59
  %v258 = vmul.f32 %v60, %v60
  %v259 = vmul.f32 %v61, %v61
  %v260 = vmul.f32 %v62, %v62
  %v261 = vmul.f32 %v63, %v63
  %v262 = vmul.f32 %v64, %v64
  %v263 = vmul.f32 %v65, %v65
  %v264 = vmul.f32 %v66, %v66
  %v265 = vmul.f32 %v67, %v67
  %v266 = vmul.f32 %v68, %v68
  %v267 = vmul.f32 %v69, %v69
  %v268 = vmul.f32 %v70, %v70
  %v269 = vmul.f32 %v71, %v71
  %v270 = vsel %vm72, %v206, 0.0
  %v271 = vsel %vm72, %v207, 0.0
  %v272 = vadd.f32 %v270, %v271
  %v273 = vsel %vm72, %v208, 0.0
  %v274 = vadd.f32 %v272, %v273
  %v275 = vsel %vm72, %v209, 0.0
  %v276 = vadd.f32 %v274, %v275
  %v277 = vsel %vm72, %v210, 0.0
  %v278 = vadd.f32 %v276, %v277
  %v279 = vsel %vm72, %v211, 0.0
  %v280 = vadd.f32 %v278, %v279
  %v281 = vsel %vm72, %v212, 0.0
  %v282 = vadd.f32 %v280, %v281
  %v283 = vsel %vm72, %v213, 0.0
  %v284 = vadd.f32 %v282, %v283
  %v285 = vsel %vm72, %v214, 0.0
  %v286 = vadd.f32 %v284, %v285
  %v287 = vsel %vm72, %v215, 0.0
  %v288 = vadd.f32 %v286, %v287
  %v289 = vsel %vm72, %v216, 0.0
  %v290 = vadd.f32 %v288, %v289
  %v291 = vsel %vm72, %v217, 0.0
  %v292 = vadd.f32 %v290, %v291
  %v293 = vsel %vm72, %v218, 0.0
  %v294 = vadd.f32 %v292, %v293
  %v295 = vsel %vm72, %v219, 0.0
  %v296 = vadd.f32 %v294, %v295
  %v297 = vsel %vm72, %v220, 0.0
  %v298 = vadd.f32 %v296, %v297
  %v299 = vsel %vm72, %v221, 0.0
  %v300 = vadd.f32 %v298, %v299
  %v301 = vsel %vm72, %v222, 0.0
  %v302 = vadd.f32 %v300, %v301
  %v303 = vsel %vm72, %v223, 0.0
  %v304 = vadd.f32 %v302, %v303
  %v305 = vsel %vm72, %v224, 0.0
  %v306 = vadd.f32 %v304, %v305
  %v307 = vsel %vm72, %v225, 0.0
  %v308 = vadd.f32 %v306, %v307
  %v309 = vsel %vm72, %v226, 0.0
  %v310 = vadd.f32 %v308, %v309
  %v311 = vsel %vm72, %v227, 0.0
  %v312 = vadd.f32 %v310, %v311
  %v313 = vsel %vm72, %v228, 0.0
  %v314 = vadd.f32 %v312, %v313
  %v315 = vsel %vm72, %v229, 0.0
  %v316 = vadd.f32 %v314, %v315
  %v317 = vsel %vm72, %v230, 0.0
  %v318 = vadd.f32 %v316, %v317
  %v319 = vsel %vm72, %v231, 0.0
  %v320 = vadd.f32 %v318, %v319
  %v321 = vsel %vm72, %v232, 0.0
  %v322 = vadd.f32 %v320, %v321
  %v323 = vsel %vm72, %v233, 0.0
  %v324 = vadd.f32 %v322, %v323
  %v325 = vsel %vm72, %v234, 0.0
  %v326 = vadd.f32 %v324, %v325
  %v327 = vsel %vm72, %v235, 0.0
  %v328 = vadd.f32 %v326, %v327
  %v329 = vsel %vm72, %v236, 0.0
  %v330 = vadd.f32 %v328, %v329
  %v331 = vsel %vm72, %v237, 0.0
  %v332 = vadd.f32 %v330, %v331
  %v333 = vsel %vm72, %v238, 0.0
  %v334 = vadd.f32 %v332, %v333
  %v335 = vsel %vm72, %v239, 0.0
  %v336 = vadd.f32 %v334, %v335
  %v337 = vsel %vm72, %v240, 0.0
  %v338 = vadd.f32 %v336, %v337
  %v339 = vsel %vm72, %v241, 0.0
  %v340 = vadd.f32 %v338, %v339
  %v341 = vsel %vm72, %v242, 0.0
  %v342 = vadd.f32 %v340, %v341
  %v343 = vsel %vm72, %v243, 0.0
  %v344 = vadd.f32 %v342, %v343
  %v345 = vsel %vm72, %v244, 0.0
  %v346 = vadd.f32 %v344, %v345
  %v347 = vsel %vm72, %v245, 0.0
  %v348 = vadd.f32 %v346, %v347
  %v349 = vsel %vm72, %v246, 0.0
  %v350 = vadd.f32 %v348, %v349
  %v351 = vsel %vm72, %v247, 0.0
  %v352 = vadd.f32 %v350, %v351
  %v353 = vsel %vm72, %v248, 0.0
  %v354 = vadd.f32 %v352, %v353
  %v355 = vsel %vm72, %v249, 0.0
  %v356 = vadd.f32 %v354, %v355
  %v357 = vsel %vm72, %v250, 0.0
  %v358 = vadd.f32 %v356, %v357
  %v359 = vsel %vm72, %v251, 0.0
  %v360 = vadd.f32 %v358, %v359
  %v361 = vsel %vm72, %v252, 0.0
  %v362 = vadd.f32 %v360, %v361
  %v363 = vsel %vm72, %v253, 0.0
  %v364 = vadd.f32 %v362, %v363
  %v365 = vsel %vm72, %v254, 0.0
  %v366 = vadd.f32 %v364, %v365
  %v367 = vsel %vm72, %v255, 0.0
  %v368 = vadd.f32 %v366, %v367
  %v369 = vsel %vm72, %v256, 0.0
  %v370 = vadd.f32 %v368, %v369
  %v371 = vsel %vm72, %v257, 0.0
  %v372 = vadd.f32 %v370, %v371
  %v373 = vsel %vm72, %v258, 0.0
  %v374 = vadd.f32 %v372, %v373
  %v375 = vsel %vm72, %v259, 0.0
  %v376 = vadd.f32 %v374, %v375
  %v377 = vsel %vm72, %v260, 0.0
  %v378 = vadd.f32 %v376, %v377
  %v379 = vsel %vm72, %v261, 0.0
  %v380 = vadd.f32 %v378, %v379
  %v381 = vsel %vm72, %v262, 0.0
  %v382 = vadd.f32 %v380, %v381
  %v383 = vsel %vm72, %v263, 0.0
  %v384 = vadd.f32 %v382, %v383
  %v385 = vsel %vm72, %v264, 0.0
  %v386 = vadd.f32 %v384, %v385
  %v387 = vsel %vm72, %v265, 0.0
  %v388 = vadd.f32 %v386, %v387
  %v389 = vsel %vm72, %v266, 0.0
  %v390 = vadd.f32 %v388, %v389
  %v391 = vsel %vm72, %v267, 0.0
  %v392 = vadd.f32 %v390, %v391
  %v393 = vsel %vm72, %v268, 0.0
  %v394 = vadd.f32 %v392, %v393
  %v395 = vsel %vm72, %v269, 0.0
  %v396 = vadd.f32 %v394, %v395
  %v397 = vrot.slane %v396, 4
  %v398 = vadd.f32 %v396, %v397
  %v399 = vrot.slane %v398, 2
  %v400 = vadd.f32 %v398, %v399
  %v401 = vrot.slane %v400, 1
  %v402 = vadd.f32 %v400, %v401
  %p403 = scmp.eq.s32.totalorder 0, 0
  // Predicated region
  $region6: #{gen_res_blk_forward.4} parent=0 // pred_check
    %p404 = pneg %p403
  $region7: #{gen_res_blk_forward.4} parent=0 // pred_check_branch
    %406 = sbr.rel (%p404) target = $region9
  $region8: #{gen_res_blk_forward.4} parent=0 // pred_region
    %vm407 = vcmask 25600
    %408 = vst.msk [vmem:[%s1] sm:$0x3] %vm407, 0.0
  $region9: #{gen_res_blk_forward.4} parent=0 // pred_fallthru
    _
  %v409 = vld [vmem:[%s1] sm:$0x3]
  %vm410 = vcmask 1040384
  %v411 = vsel %vm410, %v205, %v402
  %v412 = vadd.f32 %v409, %v411
  %vm413 = vcmask 25600
  %414 = vst.msk [vmem:[%s1] sm:$0x3] %vm413, %v412
  // Predicated region
  $region10: #{gen_res_blk_forward.4} parent=0 // pred_check
    _
  $region11: #{gen_res_blk_forward.4} parent=0 // pred_check_branch
    %416 = sbr.rel (0) target = $region13
  $region12: #{gen_res_blk_forward.4} parent=0 // pred_region
    _
  $region13: #{gen_res_blk_forward.4} parent=0 // pred_fallthru
    _
  // Predicated region
  $region14: #{gen_res_blk_forward.4} parent=0 // pred_check
    _
  $region15: #{gen_res_blk_forward.4} parent=0 // pred_check_branch
    %418 = sbr.rel (0) target = $region17
  $region16: #{gen_res_blk_forward.4} parent=0 // pred_region
    _
  $region17: #{gen_res_blk_forward.4} parent=0 // pred_fallthru
    _

// kernel: gen_res_blk_forward.6
$region0: #{gen_res_blk_forward.6}
  #allocation0 [shape = 'u32[]', space=smem, size = 0x4, offset = 0x4, fixed_abs, tag = 'smem constant byte address 0x4 - core index']
  #allocation1 [shape = 'u32[72,128]{1,0:T(1,128)}', space=vmem, size = 0x9000, scoped, tag = 'internal scratch']
  %s0 = inlined_call_operand.vmem [shape: f32[512,4], index: 0, kind: input, shape index: {}]
  %s1 = inlined_call_operand.vmem [shape: f32[4,8], index: 1, kind: input, shape index: {}]
  %s2 = inlined_call_operand.vmem [shape: f32[512,8], index: 2, kind: output, shape index: {}]
  %s3 = sld [smem:[#allocation0]]
  $region18: #{gen_res_blk_forward.6} parent=0
    _
  %s5 = ssub.s32 1, %s3
  %s6 = scalar_select 0, %s5, %s3
  // Predicated region
  $region2: #{gen_res_blk_forward.6} parent=0 // pred_check
    _
  $region3: #{gen_res_blk_forward.6} parent=0 // pred_check_branch
    %8 = sbr.rel (0) target = $region5
  $region4: #{gen_res_blk_forward.6} parent=0 // pred_region
    _
  $region5: #{gen_res_blk_forward.6} parent=0 // pred_fallthru
    _
  // Predicated region
  $region6: #{gen_res_blk_forward.6} parent=0 // pred_check
    _
  $region7: #{gen_res_blk_forward.6} parent=0 // pred_check_branch
    %10 = sbr.rel (0) target = $region9
  $region8: #{gen_res_blk_forward.6} parent=0 // pred_region
    _
  $region9: #{gen_res_blk_forward.6} parent=0 // pred_fallthru
    _
  %v11 = vld [vmem:[%s0] sm:$0xff]
  %v12 = vld [vmem:[%s0 + $0x8] sm:$0xff]
  %v13 = vld [vmem:[%s0 + $0x10] sm:$0xff]
  %v14 = vld [vmem:[%s0 + $0x18] sm:$0xff]
  %v15 = vld [vmem:[%s0 + $0x20] sm:$0xff]
  %v16 = vld [vmem:[%s0 + $0x28] sm:$0xff]
  %v17 = vld [vmem:[%s0 + $0x30] sm:$0xff]
  %v18 = vld [vmem:[%s0 + $0x38] sm:$0xff]
  %v19 = vld [vmem:[%s0 + $0x40] sm:$0xff]
  %v20 = vld [vmem:[%s0 + $0x48] sm:$0xff]
  %v21 = vld [vmem:[%s0 + $0x50] sm:$0xff]
  %v22 = vld [vmem:[%s0 + $0x58] sm:$0xff]
  %v23 = vld [vmem:[%s0 + $0x60] sm:$0xff]
  %v24 = vld [vmem:[%s0 + $0x68] sm:$0xff]
  %v25 = vld [vmem:[%s0 + $0x70] sm:$0xff]
  %v26 = vld [vmem:[%s0 + $0x78] sm:$0xff]
  %v27 = vld [vmem:[%s0 + $0x80] sm:$0xff]
  %v28 = vld [vmem:[%s0 + $0x88] sm:$0xff]
  %v29 = vld [vmem:[%s0 + $0x90] sm:$0xff]
  %v30 = vld [vmem:[%s0 + $0x98] sm:$0xff]
  %v31 = vld [vmem:[%s0 + $0xa0] sm:$0xff]
  %v32 = vld [vmem:[%s0 + $0xa8] sm:$0xff]
  %v33 = vld [vmem:[%s0 + $0xb0] sm:$0xff]
  %v34 = vld [vmem:[%s0 + $0xb8] sm:$0xff]
  %v35 = vld [vmem:[%s0 + $0xc0] sm:$0xff]
  %v36 = vld [vmem:[%s0 + $0xc8] sm:$0xff]
  %v37 = vld [vmem:[%s0 + $0xd0] sm:$0xff]
  %v38 = vld [vmem:[%s0 + $0xd8] sm:$0xff]
  %v39 = vld [vmem:[%s0 + $0xe0] sm:$0xff]
  %v40 = vld [vmem:[%s0 + $0xe8] sm:$0xff]
  %v41 = vld [vmem:[%s0 + $0xf0] sm:$0xff]
  %v42 = vld [vmem:[%s0 + $0xf8] sm:$0xff]
  %v43 = vld [vmem:[%s0 + $0x100] sm:$0xff]
  %v44 = vld [vmem:[%s0 + $0x108] sm:$0xff]
  %v45 = vld [vmem:[%s0 + $0x110] sm:$0xff]
  %v46 = vld [vmem:[%s0 + $0x118] sm:$0xff]
  %v47 = vld [vmem:[%s0 + $0x120] sm:$0xff]
  %v48 = vld [vmem:[%s0 + $0x128] sm:$0xff]
  %v49 = vld [vmem:[%s0 + $0x130] sm:$0xff]
  %v50 = vld [vmem:[%s0 + $0x138] sm:$0xff]
  %v51 = vld [vmem:[%s0 + $0x140] sm:$0xff]
  %v52 = vld [vmem:[%s0 + $0x148] sm:$0xff]
  %v53 = vld [vmem:[%s0 + $0x150] sm:$0xff]
  %v54 = vld [vmem:[%s0 + $0x158] sm:$0xff]
  %v55 = vld [vmem:[%s0 + $0x160] sm:$0xff]
  %v56 = vld [vmem:[%s0 + $0x168] sm:$0xff]
  %v57 = vld [vmem:[%s0 + $0x170] sm:$0xff]
  %v58 = vld [vmem:[%s0 + $0x178] sm:$0xff]
  %v59 = vld [vmem:[%s0 + $0x180] sm:$0xff]
  %v60 = vld [vmem:[%s0 + $0x188] sm:$0xff]
  %v61 = vld [vmem:[%s0 + $0x190] sm:$0xff]
  %v62 = vld [vmem:[%s0 + $0x198] sm:$0xff]
  %v63 = vld [vmem:[%s0 + $0x1a0] sm:$0xff]
  %v64 = vld [vmem:[%s0 + $0x1a8] sm:$0xff]
  %v65 = vld [vmem:[%s0 + $0x1b0] sm:$0xff]
  %v66 = vld [vmem:[%s0 + $0x1b8] sm:$0xff]
  %v67 = vld [vmem:[%s0 + $0x1c0] sm:$0xff]
  %v68 = vld [vmem:[%s0 + $0x1c8] sm:$0xff]
  %v69 = vld [vmem:[%s0 + $0x1d0] sm:$0xff]
  %v70 = vld [vmem:[%s0 + $0x1d8] sm:$0xff]
  %v71 = vld [vmem:[%s0 + $0x1e0] sm:$0xff]
  %v72 = vld [vmem:[%s0 + $0x1e8] sm:$0xff]
  %v73 = vld [vmem:[%s0 + $0x1f0] sm:$0xff]
  %v74 = vld [vmem:[%s0 + $0x1f8] sm:$0xff]
  %v75 = vld [vmem:[%s1] sm:$0xf]
  %vm76 = vcmask 31744
  %v78 = vsel %vm76, %v11, 0
  %v81 = vsel %vm76, %v12, 0
  %v84 = vsel %vm76, %v13, 0
  %v87 = vsel %vm76, %v14, 0
  %v90 = vsel %vm76, %v15, 0
  %v93 = vsel %vm76, %v16, 0
  %v96 = vsel %vm76, %v17, 0
  %v99 = vsel %vm76, %v18, 0
  %v102 = vsel %vm76, %v19, 0
  %v105 = vsel %vm76, %v20, 0
  %v108 = vsel %vm76, %v21, 0
  %v111 = vsel %vm76, %v22, 0
  %v114 = vsel %vm76, %v23, 0
  %v117 = vsel %vm76, %v24, 0
  %v120 = vsel %vm76, %v25, 0
  %v123 = vsel %vm76, %v26, 0
  %v126 = vsel %vm76, %v27, 0
  %v129 = vsel %vm76, %v28, 0
  %v132 = vsel %vm76, %v29, 0
  %v135 = vsel %vm76, %v30, 0
  %v138 = vsel %vm76, %v31, 0
  %v141 = vsel %vm76, %v32, 0
  %v144 = vsel %vm76, %v33, 0
  %v147 = vsel %vm76, %v34, 0
  %v150 = vsel %vm76, %v35, 0
  %v153 = vsel %vm76, %v36, 0
  %v156 = vsel %vm76, %v37, 0
  %v159 = vsel %vm76, %v38, 0
  %v162 = vsel %vm76, %v39, 0
  %v165 = vsel %vm76, %v40, 0
  %v168 = vsel %vm76, %v41, 0
  %v171 = vsel %vm76, %v42, 0
  %v174 = vsel %vm76, %v43, 0
  %v177 = vsel %vm76, %v44, 0
  %v180 = vsel %vm76, %v45, 0
  %v183 = vsel %vm76, %v46, 0
  %v186 = vsel %vm76, %v47, 0
  %v189 = vsel %vm76, %v48, 0
  %v192 = vsel %vm76, %v49, 0
  %v195 = vsel %vm76, %v50, 0
  %v198 = vsel %vm76, %v51, 0
  %v201 = vsel %vm76, %v52, 0
  %v204 = vsel %vm76, %v53, 0
  %v207 = vsel %vm76, %v54, 0
  %v210 = vsel %vm76, %v55, 0
  %v213 = vsel %vm76, %v56, 0
  %v216 = vsel %vm76, %v57, 0
  %v219 = vsel %vm76, %v58, 0
  %v222 = vsel %vm76, %v59, 0
  %v225 = vsel %vm76, %v60, 0
  %v228 = vsel %vm76, %v61, 0
  %v231 = vsel %vm76, %v62, 0
  %v234 = vsel %vm76, %v63, 0
  %v237 = vsel %vm76, %v64, 0
  %v240 = vsel %vm76, %v65, 0
  %v243 = vsel %vm76, %v66, 0
  %v246 = vsel %vm76, %v67, 0
  %v249 = vsel %vm76, %v68, 0
  %v252 = vsel %vm76, %v69, 0
  %v255 = vsel %vm76, %v70, 0
  %v258 = vsel %vm76, %v71, 0
  %v261 = vsel %vm76, %v72, 0
  %v264 = vsel %vm76, %v73, 0
  %v267 = vsel %vm76, %v74, 0
  %vm269 = vcmask 1043456
  %v271 = vsel %vm269, %v75, 0
  %273 = vmatpush.msra.mxu0 0.0
  %274 = vmatpush.msra.mxu0 0.0
  %275 = vmatpush.msra.mxu0 0.0
  %276 = vmatpush.msra.mxu0 0.0
  %277 = vmatpush.msra.mxu0 0.0
  %278 = vmatpush.msra.mxu0 0.0
  %279 = vmatpush.msra.mxu0 0.0
  %280 = vmatpush.msra.mxu0 0.0
  %281 = vmatpush.msra.mxu0 0.0
  %282 = vmatpush.msra.mxu0 0.0
  %283 = vmatpush.msra.mxu0 0.0
  %284 = vmatpush.msra.mxu0 0.0
  %285 = vmatpush.msra.mxu0 0.0
  %286 = vmatpush.msra.mxu0 0.0
  %287 = vmatpush.msra.mxu0 0.0
  %288 = vmatpush.msra.mxu0 %v271
  %289 = vmatmul.f32.gmra.mxu0 %v78
  %v290 = vpop.f32.mrf.mxu0
  %v291 = vadd.f32 0.0, %v290
  %292 = vmatmul.f32.gmra.mxu0 %v81
  %v293 = vpop.f32.mrf.mxu0
  %v294 = vadd.f32 0.0, %v293
  %295 = vmatmul.f32.gmra.mxu0 %v84
  %v296 = vpop.f32.mrf.mxu0
  %v297 = vadd.f32 0.0, %v296
  %298 = vmatmul.f32.gmra.mxu0 %v87
  %v299 = vpop.f32.mrf.mxu0
  %v300 = vadd.f32 0.0, %v299
  %301 = vmatmul.f32.gmra.mxu0 %v90
  %v302 = vpop.f32.mrf.mxu0
  %v303 = vadd.f32 0.0, %v302
  %304 = vmatmul.f32.gmra.mxu0 %v93
  %v305 = vpop.f32.mrf.mxu0
  %v306 = vadd.f32 0.0, %v305
  %307 = vmatmul.f32.gmra.mxu0 %v96
  %v308 = vpop.f32.mrf.mxu0
  %v309 = vadd.f32 0.0, %v308
  %310 = vmatmul.f32.gmra.mxu0 %v99
  %v311 = vpop.f32.mrf.mxu0
  %v312 = vadd.f32 0.0, %v311
  %313 = vmatmul.f32.gmra.mxu0 %v102
  %v314 = vpop.f32.mrf.mxu0
  %v315 = vadd.f32 0.0, %v314
  %316 = vmatmul.f32.gmra.mxu0 %v105
  %v317 = vpop.f32.mrf.mxu0
  %v318 = vadd.f32 0.0, %v317
  %319 = vmatmul.f32.gmra.mxu0 %v108
  %v320 = vpop.f32.mrf.mxu0
  %v321 = vadd.f32 0.0, %v320
  %322 = vmatmul.f32.gmra.mxu0 %v111
  %v323 = vpop.f32.mrf.mxu0
  %v324 = vadd.f32 0.0, %v323
  %325 = vmatmul.f32.gmra.mxu0 %v114
  %v326 = vpop.f32.mrf.mxu0
  %v327 = vadd.f32 0.0, %v326
  %328 = vmatmul.f32.gmra.mxu0 %v117
  %v329 = vpop.f32.mrf.mxu0
  %v330 = vadd.f32 0.0, %v329
  %331 = vmatmul.f32.gmra.mxu0 %v120
  %v332 = vpop.f32.mrf.mxu0
  %v333 = vadd.f32 0.0, %v332
  %334 = vmatmul.f32.gmra.mxu0 %v123
  %v335 = vpop.f32.mrf.mxu0
  %v336 = vadd.f32 0.0, %v335
  %337 = vmatmul.f32.gmra.mxu0 %v126
  %v338 = vpop.f32.mrf.mxu0
  %v339 = vadd.f32 0.0, %v338
  %340 = vmatmul.f32.gmra.mxu0 %v129
  %v341 = vpop.f32.mrf.mxu0
  %v342 = vadd.f32 0.0, %v341
  %343 = vmatmul.f32.gmra.mxu0 %v132
  %v344 = vpop.f32.mrf.mxu0
  %v345 = vadd.f32 0.0, %v344
  %346 = vmatmul.f32.gmra.mxu0 %v135
  %v347 = vpop.f32.mrf.mxu0
  %v348 = vadd.f32 0.0, %v347
  %349 = vmatmul.f32.gmra.mxu0 %v138
  %v350 = vpop.f32.mrf.mxu0
  %v351 = vadd.f32 0.0, %v350
  %352 = vmatmul.f32.gmra.mxu0 %v141
  %v353 = vpop.f32.mrf.mxu0
  %v354 = vadd.f32 0.0, %v353
  %355 = vmatmul.f32.gmra.mxu0 %v144
  %v356 = vpop.f32.mrf.mxu0
  %v357 = vadd.f32 0.0, %v356
  %358 = vmatmul.f32.gmra.mxu0 %v147
  %v359 = vpop.f32.mrf.mxu0
  %v360 = vadd.f32 0.0, %v359
  %361 = vmatmul.f32.gmra.mxu0 %v150
  %v362 = vpop.f32.mrf.mxu0
  %v363 = vadd.f32 0.0, %v362
  %364 = vmatmul.f32.gmra.mxu0 %v153
  %v365 = vpop.f32.mrf.mxu0
  %v366 = vadd.f32 0.0, %v365
  %367 = vmatmul.f32.gmra.mxu0 %v156
  %v368 = vpop.f32.mrf.mxu0
  %v369 = vadd.f32 0.0, %v368
  %370 = vmatmul.f32.gmra.mxu0 %v159
  %v371 = vpop.f32.mrf.mxu0
  %v372 = vadd.f32 0.0, %v371
  %373 = vmatmul.f32.gmra.mxu0 %v162
  %v374 = vpop.f32.mrf.mxu0
  %v375 = vadd.f32 0.0, %v374
  %376 = vmatmul.f32.gmra.mxu0 %v165
  %v377 = vpop.f32.mrf.mxu0
  %v378 = vadd.f32 0.0, %v377
  %379 = vmatmul.f32.gmra.mxu0 %v168
  %v380 = vpop.f32.mrf.mxu0
  %v381 = vadd.f32 0.0, %v380
  %382 = vmatmul.f32.gmra.mxu0 %v171
  %v383 = vpop.f32.mrf.mxu0
  %v384 = vadd.f32 0.0, %v383
  %385 = vmatmul.f32.gmra.mxu0 %v174
  %v386 = vpop.f32.mrf.mxu0
  %v387 = vadd.f32 0.0, %v386
  %388 = vmatmul.f32.gmra.mxu0 %v177
  %v389 = vpop.f32.mrf.mxu0
  %v390 = vadd.f32 0.0, %v389
  %391 = vmatmul.f32.gmra.mxu0 %v180
  %v392 = vpop.f32.mrf.mxu0
  %v393 = vadd.f32 0.0, %v392
  %394 = vmatmul.f32.gmra.mxu0 %v183
  %v395 = vpop.f32.mrf.mxu0
  %v396 = vadd.f32 0.0, %v395
  %397 = vmatmul.f32.gmra.mxu0 %v186
  %v398 = vpop.f32.mrf.mxu0
  %v399 = vadd.f32 0.0, %v398
  %400 = vmatmul.f32.gmra.mxu0 %v189
  %v401 = vpop.f32.mrf.mxu0
  %v402 = vadd.f32 0.0, %v401
  %403 = vmatmul.f32.gmra.mxu0 %v192
  %v404 = vpop.f32.mrf.mxu0
  %v405 = vadd.f32 0.0, %v404
  %406 = vmatmul.f32.gmra.mxu0 %v195
  %v407 = vpop.f32.mrf.mxu0
  %v408 = vadd.f32 0.0, %v407
  %409 = vmatmul.f32.gmra.mxu0 %v198
  %v410 = vpop.f32.mrf.mxu0
  %v411 = vadd.f32 0.0, %v410
  %412 = vmatmul.f32.gmra.mxu0 %v201
  %v413 = vpop.f32.mrf.mxu0
  %v414 = vadd.f32 0.0, %v413
  %415 = vmatmul.f32.gmra.mxu0 %v204
  %v416 = vpop.f32.mrf.mxu0
  %v417 = vadd.f32 0.0, %v416
  %418 = vmatmul.f32.gmra.mxu0 %v207
  %v419 = vpop.f32.mrf.mxu0
  %v420 = vadd.f32 0.0, %v419
  %421 = vmatmul.f32.gmra.mxu0 %v210
  %v422 = vpop.f32.mrf.mxu0
  %v423 = vadd.f32 0.0, %v422
  %424 = vmatmul.f32.gmra.mxu0 %v213
  %v425 = vpop.f32.mrf.mxu0
  %v426 = vadd.f32 0.0, %v425
  %427 = vmatmul.f32.gmra.mxu0 %v216
  %v428 = vpop.f32.mrf.mxu0
  %v429 = vadd.f32 0.0, %v428
  %430 = vmatmul.f32.gmra.mxu0 %v219
  %v431 = vpop.f32.mrf.mxu0
  %v432 = vadd.f32 0.0, %v431
  %433 = vmatmul.f32.gmra.mxu0 %v222
  %v434 = vpop.f32.mrf.mxu0
  %v435 = vadd.f32 0.0, %v434
  %436 = vmatmul.f32.gmra.mxu0 %v225
  %v437 = vpop.f32.mrf.mxu0
  %v438 = vadd.f32 0.0, %v437
  %439 = vmatmul.f32.gmra.mxu0 %v228
  %v440 = vpop.f32.mrf.mxu0
  %v441 = vadd.f32 0.0, %v440
  %442 = vmatmul.f32.gmra.mxu0 %v231
  %v443 = vpop.f32.mrf.mxu0
  %v444 = vadd.f32 0.0, %v443
  %445 = vmatmul.f32.gmra.mxu0 %v234
  %v446 = vpop.f32.mrf.mxu0
  %v447 = vadd.f32 0.0, %v446
  %448 = vmatmul.f32.gmra.mxu0 %v237
  %v449 = vpop.f32.mrf.mxu0
  %v450 = vadd.f32 0.0, %v449
  %451 = vmatmul.f32.gmra.mxu0 %v240
  %v452 = vpop.f32.mrf.mxu0
  %v453 = vadd.f32 0.0, %v452
  %454 = vmatmul.f32.gmra.mxu0 %v243
  %v455 = vpop.f32.mrf.mxu0
  %v456 = vadd.f32 0.0, %v455
  %457 = vmatmul.f32.gmra.mxu0 %v246
  %v458 = vpop.f32.mrf.mxu0
  %v459 = vadd.f32 0.0, %v458
  %460 = vmatmul.f32.gmra.mxu0 %v249
  %v461 = vpop.f32.mrf.mxu0
  %v462 = vadd.f32 0.0, %v461
  %463 = vmatmul.f32.gmra.mxu0 %v252
  %v464 = vpop.f32.mrf.mxu0
  %v465 = vadd.f32 0.0, %v464
  %466 = vmatmul.f32.gmra.mxu0 %v255
  %v467 = vpop.f32.mrf.mxu0
  %v468 = vadd.f32 0.0, %v467
  %469 = vmatmul.f32.gmra.mxu0 %v258
  %v470 = vpop.f32.mrf.mxu0
  %v471 = vadd.f32 0.0, %v470
  %472 = vmatmul.f32.gmra.mxu0 %v261
  %v473 = vpop.f32.mrf.mxu0
  %v474 = vadd.f32 0.0, %v473
  %475 = vmatmul.f32.gmra.mxu0 %v264
  %v476 = vpop.f32.mrf.mxu0
  %v477 = vadd.f32 0.0, %v476
  %478 = vmatmul.f32.gmra.mxu0 %v267
  %v479 = vpop.f32.mrf.mxu0
  %v480 = vadd.f32 0.0, %v479
  %481 = vdwg.mxu0
  %vm482 = vcmask 64512
  %483 = vst.msk [vmem:[%s2] sm:$0xff] %vm482, %v291
  %484 = vst.msk [vmem:[%s2 + $0x8] sm:$0xff] %vm482, %v294
  %485 = vst.msk [vmem:[%s2 + $0x10] sm:$0xff] %vm482, %v297
  %486 = vst.msk [vmem:[%s2 + $0x18] sm:$0xff] %vm482, %v300
  %487 = vst.msk [vmem:[%s2 + $0x20] sm:$0xff] %vm482, %v303
  %488 = vst.msk [vmem:[%s2 + $0x28] sm:$0xff] %vm482, %v306
  %489 = vst.msk [vmem:[%s2 + $0x30] sm:$0xff] %vm482, %v309
  %490 = vst.msk [vmem:[%s2 + $0x38] sm:$0xff] %vm482, %v312
  %491 = vst.msk [vmem:[%s2 + $0x40] sm:$0xff] %vm482, %v315
  %492 = vst.msk [vmem:[%s2 + $0x48] sm:$0xff] %vm482, %v318
  %493 = vst.msk [vmem:[%s2 + $0x50] sm:$0xff] %vm482, %v321
  %494 = vst.msk [vmem:[%s2 + $0x58] sm:$0xff] %vm482, %v324
  %495 = vst.msk [vmem:[%s2 + $0x60] sm:$0xff] %vm482, %v327
  %496 = vst.msk [vmem:[%s2 + $0x68] sm:$0xff] %vm482, %v330
  %497 = vst.msk [vmem:[%s2 + $0x70] sm:$0xff] %vm482, %v333
  %498 = vst.msk [vmem:[%s2 + $0x78] sm:$0xff] %vm482, %v336
  %499 = vst.msk [vmem:[%s2 + $0x80] sm:$0xff] %vm482, %v339
  %500 = vst.msk [vmem:[%s2 + $0x88] sm:$0xff] %vm482, %v342
  %501 = vst.msk [vmem:[%s2 + $0x90] sm:$0xff] %vm482, %v345
  %502 = vst.msk [vmem:[%s2 + $0x98] sm:$0xff] %vm482, %v348
  %503 = vst.msk [vmem:[%s2 + $0xa0] sm:$0xff] %vm482, %v351
  %504 = vst.msk [vmem:[%s2 + $0xa8] sm:$0xff] %vm482, %v354
  %505 = vst.msk [vmem:[%s2 + $0xb0] sm:$0xff] %vm482, %v357
  %506 = vst.msk [vmem:[%s2 + $0xb8] sm:$0xff] %vm482, %v360
  %507 = vst.msk [vmem:[%s2 + $0xc0] sm:$0xff] %vm482, %v363
  %508 = vst.msk [vmem:[%s2 + $0xc8] sm:$0xff] %vm482, %v366
  %509 = vst.msk [vmem:[%s2 + $0xd0] sm:$0xff] %vm482, %v369
  %510 = vst.msk [vmem:[%s2 + $0xd8] sm:$0xff] %vm482, %v372
  %511 = vst.msk [vmem:[%s2 + $0xe0] sm:$0xff] %vm482, %v375
  %512 = vst.msk [vmem:[%s2 + $0xe8] sm:$0xff] %vm482, %v378
  %513 = vst.msk [vmem:[%s2 + $0xf0] sm:$0xff] %vm482, %v381
  %514 = vst.msk [vmem:[%s2 + $0xf8] sm:$0xff] %vm482, %v384
  %515 = vst.msk [vmem:[%s2 + $0x100] sm:$0xff] %vm482, %v387
  %516 = vst.msk [vmem:[%s2 + $0x108] sm:$0xff] %vm482, %v390
  %517 = vst.msk [vmem:[%s2 + $0x110] sm:$0xff] %vm482, %v393
  %518 = vst.msk [vmem:[%s2 + $0x118] sm:$0xff] %vm482, %v396
  %519 = vst.msk [vmem:[%s2 + $0x120] sm:$0xff] %vm482, %v399
  %520 = vst.msk [vmem:[%s2 + $0x128] sm:$0xff] %vm482, %v402
  %521 = vst.msk [vmem:[%s2 + $0x130] sm:$0xff] %vm482, %v405
  %522 = vst.msk [vmem:[%s2 + $0x138] sm:$0xff] %vm482, %v408
  %523 = vst.msk [vmem:[%s2 + $0x140] sm:$0xff] %vm482, %v411
  %524 = vst.msk [vmem:[%s2 + $0x148] sm:$0xff] %vm482, %v414
  %525 = vst.msk [vmem:[%s2 + $0x150] sm:$0xff] %vm482, %v417
  %526 = vst.msk [vmem:[%s2 + $0x158] sm:$0xff] %vm482, %v420
  %527 = vst.msk [vmem:[%s2 + $0x160] sm:$0xff] %vm482, %v423
  %528 = vst.msk [vmem:[%s2 + $0x168] sm:$0xff] %vm482, %v426
  %529 = vst.msk [vmem:[%s2 + $0x170] sm:$0xff] %vm482, %v429
  %530 = vst.msk [vmem:[%s2 + $0x178] sm:$0xff] %vm482, %v432
  %531 = vst.msk [vmem:[%s2 + $0x180] sm:$0xff] %vm482, %v435
  %532 = vst.msk [vmem:[%s2 + $0x188] sm:$0xff] %vm482, %v438
  %533 = vst.msk [vmem:[%s2 + $0x190] sm:$0xff] %vm482, %v441
  %534 = vst.msk [vmem:[%s2 + $0x198] sm:$0xff] %vm482, %v444
  %535 = vst.msk [vmem:[%s2 + $0x1a0] sm:$0xff] %vm482, %v447
  %536 = vst.msk [vmem:[%s2 + $0x1a8] sm:$0xff] %vm482, %v450
  %537 = vst.msk [vmem:[%s2 + $0x1b0] sm:$0xff] %vm482, %v453
  %538 = vst.msk [vmem:[%s2 + $0x1b8] sm:$0xff] %vm482, %v456
  %539 = vst.msk [vmem:[%s2 + $0x1c0] sm:$0xff] %vm482, %v459
  %540 = vst.msk [vmem:[%s2 + $0x1c8] sm:$0xff] %vm482, %v462
  %541 = vst.msk [vmem:[%s2 + $0x1d0] sm:$0xff] %vm482, %v465
  %542 = vst.msk [vmem:[%s2 + $0x1d8] sm:$0xff] %vm482, %v468
  %543 = vst.msk [vmem:[%s2 + $0x1e0] sm:$0xff] %vm482, %v471
  %544 = vst.msk [vmem:[%s2 + $0x1e8] sm:$0xff] %vm482, %v474
  %545 = vst.msk [vmem:[%s2 + $0x1f0] sm:$0xff] %vm482, %v477
  %546 = vst.msk [vmem:[%s2 + $0x1f8] sm:$0xff] %vm482, %v480
  // Predicated region
  $region10: #{gen_res_blk_forward.6} parent=0 // pred_check
    _
  $region11: #{gen_res_blk_forward.6} parent=0 // pred_check_branch
    %548 = sbr.rel (0) target = $region13
  $region12: #{gen_res_blk_forward.6} parent=0 // pred_region
    _
  $region13: #{gen_res_blk_forward.6} parent=0 // pred_fallthru
    _
  // Predicated region
  $region14: #{gen_res_blk_forward.6} parent=0 // pred_check
    _
  $region15: #{gen_res_blk_forward.6} parent=0 // pred_check_branch
    %550 = sbr.rel (0) target = $region17
  $region16: #{gen_res_blk_forward.6} parent=0 // pred_region
    _
  $region17: #{gen_res_blk_forward.6} parent=0 // pred_fallthru
    _

// kernel: gen_res_blk_forward.5
$region0: #{gen_res_blk_forward.5}
  #allocation0 [shape = 'u32[]', space=smem, size = 0x4, offset = 0x4, fixed_abs, tag = 'smem constant byte address 0x4 - core index']
  #allocation1 [shape = 'u32[72,128]{1,0:T(1,128)}', space=vmem, size = 0x9000, scoped, tag = 'internal scratch']
  #allocation2 [shape = 'f32[16,20,4]{2,1,0:T(8,128)}', space=vmem, size = 0x30000, scoped, tag = 'scratch operand']
  #allocation3 [shape = 'f32[20,16,20]{2,1,0:T(8,128)}', space=vmem, size = 0x28000, scoped, tag = 'scratch operand']
  %s0 = inlined_call_operand.vmem [shape: f32[2,16,16,4], index: 0, kind: input, shape index: {}]
  %s1 = inlined_call_operand.vmem [shape: f32[1,4], index: 1, kind: input, shape index: {}]
  %s2 = inlined_call_operand.vmem [shape: f32[1,4], index: 2, kind: input, shape index: {}]
  %s3 = inlined_call_operand.vmem [shape: f32[5,20,8], index: 3, kind: input, shape index: {}]
  %s4 = inlined_call_operand.vmem [shape: f32[1,8], index: 4, kind: input, shape index: {}]
  %s5 = inlined_call_operand.vmem [shape: f32[2,256,8], index: 5, kind: output, shape index: {0}]
  %s6 = inlined_call_operand.vmem [shape: f32[2,2,8], index: 6, kind: output, shape index: {1}]
  %7 = xla_tuple %s5, %s6
  %s8 = sld [smem:[#allocation0]]
  $region65: #{gen_res_blk_forward.5} parent=0
    _
  %s10 = ssub.s32 1, %s8
  %s11 = scalar_select 0, %s10, %s8
  loop: start=0, step=1, limit=4
  $region2: #{gen_res_blk_forward.5} parent=0 // loop_pre_header
    _
  $region3: #{gen_res_blk_forward.5} parent=0 // loop_header
    %s13 = sphi 0, %s17
    %p14 = scmp.ge.s32.totalorder %s13, 4
    %s20 = sphi 0, %s32
    %s21 = sphi 0, %s28
    %s22 = sphi 0, %s20
    %s23 = sphi 0, %s21
    %s24 = sphi 0, %s22
    %s25 = sphi 0, %s23
    %s35 = sphi 0, %s37
    %s38 = sphi 0, %s35
    %s39 = sphi 0, %s38
    %s55 = sphi 0, %s39
    %s59 = sphi 0, %s59
    %s61 = sphi 0, %s59
    %s62 = sphi 0, %s61
    %s76 = sphi 0, %s62
    %s80 = sphi 0, %s80
    %s82 = sphi 0, %s80
    %s83 = sphi 0, %s82
    %s97 = sphi 0, %s83
    %s103 = sphi 0, %s105
    %s106 = sphi 0, %s103
    %s107 = sphi 0, %s106
    %s123 = sphi 0, %s107
    %s129 = sphi 0, %s131
    %s132 = sphi 0, %s129
    %s133 = sphi 0, %s132
    %s149 = sphi 0, %s133
    %s157 = sphi 0, %s159
    %s160 = sphi 0, %s157
    %s161 = sphi 0, %s160
    %s177 = sphi 0, %s161
    %s185 = sphi 0, %s187
    %s188 = sphi 0, %s185
    %s189 = sphi 0, %s188
    %s205 = sphi 0, %s189
  $region4: #{gen_res_blk_forward.5} parent=0 // loop_header_branch
    %16 = sbr.rel (%p14) target = $region8
  $region5: #{gen_res_blk_forward.5} parent=0 // loop_body
    %s18 = ssub.s32 %s13, 1
    %s19 = ssub.s32 %s13, 2
    %s26 = sadd.s32 1, %s21
    %p27 = scmp.ge.s32.totalorder %s26, 1
    %s28 = scalar_select %p27, 0, %s26
    %s29 = sadd.s32 1, %s20
    %s30 = scalar_select %p27, %s29, %s20
    %p31 = scmp.ge.s32.totalorder %s30, 2
    %s32 = scalar_select %p31, 0, %s30
    %s33 = ssub.s32 %s20, %s32
    %p34 = scmp.eq.s32.totalorder %s33, 0
    %s36 = sadd.s32 %s35, 1
    %s37 = scalar_select %p34, %s35, %s36
    %p40 = pneg %p34
    %p41 = scmp.eq.s32.totalorder %s13, 1
    %p42 = por %p40, %p41
    %p43 = scmp.ne.s32.totalorder %s35, %s38
    %p44 = scmp.eq.s32.totalorder %s13, 0
    %p45 = por %p43, %p44
    %p46 = scmp.ne.s32.totalorder %s35, %s38
    %p47 = scmp.eq.s32.totalorder %s18, 1
    %p48 = por %p46, %p47
    %p49 = scmp.ne.s32.totalorder %s38, %s39
    %p50 = scmp.eq.s32.totalorder %s18, 0
    %p51 = por %p49, %p50
    %p52 = scmp.ne.s32.totalorder %s38, %s39
    %p53 = scmp.eq.s32.totalorder %s19, 1
    %p54 = por %p52, %p53
    %p56 = scmp.ne.s32.totalorder %s39, %s55
    %p57 = scmp.eq.s32.totalorder %s19, 0
    %p58 = por %p56, %p57
    %s60 = sadd.s32 %s59, 1
    %p63 = scmp.eq.s32.totalorder %s13, 1
    %p64 = scmp.ne.s32.totalorder %s59, %s61
    %p65 = scmp.eq.s32.totalorder %s13, 0
    %p66 = por %p64, %p65
    %p67 = scmp.ne.s32.totalorder %s59, %s61
    %p68 = scmp.eq.s32.totalorder %s18, 1
    %p69 = por %p67, %p68
    %p70 = scmp.ne.s32.totalorder %s61, %s62
    %p71 = scmp.eq.s32.totalorder %s18, 0
    %p72 = por %p70, %p71
    %p73 = scmp.ne.s32.totalorder %s61, %s62
    %p74 = scmp.eq.s32.totalorder %s19, 1
    %p75 = por %p73, %p74
    %p77 = scmp.ne.s32.totalorder %s62, %s76
    %p78 = scmp.eq.s32.totalorder %s19, 0
    %p79 = por %p77, %p78
    %s81 = sadd.s32 %s80, 1
    %p84 = scmp.eq.s32.totalorder %s13, 1
    %p85 = scmp.ne.s32.totalorder %s80, %s82
    %p86 = scmp.eq.s32.totalorder %s13, 0
    %p87 = por %p85, %p86
    %p88 = scmp.ne.s32.totalorder %s80, %s82
    %p89 = scmp.eq.s32.totalorder %s18, 1
    %p90 = por %p88, %p89
    %p91 = scmp.ne.s32.totalorder %s82, %s83
    %p92 = scmp.eq.s32.totalorder %s18, 0
    %p93 = por %p91, %p92
    %p94 = scmp.ne.s32.totalorder %s82, %s83
    %p95 = scmp.eq.s32.totalorder %s19, 1
    %p96 = por %p94, %p95
    %p98 = scmp.ne.s32.totalorder %s83, %s97
    %p99 = scmp.eq.s32.totalorder %s19, 0
    %p100 = por %p98, %p99
    %s101 = ssub.s32 %s21, %s28
    %p102 = scmp.eq.s32.totalorder %s101, 0
    %s104 = sadd.s32 %s103, 1
    %s105 = scalar_select %p102, %s103, %s104
    %p108 = pneg %p102
    %p109 = scmp.eq.s32.totalorder %s13, 1
    %p110 = por %p108, %p109
    %p111 = scmp.ne.s32.totalorder %s103, %s106
    %p112 = scmp.eq.s32.totalorder %s13, 0
    %p113 = por %p111, %p112
    %p114 = scmp.ne.s32.totalorder %s103, %s106
    %p115 = scmp.eq.s32.totalorder %s18, 1
    %p116 = por %p114, %p115
    %p117 = scmp.ne.s32.totalorder %s106, %s107
    %p118 = scmp.eq.s32.totalorder %s18, 0
    %p119 = por %p117, %p118
    %p120 = scmp.ne.s32.totalorder %s106, %s107
    %p121 = scmp.eq.s32.totalorder %s19, 1
    %p122 = por %p120, %p121
    %p124 = scmp.ne.s32.totalorder %s107, %s123
    %p125 = scmp.eq.s32.totalorder %s19, 0
    %p126 = por %p124, %p125
    %s127 = ssub.s32 %s21, %s28
    %p128 = scmp.eq.s32.totalorder %s127, 0
    %s130 = sadd.s32 %s129, 1
    %s131 = scalar_select %p128, %s129, %s130
    %p134 = pneg %p128
    %p135 = scmp.eq.s32.totalorder %s13, 1
    %p136 = por %p134, %p135
    %p137 = scmp.ne.s32.totalorder %s129, %s132
    %p138 = scmp.eq.s32.totalorder %s13, 0
    %p139 = por %p137, %p138
    %p140 = scmp.ne.s32.totalorder %s129, %s132
    %p141 = scmp.eq.s32.totalorder %s18, 1
    %p142 = por %p140, %p141
    %p143 = scmp.ne.s32.totalorder %s132, %s133
    %p144 = scmp.eq.s32.totalorder %s18, 0
    %p145 = por %p143, %p144
    %p146 = scmp.ne.s32.totalorder %s132, %s133
    %p147 = scmp.eq.s32.totalorder %s19, 1
    %p148 = por %p146, %p147
    %p150 = scmp.ne.s32.totalorder %s133, %s149
    %p151 = scmp.eq.s32.totalorder %s19, 0
    %p152 = por %p150, %p151
    %s153 = ssub.s32 %s20, %s32
    %s154 = ssub.s32 %s21, %s28
    %s155 = sor.u32 %s153, %s154
    %p156 = scmp.eq.s32.totalorder %s155, 0
    %s158 = sadd.s32 %s157, 1
    %s159 = scalar_select %p156, %s157, %s158
    %p162 = pneg %p156
    %p163 = scmp.eq.s32.totalorder %s13, 1
    %p164 = por %p162, %p163
    %p165 = scmp.ne.s32.totalorder %s157, %s160
    %p166 = scmp.eq.s32.totalorder %s13, 0
    %p167 = por %p165, %p166
    %p168 = scmp.ne.s32.totalorder %s157, %s160
    %p169 = scmp.eq.s32.totalorder %s18, 1
    %p170 = por %p168, %p169
    %p171 = scmp.ne.s32.totalorder %s160, %s161
    %p172 = scmp.eq.s32.totalorder %s18, 0
    %p173 = por %p171, %p172
    %p174 = scmp.ne.s32.totalorder %s160, %s161
    %p175 = scmp.eq.s32.totalorder %s19, 1
    %p176 = por %p174, %p175
    %p178 = scmp.ne.s32.totalorder %s161, %s177
    %p179 = scmp.eq.s32.totalorder %s19, 0
    %p180 = por %p178, %p179
    %s181 = ssub.s32 %s20, %s32
    %s182 = ssub.s32 %s21, %s28
    %s183 = sor.u32 %s181, %s182
    %p184 = scmp.eq.s32.totalorder %s183, 0
    %s186 = sadd.s32 %s185, 1
    %s187 = scalar_select %p184, %s185, %s186
    %p190 = pneg %p184
    %p191 = scmp.eq.s32.totalorder %s13, 1
    %p192 = por %p190, %p191
    %p193 = scmp.ne.s32.totalorder %s185, %s188
    %p194 = scmp.eq.s32.totalorder %s13, 0
    %p195 = por %p193, %p194
    %p196 = scmp.ne.s32.totalorder %s185, %s188
    %p197 = scmp.eq.s32.totalorder %s18, 1
    %p198 = por %p196, %p197
    %p199 = scmp.ne.s32.totalorder %s188, %s189
    %p200 = scmp.eq.s32.totalorder %s18, 0
    %p201 = por %p199, %p200
    %p202 = scmp.ne.s32.totalorder %s188, %s189
    %p203 = scmp.eq.s32.totalorder %s19, 1
    %p204 = por %p202, %p203
    %p206 = scmp.ne.s32.totalorder %s189, %s205
    %p207 = scmp.eq.s32.totalorder %s19, 0
    %p208 = por %p206, %p207
    %p209 = scmp.le.s32.totalorder 1, %s13
    %p210 = scmp.lt.s32.totalorder %s13, 3
    %p211 = pnand %p209, %p210
    %p212 = pneg %p211
    // Predicated region
    $region9: #{gen_res_blk_forward.5} parent=5 // pred_check
      _
    $region10: #{gen_res_blk_forward.5} parent=5 // pred_check_branch
      %214 = sbr.rel (%p211) target = $region12
    $region11: #{gen_res_blk_forward.5} parent=5 // pred_region
      %s215 = ssub.s32 %s13, 1
      // Predicated region
      $region13: #{gen_res_blk_forward.5} parent=11 // pred_check
        %p216 = pneg %p72
      $region14: #{gen_res_blk_forward.5} parent=11 // pred_check_branch
        %218 = sbr.rel (%p216) target = $region16
      $region15: #{gen_res_blk_forward.5} parent=11 // pred_region
        _
      $region16: #{gen_res_blk_forward.5} parent=11 // pred_fallthru
        _
      // Predicated region
      $region17: #{gen_res_blk_forward.5} parent=11 // pred_check
        %p219 = pneg %p93
      $region18: #{gen_res_blk_forward.5} parent=11 // pred_check_branch
        %221 = sbr.rel (%p219) target = $region20
      $region19: #{gen_res_blk_forward.5} parent=11 // pred_region
        _
      $region20: #{gen_res_blk_forward.5} parent=11 // pred_fallthru
        _
      // Predicated region
      $region21: #{gen_res_blk_forward.5} parent=11 // pred_check
        %p222 = pneg %p119
      $region22: #{gen_res_blk_forward.5} parent=11 // pred_check_branch
        %224 = sbr.rel (%p222) target = $region24
      $region23: #{gen_res_blk_forward.5} parent=11 // pred_region
        %p225 = scmp.lt.s32.totalorder %s23, 0
        %s226 = scalar_select %p225, %s23, 0
        %s227 = smul.addr %s226, 8
        %s228 = scalar_lea.vmem %s3, %s227
      $region24: #{gen_res_blk_forward.5} parent=11 // pred_fallthru
        _
      // Predicated region
      $region25: #{gen_res_blk_forward.5} parent=11 // pred_check
        %p229 = pneg %p145
      $region26: #{gen_res_blk_forward.5} parent=11 // pred_check_branch
        %231 = sbr.rel (%p229) target = $region28
      $region27: #{gen_res_blk_forward.5} parent=11 // pred_region
        %p232 = scmp.lt.s32.totalorder %s23, 0
        %s233 = scalar_select %p232, %s23, 0
        %s234 = scalar_lea.vmem %s4, %s233
      $region28: #{gen_res_blk_forward.5} parent=11 // pred_fallthru
        _
    $region12: #{gen_res_blk_forward.5} parent=5 // pred_fallthru
      _
    %p235 = scmp.lt.s32.totalorder %s13, 2
    // Predicated region
    $region29: #{gen_res_blk_forward.5} parent=5 // pred_check
      %p236 = pneg %p235
    $region30: #{gen_res_blk_forward.5} parent=5 // pred_check_branch
      %238 = sbr.rel (%p236) target = $region32
    $region31: #{gen_res_blk_forward.5} parent=5 // pred_region
      // Predicated region
      $region33: #{gen_res_blk_forward.5} parent=31 // pred_check
        %p239 = pneg %p45
      $region34: #{gen_res_blk_forward.5} parent=31 // pred_check_branch
        %241 = sbr.rel (%p239) target = $region36
      $region35: #{gen_res_blk_forward.5} parent=31 // pred_region
        %p242 = scmp.lt.s32.totalorder %s20, 1
        %s243 = scalar_select %p242, %s20, 1
        %s244 = smul.addr %s243, 32
        %s245 = smul.addr %s244, 8
        %s246 = scalar_lea.vmem %s0, %s245
      $region36: #{gen_res_blk_forward.5} parent=31 // pred_fallthru
        _
    $region32: #{gen_res_blk_forward.5} parent=5 // pred_fallthru
      _
    %p247 = scmp.le.s32.totalorder 1, %s13
    %p248 = scmp.lt.s32.totalorder %s13, 3
    %p249 = pnand %p247, %p248
    %p250 = pneg %p249
    // Predicated region
    $region37: #{gen_res_blk_forward.5} parent=5 // pred_check
      _
    $region38: #{gen_res_blk_forward.5} parent=5 // pred_check_branch
      %252 = sbr.rel (%p249) target = $region40
    $region39: #{gen_res_blk_forward.5} parent=5 // pred_region
      %s253 = ssub.s32 %s13, 1
      %p254 = scmp.lt.s32.totalorder %s22, 1
      %s255 = scalar_select %p254, %s22, 1
      %s256 = smul.addr %s255, 32
      %s257 = smul.addr %s256, 8
      %s258 = scalar_lea.vmem %s0, %s257
      %p259 = pneg %p51
      %p260 = pneg %p48
      %p261 = pneg %p72
      %p262 = pneg %p69
      %p263 = pneg %p93
      %p264 = pneg %p90
      %p265 = scmp.lt.s32.totalorder %s23, 0
      %s266 = scalar_select %p265, %s23, 0
      %s267 = smul.addr %s266, 8
      %s268 = scalar_lea.vmem %s3, %s267
      %p269 = pneg %p119
      %p270 = pneg %p116
      %p271 = scmp.lt.s32.totalorder %s23, 0
      %s272 = scalar_select %p271, %s23, 0
      %s273 = scalar_lea.vmem %s4, %s272
      %p274 = pneg %p145
      %p275 = pneg %p142
      %p276 = pneg %p173
      %p277 = pneg %p170
      %p278 = scmp.lt.s32.totalorder %s22, 1
      %s279 = scalar_select %p278, %s22, 1
      %p280 = scmp.lt.s32.totalorder %s23, 0
      %s281 = scalar_select %p280, %s23, 0
      %s282 = smul.addr %s279, 32
      %s283 = sadd.s32 %s281, %s282
      %s284 = smul.addr %s283, 8
      %s285 = scalar_lea.vmem %s5, %s284
      %p286 = pneg %p201
      %p287 = pneg %p198
      %p288 = scmp.lt.s32.totalorder %s22, 1
      %s289 = scalar_select %p288, %s22, 1
      %p290 = scmp.lt.s32.totalorder %s23, 0
      %s291 = scalar_select %p290, %s23, 0
      %s292 = sadd.s32 %s291, %s289
      %s293 = smul.addr %s292, 2
      %s294 = scalar_lea.vmem %s6, %s293
      %p295 = scmp.lt.s32.totalorder %s22, 1
      %s296 = scalar_select %p295, %s22, 1
      %s297 = smul.addr %s296, 32
      %s298 = smul.addr %s297, 8
      %s299 = scalar_lea.vmem %s0, %s298
      %p300 = scmp.lt.s32.totalorder %s23, 0
      %s301 = scalar_select %p300, %s23, 0
      %s302 = smul.addr %s301, 8
      %s303 = scalar_lea.vmem %s3, %s302
      %p304 = scmp.lt.s32.totalorder %s23, 0
      %s305 = scalar_select %p304, %s23, 0
      %s306 = scalar_lea.vmem %s4, %s305
      %p307 = scmp.lt.s32.totalorder %s22, 1
      %s308 = scalar_select %p307, %s22, 1
      %p309 = scmp.lt.s32.totalorder %s23, 0
      %s310 = scalar_select %p309, %s23, 0
      %s311 = smul.addr %s308, 32
      %s312 = sadd.s32 %s310, %s311
      %s313 = smul.addr %s312, 8
      %s314 = scalar_lea.vmem %s5, %s313
      %p315 = scmp.lt.s32.totalorder %s22, 1
      %s316 = scalar_select %p315, %s22, 1
      %p317 = scmp.lt.s32.totalorder %s23, 0
      %s318 = scalar_select %p317, %s23, 0
      %s319 = sadd.s32 %s318, %s316
      %s320 = smul.addr %s319, 2
      %s321 = scalar_lea.vmem %s6, %s320
      %p322 = scmp.eq.s32.totalorder %s23, 0
      // Predicated region
      $region41: #{gen_res_blk_forward.5} parent=39 // pred_check
        %p323 = pneg %p322
      $region42: #{gen_res_blk_forward.5} parent=39 // pred_check_branch
        %325 = sbr.rel (%p323) target = $region44
      $region43: #{gen_res_blk_forward.5} parent=39 // pred_region
        %v326 = vld [vmem:[%s299] sm:$0xff]
        %v327 = vld [vmem:[%s299 + $0x8] sm:$0xff]
        %v328 = vld [vmem:[%s299 + $0x10] sm:$0xff]
        %v329 = vld [vmem:[%s299 + $0x18] sm:$0xff]
        %v330 = vld [vmem:[%s299 + $0x20] sm:$0xff]
        %v331 = vld [vmem:[%s299 + $0x28] sm:$0xff]
        %v332 = vld [vmem:[%s299 + $0x30] sm:$0xff]
        %v333 = vld [vmem:[%s299 + $0x38] sm:$0xff]
        %v334 = vld [vmem:[%s299 + $0x40] sm:$0xff]
        %v335 = vld [vmem:[%s299 + $0x48] sm:$0xff]
        %v336 = vld [vmem:[%s299 + $0x50] sm:$0xff]
        %v337 = vld [vmem:[%s299 + $0x58] sm:$0xff]
        %v338 = vld [vmem:[%s299 + $0x60] sm:$0xff]
        %v339 = vld [vmem:[%s299 + $0x68] sm:$0xff]
        %v340 = vld [vmem:[%s299 + $0x70] sm:$0xff]
        %v341 = vld [vmem:[%s299 + $0x78] sm:$0xff]
        %v342 = vld [vmem:[%s299 + $0x80] sm:$0xff]
        %v343 = vld [vmem:[%s299 + $0x88] sm:$0xff]
        %v344 = vld [vmem:[%s299 + $0x90] sm:$0xff]
        %v345 = vld [vmem:[%s299 + $0x98] sm:$0xff]
        %v346 = vld [vmem:[%s299 + $0xa0] sm:$0xff]
        %v347 = vld [vmem:[%s299 + $0xa8] sm:$0xff]
        %v348 = vld [vmem:[%s299 + $0xb0] sm:$0xff]
        %v349 = vld [vmem:[%s299 + $0xb8] sm:$0xff]
        %v350 = vld [vmem:[%s299 + $0xc0] sm:$0xff]
        %v351 = vld [vmem:[%s299 + $0xc8] sm:$0xff]
        %v352 = vld [vmem:[%s299 + $0xd0] sm:$0xff]
        %v353 = vld [vmem:[%s299 + $0xd8] sm:$0xff]
        %v354 = vld [vmem:[%s299 + $0xe0] sm:$0xff]
        %v355 = vld [vmem:[%s299 + $0xe8] sm:$0xff]
        %v356 = vld [vmem:[%s299 + $0xf0] sm:$0xff]
        %v357 = vld [vmem:[%s299 + $0xf8] sm:$0xff]
        %v358 = vld [vmem:[%s1] sm:$0x1]
        %v360 = vperm.slane %v358, 0
        %v362 = vmul.f32 %v326, %v360
        %v363 = vmul.f32 %v327, %v360
        %v364 = vmul.f32 %v328, %v360
        %v365 = vmul.f32 %v329, %v360
        %v366 = vmul.f32 %v330, %v360
        %v367 = vmul.f32 %v331, %v360
        %v368 = vmul.f32 %v332, %v360
        %v369 = vmul.f32 %v333, %v360
        %v370 = vmul.f32 %v334, %v360
        %v371 = vmul.f32 %v335, %v360
        %v372 = vmul.f32 %v336, %v360
        %v373 = vmul.f32 %v337, %v360
        %v374 = vmul.f32 %v338, %v360
        %v375 = vmul.f32 %v339, %v360
        %v376 = vmul.f32 %v340, %v360
        %v377 = vmul.f32 %v341, %v360
        %v378 = vmul.f32 %v342, %v360
        %v379 = vmul.f32 %v343, %v360
        %v380 = vmul.f32 %v344, %v360
        %v381 = vmul.f32 %v345, %v360
        %v382 = vmul.f32 %v346, %v360
        %v383 = vmul.f32 %v347, %v360
        %v384 = vmul.f32 %v348, %v360
        %v385 = vmul.f32 %v349, %v360
        %v386 = vmul.f32 %v350, %v360
        %v387 = vmul.f32 %v351, %v360
        %v388 = vmul.f32 %v352, %v360
        %v389 = vmul.f32 %v353, %v360
        %v390 = vmul.f32 %v354, %v360
        %v391 = vmul.f32 %v355, %v360
        %v392 = vmul.f32 %v356, %v360
        %v393 = vmul.f32 %v357, %v360
        %v394 = vld [vmem:[%s2] sm:$0x1]
        %v396 = vperm.slane %v394, 0
        %v398 = vadd.f32 %v362, %v396
        %v399 = vadd.f32 %v363, %v396
        %v400 = vadd.f32 %v364, %v396
        %v401 = vadd.f32 %v365, %v396
        %v402 = vadd.f32 %v366, %v396
        %v403 = vadd.f32 %v367, %v396
        %v404 = vadd.f32 %v368, %v396
        %v405 = vadd.f32 %v369, %v396
        %v406 = vadd.f32 %v370, %v396
        %v407 = vadd.f32 %v371, %v396
        %v408 = vadd.f32 %v372, %v396
        %v409 = vadd.f32 %v373, %v396
        %v410 = vadd.f32 %v374, %v396
        %v411 = vadd.f32 %v375, %v396
        %v412 = vadd.f32 %v376, %v396
        %v413 = vadd.f32 %v377, %v396
        %v414 = vadd.f32 %v378, %v396
        %v415 = vadd.f32 %v379, %v396
        %v416 = vadd.f32 %v380, %v396
        %v417 = vadd.f32 %v381, %v396
        %v418 = vadd.f32 %v382, %v396
        %v419 = vadd.f32 %v383, %v396
        %v420 = vadd.f32 %v384, %v396
        %v421 = vadd.f32 %v385, %v396
        %v422 = vadd.f32 %v386, %v396
        %v423 = vadd.f32 %v387, %v396
        %v424 = vadd.f32 %v388, %v396
        %v425 = vadd.f32 %v389, %v396
        %v426 = vadd.f32 %v390, %v396
        %v427 = vadd.f32 %v391, %v396
        %v428 = vadd.f32 %v392, %v396
        %v429 = vadd.f32 %v393, %v396
        %vm430 = vcmp.ge.f32.partialorder %v398, 0.0
        %vm431 = vcmp.ge.f32.partialorder %v399, 0.0
        %vm432 = vcmp.ge.f32.partialorder %v400, 0.0
        %vm433 = vcmp.ge.f32.partialorder %v401, 0.0
        %vm434 = vcmp.ge.f32.partialorder %v402, 0.0
        %vm435 = vcmp.ge.f32.partialorder %v403, 0.0
        %vm436 = vcmp.ge.f32.partialorder %v404, 0.0
        %vm437 = vcmp.ge.f32.partialorder %v405, 0.0
        %vm438 = vcmp.ge.f32.partialorder %v406, 0.0
        %vm439 = vcmp.ge.f32.partialorder %v407, 0.0
        %vm440 = vcmp.ge.f32.partialorder %v408, 0.0
        %vm441 = vcmp.ge.f32.partialorder %v409, 0.0
        %vm442 = vcmp.ge.f32.partialorder %v410, 0.0
        %vm443 = vcmp.ge.f32.partialorder %v411, 0.0
        %vm444 = vcmp.ge.f32.partialorder %v412, 0.0
        %vm445 = vcmp.ge.f32.partialorder %v413, 0.0
        %vm446 = vcmp.ge.f32.partialorder %v414, 0.0
        %vm447 = vcmp.ge.f32.partialorder %v415, 0.0
        %vm448 = vcmp.ge.f32.partialorder %v416, 0.0
        %vm449 = vcmp.ge.f32.partialorder %v417, 0.0
        %vm450 = vcmp.ge.f32.partialorder %v418, 0.0
        %vm451 = vcmp.ge.f32.partialorder %v419, 0.0
        %vm452 = vcmp.ge.f32.partialorder %v420, 0.0
        %vm453 = vcmp.ge.f32.partialorder %v421, 0.0
        %vm454 = vcmp.ge.f32.partialorder %v422, 0.0
        %vm455 = vcmp.ge.f32.partialorder %v423, 0.0
        %vm456 = vcmp.ge.f32.partialorder %v424, 0.0
        %vm457 = vcmp.ge.f32.partialorder %v425, 0.0
        %vm458 = vcmp.ge.f32.partialorder %v426, 0.0
        %vm459 = vcmp.ge.f32.partialorder %v427, 0.0
        %vm460 = vcmp.ge.f32.partialorder %v428, 0.0
        %vm461 = vcmp.ge.f32.partialorder %v429, 0.0
        %v462 = vmul.f32 %v398, 0.2
        %v463 = vmul.f32 %v399, 0.2
        %v464 = vmul.f32 %v400, 0.2
        %v465 = vmul.f32 %v401, 0.2
        %v466 = vmul.f32 %v402, 0.2
        %v467 = vmul.f32 %v403, 0.2
        %v468 = vmul.f32 %v404, 0.2
        %v469 = vmul.f32 %v405, 0.2
        %v470 = vmul.f32 %v406, 0.2
        %v471 = vmul.f32 %v407, 0.2
        %v472 = vmul.f32 %v408, 0.2
        %v473 = vmul.f32 %v409, 0.2
        %v474 = vmul.f32 %v410, 0.2
        %v475 = vmul.f32 %v411, 0.2
        %v476 = vmul.f32 %v412, 0.2
        %v477 = vmul.f32 %v413, 0.2
        %v478 = vmul.f32 %v414, 0.2
        %v479 = vmul.f32 %v415, 0.2
        %v480 = vmul.f32 %v416, 0.2
        %v481 = vmul.f32 %v417, 0.2
        %v482 = vmul.f32 %v418, 0.2
        %v483 = vmul.f32 %v419, 0.2
        %v484 = vmul.f32 %v420, 0.2
        %v485 = vmul.f32 %v421, 0.2
        %v486 = vmul.f32 %v422, 0.2
        %v487 = vmul.f32 %v423, 0.2
        %v488 = vmul.f32 %v424, 0.2
        %v489 = vmul.f32 %v425, 0.2
        %v490 = vmul.f32 %v426, 0.2
        %v491 = vmul.f32 %v427, 0.2
        %v492 = vmul.f32 %v428, 0.2
        %v493 = vmul.f32 %v429, 0.2
        %v494 = vsel %vm430, %v398, %v462
        %v495 = vsel %vm431, %v399, %v463
        %v496 = vsel %vm432, %v400, %v464
        %v497 = vsel %vm433, %v401, %v465
        %v498 = vsel %vm434, %v402, %v466
        %v499 = vsel %vm435, %v403, %v467
        %v500 = vsel %vm436, %v404, %v468
        %v501 = vsel %vm437, %v405, %v469
        %v502 = vsel %vm438, %v406, %v470
        %v503 = vsel %vm439, %v407, %v471
        %v504 = vsel %vm440, %v408, %v472
        %v505 = vsel %vm441, %v409, %v473
        %v506 = vsel %vm442, %v410, %v474
        %v507 = vsel %vm443, %v411, %v475
        %v508 = vsel %vm444, %v412, %v476
        %v509 = vsel %vm445, %v413, %v477
        %v510 = vsel %vm446, %v414, %v478
        %v511 = vsel %vm447, %v415, %v479
        %v512 = vsel %vm448, %v416, %v480
        %v513 = vsel %vm449, %v417, %v481
        %v514 = vsel %vm450, %v418, %v482
        %v515 = vsel %vm451, %v419, %v483
        %v516 = vsel %vm452, %v420, %v484
        %v517 = vsel %vm453, %v421, %v485
        %v518 = vsel %vm454, %v422, %v486
        %v519 = vsel %vm455, %v423, %v487
        %v520 = vsel %vm456, %v424, %v488
        %v521 = vsel %vm457, %v425, %v489
        %v522 = vsel %vm458, %v426, %v490
        %v523 = vsel %vm459, %v427, %v491
        %v524 = vsel %vm460, %v428, %v492
        %v525 = vsel %vm461, %v429, %v493
        %vm526 = vcmask 25600
        %527 = vst.msk [vmem:[#allocation2] sm:$0x3] %vm526, 0.0
        %528 = vst.msk [vmem:[#allocation2 + $0x18] sm:$0x3] %vm526, 0.0
        %529 = vst.msk [vmem:[#allocation2 + $0x30] sm:$0x3] %vm526, 0.0
        %530 = vst.msk [vmem:[#allocation2 + $0x48] sm:$0x3] %vm526, 0.0
        %531 = vst.msk [vmem:[#allocation2 + $0x60] sm:$0x3] %vm526, 0.0
        %532 = vst.msk [vmem:[#allocation2 + $0x78] sm:$0x3] %vm526, 0.0
        %533 = vst.msk [vmem:[#allocation2 + $0x90] sm:$0x3] %vm526, 0.0
        %534 = vst.msk [vmem:[#allocation2 + $0xa8] sm:$0x3] %vm526, 0.0
        %535 = vst.msk [vmem:[#allocation2 + $0xc0] sm:$0x3] %vm526, 0.0
        %536 = vst.msk [vmem:[#allocation2 + $0xd8] sm:$0x3] %vm526, 0.0
        %537 = vst.msk [vmem:[#allocation2 + $0xf0] sm:$0x3] %vm526, 0.0
        %538 = vst.msk [vmem:[#allocation2 + $0x108] sm:$0x3] %vm526, 0.0
        %539 = vst.msk [vmem:[#allocation2 + $0x120] sm:$0x3] %vm526, 0.0
        %540 = vst.msk [vmem:[#allocation2 + $0x138] sm:$0x3] %vm526, 0.0
        %541 = vst.msk [vmem:[#allocation2 + $0x150] sm:$0x3] %vm526, 0.0
        %542 = vst.msk [vmem:[#allocation2 + $0x168] sm:$0x3] %vm526, 0.0
        %543 = vst.msk [vmem:[#allocation2 + $0x12] sm:$0x3] %vm526, 0.0
        %544 = vst.msk [vmem:[#allocation2 + $0x2a] sm:$0x3] %vm526, 0.0
        %545 = vst.msk [vmem:[#allocation2 + $0x42] sm:$0x3] %vm526, 0.0
        %546 = vst.msk [vmem:[#allocation2 + $0x5a] sm:$0x3] %vm526, 0.0
        %547 = vst.msk [vmem:[#allocation2 + $0x72] sm:$0x3] %vm526, 0.0
        %548 = vst.msk [vmem:[#allocation2 + $0x8a] sm:$0x3] %vm526, 0.0
        %549 = vst.msk [vmem:[#allocation2 + $0xa2] sm:$0x3] %vm526, 0.0
        %550 = vst.msk [vmem:[#allocation2 + $0xba] sm:$0x3] %vm526, 0.0
        %551 = vst.msk [vmem:[#allocation2 + $0xd2] sm:$0x3] %vm526, 0.0
        %552 = vst.msk [vmem:[#allocation2 + $0xea] sm:$0x3] %vm526, 0.0
        %553 = vst.msk [vmem:[#allocation2 + $0x102] sm:$0x3] %vm526, 0.0
        %554 = vst.msk [vmem:[#allocation2 + $0x11a] sm:$0x3] %vm526, 0.0
        %555 = vst.msk [vmem:[#allocation2 + $0x132] sm:$0x3] %vm526, 0.0
        %556 = vst.msk [vmem:[#allocation2 + $0x14a] sm:$0x3] %vm526, 0.0
        %557 = vst.msk [vmem:[#allocation2 + $0x162] sm:$0x3] %vm526, 0.0
        %558 = vst.msk [vmem:[#allocation2 + $0x17a] sm:$0x3] %vm526, 0.0
        %vm559 = vcmask 31744
        %560 = vst.msk [vmem:[#allocation2 + $0x2] sm:$0xff] %vm559, %v494
        %561 = vst.msk [vmem:[#allocation2 + $0xa] sm:$0xff] %vm559, %v495
        %562 = vst.msk [vmem:[#allocation2 + $0x1a] sm:$0xff] %vm559, %v496
        %563 = vst.msk [vmem:[#allocation2 + $0x22] sm:$0xff] %vm559, %v497
        %564 = vst.msk [vmem:[#allocation2 + $0x32] sm:$0xff] %vm559, %v498
        %565 = vst.msk [vmem:[#allocation2 + $0x3a] sm:$0xff] %vm559, %v499
        %566 = vst.msk [vmem:[#allocation2 + $0x4a] sm:$0xff] %vm559, %v500
        %567 = vst.msk [vmem:[#allocation2 + $0x52] sm:$0xff] %vm559, %v501
        %568 = vst.msk [vmem:[#allocation2 + $0x62] sm:$0xff] %vm559, %v502
        %569 = vst.msk [vmem:[#allocation2 + $0x6a] sm:$0xff] %vm559, %v503
        %570 = vst.msk [vmem:[#allocation2 + $0x7a] sm:$0xff] %vm559, %v504
        %571 = vst.msk [vmem:[#allocation2 + $0x82] sm:$0xff] %vm559, %v505
        %572 = vst.msk [vmem:[#allocation2 + $0x92] sm:$0xff] %vm559, %v506
        %573 = vst.msk [vmem:[#allocation2 + $0x9a] sm:$0xff] %vm559, %v507
        %574 = vst.msk [vmem:[#allocation2 + $0xaa] sm:$0xff] %vm559, %v508
        %575 = vst.msk [vmem:[#allocation2 + $0xb2] sm:$0xff] %vm559, %v509
        %576 = vst.msk [vmem:[#allocation2 + $0xc2] sm:$0xff] %vm559, %v510
        %577 = vst.msk [vmem:[#allocation2 + $0xca] sm:$0xff] %vm559, %v511
        %578 = vst.msk [vmem:[#allocation2 + $0xda] sm:$0xff] %vm559, %v512
        %579 = vst.msk [vmem:[#allocation2 + $0xe2] sm:$0xff] %vm559, %v513
        %580 = vst.msk [vmem:[#allocation2 + $0xf2] sm:$0xff] %vm559, %v514
        %581 = vst.msk [vmem:[#allocation2 + $0xfa] sm:$0xff] %vm559, %v515
        %582 = vst.msk [vmem:[#allocation2 + $0x10a] sm:$0xff] %vm559, %v516
        %583 = vst.msk [vmem:[#allocation2 + $0x112] sm:$0xff] %vm559, %v517
        %584 = vst.msk [vmem:[#allocation2 + $0x122] sm:$0xff] %vm559, %v518
        %585 = vst.msk [vmem:[#allocation2 + $0x12a] sm:$0xff] %vm559, %v519
        %586 = vst.msk [vmem:[#allocation2 + $0x13a] sm:$0xff] %vm559, %v520
        %587 = vst.msk [vmem:[#allocation2 + $0x142] sm:$0xff] %vm559, %v521
        %588 = vst.msk [vmem:[#allocation2 + $0x152] sm:$0xff] %vm559, %v522
        %589 = vst.msk [vmem:[#allocation2 + $0x15a] sm:$0xff] %vm559, %v523
        %590 = vst.msk [vmem:[#allocation2 + $0x16a] sm:$0xff] %vm559, %v524
        %591 = vst.msk [vmem:[#allocation2 + $0x172] sm:$0xff] %vm559, %v525
        %v592 = vld [vmem:[#allocation2] sm:$0xff]
        %v593 = vld [vmem:[#allocation2 + $0x8] sm:$0xff]
        %v594 = vld [vmem:[#allocation2 + $0x10] sm:$0xf]
        %v595 = vld [vmem:[#allocation2 + $0x18] sm:$0xff]
        %v596 = vld [vmem:[#allocation2 + $0x20] sm:$0xff]
        %v597 = vld [vmem:[#allocation2 + $0x28] sm:$0xf]
        %v598 = vld [vmem:[#allocation2 + $0x30] sm:$0xff]
        %v599 = vld [vmem:[#allocation2 + $0x38] sm:$0xff]
        %v600 = vld [vmem:[#allocation2 + $0x40] sm:$0xf]
        %v601 = vld [vmem:[#allocation2 + $0x48] sm:$0xff]
        %v602 = vld [vmem:[#allocation2 + $0x50] sm:$0xff]
        %v603 = vld [vmem:[#allocation2 + $0x58] sm:$0xf]
        %v604 = vld [vmem:[#allocation2 + $0x60] sm:$0xff]
        %v605 = vld [vmem:[#allocation2 + $0x68] sm:$0xff]
        %v606 = vld [vmem:[#allocation2 + $0x70] sm:$0xf]
        %v607 = vld [vmem:[#allocation2 + $0x78] sm:$0xff]
        %v608 = vld [vmem:[#allocation2 + $0x80] sm:$0xff]
        %v609 = vld [vmem:[#allocation2 + $0x88] sm:$0xf]
        %v610 = vld [vmem:[#allocation2 + $0x90] sm:$0xff]
        %v611 = vld [vmem:[#allocation2 + $0x98] sm:$0xff]
        %v612 = vld [vmem:[#allocation2 + $0xa0] sm:$0xf]
        %v613 = vld [vmem:[#allocation2 + $0xa8] sm:$0xff]
        %v614 = vld [vmem:[#allocation2 + $0xb0] sm:$0xff]
        %v615 = vld [vmem:[#allocation2 + $0xb8] sm:$0xf]
        %v616 = vld [vmem:[#allocation2 + $0xc0] sm:$0xff]
        %v617 = vld [vmem:[#allocation2 + $0xc8] sm:$0xff]
        %v618 = vld [vmem:[#allocation2 + $0xd0] sm:$0xf]
        %v619 = vld [vmem:[#allocation2 + $0xd8] sm:$0xff]
        %v620 = vld [vmem:[#allocation2 + $0xe0] sm:$0xff]
        %v621 = vld [vmem:[#allocation2 + $0xe8] sm:$0xf]
        %v622 = vld [vmem:[#allocation2 + $0xf0] sm:$0xff]
        %v623 = vld [vmem:[#allocation2 + $0xf8] sm:$0xff]
        %v624 = vld [vmem:[#allocation2 + $0x100] sm:$0xf]
        %v625 = vld [vmem:[#allocation2 + $0x108] sm:$0xff]
        %v626 = vld [vmem:[#allocation2 + $0x110] sm:$0xff]
        %v627 = vld [vmem:[#allocation2 + $0x118] sm:$0xf]
        %v628 = vld [vmem:[#allocation2 + $0x120] sm:$0xff]
        %v629 = vld [vmem:[#allocation2 + $0x128] sm:$0xff]
        %v630 = vld [vmem:[#allocation2 + $0x130] sm:$0xf]
        %v631 = vld [vmem:[#allocation2 + $0x138] sm:$0xff]
        %v632 = vld [vmem:[#allocation2 + $0x140] sm:$0xff]
        %v633 = vld [vmem:[#allocation2 + $0x148] sm:$0xf]
        %v634 = vld [vmem:[#allocation2 + $0x150] sm:$0xff]
        %v635 = vld [vmem:[#allocation2 + $0x158] sm:$0xff]
        %v636 = vld [vmem:[#allocation2 + $0x160] sm:$0xf]
        %v637 = vld [vmem:[#allocation2 + $0x168] sm:$0xff]
        %v638 = vld [vmem:[#allocation2 + $0x170] sm:$0xff]
        %v639 = vld [vmem:[#allocation2 + $0x178] sm:$0xf]
        %vm688 = vcmask 1046528
        %v689 = vrot.slane %v592, 1
        %v690 = vrot.slane %v593, 1
        %v691 = vsel %vm688, %v689, %v690
        %v692 = vrot.slane %v594, 1
        %v693 = vsel %vm688, %v690, %v692
        %v694 = vrot.slane %v595, 1
        %v695 = vrot.slane %v596, 1
        %v696 = vsel %vm688, %v694, %v695
        %v697 = vrot.slane %v597, 1
        %v698 = vsel %vm688, %v695, %v697
        %v699 = vrot.slane %v598, 1
        %v700 = vrot.slane %v599, 1
        %v701 = vsel %vm688, %v699, %v700
        %v702 = vrot.slane %v600, 1
        %v703 = vsel %vm688, %v700, %v702
        %v704 = vrot.slane %v601, 1
        %v705 = vrot.slane %v602, 1
        %v706 = vsel %vm688, %v704, %v705
        %v707 = vrot.slane %v603, 1
        %v708 = vsel %vm688, %v705, %v707
        %v709 = vrot.slane %v604, 1
        %v710 = vrot.slane %v605, 1
        %v711 = vsel %vm688, %v709, %v710
        %v712 = vrot.slane %v606, 1
        %v713 = vsel %vm688, %v710, %v712
        %v714 = vrot.slane %v607, 1
        %v715 = vrot.slane %v608, 1
        %v716 = vsel %vm688, %v714, %v715
        %v717 = vrot.slane %v609, 1
        %v718 = vsel %vm688, %v715, %v717
        %v719 = vrot.slane %v610, 1
        %v720 = vrot.slane %v611, 1
        %v721 = vsel %vm688, %v719, %v720
        %v722 = vrot.slane %v612, 1
        %v723 = vsel %vm688, %v720, %v722
        %v724 = vrot.slane %v613, 1
        %v725 = vrot.slane %v614, 1
        %v726 = vsel %vm688, %v724, %v725
        %v727 = vrot.slane %v615, 1
        %v728 = vsel %vm688, %v725, %v727
        %v729 = vrot.slane %v616, 1
        %v730 = vrot.slane %v617, 1
        %v731 = vsel %vm688, %v729, %v730
        %v732 = vrot.slane %v618, 1
        %v733 = vsel %vm688, %v730, %v732
        %v734 = vrot.slane %v619, 1
        %v735 = vrot.slane %v620, 1
        %v736 = vsel %vm688, %v734, %v735
        %v737 = vrot.slane %v621, 1
        %v738 = vsel %vm688, %v735, %v737
        %v739 = vrot.slane %v622, 1
        %v740 = vrot.slane %v623, 1
        %v741 = vsel %vm688, %v739, %v740
        %v742 = vrot.slane %v624, 1
        %v743 = vsel %vm688, %v740, %v742
        %v744 = vrot.slane %v625, 1
        %v745 = vrot.slane %v626, 1
        %v746 = vsel %vm688, %v744, %v745
        %v747 = vrot.slane %v627, 1
        %v748 = vsel %vm688, %v745, %v747
        %v749 = vrot.slane %v628, 1
        %v750 = vrot.slane %v629, 1
        %v751 = vsel %vm688, %v749, %v750
        %v752 = vrot.slane %v630, 1
        %v753 = vsel %vm688, %v750, %v752
        %v754 = vrot.slane %v631, 1
        %v755 = vrot.slane %v632, 1
        %v756 = vsel %vm688, %v754, %v755
        %v757 = vrot.slane %v633, 1
        %v758 = vsel %vm688, %v755, %v757
        %v759 = vrot.slane %v634, 1
        %v760 = vrot.slane %v635, 1
        %v761 = vsel %vm688, %v759, %v760
        %v762 = vrot.slane %v636, 1
        %v763 = vsel %vm688, %v760, %v762
        %v764 = vrot.slane %v637, 1
        %v765 = vrot.slane %v638, 1
        %v766 = vsel %vm688, %v764, %v765
        %v767 = vrot.slane %v639, 1
        %v768 = vsel %vm688, %v765, %v767
        %769 = vrot.lane.b32.xlu0 %v691, 4
        %v770 = vpop.permute.xlu0 %769
        %771 = vrot.lane.b32.xlu0 %v693, 4
        %v772 = vpop.permute.xlu0 %771
        %773 = vrot.lane.b32.xlu0 %v696, 4
        %v774 = vpop.permute.xlu0 %773
        %775 = vrot.lane.b32.xlu0 %v698, 4
        %v776 = vpop.permute.xlu0 %775
        %777 = vrot.lane.b32.xlu0 %v701, 4
        %v778 = vpop.permute.xlu0 %777
        %779 = vrot.lane.b32.xlu0 %v703, 4
        %v780 = vpop.permute.xlu0 %779
        %781 = vrot.lane.b32.xlu0 %v706, 4
        %v782 = vpop.permute.xlu0 %781
        %783 = vrot.lane.b32.xlu0 %v708, 4
        %v784 = vpop.permute.xlu0 %783
        %785 = vrot.lane.b32.xlu0 %v711, 4
        %v786 = vpop.permute.xlu0 %785
        %787 = vrot.lane.b32.xlu0 %v713, 4
        %v788 = vpop.permute.xlu0 %787
        %789 = vrot.lane.b32.xlu0 %v716, 4
        %v790 = vpop.permute.xlu0 %789
        %791 = vrot.lane.b32.xlu0 %v718, 4
        %v792 = vpop.permute.xlu0 %791
        %793 = vrot.lane.b32.xlu0 %v721, 4
        %v794 = vpop.permute.xlu0 %793
        %795 = vrot.lane.b32.xlu0 %v723, 4
        %v796 = vpop.permute.xlu0 %795
        %797 = vrot.lane.b32.xlu0 %v726, 4
        %v798 = vpop.permute.xlu0 %797
        %799 = vrot.lane.b32.xlu0 %v728, 4
        %v800 = vpop.permute.xlu0 %799
        %801 = vrot.lane.b32.xlu0 %v731, 4
        %v802 = vpop.permute.xlu0 %801
        %803 = vrot.lane.b32.xlu0 %v733, 4
        %v804 = vpop.permute.xlu0 %803
        %805 = vrot.lane.b32.xlu0 %v736, 4
        %v806 = vpop.permute.xlu0 %805
        %807 = vrot.lane.b32.xlu0 %v738, 4
        %v808 = vpop.permute.xlu0 %807
        %809 = vrot.lane.b32.xlu0 %v741, 4
        %v810 = vpop.permute.xlu0 %809
        %811 = vrot.lane.b32.xlu0 %v743, 4
        %v812 = vpop.permute.xlu0 %811
        %813 = vrot.lane.b32.xlu0 %v746, 4
        %v814 = vpop.permute.xlu0 %813
        %815 = vrot.lane.b32.xlu0 %v748, 4
        %v816 = vpop.permute.xlu0 %815
        %817 = vrot.lane.b32.xlu0 %v751, 4
        %v818 = vpop.permute.xlu0 %817
        %819 = vrot.lane.b32.xlu0 %v753, 4
        %v820 = vpop.permute.xlu0 %819
        %821 = vrot.lane.b32.xlu0 %v756, 4
        %v822 = vpop.permute.xlu0 %821
        %823 = vrot.lane.b32.xlu0 %v758, 4
        %v824 = vpop.permute.xlu0 %823
        %825 = vrot.lane.b32.xlu0 %v761, 4
        %v826 = vpop.permute.xlu0 %825
        %827 = vrot.lane.b32.xlu0 %v763, 4
        %v828 = vpop.permute.xlu0 %827
        %829 = vrot.lane.b32.xlu0 %v766, 4
        %v830 = vpop.permute.xlu0 %829
        %831 = vrot.lane.b32.xlu0 %v768, 4
        %v832 = vpop.permute.xlu0 %831
        %vm865 = vcmask 1045504
        %v866 = vrot.slane %v592, 2
        %v867 = vrot.slane %v593, 2
        %v868 = vsel %vm865, %v866, %v867
        %v869 = vrot.slane %v594, 2
        %v870 = vsel %vm865, %v867, %v869
        %v871 = vrot.slane %v595, 2
        %v872 = vrot.slane %v596, 2
        %v873 = vsel %vm865, %v871, %v872
        %v874 = vrot.slane %v597, 2
        %v875 = vsel %vm865, %v872, %v874
        %v876 = vrot.slane %v598, 2
        %v877 = vrot.slane %v599, 2
        %v878 = vsel %vm865, %v876, %v877
        %v879 = vrot.slane %v600, 2
        %v880 = vsel %vm865, %v877, %v879
        %v881 = vrot.slane %v601, 2
        %v882 = vrot.slane %v602, 2
        %v883 = vsel %vm865, %v881, %v882
        %v884 = vrot.slane %v603, 2
        %v885 = vsel %vm865, %v882, %v884
        %v886 = vrot.slane %v604, 2
        %v887 = vrot.slane %v605, 2
        %v888 = vsel %vm865, %v886, %v887
        %v889 = vrot.slane %v606, 2
        %v890 = vsel %vm865, %v887, %v889
        %v891 = vrot.slane %v607, 2
        %v892 = vrot.slane %v608, 2
        %v893 = vsel %vm865, %v891, %v892
        %v894 = vrot.slane %v609, 2
        %v895 = vsel %vm865, %v892, %v894
        %v896 = vrot.slane %v610, 2
        %v897 = vrot.slane %v611, 2
        %v898 = vsel %vm865, %v896, %v897
        %v899 = vrot.slane %v612, 2
        %v900 = vsel %vm865, %v897, %v899
        %v901 = vrot.slane %v613, 2
        %v902 = vrot.slane %v614, 2
        %v903 = vsel %vm865, %v901, %v902
        %v904 = vrot.slane %v615, 2
        %v905 = vsel %vm865, %v902, %v904
        %v906 = vrot.slane %v616, 2
        %v907 = vrot.slane %v617, 2
        %v908 = vsel %vm865, %v906, %v907
        %v909 = vrot.slane %v618, 2
        %v910 = vsel %vm865, %v907, %v909
        %v911 = vrot.slane %v619, 2
        %v912 = vrot.slane %v620, 2
        %v913 = vsel %vm865, %v911, %v912
        %v914 = vrot.slane %v621, 2
        %v915 = vsel %vm865, %v912, %v914
        %v916 = vrot.slane %v622, 2
        %v917 = vrot.slane %v623, 2
        %v918 = vsel %vm865, %v916, %v917
        %v919 = vrot.slane %v624, 2
        %v920 = vsel %vm865, %v917, %v919
        %v921 = vrot.slane %v625, 2
        %v922 = vrot.slane %v626, 2
        %v923 = vsel %vm865, %v921, %v922
        %v924 = vrot.slane %v627, 2
        %v925 = vsel %vm865, %v922, %v924
        %v926 = vrot.slane %v628, 2
        %v927 = vrot.slane %v629, 2
        %v928 = vsel %vm865, %v926, %v927
        %v929 = vrot.slane %v630, 2
        %v930 = vsel %vm865, %v927, %v929
        %v931 = vrot.slane %v631, 2
        %v932 = vrot.slane %v632, 2
        %v933 = vsel %vm865, %v931, %v932
        %v934 = vrot.slane %v633, 2
        %v935 = vsel %vm865, %v932, %v934
        %v936 = vrot.slane %v634, 2
        %v937 = vrot.slane %v635, 2
        %v938 = vsel %vm865, %v936, %v937
        %v939 = vrot.slane %v636, 2
        %v940 = vsel %vm865, %v937, %v939
        %v941 = vrot.slane %v637, 2
        %v942 = vrot.slane %v638, 2
        %v943 = vsel %vm865, %v941, %v942
        %v944 = vrot.slane %v639, 2
        %v945 = vsel %vm865, %v942, %v944
        %946 = vrot.lane.b32.xlu0 %v868, 8
        %v947 = vpop.permute.xlu0 %946
        %948 = vrot.lane.b32.xlu0 %v870, 8
        %v949 = vpop.permute.xlu0 %948
        %950 = vrot.lane.b32.xlu0 %v873, 8
        %v951 = vpop.permute.xlu0 %950
        %952 = vrot.lane.b32.xlu0 %v875, 8
        %v953 = vpop.permute.xlu0 %952
        %954 = vrot.lane.b32.xlu0 %v878, 8
        %v955 = vpop.permute.xlu0 %954
        %956 = vrot.lane.b32.xlu0 %v880, 8
        %v957 = vpop.permute.xlu0 %956
        %958 = vrot.lane.b32.xlu0 %v883, 8
        %v959 = vpop.permute.xlu0 %958
        %960 = vrot.lane.b32.xlu0 %v885, 8
        %v961 = vpop.permute.xlu0 %960
        %962 = vrot.lane.b32.xlu0 %v888, 8
        %v963 = vpop.permute.xlu0 %962
        %964 = vrot.lane.b32.xlu0 %v890, 8
        %v965 = vpop.permute.xlu0 %964
        %966 = vrot.lane.b32.xlu0 %v893, 8
        %v967 = vpop.permute.xlu0 %966
        %968 = vrot.lane.b32.xlu0 %v895, 8
        %v969 = vpop.permute.xlu0 %968
        %970 = vrot.lane.b32.xlu0 %v898, 8
        %v971 = vpop.permute.xlu0 %970
        %972 = vrot.lane.b32.xlu0 %v900, 8
        %v973 = vpop.permute.xlu0 %972
        %974 = vrot.lane.b32.xlu0 %v903, 8
        %v975 = vpop.permute.xlu0 %974
        %976 = vrot.lane.b32.xlu0 %v905, 8
        %v977 = vpop.permute.xlu0 %976
        %978 = vrot.lane.b32.xlu0 %v908, 8
        %v979 = vpop.permute.xlu0 %978
        %980 = vrot.lane.b32.xlu0 %v910, 8
        %v981 = vpop.permute.xlu0 %980
        %982 = vrot.lane.b32.xlu0 %v913, 8
        %v983 = vpop.permute.xlu0 %982
        %984 = vrot.lane.b32.xlu0 %v915, 8
        %v985 = vpop.permute.xlu0 %984
        %986 = vrot.lane.b32.xlu0 %v918, 8
        %v987 = vpop.permute.xlu0 %986
        %988 = vrot.lane.b32.xlu0 %v920, 8
        %v989 = vpop.permute.xlu0 %988
        %990 = vrot.lane.b32.xlu0 %v923, 8
        %v991 = vpop.permute.xlu0 %990
        %992 = vrot.lane.b32.xlu0 %v925, 8
        %v993 = vpop.permute.xlu0 %992
        %994 = vrot.lane.b32.xlu0 %v928, 8
        %v995 = vpop.permute.xlu0 %994
        %996 = vrot.lane.b32.xlu0 %v930, 8
        %v997 = vpop.permute.xlu0 %996
        %998 = vrot.lane.b32.xlu0 %v933, 8
        %v999 = vpop.permute.xlu0 %998
        %1000 = vrot.lane.b32.xlu0 %v935, 8
        %v1001 = vpop.permute.xlu0 %1000
        %1002 = vrot.lane.b32.xlu0 %v938, 8
        %v1003 = vpop.permute.xlu0 %1002
        %1004 = vrot.lane.b32.xlu0 %v940, 8
        %v1005 = vpop.permute.xlu0 %1004
        %1006 = vrot.lane.b32.xlu0 %v943, 8
        %v1007 = vpop.permute.xlu0 %1006
        %1008 = vrot.lane.b32.xlu0 %v945, 8
        %v1009 = vpop.permute.xlu0 %1008
        %vm1042 = vcmask 1044480
        %v1043 = vrot.slane %v592, 3
        %v1044 = vrot.slane %v593, 3
        %v1045 = vsel %vm1042, %v1043, %v1044
        %v1046 = vrot.slane %v594, 3
        %v1047 = vsel %vm1042, %v1044, %v1046
        %v1048 = vrot.slane %v595, 3
        %v1049 = vrot.slane %v596, 3
        %v1050 = vsel %vm1042, %v1048, %v1049
        %v1051 = vrot.slane %v597, 3
        %v1052 = vsel %vm1042, %v1049, %v1051
        %v1053 = vrot.slane %v598, 3
        %v1054 = vrot.slane %v599, 3
        %v1055 = vsel %vm1042, %v1053, %v1054
        %v1056 = vrot.slane %v600, 3
        %v1057 = vsel %vm1042, %v1054, %v1056
        %v1058 = vrot.slane %v601, 3
        %v1059 = vrot.slane %v602, 3
        %v1060 = vsel %vm1042, %v1058, %v1059
        %v1061 = vrot.slane %v603, 3
        %v1062 = vsel %vm1042, %v1059, %v1061
        %v1063 = vrot.slane %v604, 3
        %v1064 = vrot.slane %v605, 3
        %v1065 = vsel %vm1042, %v1063, %v1064
        %v1066 = vrot.slane %v606, 3
        %v1067 = vsel %vm1042, %v1064, %v1066
        %v1068 = vrot.slane %v607, 3
        %v1069 = vrot.slane %v608, 3
        %v1070 = vsel %vm1042, %v1068, %v1069
        %v1071 = vrot.slane %v609, 3
        %v1072 = vsel %vm1042, %v1069, %v1071
        %v1073 = vrot.slane %v610, 3
        %v1074 = vrot.slane %v611, 3
        %v1075 = vsel %vm1042, %v1073, %v1074
        %v1076 = vrot.slane %v612, 3
        %v1077 = vsel %vm1042, %v1074, %v1076
        %v1078 = vrot.slane %v613, 3
        %v1079 = vrot.slane %v614, 3
        %v1080 = vsel %vm1042, %v1078, %v1079
        %v1081 = vrot.slane %v615, 3
        %v1082 = vsel %vm1042, %v1079, %v1081
        %v1083 = vrot.slane %v616, 3
        %v1084 = vrot.slane %v617, 3
        %v1085 = vsel %vm1042, %v1083, %v1084
        %v1086 = vrot.slane %v618, 3
        %v1087 = vsel %vm1042, %v1084, %v1086
        %v1088 = vrot.slane %v619, 3
        %v1089 = vrot.slane %v620, 3
        %v1090 = vsel %vm1042, %v1088, %v1089
        %v1091 = vrot.slane %v621, 3
        %v1092 = vsel %vm1042, %v1089, %v1091
        %v1093 = vrot.slane %v622, 3
        %v1094 = vrot.slane %v623, 3
        %v1095 = vsel %vm1042, %v1093, %v1094
        %v1096 = vrot.slane %v624, 3
        %v1097 = vsel %vm1042, %v1094, %v1096
        %v1098 = vrot.slane %v625, 3
        %v1099 = vrot.slane %v626, 3
        %v1100 = vsel %vm1042, %v1098, %v1099
        %v1101 = vrot.slane %v627, 3
        %v1102 = vsel %vm1042, %v1099, %v1101
        %v1103 = vrot.slane %v628, 3
        %v1104 = vrot.slane %v629, 3
        %v1105 = vsel %vm1042, %v1103, %v1104
        %v1106 = vrot.slane %v630, 3
        %v1107 = vsel %vm1042, %v1104, %v1106
        %v1108 = vrot.slane %v631, 3
        %v1109 = vrot.slane %v632, 3
        %v1110 = vsel %vm1042, %v1108, %v1109
        %v1111 = vrot.slane %v633, 3
        %v1112 = vsel %vm1042, %v1109, %v1111
        %v1113 = vrot.slane %v634, 3
        %v1114 = vrot.slane %v635, 3
        %v1115 = vsel %vm1042, %v1113, %v1114
        %v1116 = vrot.slane %v636, 3
        %v1117 = vsel %vm1042, %v1114, %v1116
        %v1118 = vrot.slane %v637, 3
        %v1119 = vrot.slane %v638, 3
        %v1120 = vsel %vm1042, %v1118, %v1119
        %v1121 = vrot.slane %v639, 3
        %v1122 = vsel %vm1042, %v1119, %v1121
        %1123 = vrot.lane.b32.xlu0 %v1045, 12
        %v1124 = vpop.permute.xlu0 %1123
        %1125 = vrot.lane.b32.xlu0 %v1047, 12
        %v1126 = vpop.permute.xlu0 %1125
        %1127 = vrot.lane.b32.xlu0 %v1050, 12
        %v1128 = vpop.permute.xlu0 %1127
        %1129 = vrot.lane.b32.xlu0 %v1052, 12
        %v1130 = vpop.permute.xlu0 %1129
        %1131 = vrot.lane.b32.xlu0 %v1055, 12
        %v1132 = vpop.permute.xlu0 %1131
        %1133 = vrot.lane.b32.xlu0 %v1057, 12
        %v1134 = vpop.permute.xlu0 %1133
        %1135 = vrot.lane.b32.xlu0 %v1060, 12
        %v1136 = vpop.permute.xlu0 %1135
        %1137 = vrot.lane.b32.xlu0 %v1062, 12
        %v1138 = vpop.permute.xlu0 %1137
        %1139 = vrot.lane.b32.xlu0 %v1065, 12
        %v1140 = vpop.permute.xlu0 %1139
        %1141 = vrot.lane.b32.xlu0 %v1067, 12
        %v1142 = vpop.permute.xlu0 %1141
        %1143 = vrot.lane.b32.xlu0 %v1070, 12
        %v1144 = vpop.permute.xlu0 %1143
        %1145 = vrot.lane.b32.xlu0 %v1072, 12
        %v1146 = vpop.permute.xlu0 %1145
        %1147 = vrot.lane.b32.xlu0 %v1075, 12
        %v1148 = vpop.permute.xlu0 %1147
        %1149 = vrot.lane.b32.xlu0 %v1077, 12
        %v1150 = vpop.permute.xlu0 %1149
        %1151 = vrot.lane.b32.xlu0 %v1080, 12
        %v1152 = vpop.permute.xlu0 %1151
        %1153 = vrot.lane.b32.xlu0 %v1082, 12
        %v1154 = vpop.permute.xlu0 %1153
        %1155 = vrot.lane.b32.xlu0 %v1085, 12
        %v1156 = vpop.permute.xlu0 %1155
        %1157 = vrot.lane.b32.xlu0 %v1087, 12
        %v1158 = vpop.permute.xlu0 %1157
        %1159 = vrot.lane.b32.xlu0 %v1090, 12
        %v1160 = vpop.permute.xlu0 %1159
        %1161 = vrot.lane.b32.xlu0 %v1092, 12
        %v1162 = vpop.permute.xlu0 %1161
        %1163 = vrot.lane.b32.xlu0 %v1095, 12
        %v1164 = vpop.permute.xlu0 %1163
        %1165 = vrot.lane.b32.xlu0 %v1097, 12
        %v1166 = vpop.permute.xlu0 %1165
        %1167 = vrot.lane.b32.xlu0 %v1100, 12
        %v1168 = vpop.permute.xlu0 %1167
        %1169 = vrot.lane.b32.xlu0 %v1102, 12
        %v1170 = vpop.permute.xlu0 %1169
        %1171 = vrot.lane.b32.xlu0 %v1105, 12
        %v1172 = vpop.permute.xlu0 %1171
        %1173 = vrot.lane.b32.xlu0 %v1107, 12
        %v1174 = vpop.permute.xlu0 %1173
        %1175 = vrot.lane.b32.xlu0 %v1110, 12
        %v1176 = vpop.permute.xlu0 %1175
        %1177 = vrot.lane.b32.xlu0 %v1112, 12
        %v1178 = vpop.permute.xlu0 %1177
        %1179 = vrot.lane.b32.xlu0 %v1115, 12
        %v1180 = vpop.permute.xlu0 %1179
        %1181 = vrot.lane.b32.xlu0 %v1117, 12
        %v1182 = vpop.permute.xlu0 %1181
        %1183 = vrot.lane.b32.xlu0 %v1120, 12
        %v1184 = vpop.permute.xlu0 %1183
        %1185 = vrot.lane.b32.xlu0 %v1122, 12
        %v1186 = vpop.permute.xlu0 %1185
        %vm1219 = vcmask 1043456
        %v1220 = vrot.slane %v592, 4
        %v1221 = vrot.slane %v593, 4
        %v1222 = vsel %vm1219, %v1220, %v1221
        %v1223 = vrot.slane %v594, 4
        %v1224 = vsel %vm1219, %v1221, %v1223
        %v1225 = vrot.slane %v595, 4
        %v1226 = vrot.slane %v596, 4
        %v1227 = vsel %vm1219, %v1225, %v1226
        %v1228 = vrot.slane %v597, 4
        %v1229 = vsel %vm1219, %v1226, %v1228
        %v1230 = vrot.slane %v598, 4
        %v1231 = vrot.slane %v599, 4
        %v1232 = vsel %vm1219, %v1230, %v1231
        %v1233 = vrot.slane %v600, 4
        %v1234 = vsel %vm1219, %v1231, %v1233
        %v1235 = vrot.slane %v601, 4
        %v1236 = vrot.slane %v602, 4
        %v1237 = vsel %vm1219, %v1235, %v1236
        %v1238 = vrot.slane %v603, 4
        %v1239 = vsel %vm1219, %v1236, %v1238
        %v1240 = vrot.slane %v604, 4
        %v1241 = vrot.slane %v605, 4
        %v1242 = vsel %vm1219, %v1240, %v1241
        %v1243 = vrot.slane %v606, 4
        %v1244 = vsel %vm1219, %v1241, %v1243
        %v1245 = vrot.slane %v607, 4
        %v1246 = vrot.slane %v608, 4
        %v1247 = vsel %vm1219, %v1245, %v1246
        %v1248 = vrot.slane %v609, 4
        %v1249 = vsel %vm1219, %v1246, %v1248
        %v1250 = vrot.slane %v610, 4
        %v1251 = vrot.slane %v611, 4
        %v1252 = vsel %vm1219, %v1250, %v1251
        %v1253 = vrot.slane %v612, 4
        %v1254 = vsel %vm1219, %v1251, %v1253
        %v1255 = vrot.slane %v613, 4
        %v1256 = vrot.slane %v614, 4
        %v1257 = vsel %vm1219, %v1255, %v1256
        %v1258 = vrot.slane %v615, 4
        %v1259 = vsel %vm1219, %v1256, %v1258
        %v1260 = vrot.slane %v616, 4
        %v1261 = vrot.slane %v617, 4
        %v1262 = vsel %vm1219, %v1260, %v1261
        %v1263 = vrot.slane %v618, 4
        %v1264 = vsel %vm1219, %v1261, %v1263
        %v1265 = vrot.slane %v619, 4
        %v1266 = vrot.slane %v620, 4
        %v1267 = vsel %vm1219, %v1265, %v1266
        %v1268 = vrot.slane %v621, 4
        %v1269 = vsel %vm1219, %v1266, %v1268
        %v1270 = vrot.slane %v622, 4
        %v1271 = vrot.slane %v623, 4
        %v1272 = vsel %vm1219, %v1270, %v1271
        %v1273 = vrot.slane %v624, 4
        %v1274 = vsel %vm1219, %v1271, %v1273
        %v1275 = vrot.slane %v625, 4
        %v1276 = vrot.slane %v626, 4
        %v1277 = vsel %vm1219, %v1275, %v1276
        %v1278 = vrot.slane %v627, 4
        %v1279 = vsel %vm1219, %v1276, %v1278
        %v1280 = vrot.slane %v628, 4
        %v1281 = vrot.slane %v629, 4
        %v1282 = vsel %vm1219, %v1280, %v1281
        %v1283 = vrot.slane %v630, 4
        %v1284 = vsel %vm1219, %v1281, %v1283
        %v1285 = vrot.slane %v631, 4
        %v1286 = vrot.slane %v632, 4
        %v1287 = vsel %vm1219, %v1285, %v1286
        %v1288 = vrot.slane %v633, 4
        %v1289 = vsel %vm1219, %v1286, %v1288
        %v1290 = vrot.slane %v634, 4
        %v1291 = vrot.slane %v635, 4
        %v1292 = vsel %vm1219, %v1290, %v1291
        %v1293 = vrot.slane %v636, 4
        %v1294 = vsel %vm1219, %v1291, %v1293
        %v1295 = vrot.slane %v637, 4
        %v1296 = vrot.slane %v638, 4
        %v1297 = vsel %vm1219, %v1295, %v1296
        %v1298 = vrot.slane %v639, 4
        %v1299 = vsel %vm1219, %v1296, %v1298
        %1300 = vrot.lane.b32.xlu0 %v1222, 16
        %v1301 = vpop.permute.xlu0 %1300
        %1302 = vrot.lane.b32.xlu0 %v1224, 16
        %v1303 = vpop.permute.xlu0 %1302
        %1304 = vrot.lane.b32.xlu0 %v1227, 16
        %v1305 = vpop.permute.xlu0 %1304
        %1306 = vrot.lane.b32.xlu0 %v1229, 16
        %v1307 = vpop.permute.xlu0 %1306
        %1308 = vrot.lane.b32.xlu0 %v1232, 16
        %v1309 = vpop.permute.xlu0 %1308
        %1310 = vrot.lane.b32.xlu0 %v1234, 16
        %v1311 = vpop.permute.xlu0 %1310
        %1312 = vrot.lane.b32.xlu0 %v1237, 16
        %v1313 = vpop.permute.xlu0 %1312
        %1314 = vrot.lane.b32.xlu0 %v1239, 16
        %v1315 = vpop.permute.xlu0 %1314
        %1316 = vrot.lane.b32.xlu0 %v1242, 16
        %v1317 = vpop.permute.xlu0 %1316
        %1318 = vrot.lane.b32.xlu0 %v1244, 16
        %v1319 = vpop.permute.xlu0 %1318
        %1320 = vrot.lane.b32.xlu0 %v1247, 16
        %v1321 = vpop.permute.xlu0 %1320
        %1322 = vrot.lane.b32.xlu0 %v1249, 16
        %v1323 = vpop.permute.xlu0 %1322
        %1324 = vrot.lane.b32.xlu0 %v1252, 16
        %v1325 = vpop.permute.xlu0 %1324
        %1326 = vrot.lane.b32.xlu0 %v1254, 16
        %v1327 = vpop.permute.xlu0 %1326
        %1328 = vrot.lane.b32.xlu0 %v1257, 16
        %v1329 = vpop.permute.xlu0 %1328
        %1330 = vrot.lane.b32.xlu0 %v1259, 16
        %v1331 = vpop.permute.xlu0 %1330
        %1332 = vrot.lane.b32.xlu0 %v1262, 16
        %v1333 = vpop.permute.xlu0 %1332
        %1334 = vrot.lane.b32.xlu0 %v1264, 16
        %v1335 = vpop.permute.xlu0 %1334
        %1336 = vrot.lane.b32.xlu0 %v1267, 16
        %v1337 = vpop.permute.xlu0 %1336
        %1338 = vrot.lane.b32.xlu0 %v1269, 16
        %v1339 = vpop.permute.xlu0 %1338
        %1340 = vrot.lane.b32.xlu0 %v1272, 16
        %v1341 = vpop.permute.xlu0 %1340
        %1342 = vrot.lane.b32.xlu0 %v1274, 16
        %v1343 = vpop.permute.xlu0 %1342
        %1344 = vrot.lane.b32.xlu0 %v1277, 16
        %v1345 = vpop.permute.xlu0 %1344
        %1346 = vrot.lane.b32.xlu0 %v1279, 16
        %v1347 = vpop.permute.xlu0 %1346
        %1348 = vrot.lane.b32.xlu0 %v1282, 16
        %v1349 = vpop.permute.xlu0 %1348
        %1350 = vrot.lane.b32.xlu0 %v1284, 16
        %v1351 = vpop.permute.xlu0 %1350
        %1352 = vrot.lane.b32.xlu0 %v1287, 16
        %v1353 = vpop.permute.xlu0 %1352
        %1354 = vrot.lane.b32.xlu0 %v1289, 16
        %v1355 = vpop.permute.xlu0 %1354
        %1356 = vrot.lane.b32.xlu0 %v1292, 16
        %v1357 = vpop.permute.xlu0 %1356
        %1358 = vrot.lane.b32.xlu0 %v1294, 16
        %v1359 = vpop.permute.xlu0 %1358
        %1360 = vrot.lane.b32.xlu0 %v1297, 16
        %v1361 = vpop.permute.xlu0 %1360
        %1362 = vrot.lane.b32.xlu0 %v1299, 16
        %v1363 = vpop.permute.xlu0 %1362
        %v1396 = vsel %vm559, %v592, %v770
        %v1397 = vsel %vm559, %v593, %v772
        %v1398 = vsel %vm559, %v595, %v774
        %v1399 = vsel %vm559, %v596, %v776
        %v1400 = vsel %vm559, %v598, %v778
        %v1401 = vsel %vm559, %v599, %v780
        %v1402 = vsel %vm559, %v601, %v782
        %v1403 = vsel %vm559, %v602, %v784
        %v1404 = vsel %vm559, %v604, %v786
        %v1405 = vsel %vm559, %v605, %v788
        %v1406 = vsel %vm559, %v607, %v790
        %v1407 = vsel %vm559, %v608, %v792
        %v1408 = vsel %vm559, %v610, %v794
        %v1409 = vsel %vm559, %v611, %v796
        %v1410 = vsel %vm559, %v613, %v798
        %v1411 = vsel %vm559, %v614, %v800
        %v1412 = vsel %vm559, %v616, %v802
        %v1413 = vsel %vm559, %v617, %v804
        %v1414 = vsel %vm559, %v619, %v806
        %v1415 = vsel %vm559, %v620, %v808
        %v1416 = vsel %vm559, %v622, %v810
        %v1417 = vsel %vm559, %v623, %v812
        %v1418 = vsel %vm559, %v625, %v814
        %v1419 = vsel %vm559, %v626, %v816
        %v1420 = vsel %vm559, %v628, %v818
        %v1421 = vsel %vm559, %v629, %v820
        %v1422 = vsel %vm559, %v631, %v822
        %v1423 = vsel %vm559, %v632, %v824
        %v1424 = vsel %vm559, %v634, %v826
        %v1425 = vsel %vm559, %v635, %v828
        %v1426 = vsel %vm559, %v637, %v830
        %v1427 = vsel %vm559, %v638, %v832
        %vm1428 = vcmask 64512
        %v1429 = vsel %vm1428, %v1396, %v947
        %v1430 = vsel %vm1428, %v1397, %v949
        %v1431 = vsel %vm1428, %v1398, %v951
        %v1432 = vsel %vm1428, %v1399, %v953
        %v1433 = vsel %vm1428, %v1400, %v955
        %v1434 = vsel %vm1428, %v1401, %v957
        %v1435 = vsel %vm1428, %v1402, %v959
        %v1436 = vsel %vm1428, %v1403, %v961
        %v1437 = vsel %vm1428, %v1404, %v963
        %v1438 = vsel %vm1428, %v1405, %v965
        %v1439 = vsel %vm1428, %v1406, %v967
        %v1440 = vsel %vm1428, %v1407, %v969
        %v1441 = vsel %vm1428, %v1408, %v971
        %v1442 = vsel %vm1428, %v1409, %v973
        %v1443 = vsel %vm1428, %v1410, %v975
        %v1444 = vsel %vm1428, %v1411, %v977
        %v1445 = vsel %vm1428, %v1412, %v979
        %v1446 = vsel %vm1428, %v1413, %v981
        %v1447 = vsel %vm1428, %v1414, %v983
        %v1448 = vsel %vm1428, %v1415, %v985
        %v1449 = vsel %vm1428, %v1416, %v987
        %v1450 = vsel %vm1428, %v1417, %v989
        %v1451 = vsel %vm1428, %v1418, %v991
        %v1452 = vsel %vm1428, %v1419, %v993
        %v1453 = vsel %vm1428, %v1420, %v995
        %v1454 = vsel %vm1428, %v1421, %v997
        %v1455 = vsel %vm1428, %v1422, %v999
        %v1456 = vsel %vm1428, %v1423, %v1001
        %v1457 = vsel %vm1428, %v1424, %v1003
        %v1458 = vsel %vm1428, %v1425, %v1005
        %v1459 = vsel %vm1428, %v1426, %v1007
        %v1460 = vsel %vm1428, %v1427, %v1009
        %vm1461 = vcmask 97280
        %v1462 = vsel %vm1461, %v1429, %v1124
        %v1463 = vsel %vm1461, %v1430, %v1126
        %v1464 = vsel %vm1461, %v1431, %v1128
        %v1465 = vsel %vm1461, %v1432, %v1130
        %v1466 = vsel %vm1461, %v1433, %v1132
        %v1467 = vsel %vm1461, %v1434, %v1134
        %v1468 = vsel %vm1461, %v1435, %v1136
        %v1469 = vsel %vm1461, %v1436, %v1138
        %v1470 = vsel %vm1461, %v1437, %v1140
        %v1471 = vsel %vm1461, %v1438, %v1142
        %v1472 = vsel %vm1461, %v1439, %v1144
        %v1473 = vsel %vm1461, %v1440, %v1146
        %v1474 = vsel %vm1461, %v1441, %v1148
        %v1475 = vsel %vm1461, %v1442, %v1150
        %v1476 = vsel %vm1461, %v1443, %v1152
        %v1477 = vsel %vm1461, %v1444, %v1154
        %v1478 = vsel %vm1461, %v1445, %v1156
        %v1479 = vsel %vm1461, %v1446, %v1158
        %v1480 = vsel %vm1461, %v1447, %v1160
        %v1481 = vsel %vm1461, %v1448, %v1162
        %v1482 = vsel %vm1461, %v1449, %v1164
        %v1483 = vsel %vm1461, %v1450, %v1166
        %v1484 = vsel %vm1461, %v1451, %v1168
        %v1485 = vsel %vm1461, %v1452, %v1170
        %v1486 = vsel %vm1461, %v1453, %v1172
        %v1487 = vsel %vm1461, %v1454, %v1174
        %v1488 = vsel %vm1461, %v1455, %v1176
        %v1489 = vsel %vm1461, %v1456, %v1178
        %v1490 = vsel %vm1461, %v1457, %v1180
        %v1491 = vsel %vm1461, %v1458, %v1182
        %v1492 = vsel %vm1461, %v1459, %v1184
        %v1493 = vsel %vm1461, %v1460, %v1186
        %vm1494 = vcmask 130048
        %v1495 = vsel %vm1494, %v1462, %v1301
        %v1496 = vsel %vm1494, %v1463, %v1303
        %v1497 = vsel %vm1494, %v1464, %v1305
        %v1498 = vsel %vm1494, %v1465, %v1307
        %v1499 = vsel %vm1494, %v1466, %v1309
        %v1500 = vsel %vm1494, %v1467, %v1311
        %v1501 = vsel %vm1494, %v1468, %v1313
        %v1502 = vsel %vm1494, %v1469, %v1315
        %v1503 = vsel %vm1494, %v1470, %v1317
        %v1504 = vsel %vm1494, %v1471, %v1319
        %v1505 = vsel %vm1494, %v1472, %v1321
        %v1506 = vsel %vm1494, %v1473, %v1323
        %v1507 = vsel %vm1494, %v1474, %v1325
        %v1508 = vsel %vm1494, %v1475, %v1327
        %v1509 = vsel %vm1494, %v1476, %v1329
        %v1510 = vsel %vm1494, %v1477, %v1331
        %v1511 = vsel %vm1494, %v1478, %v1333
        %v1512 = vsel %vm1494, %v1479, %v1335
        %v1513 = vsel %vm1494, %v1480, %v1337
        %v1514 = vsel %vm1494, %v1481, %v1339
        %v1515 = vsel %vm1494, %v1482, %v1341
        %v1516 = vsel %vm1494, %v1483, %v1343
        %v1517 = vsel %vm1494, %v1484, %v1345
        %v1518 = vsel %vm1494, %v1485, %v1347
        %v1519 = vsel %vm1494, %v1486, %v1349
        %v1520 = vsel %vm1494, %v1487, %v1351
        %v1521 = vsel %vm1494, %v1488, %v1353
        %v1522 = vsel %vm1494, %v1489, %v1355
        %v1523 = vsel %vm1494, %v1490, %v1357
        %v1524 = vsel %vm1494, %v1491, %v1359
        %v1525 = vsel %vm1494, %v1492, %v1361
        %v1526 = vsel %vm1494, %v1493, %v1363
        %vm1527 = vcmask 162816
        %1528 = vst.msk [vmem:[#allocation3] sm:$0xff] %vm1527, 0.0
        %1529 = vst.msk [vmem:[#allocation3 + $0x8] sm:$0xff] %vm1527, 0.0
        %1530 = vst.msk [vmem:[#allocation3 + $0x10] sm:$0xff] %vm1527, 0.0
        %1531 = vst.msk [vmem:[#allocation3 + $0x18] sm:$0xff] %vm1527, 0.0
        %s1532 = scalar_lea.vmem [#allocation3], 288
        %1533 = vst.msk [vmem:[%s1532] sm:$0xff] %vm1527, 0.0
        %1534 = vst.msk [vmem:[%s1532 + $0x8] sm:$0xff] %vm1527, 0.0
        %1535 = vst.msk [vmem:[%s1532 + $0x10] sm:$0xff] %vm1527, 0.0
        %1536 = vst.msk [vmem:[%s1532 + $0x18] sm:$0xff] %vm1527, 0.0
        %s1537 = scalar_lea.vmem [#allocation3], 32
        %1538 = vst.msk [vmem:[%s1537] sm:$0xff] %vm1527, %v1495
        %1539 = vst.msk [vmem:[%s1537 + $0x8] sm:$0xff] %vm1527, %v1496
        %1540 = vst.msk [vmem:[%s1537 + $0x10] sm:$0xff] %vm1527, %v1497
        %1541 = vst.msk [vmem:[%s1537 + $0x18] sm:$0xff] %vm1527, %v1498
        %1542 = vst.msk [vmem:[%s1537 + $0x20] sm:$0xff] %vm1527, %v1499
        %1543 = vst.msk [vmem:[%s1537 + $0x28] sm:$0xff] %vm1527, %v1500
        %1544 = vst.msk [vmem:[%s1537 + $0x30] sm:$0xff] %vm1527, %v1501
        %1545 = vst.msk [vmem:[%s1537 + $0x38] sm:$0xff] %vm1527, %v1502
        %1546 = vst.msk [vmem:[%s1537 + $0x40] sm:$0xff] %vm1527, %v1503
        %1547 = vst.msk [vmem:[%s1537 + $0x48] sm:$0xff] %vm1527, %v1504
        %1548 = vst.msk [vmem:[%s1537 + $0x50] sm:$0xff] %vm1527, %v1505
        %1549 = vst.msk [vmem:[%s1537 + $0x58] sm:$0xff] %vm1527, %v1506
        %1550 = vst.msk [vmem:[%s1537 + $0x60] sm:$0xff] %vm1527, %v1507
        %1551 = vst.msk [vmem:[%s1537 + $0x68] sm:$0xff] %vm1527, %v1508
        %1552 = vst.msk [vmem:[%s1537 + $0x70] sm:$0xff] %vm1527, %v1509
        %1553 = vst.msk [vmem:[%s1537 + $0x78] sm:$0xff] %vm1527, %v1510
        %1554 = vst.msk [vmem:[%s1537 + $0x80] sm:$0xff] %vm1527, %v1511
        %1555 = vst.msk [vmem:[%s1537 + $0x88] sm:$0xff] %vm1527, %v1512
        %1556 = vst.msk [vmem:[%s1537 + $0x90] sm:$0xff] %vm1527, %v1513
        %1557 = vst.msk [vmem:[%s1537 + $0x98] sm:$0xff] %vm1527, %v1514
        %1558 = vst.msk [vmem:[%s1537 + $0xa0] sm:$0xff] %vm1527, %v1515
        %1559 = vst.msk [vmem:[%s1537 + $0xa8] sm:$0xff] %vm1527, %v1516
        %1560 = vst.msk [vmem:[%s1537 + $0xb0] sm:$0xff] %vm1527, %v1517
        %1561 = vst.msk [vmem:[%s1537 + $0xb8] sm:$0xff] %vm1527, %v1518
        %1562 = vst.msk [vmem:[%s1537 + $0xc0] sm:$0xff] %vm1527, %v1519
        %1563 = vst.msk [vmem:[%s1537 + $0xc8] sm:$0xff] %vm1527, %v1520
        %1564 = vst.msk [vmem:[%s1537 + $0xd0] sm:$0xff] %vm1527, %v1521
        %1565 = vst.msk [vmem:[%s1537 + $0xd8] sm:$0xff] %vm1527, %v1522
        %1566 = vst.msk [vmem:[%s1537 + $0xe0] sm:$0xff] %vm1527, %v1523
        %1567 = vst.msk [vmem:[%s1537 + $0xe8] sm:$0xff] %vm1527, %v1524
        %1568 = vst.msk [vmem:[%s1537 + $0xf0] sm:$0xff] %vm1527, %v1525
        %1569 = vst.msk [vmem:[%s1537 + $0xf8] sm:$0xff] %vm1527, %v1526
      $region44: #{gen_res_blk_forward.5} parent=39 // pred_fallthru
        _
      %v1570 = vld [vmem:[#allocation3] sm:$0xff]
      %v1571 = vld [vmem:[#allocation3 + $0x8] sm:$0xff]
      %v1572 = vld [vmem:[#allocation3 + $0x10] sm:$0xff]
      %v1573 = vld [vmem:[#allocation3 + $0x18] sm:$0xff]
      %v1574 = vld [vmem:[#allocation3 + $0x20] sm:$0xff]
      %v1575 = vld [vmem:[#allocation3 + $0x28] sm:$0xff]
      %v1576 = vld [vmem:[#allocation3 + $0x30] sm:$0xff]
      %v1577 = vld [vmem:[#allocation3 + $0x38] sm:$0xff]
      %v1578 = vld [vmem:[#allocation3 + $0x40] sm:$0xff]
      %v1579 = vld [vmem:[#allocation3 + $0x48] sm:$0xff]
      %v1580 = vld [vmem:[#allocation3 + $0x50] sm:$0xff]
      %v1581 = vld [vmem:[#allocation3 + $0x58] sm:$0xff]
      %v1582 = vld [vmem:[#allocation3 + $0x60] sm:$0xff]
      %v1583 = vld [vmem:[#allocation3 + $0x68] sm:$0xff]
      %v1584 = vld [vmem:[#allocation3 + $0x70] sm:$0xff]
      %v1585 = vld [vmem:[#allocation3 + $0x78] sm:$0xff]
      %v1586 = vld [vmem:[#allocation3 + $0x80] sm:$0xff]
      %v1587 = vld [vmem:[#allocation3 + $0x88] sm:$0xff]
      %v1588 = vld [vmem:[#allocation3 + $0x90] sm:$0xff]
      %v1589 = vld [vmem:[#allocation3 + $0x98] sm:$0xff]
      %v1590 = vld [vmem:[#allocation3 + $0xa0] sm:$0xff]
      %v1591 = vld [vmem:[#allocation3 + $0xa8] sm:$0xff]
      %v1592 = vld [vmem:[#allocation3 + $0xb0] sm:$0xff]
      %v1593 = vld [vmem:[#allocation3 + $0xb8] sm:$0xff]
      %v1594 = vld [vmem:[#allocation3 + $0xc0] sm:$0xff]
      %v1595 = vld [vmem:[#allocation3 + $0xc8] sm:$0xff]
      %v1596 = vld [vmem:[#allocation3 + $0xd0] sm:$0xff]
      %v1597 = vld [vmem:[#allocation3 + $0xd8] sm:$0xff]
      %v1598 = vld [vmem:[#allocation3 + $0xe0] sm:$0xff]
      %v1599 = vld [vmem:[#allocation3 + $0xe8] sm:$0xff]
      %v1600 = vld [vmem:[#allocation3 + $0xf0] sm:$0xff]
      %v1601 = vld [vmem:[#allocation3 + $0xf8] sm:$0xff]
      %v1602 = vld [vmem:[%s303] sm:$0xff]
      %v1603 = vld [vmem:[%s303 + $0x8] sm:$0xff]
      %v1604 = vld [vmem:[%s303 + $0x10] sm:$0xf]
      %s1605 = scalar_lea.vmem [#allocation3], 16
      %v1606 = vld [vmem:[%s1605] sm:$0xff]
      %v1607 = vld [vmem:[%s1605 + $0x8] sm:$0xff]
      %v1608 = vld [vmem:[%s1605 + $0x10] sm:$0xff]
      %v1609 = vld [vmem:[%s1605 + $0x18] sm:$0xff]
      %v1610 = vld [vmem:[%s1605 + $0x20] sm:$0xff]
      %v1611 = vld [vmem:[%s1605 + $0x28] sm:$0xff]
      %v1612 = vld [vmem:[%s1605 + $0x30] sm:$0xff]
      %v1613 = vld [vmem:[%s1605 + $0x38] sm:$0xff]
      %v1614 = vld [vmem:[%s1605 + $0x40] sm:$0xff]
      %v1615 = vld [vmem:[%s1605 + $0x48] sm:$0xff]
      %v1616 = vld [vmem:[%s1605 + $0x50] sm:$0xff]
      %v1617 = vld [vmem:[%s1605 + $0x58] sm:$0xff]
      %v1618 = vld [vmem:[%s1605 + $0x60] sm:$0xff]
      %v1619 = vld [vmem:[%s1605 + $0x68] sm:$0xff]
      %v1620 = vld [vmem:[%s1605 + $0x70] sm:$0xff]
      %v1621 = vld [vmem:[%s1605 + $0x78] sm:$0xff]
      %v1622 = vld [vmem:[%s1605 + $0x80] sm:$0xff]
      %v1623 = vld [vmem:[%s1605 + $0x88] sm:$0xff]
      %v1624 = vld [vmem:[%s1605 + $0x90] sm:$0xff]
      %v1625 = vld [vmem:[%s1605 + $0x98] sm:$0xff]
      %v1626 = vld [vmem:[%s1605 + $0xa0] sm:$0xff]
      %v1627 = vld [vmem:[%s1605 + $0xa8] sm:$0xff]
      %v1628 = vld [vmem:[%s1605 + $0xb0] sm:$0xff]
      %v1629 = vld [vmem:[%s1605 + $0xb8] sm:$0xff]
      %v1630 = vld [vmem:[%s1605 + $0xc0] sm:$0xff]
      %v1631 = vld [vmem:[%s1605 + $0xc8] sm:$0xff]
      %v1632 = vld [vmem:[%s1605 + $0xd0] sm:$0xff]
      %v1633 = vld [vmem:[%s1605 + $0xd8] sm:$0xff]
      %v1634 = vld [vmem:[%s1605 + $0xe0] sm:$0xff]
      %v1635 = vld [vmem:[%s1605 + $0xe8] sm:$0xff]
      %v1636 = vld [vmem:[%s1605 + $0xf0] sm:$0xff]
      %v1637 = vld [vmem:[%s1605 + $0xf8] sm:$0xff]
      %s1638 = scalar_lea.vmem %s303, 24
      %v1639 = vld [vmem:[%s1638] sm:$0xff]
      %v1640 = vld [vmem:[%s1638 + $0x8] sm:$0xff]
      %v1641 = vld [vmem:[%s1638 + $0x10] sm:$0xf]
      %vm1642 = vcmask 162816
      %v1644 = vsel %vm1642, %v1606, 0
      %v1647 = vsel %vm1642, %v1607, 0
      %v1650 = vsel %vm1642, %v1608, 0
      %v1653 = vsel %vm1642, %v1609, 0
      %v1656 = vsel %vm1642, %v1610, 0
      %v1659 = vsel %vm1642, %v1611, 0
      %v1662 = vsel %vm1642, %v1612, 0
      %v1665 = vsel %vm1642, %v1613, 0
      %v1668 = vsel %vm1642, %v1614, 0
      %v1671 = vsel %vm1642, %v1615, 0
      %v1674 = vsel %vm1642, %v1616, 0
      %v1677 = vsel %vm1642, %v1617, 0
      %v1680 = vsel %vm1642, %v1618, 0
      %v1683 = vsel %vm1642, %v1619, 0
      %v1686 = vsel %vm1642, %v1620, 0
      %v1689 = vsel %vm1642, %v1621, 0
      %v1692 = vsel %vm1642, %v1622, 0
      %v1695 = vsel %vm1642, %v1623, 0
      %v1698 = vsel %vm1642, %v1624, 0
      %v1701 = vsel %vm1642, %v1625, 0
      %v1704 = vsel %vm1642, %v1626, 0
      %v1707 = vsel %vm1642, %v1627, 0
      %v1710 = vsel %vm1642, %v1628, 0
      %v1713 = vsel %vm1642, %v1629, 0
      %v1716 = vsel %vm1642, %v1630, 0
      %v1719 = vsel %vm1642, %v1631, 0
      %v1722 = vsel %vm1642, %v1632, 0
      %v1725 = vsel %vm1642, %v1633, 0
      %v1728 = vsel %vm1642, %v1634, 0
      %v1731 = vsel %vm1642, %v1635, 0
      %v1734 = vsel %vm1642, %v1636, 0
      %v1737 = vsel %vm1642, %v1637, 0
      %vm1739 = vcmask 1043456
      %v1741 = vsel %vm1739, %v1641, 0
      %1743 = vmatpush.msra.mxu0 0.0
      %1744 = vmatpush.msra.mxu0 0.0
      %1745 = vmatpush.msra.mxu0 0.0
      %1746 = vmatpush.msra.mxu0 0.0
      %1747 = vmatpush.msra.mxu0 0.0
      %1748 = vmatpush.msra.mxu0 0.0
      %1749 = vmatpush.msra.mxu0 0.0
      %1750 = vmatpush.msra.mxu0 0.0
      %1751 = vmatpush.msra.mxu0 0.0
      %1752 = vmatpush.msra.mxu0 0.0
      %1753 = vmatpush.msra.mxu0 0.0
      %1754 = vmatpush.msra.mxu0 0.0
      %1755 = vmatpush.msra.mxu0 0.0
      %1756 = vmatpush.msra.mxu0 %v1741
      %1757 = vmatpush.msra.mxu0 %v1640
      %1758 = vmatpush.msra.mxu0 %v1639
      %1759 = vmatmul.f32.gmra.mxu0 %v1644
      %v1760 = vpop.f32.mrf.mxu0
      %v1761 = vadd.f32 0.0, %v1760
      %1762 = vmatmul.f32.gmra.mxu0 %v1647
      %v1763 = vpop.f32.mrf.mxu0
      %v1764 = vadd.f32 0.0, %v1763
      %1765 = vmatmul.f32.gmra.mxu0 %v1650
      %v1766 = vpop.f32.mrf.mxu0
      %v1767 = vadd.f32 0.0, %v1766
      %1768 = vmatmul.f32.gmra.mxu0 %v1653
      %v1769 = vpop.f32.mrf.mxu0
      %v1770 = vadd.f32 0.0, %v1769
      %1771 = vmatmul.f32.gmra.mxu0 %v1656
      %v1772 = vpop.f32.mrf.mxu0
      %v1773 = vadd.f32 0.0, %v1772
      %1774 = vmatmul.f32.gmra.mxu0 %v1659
      %v1775 = vpop.f32.mrf.mxu0
      %v1776 = vadd.f32 0.0, %v1775
      %1777 = vmatmul.f32.gmra.mxu0 %v1662
      %v1778 = vpop.f32.mrf.mxu0
      %v1779 = vadd.f32 0.0, %v1778
      %1780 = vmatmul.f32.gmra.mxu0 %v1665
      %v1781 = vpop.f32.mrf.mxu0
      %v1782 = vadd.f32 0.0, %v1781
      %1783 = vmatmul.f32.gmra.mxu0 %v1668
      %v1784 = vpop.f32.mrf.mxu0
      %v1785 = vadd.f32 0.0, %v1784
      %1786 = vmatmul.f32.gmra.mxu0 %v1671
      %v1787 = vpop.f32.mrf.mxu0
      %v1788 = vadd.f32 0.0, %v1787
      %1789 = vmatmul.f32.gmra.mxu0 %v1674
      %v1790 = vpop.f32.mrf.mxu0
      %v1791 = vadd.f32 0.0, %v1790
      %1792 = vmatmul.f32.gmra.mxu0 %v1677
      %v1793 = vpop.f32.mrf.mxu0
      %v1794 = vadd.f32 0.0, %v1793
      %1795 = vmatmul.f32.gmra.mxu0 %v1680
      %v1796 = vpop.f32.mrf.mxu0
      %v1797 = vadd.f32 0.0, %v1796
      %1798 = vmatmul.f32.gmra.mxu0 %v1683
      %v1799 = vpop.f32.mrf.mxu0
      %v1800 = vadd.f32 0.0, %v1799
      %1801 = vmatmul.f32.gmra.mxu0 %v1686
      %v1802 = vpop.f32.mrf.mxu0
      %v1803 = vadd.f32 0.0, %v1802
      %1804 = vmatmul.f32.gmra.mxu0 %v1689
      %v1805 = vpop.f32.mrf.mxu0
      %v1806 = vadd.f32 0.0, %v1805
      %1807 = vmatmul.f32.gmra.mxu0 %v1692
      %v1808 = vpop.f32.mrf.mxu0
      %v1809 = vadd.f32 0.0, %v1808
      %1810 = vmatmul.f32.gmra.mxu0 %v1695
      %v1811 = vpop.f32.mrf.mxu0
      %v1812 = vadd.f32 0.0, %v1811
      %1813 = vmatmul.f32.gmra.mxu0 %v1698
      %v1814 = vpop.f32.mrf.mxu0
      %v1815 = vadd.f32 0.0, %v1814
      %1816 = vmatmul.f32.gmra.mxu0 %v1701
      %v1817 = vpop.f32.mrf.mxu0
      %v1818 = vadd.f32 0.0, %v1817
      %1819 = vmatmul.f32.gmra.mxu0 %v1704
      %v1820 = vpop.f32.mrf.mxu0
      %v1821 = vadd.f32 0.0, %v1820
      %1822 = vmatmul.f32.gmra.mxu0 %v1707
      %v1823 = vpop.f32.mrf.mxu0
      %v1824 = vadd.f32 0.0, %v1823
      %1825 = vmatmul.f32.gmra.mxu0 %v1710
      %v1826 = vpop.f32.mrf.mxu0
      %v1827 = vadd.f32 0.0, %v1826
      %1828 = vmatmul.f32.gmra.mxu0 %v1713
      %v1829 = vpop.f32.mrf.mxu0
      %v1830 = vadd.f32 0.0, %v1829
      %1831 = vmatmul.f32.gmra.mxu0 %v1716
      %v1832 = vpop.f32.mrf.mxu0
      %v1833 = vadd.f32 0.0, %v1832
      %1834 = vmatmul.f32.gmra.mxu0 %v1719
      %v1835 = vpop.f32.mrf.mxu0
      %v1836 = vadd.f32 0.0, %v1835
      %1837 = vmatmul.f32.gmra.mxu0 %v1722
      %v1838 = vpop.f32.mrf.mxu0
      %v1839 = vadd.f32 0.0, %v1838
      %1840 = vmatmul.f32.gmra.mxu0 %v1725
      %v1841 = vpop.f32.mrf.mxu0
      %v1842 = vadd.f32 0.0, %v1841
      %1843 = vmatmul.f32.gmra.mxu0 %v1728
      %v1844 = vpop.f32.mrf.mxu0
      %v1845 = vadd.f32 0.0, %v1844
      %1846 = vmatmul.f32.gmra.mxu0 %v1731
      %v1847 = vpop.f32.mrf.mxu0
      %v1848 = vadd.f32 0.0, %v1847
      %1849 = vmatmul.f32.gmra.mxu0 %v1734
      %v1850 = vpop.f32.mrf.mxu0
      %v1851 = vadd.f32 0.0, %v1850
      %1852 = vmatmul.f32.gmra.mxu0 %v1737
      %v1853 = vpop.f32.mrf.mxu0
      %v1854 = vadd.f32 0.0, %v1853
      %1855 = vdwg.mxu0
      %v1857 = vsel %vm1642, %v1570, 0
      %v1860 = vsel %vm1642, %v1571, 0
      %v1863 = vsel %vm1642, %v1572, 0
      %v1866 = vsel %vm1642, %v1573, 0
      %v1869 = vsel %vm1642, %v1574, 0
      %v1872 = vsel %vm1642, %v1575, 0
      %v1875 = vsel %vm1642, %v1576, 0
      %v1878 = vsel %vm1642, %v1577, 0
      %v1881 = vsel %vm1642, %v1578, 0
      %v1884 = vsel %vm1642, %v1579, 0
      %v1887 = vsel %vm1642, %v1580, 0
      %v1890 = vsel %vm1642, %v1581, 0
      %v1893 = vsel %vm1642, %v1582, 0
      %v1896 = vsel %vm1642, %v1583, 0
      %v1899 = vsel %vm1642, %v1584, 0
      %v1902 = vsel %vm1642, %v1585, 0
      %v1905 = vsel %vm1642, %v1586, 0
      %v1908 = vsel %vm1642, %v1587, 0
      %v1911 = vsel %vm1642, %v1588, 0
      %v1914 = vsel %vm1642, %v1589, 0
      %v1917 = vsel %vm1642, %v1590, 0
      %v1920 = vsel %vm1642, %v1591, 0
      %v1923 = vsel %vm1642, %v1592, 0
      %v1926 = vsel %vm1642, %v1593, 0
      %v1929 = vsel %vm1642, %v1594, 0
      %v1932 = vsel %vm1642, %v1595, 0
      %v1935 = vsel %vm1642, %v1596, 0
      %v1938 = vsel %vm1642, %v1597, 0
      %v1941 = vsel %vm1642, %v1598, 0
      %v1944 = vsel %vm1642, %v1599, 0
      %v1947 = vsel %vm1642, %v1600, 0
      %v1950 = vsel %vm1642, %v1601, 0
      %v1953 = vsel %vm1739, %v1604, 0
      %1955 = vmatpush.msra.mxu0 0.0
      %1956 = vmatpush.msra.mxu0 0.0
      %1957 = vmatpush.msra.mxu0 0.0
      %1958 = vmatpush.msra.mxu0 0.0
      %1959 = vmatpush.msra.mxu0 0.0
      %1960 = vmatpush.msra.mxu0 0.0
      %1961 = vmatpush.msra.mxu0 0.0
      %1962 = vmatpush.msra.mxu0 0.0
      %1963 = vmatpush.msra.mxu0 0.0
      %1964 = vmatpush.msra.mxu0 0.0
      %1965 = vmatpush.msra.mxu0 0.0
      %1966 = vmatpush.msra.mxu0 0.0
      %1967 = vmatpush.msra.mxu0 0.0
      %1968 = vmatpush.msra.mxu0 %v1953
      %1969 = vmatpush.msra.mxu0 %v1603
      %1970 = vmatpush.msra.mxu0 %v1602
      %1971 = vmatmul.f32.gmra.mxu0 %v1857
      %v1972 = vpop.f32.mrf.mxu0
      %v1973 = vadd.f32 %v1761, %v1972
      %1974 = vmatmul.f32.gmra.mxu0 %v1860
      %v1975 = vpop.f32.mrf.mxu0
      %v1976 = vadd.f32 %v1764, %v1975
      %1977 = vmatmul.f32.gmra.mxu0 %v1863
      %v1978 = vpop.f32.mrf.mxu0
      %v1979 = vadd.f32 %v1767, %v1978
      %1980 = vmatmul.f32.gmra.mxu0 %v1866
      %v1981 = vpop.f32.mrf.mxu0
      %v1982 = vadd.f32 %v1770, %v1981
      %1983 = vmatmul.f32.gmra.mxu0 %v1869
      %v1984 = vpop.f32.mrf.mxu0
      %v1985 = vadd.f32 %v1773, %v1984
      %1986 = vmatmul.f32.gmra.mxu0 %v1872
      %v1987 = vpop.f32.mrf.mxu0
      %v1988 = vadd.f32 %v1776, %v1987
      %1989 = vmatmul.f32.gmra.mxu0 %v1875
      %v1990 = vpop.f32.mrf.mxu0
      %v1991 = vadd.f32 %v1779, %v1990
      %1992 = vmatmul.f32.gmra.mxu0 %v1878
      %v1993 = vpop.f32.mrf.mxu0
      %v1994 = vadd.f32 %v1782, %v1993
      %1995 = vmatmul.f32.gmra.mxu0 %v1881
      %v1996 = vpop.f32.mrf.mxu0
      %v1997 = vadd.f32 %v1785, %v1996
      %1998 = vmatmul.f32.gmra.mxu0 %v1884
      %v1999 = vpop.f32.mrf.mxu0
      %v2000 = vadd.f32 %v1788, %v1999
      %2001 = vmatmul.f32.gmra.mxu0 %v1887
      %v2002 = vpop.f32.mrf.mxu0
      %v2003 = vadd.f32 %v1791, %v2002
      %2004 = vmatmul.f32.gmra.mxu0 %v1890
      %v2005 = vpop.f32.mrf.mxu0
      %v2006 = vadd.f32 %v1794, %v2005
      %2007 = vmatmul.f32.gmra.mxu0 %v1893
      %v2008 = vpop.f32.mrf.mxu0
      %v2009 = vadd.f32 %v1797, %v2008
      %2010 = vmatmul.f32.gmra.mxu0 %v1896
      %v2011 = vpop.f32.mrf.mxu0
      %v2012 = vadd.f32 %v1800, %v2011
      %2013 = vmatmul.f32.gmra.mxu0 %v1899
      %v2014 = vpop.f32.mrf.mxu0
      %v2015 = vadd.f32 %v1803, %v2014
      %2016 = vmatmul.f32.gmra.mxu0 %v1902
      %v2017 = vpop.f32.mrf.mxu0
      %v2018 = vadd.f32 %v1806, %v2017
      %2019 = vmatmul.f32.gmra.mxu0 %v1905
      %v2020 = vpop.f32.mrf.mxu0
      %v2021 = vadd.f32 %v1809, %v2020
      %2022 = vmatmul.f32.gmra.mxu0 %v1908
      %v2023 = vpop.f32.mrf.mxu0
      %v2024 = vadd.f32 %v1812, %v2023
      %2025 = vmatmul.f32.gmra.mxu0 %v1911
      %v2026 = vpop.f32.mrf.mxu0
      %v2027 = vadd.f32 %v1815, %v2026
      %2028 = vmatmul.f32.gmra.mxu0 %v1914
      %v2029 = vpop.f32.mrf.mxu0
      %v2030 = vadd.f32 %v1818, %v2029
      %2031 = vmatmul.f32.gmra.mxu0 %v1917
      %v2032 = vpop.f32.mrf.mxu0
      %v2033 = vadd.f32 %v1821, %v2032
      %2034 = vmatmul.f32.gmra.mxu0 %v1920
      %v2035 = vpop.f32.mrf.mxu0
      %v2036 = vadd.f32 %v1824, %v2035
      %2037 = vmatmul.f32.gmra.mxu0 %v1923
      %v2038 = vpop.f32.mrf.mxu0
      %v2039 = vadd.f32 %v1827, %v2038
      %2040 = vmatmul.f32.gmra.mxu0 %v1926
      %v2041 = vpop.f32.mrf.mxu0
      %v2042 = vadd.f32 %v1830, %v2041
      %2043 = vmatmul.f32.gmra.mxu0 %v1929
      %v2044 = vpop.f32.mrf.mxu0
      %v2045 = vadd.f32 %v1833, %v2044
      %2046 = vmatmul.f32.gmra.mxu0 %v1932
      %v2047 = vpop.f32.mrf.mxu0
      %v2048 = vadd.f32 %v1836, %v2047
      %2049 = vmatmul.f32.gmra.mxu0 %v1935
      %v2050 = vpop.f32.mrf.mxu0
      %v2051 = vadd.f32 %v1839, %v2050
      %2052 = vmatmul.f32.gmra.mxu0 %v1938
      %v2053 = vpop.f32.mrf.mxu0
      %v2054 = vadd.f32 %v1842, %v2053
      %2055 = vmatmul.f32.gmra.mxu0 %v1941
      %v2056 = vpop.f32.mrf.mxu0
      %v2057 = vadd.f32 %v1845, %v2056
      %2058 = vmatmul.f32.gmra.mxu0 %v1944
      %v2059 = vpop.f32.mrf.mxu0
      %v2060 = vadd.f32 %v1848, %v2059
      %2061 = vmatmul.f32.gmra.mxu0 %v1947
      %v2062 = vpop.f32.mrf.mxu0
      %v2063 = vadd.f32 %v1851, %v2062
      %2064 = vmatmul.f32.gmra.mxu0 %v1950
      %v2065 = vpop.f32.mrf.mxu0
      %v2066 = vadd.f32 %v1854, %v2065
      %2067 = vdwg.mxu0
      %s2068 = scalar_lea.vmem [#allocation3], 32
      %v2069 = vld [vmem:[%s2068] sm:$0xff]
      %v2070 = vld [vmem:[%s2068 + $0x8] sm:$0xff]
      %v2071 = vld [vmem:[%s2068 + $0x10] sm:$0xff]
      %v2072 = vld [vmem:[%s2068 + $0x18] sm:$0xff]
      %v2073 = vld [vmem:[%s2068 + $0x20] sm:$0xff]
      %v2074 = vld [vmem:[%s2068 + $0x28] sm:$0xff]
      %v2075 = vld [vmem:[%s2068 + $0x30] sm:$0xff]
      %v2076 = vld [vmem:[%s2068 + $0x38] sm:$0xff]
      %v2077 = vld [vmem:[%s2068 + $0x40] sm:$0xff]
      %v2078 = vld [vmem:[%s2068 + $0x48] sm:$0xff]
      %v2079 = vld [vmem:[%s2068 + $0x50] sm:$0xff]
      %v2080 = vld [vmem:[%s2068 + $0x58] sm:$0xff]
      %v2081 = vld [vmem:[%s2068 + $0x60] sm:$0xff]
      %v2082 = vld [vmem:[%s2068 + $0x68] sm:$0xff]
      %v2083 = vld [vmem:[%s2068 + $0x70] sm:$0xff]
      %v2084 = vld [vmem:[%s2068 + $0x78] sm:$0xff]
      %v2085 = vld [vmem:[%s2068 + $0x80] sm:$0xff]
      %v2086 = vld [vmem:[%s2068 + $0x88] sm:$0xff]
      %v2087 = vld [vmem:[%s2068 + $0x90] sm:$0xff]
      %v2088 = vld [vmem:[%s2068 + $0x98] sm:$0xff]
      %v2089 = vld [vmem:[%s2068 + $0xa0] sm:$0xff]
      %v2090 = vld [vmem:[%s2068 + $0xa8] sm:$0xff]
      %v2091 = vld [vmem:[%s2068 + $0xb0] sm:$0xff]
      %v2092 = vld [vmem:[%s2068 + $0xb8] sm:$0xff]
      %v2093 = vld [vmem:[%s2068 + $0xc0] sm:$0xff]
      %v2094 = vld [vmem:[%s2068 + $0xc8] sm:$0xff]
      %v2095 = vld [vmem:[%s2068 + $0xd0] sm:$0xff]
      %v2096 = vld [vmem:[%s2068 + $0xd8] sm:$0xff]
      %v2097 = vld [vmem:[%s2068 + $0xe0] sm:$0xff]
      %v2098 = vld [vmem:[%s2068 + $0xe8] sm:$0xff]
      %v2099 = vld [vmem:[%s2068 + $0xf0] sm:$0xff]
      %v2100 = vld [vmem:[%s2068 + $0xf8] sm:$0xff]
      %s2101 = scalar_lea.vmem %s303, 48
      %v2102 = vld [vmem:[%s2101] sm:$0xff]
      %v2103 = vld [vmem:[%s2101 + $0x8] sm:$0xff]
      %v2104 = vld [vmem:[%s2101 + $0x10] sm:$0xf]
      %v2106 = vsel %vm1642, %v2069, 0
      %v2109 = vsel %vm1642, %v2070, 0
      %v2112 = vsel %vm1642, %v2071, 0
      %v2115 = vsel %vm1642, %v2072, 0
      %v2118 = vsel %vm1642, %v2073, 0
      %v2121 = vsel %vm1642, %v2074, 0
      %v2124 = vsel %vm1642, %v2075, 0
      %v2127 = vsel %vm1642, %v2076, 0
      %v2130 = vsel %vm1642, %v2077, 0
      %v2133 = vsel %vm1642, %v2078, 0
      %v2136 = vsel %vm1642, %v2079, 0
      %v2139 = vsel %vm1642, %v2080, 0
      %v2142 = vsel %vm1642, %v2081, 0
      %v2145 = vsel %vm1642, %v2082, 0
      %v2148 = vsel %vm1642, %v2083, 0
      %v2151 = vsel %vm1642, %v2084, 0
      %v2154 = vsel %vm1642, %v2085, 0
      %v2157 = vsel %vm1642, %v2086, 0
      %v2160 = vsel %vm1642, %v2087, 0
      %v2163 = vsel %vm1642, %v2088, 0
      %v2166 = vsel %vm1642, %v2089, 0
      %v2169 = vsel %vm1642, %v2090, 0
      %v2172 = vsel %vm1642, %v2091, 0
      %v2175 = vsel %vm1642, %v2092, 0
      %v2178 = vsel %vm1642, %v2093, 0
      %v2181 = vsel %vm1642, %v2094, 0
      %v2184 = vsel %vm1642, %v2095, 0
      %v2187 = vsel %vm1642, %v2096, 0
      %v2190 = vsel %vm1642, %v2097, 0
      %v2193 = vsel %vm1642, %v2098, 0
      %v2196 = vsel %vm1642, %v2099, 0
      %v2199 = vsel %vm1642, %v2100, 0
      %v2202 = vsel %vm1739, %v2104, 0
      %2204 = vmatpush.msra.mxu0 0.0
      %2205 = vmatpush.msra.mxu0 0.0
      %2206 = vmatpush.msra.mxu0 0.0
      %2207 = vmatpush.msra.mxu0 0.0
      %2208 = vmatpush.msra.mxu0 0.0
      %2209 = vmatpush.msra.mxu0 0.0
      %2210 = vmatpush.msra.mxu0 0.0
      %2211 = vmatpush.msra.mxu0 0.0
      %2212 = vmatpush.msra.mxu0 0.0
      %2213 = vmatpush.msra.mxu0 0.0
      %2214 = vmatpush.msra.mxu0 0.0
      %2215 = vmatpush.msra.mxu0 0.0
      %2216 = vmatpush.msra.mxu0 0.0
      %2217 = vmatpush.msra.mxu0 %v2202
      %2218 = vmatpush.msra.mxu0 %v2103
      %2219 = vmatpush.msra.mxu0 %v2102
      %2220 = vmatmul.f32.gmra.mxu0 %v2106
      %v2221 = vpop.f32.mrf.mxu0
      %v2222 = vadd.f32 0.0, %v2221
      %2223 = vmatmul.f32.gmra.mxu0 %v2109
      %v2224 = vpop.f32.mrf.mxu0
      %v2225 = vadd.f32 0.0, %v2224
      %2226 = vmatmul.f32.gmra.mxu0 %v2112
      %v2227 = vpop.f32.mrf.mxu0
      %v2228 = vadd.f32 0.0, %v2227
      %2229 = vmatmul.f32.gmra.mxu0 %v2115
      %v2230 = vpop.f32.mrf.mxu0
      %v2231 = vadd.f32 0.0, %v2230
      %2232 = vmatmul.f32.gmra.mxu0 %v2118
      %v2233 = vpop.f32.mrf.mxu0
      %v2234 = vadd.f32 0.0, %v2233
      %2235 = vmatmul.f32.gmra.mxu0 %v2121
      %v2236 = vpop.f32.mrf.mxu0
      %v2237 = vadd.f32 0.0, %v2236
      %2238 = vmatmul.f32.gmra.mxu0 %v2124
      %v2239 = vpop.f32.mrf.mxu0
      %v2240 = vadd.f32 0.0, %v2239
      %2241 = vmatmul.f32.gmra.mxu0 %v2127
      %v2242 = vpop.f32.mrf.mxu0
      %v2243 = vadd.f32 0.0, %v2242
      %2244 = vmatmul.f32.gmra.mxu0 %v2130
      %v2245 = vpop.f32.mrf.mxu0
      %v2246 = vadd.f32 0.0, %v2245
      %2247 = vmatmul.f32.gmra.mxu0 %v2133
      %v2248 = vpop.f32.mrf.mxu0
      %v2249 = vadd.f32 0.0, %v2248
      %2250 = vmatmul.f32.gmra.mxu0 %v2136
      %v2251 = vpop.f32.mrf.mxu0
      %v2252 = vadd.f32 0.0, %v2251
      %2253 = vmatmul.f32.gmra.mxu0 %v2139
      %v2254 = vpop.f32.mrf.mxu0
      %v2255 = vadd.f32 0.0, %v2254
      %2256 = vmatmul.f32.gmra.mxu0 %v2142
      %v2257 = vpop.f32.mrf.mxu0
      %v2258 = vadd.f32 0.0, %v2257
      %2259 = vmatmul.f32.gmra.mxu0 %v2145
      %v2260 = vpop.f32.mrf.mxu0
      %v2261 = vadd.f32 0.0, %v2260
      %2262 = vmatmul.f32.gmra.mxu0 %v2148
      %v2263 = vpop.f32.mrf.mxu0
      %v2264 = vadd.f32 0.0, %v2263
      %2265 = vmatmul.f32.gmra.mxu0 %v2151
      %v2266 = vpop.f32.mrf.mxu0
      %v2267 = vadd.f32 0.0, %v2266
      %2268 = vmatmul.f32.gmra.mxu0 %v2154
      %v2269 = vpop.f32.mrf.mxu0
      %v2270 = vadd.f32 0.0, %v2269
      %2271 = vmatmul.f32.gmra.mxu0 %v2157
      %v2272 = vpop.f32.mrf.mxu0
      %v2273 = vadd.f32 0.0, %v2272
      %2274 = vmatmul.f32.gmra.mxu0 %v2160
      %v2275 = vpop.f32.mrf.mxu0
      %v2276 = vadd.f32 0.0, %v2275
      %2277 = vmatmul.f32.gmra.mxu0 %v2163
      %v2278 = vpop.f32.mrf.mxu0
      %v2279 = vadd.f32 0.0, %v2278
      %2280 = vmatmul.f32.gmra.mxu0 %v2166
      %v2281 = vpop.f32.mrf.mxu0
      %v2282 = vadd.f32 0.0, %v2281
      %2283 = vmatmul.f32.gmra.mxu0 %v2169
      %v2284 = vpop.f32.mrf.mxu0
      %v2285 = vadd.f32 0.0, %v2284
      %2286 = vmatmul.f32.gmra.mxu0 %v2172
      %v2287 = vpop.f32.mrf.mxu0
      %v2288 = vadd.f32 0.0, %v2287
      %2289 = vmatmul.f32.gmra.mxu0 %v2175
      %v2290 = vpop.f32.mrf.mxu0
      %v2291 = vadd.f32 0.0, %v2290
      %2292 = vmatmul.f32.gmra.mxu0 %v2178
      %v2293 = vpop.f32.mrf.mxu0
      %v2294 = vadd.f32 0.0, %v2293
      %2295 = vmatmul.f32.gmra.mxu0 %v2181
      %v2296 = vpop.f32.mrf.mxu0
      %v2297 = vadd.f32 0.0, %v2296
      %2298 = vmatmul.f32.gmra.mxu0 %v2184
      %v2299 = vpop.f32.mrf.mxu0
      %v2300 = vadd.f32 0.0, %v2299
      %2301 = vmatmul.f32.gmra.mxu0 %v2187
      %v2302 = vpop.f32.mrf.mxu0
      %v2303 = vadd.f32 0.0, %v2302
      %2304 = vmatmul.f32.gmra.mxu0 %v2190
      %v2305 = vpop.f32.mrf.mxu0
      %v2306 = vadd.f32 0.0, %v2305
      %2307 = vmatmul.f32.gmra.mxu0 %v2193
      %v2308 = vpop.f32.mrf.mxu0
      %v2309 = vadd.f32 0.0, %v2308
      %2310 = vmatmul.f32.gmra.mxu0 %v2196
      %v2311 = vpop.f32.mrf.mxu0
      %v2312 = vadd.f32 0.0, %v2311
      %2313 = vmatmul.f32.gmra.mxu0 %v2199
      %v2314 = vpop.f32.mrf.mxu0
      %v2315 = vadd.f32 0.0, %v2314
      %2316 = vdwg.mxu0
      %v2317 = vadd.f32 %v1973, %v2222
      %v2318 = vadd.f32 %v1976, %v2225
      %v2319 = vadd.f32 %v1979, %v2228
      %v2320 = vadd.f32 %v1982, %v2231
      %v2321 = vadd.f32 %v1985, %v2234
      %v2322 = vadd.f32 %v1988, %v2237
      %v2323 = vadd.f32 %v1991, %v2240
      %v2324 = vadd.f32 %v1994, %v2243
      %v2325 = vadd.f32 %v1997, %v2246
      %v2326 = vadd.f32 %v2000, %v2249
      %v2327 = vadd.f32 %v2003, %v2252
      %v2328 = vadd.f32 %v2006, %v2255
      %v2329 = vadd.f32 %v2009, %v2258
      %v2330 = vadd.f32 %v2012, %v2261
      %v2331 = vadd.f32 %v2015, %v2264
      %v2332 = vadd.f32 %v2018, %v2267
      %v2333 = vadd.f32 %v2021, %v2270
      %v2334 = vadd.f32 %v2024, %v2273
      %v2335 = vadd.f32 %v2027, %v2276
      %v2336 = vadd.f32 %v2030, %v2279
      %v2337 = vadd.f32 %v2033, %v2282
      %v2338 = vadd.f32 %v2036, %v2285
      %v2339 = vadd.f32 %v2039, %v2288
      %v2340 = vadd.f32 %v2042, %v2291
      %v2341 = vadd.f32 %v2045, %v2294
      %v2342 = vadd.f32 %v2048, %v2297
      %v2343 = vadd.f32 %v2051, %v2300
      %v2344 = vadd.f32 %v2054, %v2303
      %v2345 = vadd.f32 %v2057, %v2306
      %v2346 = vadd.f32 %v2060, %v2309
      %v2347 = vadd.f32 %v2063, %v2312
      %v2348 = vadd.f32 %v2066, %v2315
      %s2349 = scalar_lea.vmem [#allocation3], 48
      %v2350 = vld [vmem:[%s2349] sm:$0xff]
      %v2351 = vld [vmem:[%s2349 + $0x8] sm:$0xff]
      %v2352 = vld [vmem:[%s2349 + $0x10] sm:$0xff]
      %v2353 = vld [vmem:[%s2349 + $0x18] sm:$0xff]
      %v2354 = vld [vmem:[%s2349 + $0x20] sm:$0xff]
      %v2355 = vld [vmem:[%s2349 + $0x28] sm:$0xff]
      %v2356 = vld [vmem:[%s2349 + $0x30] sm:$0xff]
      %v2357 = vld [vmem:[%s2349 + $0x38] sm:$0xff]
      %v2358 = vld [vmem:[%s2349 + $0x40] sm:$0xff]
      %v2359 = vld [vmem:[%s2349 + $0x48] sm:$0xff]
      %v2360 = vld [vmem:[%s2349 + $0x50] sm:$0xff]
      %v2361 = vld [vmem:[%s2349 + $0x58] sm:$0xff]
      %v2362 = vld [vmem:[%s2349 + $0x60] sm:$0xff]
      %v2363 = vld [vmem:[%s2349 + $0x68] sm:$0xff]
      %v2364 = vld [vmem:[%s2349 + $0x70] sm:$0xff]
      %v2365 = vld [vmem:[%s2349 + $0x78] sm:$0xff]
      %v2366 = vld [vmem:[%s2349 + $0x80] sm:$0xff]
      %v2367 = vld [vmem:[%s2349 + $0x88] sm:$0xff]
      %v2368 = vld [vmem:[%s2349 + $0x90] sm:$0xff]
      %v2369 = vld [vmem:[%s2349 + $0x98] sm:$0xff]
      %v2370 = vld [vmem:[%s2349 + $0xa0] sm:$0xff]
      %v2371 = vld [vmem:[%s2349 + $0xa8] sm:$0xff]
      %v2372 = vld [vmem:[%s2349 + $0xb0] sm:$0xff]
      %v2373 = vld [vmem:[%s2349 + $0xb8] sm:$0xff]
      %v2374 = vld [vmem:[%s2349 + $0xc0] sm:$0xff]
      %v2375 = vld [vmem:[%s2349 + $0xc8] sm:$0xff]
      %v2376 = vld [vmem:[%s2349 + $0xd0] sm:$0xff]
      %v2377 = vld [vmem:[%s2349 + $0xd8] sm:$0xff]
      %v2378 = vld [vmem:[%s2349 + $0xe0] sm:$0xff]
      %v2379 = vld [vmem:[%s2349 + $0xe8] sm:$0xff]
      %v2380 = vld [vmem:[%s2349 + $0xf0] sm:$0xff]
      %v2381 = vld [vmem:[%s2349 + $0xf8] sm:$0xff]
      %s2382 = scalar_lea.vmem %s303, 72
      %v2383 = vld [vmem:[%s2382] sm:$0xff]
      %v2384 = vld [vmem:[%s2382 + $0x8] sm:$0xff]
      %v2385 = vld [vmem:[%s2382 + $0x10] sm:$0xf]
      %v2387 = vsel %vm1642, %v2350, 0
      %v2390 = vsel %vm1642, %v2351, 0
      %v2393 = vsel %vm1642, %v2352, 0
      %v2396 = vsel %vm1642, %v2353, 0
      %v2399 = vsel %vm1642, %v2354, 0
      %v2402 = vsel %vm1642, %v2355, 0
      %v2405 = vsel %vm1642, %v2356, 0
      %v2408 = vsel %vm1642, %v2357, 0
      %v2411 = vsel %vm1642, %v2358, 0
      %v2414 = vsel %vm1642, %v2359, 0
      %v2417 = vsel %vm1642, %v2360, 0
      %v2420 = vsel %vm1642, %v2361, 0
      %v2423 = vsel %vm1642, %v2362, 0
      %v2426 = vsel %vm1642, %v2363, 0
      %v2429 = vsel %vm1642, %v2364, 0
      %v2432 = vsel %vm1642, %v2365, 0
      %v2435 = vsel %vm1642, %v2366, 0
      %v2438 = vsel %vm1642, %v2367, 0
      %v2441 = vsel %vm1642, %v2368, 0
      %v2444 = vsel %vm1642, %v2369, 0
      %v2447 = vsel %vm1642, %v2370, 0
      %v2450 = vsel %vm1642, %v2371, 0
      %v2453 = vsel %vm1642, %v2372, 0
      %v2456 = vsel %vm1642, %v2373, 0
      %v2459 = vsel %vm1642, %v2374, 0
      %v2462 = vsel %vm1642, %v2375, 0
      %v2465 = vsel %vm1642, %v2376, 0
      %v2468 = vsel %vm1642, %v2377, 0
      %v2471 = vsel %vm1642, %v2378, 0
      %v2474 = vsel %vm1642, %v2379, 0
      %v2477 = vsel %vm1642, %v2380, 0
      %v2480 = vsel %vm1642, %v2381, 0
      %v2483 = vsel %vm1739, %v2385, 0
      %2485 = vmatpush.msra.mxu0 0.0
      %2486 = vmatpush.msra.mxu0 0.0
      %2487 = vmatpush.msra.mxu0 0.0
      %2488 = vmatpush.msra.mxu0 0.0
      %2489 = vmatpush.msra.mxu0 0.0
      %2490 = vmatpush.msra.mxu0 0.0
      %2491 = vmatpush.msra.mxu0 0.0
      %2492 = vmatpush.msra.mxu0 0.0
      %2493 = vmatpush.msra.mxu0 0.0
      %2494 = vmatpush.msra.mxu0 0.0
      %2495 = vmatpush.msra.mxu0 0.0
      %2496 = vmatpush.msra.mxu0 0.0
      %2497 = vmatpush.msra.mxu0 0.0
      %2498 = vmatpush.msra.mxu0 %v2483
      %2499 = vmatpush.msra.mxu0 %v2384
      %2500 = vmatpush.msra.mxu0 %v2383
      %2501 = vmatmul.f32.gmra.mxu0 %v2387
      %v2502 = vpop.f32.mrf.mxu0
      %v2503 = vadd.f32 0.0, %v2502
      %2504 = vmatmul.f32.gmra.mxu0 %v2390
      %v2505 = vpop.f32.mrf.mxu0
      %v2506 = vadd.f32 0.0, %v2505
      %2507 = vmatmul.f32.gmra.mxu0 %v2393
      %v2508 = vpop.f32.mrf.mxu0
      %v2509 = vadd.f32 0.0, %v2508
      %2510 = vmatmul.f32.gmra.mxu0 %v2396
      %v2511 = vpop.f32.mrf.mxu0
      %v2512 = vadd.f32 0.0, %v2511
      %2513 = vmatmul.f32.gmra.mxu0 %v2399
      %v2514 = vpop.f32.mrf.mxu0
      %v2515 = vadd.f32 0.0, %v2514
      %2516 = vmatmul.f32.gmra.mxu0 %v2402
      %v2517 = vpop.f32.mrf.mxu0
      %v2518 = vadd.f32 0.0, %v2517
      %2519 = vmatmul.f32.gmra.mxu0 %v2405
      %v2520 = vpop.f32.mrf.mxu0
      %v2521 = vadd.f32 0.0, %v2520
      %2522 = vmatmul.f32.gmra.mxu0 %v2408
      %v2523 = vpop.f32.mrf.mxu0
      %v2524 = vadd.f32 0.0, %v2523
      %2525 = vmatmul.f32.gmra.mxu0 %v2411
      %v2526 = vpop.f32.mrf.mxu0
      %v2527 = vadd.f32 0.0, %v2526
      %2528 = vmatmul.f32.gmra.mxu0 %v2414
      %v2529 = vpop.f32.mrf.mxu0
      %v2530 = vadd.f32 0.0, %v2529
      %2531 = vmatmul.f32.gmra.mxu0 %v2417
      %v2532 = vpop.f32.mrf.mxu0
      %v2533 = vadd.f32 0.0, %v2532
      %2534 = vmatmul.f32.gmra.mxu0 %v2420
      %v2535 = vpop.f32.mrf.mxu0
      %v2536 = vadd.f32 0.0, %v2535
      %2537 = vmatmul.f32.gmra.mxu0 %v2423
      %v2538 = vpop.f32.mrf.mxu0
      %v2539 = vadd.f32 0.0, %v2538
      %2540 = vmatmul.f32.gmra.mxu0 %v2426
      %v2541 = vpop.f32.mrf.mxu0
      %v2542 = vadd.f32 0.0, %v2541
      %2543 = vmatmul.f32.gmra.mxu0 %v2429
      %v2544 = vpop.f32.mrf.mxu0
      %v2545 = vadd.f32 0.0, %v2544
      %2546 = vmatmul.f32.gmra.mxu0 %v2432
      %v2547 = vpop.f32.mrf.mxu0
      %v2548 = vadd.f32 0.0, %v2547
      %2549 = vmatmul.f32.gmra.mxu0 %v2435
      %v2550 = vpop.f32.mrf.mxu0
      %v2551 = vadd.f32 0.0, %v2550
      %2552 = vmatmul.f32.gmra.mxu0 %v2438
      %v2553 = vpop.f32.mrf.mxu0
      %v2554 = vadd.f32 0.0, %v2553
      %2555 = vmatmul.f32.gmra.mxu0 %v2441
      %v2556 = vpop.f32.mrf.mxu0
      %v2557 = vadd.f32 0.0, %v2556
      %2558 = vmatmul.f32.gmra.mxu0 %v2444
      %v2559 = vpop.f32.mrf.mxu0
      %v2560 = vadd.f32 0.0, %v2559
      %2561 = vmatmul.f32.gmra.mxu0 %v2447
      %v2562 = vpop.f32.mrf.mxu0
      %v2563 = vadd.f32 0.0, %v2562
      %2564 = vmatmul.f32.gmra.mxu0 %v2450
      %v2565 = vpop.f32.mrf.mxu0
      %v2566 = vadd.f32 0.0, %v2565
      %2567 = vmatmul.f32.gmra.mxu0 %v2453
      %v2568 = vpop.f32.mrf.mxu0
      %v2569 = vadd.f32 0.0, %v2568
      %2570 = vmatmul.f32.gmra.mxu0 %v2456
      %v2571 = vpop.f32.mrf.mxu0
      %v2572 = vadd.f32 0.0, %v2571
      %2573 = vmatmul.f32.gmra.mxu0 %v2459
      %v2574 = vpop.f32.mrf.mxu0
      %v2575 = vadd.f32 0.0, %v2574
      %2576 = vmatmul.f32.gmra.mxu0 %v2462
      %v2577 = vpop.f32.mrf.mxu0
      %v2578 = vadd.f32 0.0, %v2577
      %2579 = vmatmul.f32.gmra.mxu0 %v2465
      %v2580 = vpop.f32.mrf.mxu0
      %v2581 = vadd.f32 0.0, %v2580
      %2582 = vmatmul.f32.gmra.mxu0 %v2468
      %v2583 = vpop.f32.mrf.mxu0
      %v2584 = vadd.f32 0.0, %v2583
      %2585 = vmatmul.f32.gmra.mxu0 %v2471
      %v2586 = vpop.f32.mrf.mxu0
      %v2587 = vadd.f32 0.0, %v2586
      %2588 = vmatmul.f32.gmra.mxu0 %v2474
      %v2589 = vpop.f32.mrf.mxu0
      %v2590 = vadd.f32 0.0, %v2589
      %2591 = vmatmul.f32.gmra.mxu0 %v2477
      %v2592 = vpop.f32.mrf.mxu0
      %v2593 = vadd.f32 0.0, %v2592
      %2594 = vmatmul.f32.gmra.mxu0 %v2480
      %v2595 = vpop.f32.mrf.mxu0
      %v2596 = vadd.f32 0.0, %v2595
      %2597 = vdwg.mxu0
      %v2598 = vadd.f32 %v2317, %v2503
      %v2599 = vadd.f32 %v2318, %v2506
      %v2600 = vadd.f32 %v2319, %v2509
      %v2601 = vadd.f32 %v2320, %v2512
      %v2602 = vadd.f32 %v2321, %v2515
      %v2603 = vadd.f32 %v2322, %v2518
      %v2604 = vadd.f32 %v2323, %v2521
      %v2605 = vadd.f32 %v2324, %v2524
      %v2606 = vadd.f32 %v2325, %v2527
      %v2607 = vadd.f32 %v2326, %v2530
      %v2608 = vadd.f32 %v2327, %v2533
      %v2609 = vadd.f32 %v2328, %v2536
      %v2610 = vadd.f32 %v2329, %v2539
      %v2611 = vadd.f32 %v2330, %v2542
      %v2612 = vadd.f32 %v2331, %v2545
      %v2613 = vadd.f32 %v2332, %v2548
      %v2614 = vadd.f32 %v2333, %v2551
      %v2615 = vadd.f32 %v2334, %v2554
      %v2616 = vadd.f32 %v2335, %v2557
      %v2617 = vadd.f32 %v2336, %v2560
      %v2618 = vadd.f32 %v2337, %v2563
      %v2619 = vadd.f32 %v2338, %v2566
      %v2620 = vadd.f32 %v2339, %v2569
      %v2621 = vadd.f32 %v2340, %v2572
      %v2622 = vadd.f32 %v2341, %v2575
      %v2623 = vadd.f32 %v2342, %v2578
      %v2624 = vadd.f32 %v2343, %v2581
      %v2625 = vadd.f32 %v2344, %v2584
      %v2626 = vadd.f32 %v2345, %v2587
      %v2627 = vadd.f32 %v2346, %v2590
      %v2628 = vadd.f32 %v2347, %v2593
      %v2629 = vadd.f32 %v2348, %v2596
      %s2630 = scalar_lea.vmem [#allocation3], 64
      %v2631 = vld [vmem:[%s2630] sm:$0xff]
      %v2632 = vld [vmem:[%s2630 + $0x8] sm:$0xff]
      %v2633 = vld [vmem:[%s2630 + $0x10] sm:$0xff]
      %v2634 = vld [vmem:[%s2630 + $0x18] sm:$0xff]
      %v2635 = vld [vmem:[%s2630 + $0x20] sm:$0xff]
      %v2636 = vld [vmem:[%s2630 + $0x28] sm:$0xff]
      %v2637 = vld [vmem:[%s2630 + $0x30] sm:$0xff]
      %v2638 = vld [vmem:[%s2630 + $0x38] sm:$0xff]
      %v2639 = vld [vmem:[%s2630 + $0x40] sm:$0xff]
      %v2640 = vld [vmem:[%s2630 + $0x48] sm:$0xff]
      %v2641 = vld [vmem:[%s2630 + $0x50] sm:$0xff]
      %v2642 = vld [vmem:[%s2630 + $0x58] sm:$0xff]
      %v2643 = vld [vmem:[%s2630 + $0x60] sm:$0xff]
      %v2644 = vld [vmem:[%s2630 + $0x68] sm:$0xff]
      %v2645 = vld [vmem:[%s2630 + $0x70] sm:$0xff]
      %v2646 = vld [vmem:[%s2630 + $0x78] sm:$0xff]
      %v2647 = vld [vmem:[%s2630 + $0x80] sm:$0xff]
      %v2648 = vld [vmem:[%s2630 + $0x88] sm:$0xff]
      %v2649 = vld [vmem:[%s2630 + $0x90] sm:$0xff]
      %v2650 = vld [vmem:[%s2630 + $0x98] sm:$0xff]
      %v2651 = vld [vmem:[%s2630 + $0xa0] sm:$0xff]
      %v2652 = vld [vmem:[%s2630 + $0xa8] sm:$0xff]
      %v2653 = vld [vmem:[%s2630 + $0xb0] sm:$0xff]
      %v2654 = vld [vmem:[%s2630 + $0xb8] sm:$0xff]
      %v2655 = vld [vmem:[%s2630 + $0xc0] sm:$0xff]
      %v2656 = vld [vmem:[%s2630 + $0xc8] sm:$0xff]
      %v2657 = vld [vmem:[%s2630 + $0xd0] sm:$0xff]
      %v2658 = vld [vmem:[%s2630 + $0xd8] sm:$0xff]
      %v2659 = vld [vmem:[%s2630 + $0xe0] sm:$0xff]
      %v2660 = vld [vmem:[%s2630 + $0xe8] sm:$0xff]
      %v2661 = vld [vmem:[%s2630 + $0xf0] sm:$0xff]
      %v2662 = vld [vmem:[%s2630 + $0xf8] sm:$0xff]
      %s2663 = scalar_lea.vmem %s303, 96
      %v2664 = vld [vmem:[%s2663] sm:$0xff]
      %v2665 = vld [vmem:[%s2663 + $0x8] sm:$0xff]
      %v2666 = vld [vmem:[%s2663 + $0x10] sm:$0xf]
      %v2668 = vsel %vm1642, %v2631, 0
      %v2671 = vsel %vm1642, %v2632, 0
      %v2674 = vsel %vm1642, %v2633, 0
      %v2677 = vsel %vm1642, %v2634, 0
      %v2680 = vsel %vm1642, %v2635, 0
      %v2683 = vsel %vm1642, %v2636, 0
      %v2686 = vsel %vm1642, %v2637, 0
      %v2689 = vsel %vm1642, %v2638, 0
      %v2692 = vsel %vm1642, %v2639, 0
      %v2695 = vsel %vm1642, %v2640, 0
      %v2698 = vsel %vm1642, %v2641, 0
      %v2701 = vsel %vm1642, %v2642, 0
      %v2704 = vsel %vm1642, %v2643, 0
      %v2707 = vsel %vm1642, %v2644, 0
      %v2710 = vsel %vm1642, %v2645, 0
      %v2713 = vsel %vm1642, %v2646, 0
      %v2716 = vsel %vm1642, %v2647, 0
      %v2719 = vsel %vm1642, %v2648, 0
      %v2722 = vsel %vm1642, %v2649, 0
      %v2725 = vsel %vm1642, %v2650, 0
      %v2728 = vsel %vm1642, %v2651, 0
      %v2731 = vsel %vm1642, %v2652, 0
      %v2734 = vsel %vm1642, %v2653, 0
      %v2737 = vsel %vm1642, %v2654, 0
      %v2740 = vsel %vm1642, %v2655, 0
      %v2743 = vsel %vm1642, %v2656, 0
      %v2746 = vsel %vm1642, %v2657, 0
      %v2749 = vsel %vm1642, %v2658, 0
      %v2752 = vsel %vm1642, %v2659, 0
      %v2755 = vsel %vm1642, %v2660, 0
      %v2758 = vsel %vm1642, %v2661, 0
      %v2761 = vsel %vm1642, %v2662, 0
      %v2764 = vsel %vm1739, %v2666, 0
      %2766 = vmatpush.msra.mxu0 0.0
      %2767 = vmatpush.msra.mxu0 0.0
      %2768 = vmatpush.msra.mxu0 0.0
      %2769 = vmatpush.msra.mxu0 0.0
      %2770 = vmatpush.msra.mxu0 0.0
      %2771 = vmatpush.msra.mxu0 0.0
      %2772 = vmatpush.msra.mxu0 0.0
      %2773 = vmatpush.msra.mxu0 0.0
      %2774 = vmatpush.msra.mxu0 0.0
      %2775 = vmatpush.msra.mxu0 0.0
      %2776 = vmatpush.msra.mxu0 0.0
      %2777 = vmatpush.msra.mxu0 0.0
      %2778 = vmatpush.msra.mxu0 0.0
      %2779 = vmatpush.msra.mxu0 %v2764
      %2780 = vmatpush.msra.mxu0 %v2665
      %2781 = vmatpush.msra.mxu0 %v2664
      %2782 = vmatmul.f32.gmra.mxu0 %v2668
      %v2783 = vpop.f32.mrf.mxu0
      %v2784 = vadd.f32 0.0, %v2783
      %2785 = vmatmul.f32.gmra.mxu0 %v2671
      %v2786 = vpop.f32.mrf.mxu0
      %v2787 = vadd.f32 0.0, %v2786
      %2788 = vmatmul.f32.gmra.mxu0 %v2674
      %v2789 = vpop.f32.mrf.mxu0
      %v2790 = vadd.f32 0.0, %v2789
      %2791 = vmatmul.f32.gmra.mxu0 %v2677
      %v2792 = vpop.f32.mrf.mxu0
      %v2793 = vadd.f32 0.0, %v2792
      %2794 = vmatmul.f32.gmra.mxu0 %v2680
      %v2795 = vpop.f32.mrf.mxu0
      %v2796 = vadd.f32 0.0, %v2795
      %2797 = vmatmul.f32.gmra.mxu0 %v2683
      %v2798 = vpop.f32.mrf.mxu0
      %v2799 = vadd.f32 0.0, %v2798
      %2800 = vmatmul.f32.gmra.mxu0 %v2686
      %v2801 = vpop.f32.mrf.mxu0
      %v2802 = vadd.f32 0.0, %v2801
      %2803 = vmatmul.f32.gmra.mxu0 %v2689
      %v2804 = vpop.f32.mrf.mxu0
      %v2805 = vadd.f32 0.0, %v2804
      %2806 = vmatmul.f32.gmra.mxu0 %v2692
      %v2807 = vpop.f32.mrf.mxu0
      %v2808 = vadd.f32 0.0, %v2807
      %2809 = vmatmul.f32.gmra.mxu0 %v2695
      %v2810 = vpop.f32.mrf.mxu0
      %v2811 = vadd.f32 0.0, %v2810
      %2812 = vmatmul.f32.gmra.mxu0 %v2698
      %v2813 = vpop.f32.mrf.mxu0
      %v2814 = vadd.f32 0.0, %v2813
      %2815 = vmatmul.f32.gmra.mxu0 %v2701
      %v2816 = vpop.f32.mrf.mxu0
      %v2817 = vadd.f32 0.0, %v2816
      %2818 = vmatmul.f32.gmra.mxu0 %v2704
      %v2819 = vpop.f32.mrf.mxu0
      %v2820 = vadd.f32 0.0, %v2819
      %2821 = vmatmul.f32.gmra.mxu0 %v2707
      %v2822 = vpop.f32.mrf.mxu0
      %v2823 = vadd.f32 0.0, %v2822
      %2824 = vmatmul.f32.gmra.mxu0 %v2710
      %v2825 = vpop.f32.mrf.mxu0
      %v2826 = vadd.f32 0.0, %v2825
      %2827 = vmatmul.f32.gmra.mxu0 %v2713
      %v2828 = vpop.f32.mrf.mxu0
      %v2829 = vadd.f32 0.0, %v2828
      %2830 = vmatmul.f32.gmra.mxu0 %v2716
      %v2831 = vpop.f32.mrf.mxu0
      %v2832 = vadd.f32 0.0, %v2831
      %2833 = vmatmul.f32.gmra.mxu0 %v2719
      %v2834 = vpop.f32.mrf.mxu0
      %v2835 = vadd.f32 0.0, %v2834
      %2836 = vmatmul.f32.gmra.mxu0 %v2722
      %v2837 = vpop.f32.mrf.mxu0
      %v2838 = vadd.f32 0.0, %v2837
      %2839 = vmatmul.f32.gmra.mxu0 %v2725
      %v2840 = vpop.f32.mrf.mxu0
      %v2841 = vadd.f32 0.0, %v2840
      %2842 = vmatmul.f32.gmra.mxu0 %v2728
      %v2843 = vpop.f32.mrf.mxu0
      %v2844 = vadd.f32 0.0, %v2843
      %2845 = vmatmul.f32.gmra.mxu0 %v2731
      %v2846 = vpop.f32.mrf.mxu0
      %v2847 = vadd.f32 0.0, %v2846
      %2848 = vmatmul.f32.gmra.mxu0 %v2734
      %v2849 = vpop.f32.mrf.mxu0
      %v2850 = vadd.f32 0.0, %v2849
      %2851 = vmatmul.f32.gmra.mxu0 %v2737
      %v2852 = vpop.f32.mrf.mxu0
      %v2853 = vadd.f32 0.0, %v2852
      %2854 = vmatmul.f32.gmra.mxu0 %v2740
      %v2855 = vpop.f32.mrf.mxu0
      %v2856 = vadd.f32 0.0, %v2855
      %2857 = vmatmul.f32.gmra.mxu0 %v2743
      %v2858 = vpop.f32.mrf.mxu0
      %v2859 = vadd.f32 0.0, %v2858
      %2860 = vmatmul.f32.gmra.mxu0 %v2746
      %v2861 = vpop.f32.mrf.mxu0
      %v2862 = vadd.f32 0.0, %v2861
      %2863 = vmatmul.f32.gmra.mxu0 %v2749
      %v2864 = vpop.f32.mrf.mxu0
      %v2865 = vadd.f32 0.0, %v2864
      %2866 = vmatmul.f32.gmra.mxu0 %v2752
      %v2867 = vpop.f32.mrf.mxu0
      %v2868 = vadd.f32 0.0, %v2867
      %2869 = vmatmul.f32.gmra.mxu0 %v2755
      %v2870 = vpop.f32.mrf.mxu0
      %v2871 = vadd.f32 0.0, %v2870
      %2872 = vmatmul.f32.gmra.mxu0 %v2758
      %v2873 = vpop.f32.mrf.mxu0
      %v2874 = vadd.f32 0.0, %v2873
      %2875 = vmatmul.f32.gmra.mxu0 %v2761
      %v2876 = vpop.f32.mrf.mxu0
      %v2877 = vadd.f32 0.0, %v2876
      %2878 = vdwg.mxu0
      %v2879 = vadd.f32 %v2598, %v2784
      %v2880 = vadd.f32 %v2599, %v2787
      %v2881 = vadd.f32 %v2600, %v2790
      %v2882 = vadd.f32 %v2601, %v2793
      %v2883 = vadd.f32 %v2602, %v2796
      %v2884 = vadd.f32 %v2603, %v2799
      %v2885 = vadd.f32 %v2604, %v2802
      %v2886 = vadd.f32 %v2605, %v2805
      %v2887 = vadd.f32 %v2606, %v2808
      %v2888 = vadd.f32 %v2607, %v2811
      %v2889 = vadd.f32 %v2608, %v2814
      %v2890 = vadd.f32 %v2609, %v2817
      %v2891 = vadd.f32 %v2610, %v2820
      %v2892 = vadd.f32 %v2611, %v2823
      %v2893 = vadd.f32 %v2612, %v2826
      %v2894 = vadd.f32 %v2613, %v2829
      %v2895 = vadd.f32 %v2614, %v2832
      %v2896 = vadd.f32 %v2615, %v2835
      %v2897 = vadd.f32 %v2616, %v2838
      %v2898 = vadd.f32 %v2617, %v2841
      %v2899 = vadd.f32 %v2618, %v2844
      %v2900 = vadd.f32 %v2619, %v2847
      %v2901 = vadd.f32 %v2620, %v2850
      %v2902 = vadd.f32 %v2621, %v2853
      %v2903 = vadd.f32 %v2622, %v2856
      %v2904 = vadd.f32 %v2623, %v2859
      %v2905 = vadd.f32 %v2624, %v2862
      %v2906 = vadd.f32 %v2625, %v2865
      %v2907 = vadd.f32 %v2626, %v2868
      %v2908 = vadd.f32 %v2627, %v2871
      %v2909 = vadd.f32 %v2628, %v2874
      %v2910 = vadd.f32 %v2629, %v2877
      %v2911 = vld [vmem:[%s306] sm:$0x1]
      %v2913 = vperm.slane %v2911, 0
      %v2915 = vadd.f32 %v2879, %v2913
      %v2916 = vadd.f32 %v2880, %v2913
      %v2917 = vadd.f32 %v2881, %v2913
      %v2918 = vadd.f32 %v2882, %v2913
      %v2919 = vadd.f32 %v2883, %v2913
      %v2920 = vadd.f32 %v2884, %v2913
      %v2921 = vadd.f32 %v2885, %v2913
      %v2922 = vadd.f32 %v2886, %v2913
      %v2923 = vadd.f32 %v2887, %v2913
      %v2924 = vadd.f32 %v2888, %v2913
      %v2925 = vadd.f32 %v2889, %v2913
      %v2926 = vadd.f32 %v2890, %v2913
      %v2927 = vadd.f32 %v2891, %v2913
      %v2928 = vadd.f32 %v2892, %v2913
      %v2929 = vadd.f32 %v2893, %v2913
      %v2930 = vadd.f32 %v2894, %v2913
      %v2931 = vadd.f32 %v2895, %v2913
      %v2932 = vadd.f32 %v2896, %v2913
      %v2933 = vadd.f32 %v2897, %v2913
      %v2934 = vadd.f32 %v2898, %v2913
      %v2935 = vadd.f32 %v2899, %v2913
      %v2936 = vadd.f32 %v2900, %v2913
      %v2937 = vadd.f32 %v2901, %v2913
      %v2938 = vadd.f32 %v2902, %v2913
      %v2939 = vadd.f32 %v2903, %v2913
      %v2940 = vadd.f32 %v2904, %v2913
      %v2941 = vadd.f32 %v2905, %v2913
      %v2942 = vadd.f32 %v2906, %v2913
      %v2943 = vadd.f32 %v2907, %v2913
      %v2944 = vadd.f32 %v2908, %v2913
      %v2945 = vadd.f32 %v2909, %v2913
      %v2946 = vadd.f32 %v2910, %v2913
      %vm2947 = vcmask 64512
      %v2948 = vsel %vm2947, %v2915, 0.0
      %v2949 = vsel %vm2947, %v2916, 0.0
      %v2950 = vadd.f32 %v2948, %v2949
      %v2951 = vsel %vm2947, %v2917, 0.0
      %v2952 = vadd.f32 %v2950, %v2951
      %v2953 = vsel %vm2947, %v2918, 0.0
      %v2954 = vadd.f32 %v2952, %v2953
      %v2955 = vsel %vm2947, %v2919, 0.0
      %v2956 = vadd.f32 %v2954, %v2955
      %v2957 = vsel %vm2947, %v2920, 0.0
      %v2958 = vadd.f32 %v2956, %v2957
      %v2959 = vsel %vm2947, %v2921, 0.0
      %v2960 = vadd.f32 %v2958, %v2959
      %v2961 = vsel %vm2947, %v2922, 0.0
      %v2962 = vadd.f32 %v2960, %v2961
      %v2963 = vsel %vm2947, %v2923, 0.0
      %v2964 = vadd.f32 %v2962, %v2963
      %v2965 = vsel %vm2947, %v2924, 0.0
      %v2966 = vadd.f32 %v2964, %v2965
      %v2967 = vsel %vm2947, %v2925, 0.0
      %v2968 = vadd.f32 %v2966, %v2967
      %v2969 = vsel %vm2947, %v2926, 0.0
      %v2970 = vadd.f32 %v2968, %v2969
      %v2971 = vsel %vm2947, %v2927, 0.0
      %v2972 = vadd.f32 %v2970, %v2971
      %v2973 = vsel %vm2947, %v2928, 0.0
      %v2974 = vadd.f32 %v2972, %v2973
      %v2975 = vsel %vm2947, %v2929, 0.0
      %v2976 = vadd.f32 %v2974, %v2975
      %v2977 = vsel %vm2947, %v2930, 0.0
      %v2978 = vadd.f32 %v2976, %v2977
      %v2979 = vsel %vm2947, %v2931, 0.0
      %v2980 = vadd.f32 %v2978, %v2979
      %v2981 = vsel %vm2947, %v2932, 0.0
      %v2982 = vadd.f32 %v2980, %v2981
      %v2983 = vsel %vm2947, %v2933, 0.0
      %v2984 = vadd.f32 %v2982, %v2983
      %v2985 = vsel %vm2947, %v2934, 0.0
      %v2986 = vadd.f32 %v2984, %v2985
      %v2987 = vsel %vm2947, %v2935, 0.0
      %v2988 = vadd.f32 %v2986, %v2987
      %v2989 = vsel %vm2947, %v2936, 0.0
      %v2990 = vadd.f32 %v2988, %v2989
      %v2991 = vsel %vm2947, %v2937, 0.0
      %v2992 = vadd.f32 %v2990, %v2991
      %v2993 = vsel %vm2947, %v2938, 0.0
      %v2994 = vadd.f32 %v2992, %v2993
      %v2995 = vsel %vm2947, %v2939, 0.0
      %v2996 = vadd.f32 %v2994, %v2995
      %v2997 = vsel %vm2947, %v2940, 0.0
      %v2998 = vadd.f32 %v2996, %v2997
      %v2999 = vsel %vm2947, %v2941, 0.0
      %v3000 = vadd.f32 %v2998, %v2999
      %v3001 = vsel %vm2947, %v2942, 0.0
      %v3002 = vadd.f32 %v3000, %v3001
      %v3003 = vsel %vm2947, %v2943, 0.0
      %v3004 = vadd.f32 %v3002, %v3003
      %v3005 = vsel %vm2947, %v2944, 0.0
      %v3006 = vadd.f32 %v3004, %v3005
      %v3007 = vsel %vm2947, %v2945, 0.0
      %v3008 = vadd.f32 %v3006, %v3007
      %v3009 = vsel %vm2947, %v2946, 0.0
      %v3010 = vadd.f32 %v3008, %v3009
      %v3011 = vrot.slane %v3010, 4
      %v3012 = vadd.f32 %v3010, %v3011
      %v3013 = vrot.slane %v3012, 2
      %v3014 = vadd.f32 %v3012, %v3013
      %v3015 = vrot.slane %v3014, 1
      %v3016 = vadd.f32 %v3014, %v3015
      %v3017 = vmul.f32 %v2915, %v2915
      %v3018 = vmul.f32 %v2916, %v2916
      %v3019 = vmul.f32 %v2917, %v2917
      %v3020 = vmul.f32 %v2918, %v2918
      %v3021 = vmul.f32 %v2919, %v2919
      %v3022 = vmul.f32 %v2920, %v2920
      %v3023 = vmul.f32 %v2921, %v2921
      %v3024 = vmul.f32 %v2922, %v2922
      %v3025 = vmul.f32 %v2923, %v2923
      %v3026 = vmul.f32 %v2924, %v2924
      %v3027 = vmul.f32 %v2925, %v2925
      %v3028 = vmul.f32 %v2926, %v2926
      %v3029 = vmul.f32 %v2927, %v2927
      %v3030 = vmul.f32 %v2928, %v2928
      %v3031 = vmul.f32 %v2929, %v2929
      %v3032 = vmul.f32 %v2930, %v2930
      %v3033 = vmul.f32 %v2931, %v2931
      %v3034 = vmul.f32 %v2932, %v2932
      %v3035 = vmul.f32 %v2933, %v2933
      %v3036 = vmul.f32 %v2934, %v2934
      %v3037 = vmul.f32 %v2935, %v2935
      %v3038 = vmul.f32 %v2936, %v2936
      %v3039 = vmul.f32 %v2937, %v2937
      %v3040 = vmul.f32 %v2938, %v2938
      %v3041 = vmul.f32 %v2939, %v2939
      %v3042 = vmul.f32 %v2940, %v2940
      %v3043 = vmul.f32 %v2941, %v2941
      %v3044 = vmul.f32 %v2942, %v2942
      %v3045 = vmul.f32 %v2943, %v2943
      %v3046 = vmul.f32 %v2944, %v2944
      %v3047 = vmul.f32 %v2945, %v2945
      %v3048 = vmul.f32 %v2946, %v2946
      %v3049 = vsel %vm2947, %v3017, 0.0
      %v3050 = vsel %vm2947, %v3018, 0.0
      %v3051 = vadd.f32 %v3049, %v3050
      %v3052 = vsel %vm2947, %v3019, 0.0
      %v3053 = vadd.f32 %v3051, %v3052
      %v3054 = vsel %vm2947, %v3020, 0.0
      %v3055 = vadd.f32 %v3053, %v3054
      %v3056 = vsel %vm2947, %v3021, 0.0
      %v3057 = vadd.f32 %v3055, %v3056
      %v3058 = vsel %vm2947, %v3022, 0.0
      %v3059 = vadd.f32 %v3057, %v3058
      %v3060 = vsel %vm2947, %v3023, 0.0
      %v3061 = vadd.f32 %v3059, %v3060
      %v3062 = vsel %vm2947, %v3024, 0.0
      %v3063 = vadd.f32 %v3061, %v3062
      %v3064 = vsel %vm2947, %v3025, 0.0
      %v3065 = vadd.f32 %v3063, %v3064
      %v3066 = vsel %vm2947, %v3026, 0.0
      %v3067 = vadd.f32 %v3065, %v3066
      %v3068 = vsel %vm2947, %v3027, 0.0
      %v3069 = vadd.f32 %v3067, %v3068
      %v3070 = vsel %vm2947, %v3028, 0.0
      %v3071 = vadd.f32 %v3069, %v3070
      %v3072 = vsel %vm2947, %v3029, 0.0
      %v3073 = vadd.f32 %v3071, %v3072
      %v3074 = vsel %vm2947, %v3030, 0.0
      %v3075 = vadd.f32 %v3073, %v3074
      %v3076 = vsel %vm2947, %v3031, 0.0
      %v3077 = vadd.f32 %v3075, %v3076
      %v3078 = vsel %vm2947, %v3032, 0.0
      %v3079 = vadd.f32 %v3077, %v3078
      %v3080 = vsel %vm2947, %v3033, 0.0
      %v3081 = vadd.f32 %v3079, %v3080
      %v3082 = vsel %vm2947, %v3034, 0.0
      %v3083 = vadd.f32 %v3081, %v3082
      %v3084 = vsel %vm2947, %v3035, 0.0
      %v3085 = vadd.f32 %v3083, %v3084
      %v3086 = vsel %vm2947, %v3036, 0.0
      %v3087 = vadd.f32 %v3085, %v3086
      %v3088 = vsel %vm2947, %v3037, 0.0
      %v3089 = vadd.f32 %v3087, %v3088
      %v3090 = vsel %vm2947, %v3038, 0.0
      %v3091 = vadd.f32 %v3089, %v3090
      %v3092 = vsel %vm2947, %v3039, 0.0
      %v3093 = vadd.f32 %v3091, %v3092
      %v3094 = vsel %vm2947, %v3040, 0.0
      %v3095 = vadd.f32 %v3093, %v3094
      %v3096 = vsel %vm2947, %v3041, 0.0
      %v3097 = vadd.f32 %v3095, %v3096
      %v3098 = vsel %vm2947, %v3042, 0.0
      %v3099 = vadd.f32 %v3097, %v3098
      %v3100 = vsel %vm2947, %v3043, 0.0
      %v3101 = vadd.f32 %v3099, %v3100
      %v3102 = vsel %vm2947, %v3044, 0.0
      %v3103 = vadd.f32 %v3101, %v3102
      %v3104 = vsel %vm2947, %v3045, 0.0
      %v3105 = vadd.f32 %v3103, %v3104
      %v3106 = vsel %vm2947, %v3046, 0.0
      %v3107 = vadd.f32 %v3105, %v3106
      %v3108 = vsel %vm2947, %v3047, 0.0
      %v3109 = vadd.f32 %v3107, %v3108
      %v3110 = vsel %vm2947, %v3048, 0.0
      %v3111 = vadd.f32 %v3109, %v3110
      %v3112 = vrot.slane %v3111, 4
      %v3113 = vadd.f32 %v3111, %v3112
      %v3114 = vrot.slane %v3113, 2
      %v3115 = vadd.f32 %v3113, %v3114
      %v3116 = vrot.slane %v3115, 1
      %v3117 = vadd.f32 %v3115, %v3116
      %vm3118 = vcmask 1040384
      %v3119 = vsel %vm3118, %v3016, %v3117
      %vm3120 = vcmask 58368
      %3121 = vst.msk [vmem:[%s321] sm:$0x3] %vm3120, %v3119
      %3122 = vst.msk [vmem:[%s314] sm:$0xff] %vm2947, %v2915
      %3123 = vst.msk [vmem:[%s314 + $0x8] sm:$0xff] %vm2947, %v2916
      %3124 = vst.msk [vmem:[%s314 + $0x10] sm:$0xff] %vm2947, %v2917
      %3125 = vst.msk [vmem:[%s314 + $0x18] sm:$0xff] %vm2947, %v2918
      %3126 = vst.msk [vmem:[%s314 + $0x20] sm:$0xff] %vm2947, %v2919
      %3127 = vst.msk [vmem:[%s314 + $0x28] sm:$0xff] %vm2947, %v2920
      %3128 = vst.msk [vmem:[%s314 + $0x30] sm:$0xff] %vm2947, %v2921
      %3129 = vst.msk [vmem:[%s314 + $0x38] sm:$0xff] %vm2947, %v2922
      %3130 = vst.msk [vmem:[%s314 + $0x40] sm:$0xff] %vm2947, %v2923
      %3131 = vst.msk [vmem:[%s314 + $0x48] sm:$0xff] %vm2947, %v2924
      %3132 = vst.msk [vmem:[%s314 + $0x50] sm:$0xff] %vm2947, %v2925
      %3133 = vst.msk [vmem:[%s314 + $0x58] sm:$0xff] %vm2947, %v2926
      %3134 = vst.msk [vmem:[%s314 + $0x60] sm:$0xff] %vm2947, %v2927
      %3135 = vst.msk [vmem:[%s314 + $0x68] sm:$0xff] %vm2947, %v2928
      %3136 = vst.msk [vmem:[%s314 + $0x70] sm:$0xff] %vm2947, %v2929
      %3137 = vst.msk [vmem:[%s314 + $0x78] sm:$0xff] %vm2947, %v2930
      %3138 = vst.msk [vmem:[%s314 + $0x80] sm:$0xff] %vm2947, %v2931
      %3139 = vst.msk [vmem:[%s314 + $0x88] sm:$0xff] %vm2947, %v2932
      %3140 = vst.msk [vmem:[%s314 + $0x90] sm:$0xff] %vm2947, %v2933
      %3141 = vst.msk [vmem:[%s314 + $0x98] sm:$0xff] %vm2947, %v2934
      %3142 = vst.msk [vmem:[%s314 + $0xa0] sm:$0xff] %vm2947, %v2935
      %3143 = vst.msk [vmem:[%s314 + $0xa8] sm:$0xff] %vm2947, %v2936
      %3144 = vst.msk [vmem:[%s314 + $0xb0] sm:$0xff] %vm2947, %v2937
      %3145 = vst.msk [vmem:[%s314 + $0xb8] sm:$0xff] %vm2947, %v2938
      %3146 = vst.msk [vmem:[%s314 + $0xc0] sm:$0xff] %vm2947, %v2939
      %3147 = vst.msk [vmem:[%s314 + $0xc8] sm:$0xff] %vm2947, %v2940
      %3148 = vst.msk [vmem:[%s314 + $0xd0] sm:$0xff] %vm2947, %v2941
      %3149 = vst.msk [vmem:[%s314 + $0xd8] sm:$0xff] %vm2947, %v2942
      %3150 = vst.msk [vmem:[%s314 + $0xe0] sm:$0xff] %vm2947, %v2943
      %3151 = vst.msk [vmem:[%s314 + $0xe8] sm:$0xff] %vm2947, %v2944
      %3152 = vst.msk [vmem:[%s314 + $0xf0] sm:$0xff] %vm2947, %v2945
      %3153 = vst.msk [vmem:[%s314 + $0xf8] sm:$0xff] %vm2947, %v2946
      %p3154 = scmp.lt.s32.totalorder %s22, 1
      %s3155 = scalar_select %p3154, %s22, 1
      %p3156 = scmp.lt.s32.totalorder %s23, 0
      %s3157 = scalar_select %p3156, %s23, 0
      %s3158 = smul.addr %s3155, 32
      %s3159 = sadd.s32 %s3157, %s3158
      %s3160 = smul.addr %s3159, 8
      %s3161 = scalar_lea.vmem %s5, %s3160
      %p3162 = scmp.lt.s32.totalorder %s22, 1
      %s3163 = scalar_select %p3162, %s22, 1
      %p3164 = scmp.lt.s32.totalorder %s23, 0
      %s3165 = scalar_select %p3164, %s23, 0
      %s3166 = sadd.s32 %s3165, %s3163
      %s3167 = smul.addr %s3166, 2
      %s3168 = scalar_lea.vmem %s6, %s3167
      // Predicated region
      $region45: #{gen_res_blk_forward.5} parent=39 // pred_check
        %p3169 = pneg %p170
      $region46: #{gen_res_blk_forward.5} parent=39 // pred_check_branch
        %3171 = sbr.rel (%p3169) target = $region48
      $region47: #{gen_res_blk_forward.5} parent=39 // pred_region
        _
      $region48: #{gen_res_blk_forward.5} parent=39 // pred_fallthru
        _
      // Predicated region
      $region49: #{gen_res_blk_forward.5} parent=39 // pred_check
        %p3172 = pneg %p198
      $region50: #{gen_res_blk_forward.5} parent=39 // pred_check_branch
        %3174 = sbr.rel (%p3172) target = $region52
      $region51: #{gen_res_blk_forward.5} parent=39 // pred_region
        _
      $region52: #{gen_res_blk_forward.5} parent=39 // pred_fallthru
        _
    $region40: #{gen_res_blk_forward.5} parent=5 // pred_fallthru
      _
    %p3175 = scmp.le.s32.totalorder 2, %s13
    // Predicated region
    $region53: #{gen_res_blk_forward.5} parent=5 // pred_check
      %p3176 = pneg %p3175
    $region54: #{gen_res_blk_forward.5} parent=5 // pred_check_branch
      %3178 = sbr.rel (%p3176) target = $region56
    $region55: #{gen_res_blk_forward.5} parent=5 // pred_region
      %s3179 = ssub.s32 %s13, 2
      // Predicated region
      $region57: #{gen_res_blk_forward.5} parent=55 // pred_check
        %p3180 = pneg %p176
      $region58: #{gen_res_blk_forward.5} parent=55 // pred_check_branch
        %3182 = sbr.rel (%p3180) target = $region60
      $region59: #{gen_res_blk_forward.5} parent=55 // pred_region
        %p3183 = scmp.lt.s32.totalorder %s24, 1
        %s3184 = scalar_select %p3183, %s24, 1
        %p3185 = scmp.lt.s32.totalorder %s25, 0
        %s3186 = scalar_select %p3185, %s25, 0
        %s3187 = smul.addr %s3184, 32
        %s3188 = sadd.s32 %s3186, %s3187
        %s3189 = smul.addr %s3188, 8
        %s3190 = scalar_lea.vmem %s5, %s3189
      $region60: #{gen_res_blk_forward.5} parent=55 // pred_fallthru
        _
      // Predicated region
      $region61: #{gen_res_blk_forward.5} parent=55 // pred_check
        %p3191 = pneg %p204
      $region62: #{gen_res_blk_forward.5} parent=55 // pred_check_branch
        %3193 = sbr.rel (%p3191) target = $region64
      $region63: #{gen_res_blk_forward.5} parent=55 // pred_region
        %p3194 = scmp.lt.s32.totalorder %s24, 1
        %s3195 = scalar_select %p3194, %s24, 1
        %p3196 = scmp.lt.s32.totalorder %s25, 0
        %s3197 = scalar_select %p3196, %s25, 0
        %s3198 = sadd.s32 %s3197, %s3195
        %s3199 = smul.addr %s3198, 2
        %s3200 = scalar_lea.vmem %s6, %s3199
      $region64: #{gen_res_blk_forward.5} parent=55 // pred_fallthru
        _
    $region56: #{gen_res_blk_forward.5} parent=5 // pred_fallthru
      _
  $region6: #{gen_res_blk_forward.5} parent=0 // loop_footer
    %s17 = sadd.s32 1, %s13
  $region7: #{gen_res_blk_forward.5} parent=0 // loop_footer_branch
    %12 = sbr.rel target = $region3
  $region8: #{gen_res_blk_forward.5} parent=0 // loop_exit
    _

// kernel: gen_res_blk_forward.7
$region0: #{gen_res_blk_forward.7}
  #allocation0 [shape = 'u32[]', space=smem, size = 0x4, offset = 0x4, fixed_abs, tag = 'smem constant byte address 0x4 - core index']
  #allocation1 [shape = 'u32[72,128]{1,0:T(1,128)}', space=vmem, size = 0x9000, scoped, tag = 'internal scratch']
  #allocation2 [shape = 'f32[16,20,8]{2,1,0:T(8,128)}', space=vmem, size = 0x30000, scoped, tag = 'scratch operand']
  #allocation3 [shape = 'f32[20,16,40]{2,1,0:T(8,128)}', space=vmem, size = 0x28000, scoped, tag = 'scratch operand']
  %s0 = inlined_call_operand.vmem [shape: f32[2,16,16,8], index: 0, kind: input, shape index: {}]
  %s1 = inlined_call_operand.vmem [shape: f32[1,8], index: 1, kind: input, shape index: {}]
  %s2 = inlined_call_operand.vmem [shape: f32[1,8], index: 2, kind: input, shape index: {}]
  %s3 = inlined_call_operand.vmem [shape: f32[5,40,8], index: 3, kind: input, shape index: {}]
  %s4 = inlined_call_operand.vmem [shape: f32[1,8], index: 4, kind: input, shape index: {}]
  %s5 = inlined_call_operand.vmem [shape: f32[2,256,8], index: 5, kind: input, shape index: {}]
  %s6 = inlined_call_operand.vmem [shape: f32[2,256,8], index: 6, kind: output, shape index: {}]
  %s7 = sld [smem:[#allocation0]]
  $region61: #{gen_res_blk_forward.7} parent=0
    _
  %s9 = ssub.s32 1, %s7
  %s10 = scalar_select 0, %s9, %s7
  loop: start=0, step=1, limit=4
  $region2: #{gen_res_blk_forward.7} parent=0 // loop_pre_header
    _
  $region3: #{gen_res_blk_forward.7} parent=0 // loop_header
    %s12 = sphi 0, %s16
    %p13 = scmp.ge.s32.totalorder %s12, 4
    %s19 = sphi 0, %s31
    %s20 = sphi 0, %s27
    %s21 = sphi 0, %s19
    %s22 = sphi 0, %s20
    %s23 = sphi 0, %s21
    %s24 = sphi 0, %s22
    %s34 = sphi 0, %s36
    %s37 = sphi 0, %s34
    %s38 = sphi 0, %s37
    %s54 = sphi 0, %s38
    %s58 = sphi 0, %s58
    %s60 = sphi 0, %s58
    %s61 = sphi 0, %s60
    %s75 = sphi 0, %s61
    %s79 = sphi 0, %s79
    %s81 = sphi 0, %s79
    %s82 = sphi 0, %s81
    %s96 = sphi 0, %s82
    %s102 = sphi 0, %s104
    %s105 = sphi 0, %s102
    %s106 = sphi 0, %s105
    %s122 = sphi 0, %s106
    %s128 = sphi 0, %s130
    %s131 = sphi 0, %s128
    %s132 = sphi 0, %s131
    %s148 = sphi 0, %s132
    %s156 = sphi 0, %s158
    %s159 = sphi 0, %s156
    %s160 = sphi 0, %s159
    %s176 = sphi 0, %s160
    %s184 = sphi 0, %s186
    %s187 = sphi 0, %s184
    %s188 = sphi 0, %s187
    %s204 = sphi 0, %s188
  $region4: #{gen_res_blk_forward.7} parent=0 // loop_header_branch
    %15 = sbr.rel (%p13) target = $region8
  $region5: #{gen_res_blk_forward.7} parent=0 // loop_body
    %s17 = ssub.s32 %s12, 1
    %s18 = ssub.s32 %s12, 2
    %s25 = sadd.s32 1, %s20
    %p26 = scmp.ge.s32.totalorder %s25, 1
    %s27 = scalar_select %p26, 0, %s25
    %s28 = sadd.s32 1, %s19
    %s29 = scalar_select %p26, %s28, %s19
    %p30 = scmp.ge.s32.totalorder %s29, 2
    %s31 = scalar_select %p30, 0, %s29
    %s32 = ssub.s32 %s19, %s31
    %p33 = scmp.eq.s32.totalorder %s32, 0
    %s35 = sadd.s32 %s34, 1
    %s36 = scalar_select %p33, %s34, %s35
    %p39 = pneg %p33
    %p40 = scmp.eq.s32.totalorder %s12, 1
    %p41 = por %p39, %p40
    %p42 = scmp.ne.s32.totalorder %s34, %s37
    %p43 = scmp.eq.s32.totalorder %s12, 0
    %p44 = por %p42, %p43
    %p45 = scmp.ne.s32.totalorder %s34, %s37
    %p46 = scmp.eq.s32.totalorder %s17, 1
    %p47 = por %p45, %p46
    %p48 = scmp.ne.s32.totalorder %s37, %s38
    %p49 = scmp.eq.s32.totalorder %s17, 0
    %p50 = por %p48, %p49
    %p51 = scmp.ne.s32.totalorder %s37, %s38
    %p52 = scmp.eq.s32.totalorder %s18, 1
    %p53 = por %p51, %p52
    %p55 = scmp.ne.s32.totalorder %s38, %s54
    %p56 = scmp.eq.s32.totalorder %s18, 0
    %p57 = por %p55, %p56
    %s59 = sadd.s32 %s58, 1
    %p62 = scmp.eq.s32.totalorder %s12, 1
    %p63 = scmp.ne.s32.totalorder %s58, %s60
    %p64 = scmp.eq.s32.totalorder %s12, 0
    %p65 = por %p63, %p64
    %p66 = scmp.ne.s32.totalorder %s58, %s60
    %p67 = scmp.eq.s32.totalorder %s17, 1
    %p68 = por %p66, %p67
    %p69 = scmp.ne.s32.totalorder %s60, %s61
    %p70 = scmp.eq.s32.totalorder %s17, 0
    %p71 = por %p69, %p70
    %p72 = scmp.ne.s32.totalorder %s60, %s61
    %p73 = scmp.eq.s32.totalorder %s18, 1
    %p74 = por %p72, %p73
    %p76 = scmp.ne.s32.totalorder %s61, %s75
    %p77 = scmp.eq.s32.totalorder %s18, 0
    %p78 = por %p76, %p77
    %s80 = sadd.s32 %s79, 1
    %p83 = scmp.eq.s32.totalorder %s12, 1
    %p84 = scmp.ne.s32.totalorder %s79, %s81
    %p85 = scmp.eq.s32.totalorder %s12, 0
    %p86 = por %p84, %p85
    %p87 = scmp.ne.s32.totalorder %s79, %s81
    %p88 = scmp.eq.s32.totalorder %s17, 1
    %p89 = por %p87, %p88
    %p90 = scmp.ne.s32.totalorder %s81, %s82
    %p91 = scmp.eq.s32.totalorder %s17, 0
    %p92 = por %p90, %p91
    %p93 = scmp.ne.s32.totalorder %s81, %s82
    %p94 = scmp.eq.s32.totalorder %s18, 1
    %p95 = por %p93, %p94
    %p97 = scmp.ne.s32.totalorder %s82, %s96
    %p98 = scmp.eq.s32.totalorder %s18, 0
    %p99 = por %p97, %p98
    %s100 = ssub.s32 %s20, %s27
    %p101 = scmp.eq.s32.totalorder %s100, 0
    %s103 = sadd.s32 %s102, 1
    %s104 = scalar_select %p101, %s102, %s103
    %p107 = pneg %p101
    %p108 = scmp.eq.s32.totalorder %s12, 1
    %p109 = por %p107, %p108
    %p110 = scmp.ne.s32.totalorder %s102, %s105
    %p111 = scmp.eq.s32.totalorder %s12, 0
    %p112 = por %p110, %p111
    %p113 = scmp.ne.s32.totalorder %s102, %s105
    %p114 = scmp.eq.s32.totalorder %s17, 1
    %p115 = por %p113, %p114
    %p116 = scmp.ne.s32.totalorder %s105, %s106
    %p117 = scmp.eq.s32.totalorder %s17, 0
    %p118 = por %p116, %p117
    %p119 = scmp.ne.s32.totalorder %s105, %s106
    %p120 = scmp.eq.s32.totalorder %s18, 1
    %p121 = por %p119, %p120
    %p123 = scmp.ne.s32.totalorder %s106, %s122
    %p124 = scmp.eq.s32.totalorder %s18, 0
    %p125 = por %p123, %p124
    %s126 = ssub.s32 %s20, %s27
    %p127 = scmp.eq.s32.totalorder %s126, 0
    %s129 = sadd.s32 %s128, 1
    %s130 = scalar_select %p127, %s128, %s129
    %p133 = pneg %p127
    %p134 = scmp.eq.s32.totalorder %s12, 1
    %p135 = por %p133, %p134
    %p136 = scmp.ne.s32.totalorder %s128, %s131
    %p137 = scmp.eq.s32.totalorder %s12, 0
    %p138 = por %p136, %p137
    %p139 = scmp.ne.s32.totalorder %s128, %s131
    %p140 = scmp.eq.s32.totalorder %s17, 1
    %p141 = por %p139, %p140
    %p142 = scmp.ne.s32.totalorder %s131, %s132
    %p143 = scmp.eq.s32.totalorder %s17, 0
    %p144 = por %p142, %p143
    %p145 = scmp.ne.s32.totalorder %s131, %s132
    %p146 = scmp.eq.s32.totalorder %s18, 1
    %p147 = por %p145, %p146
    %p149 = scmp.ne.s32.totalorder %s132, %s148
    %p150 = scmp.eq.s32.totalorder %s18, 0
    %p151 = por %p149, %p150
    %s152 = ssub.s32 %s19, %s31
    %s153 = ssub.s32 %s20, %s27
    %s154 = sor.u32 %s152, %s153
    %p155 = scmp.eq.s32.totalorder %s154, 0
    %s157 = sadd.s32 %s156, 1
    %s158 = scalar_select %p155, %s156, %s157
    %p161 = pneg %p155
    %p162 = scmp.eq.s32.totalorder %s12, 1
    %p163 = por %p161, %p162
    %p164 = scmp.ne.s32.totalorder %s156, %s159
    %p165 = scmp.eq.s32.totalorder %s12, 0
    %p166 = por %p164, %p165
    %p167 = scmp.ne.s32.totalorder %s156, %s159
    %p168 = scmp.eq.s32.totalorder %s17, 1
    %p169 = por %p167, %p168
    %p170 = scmp.ne.s32.totalorder %s159, %s160
    %p171 = scmp.eq.s32.totalorder %s17, 0
    %p172 = por %p170, %p171
    %p173 = scmp.ne.s32.totalorder %s159, %s160
    %p174 = scmp.eq.s32.totalorder %s18, 1
    %p175 = por %p173, %p174
    %p177 = scmp.ne.s32.totalorder %s160, %s176
    %p178 = scmp.eq.s32.totalorder %s18, 0
    %p179 = por %p177, %p178
    %s180 = ssub.s32 %s19, %s31
    %s181 = ssub.s32 %s20, %s27
    %s182 = sor.u32 %s180, %s181
    %p183 = scmp.eq.s32.totalorder %s182, 0
    %s185 = sadd.s32 %s184, 1
    %s186 = scalar_select %p183, %s184, %s185
    %p189 = pneg %p183
    %p190 = scmp.eq.s32.totalorder %s12, 1
    %p191 = por %p189, %p190
    %p192 = scmp.ne.s32.totalorder %s184, %s187
    %p193 = scmp.eq.s32.totalorder %s12, 0
    %p194 = por %p192, %p193
    %p195 = scmp.ne.s32.totalorder %s184, %s187
    %p196 = scmp.eq.s32.totalorder %s17, 1
    %p197 = por %p195, %p196
    %p198 = scmp.ne.s32.totalorder %s187, %s188
    %p199 = scmp.eq.s32.totalorder %s17, 0
    %p200 = por %p198, %p199
    %p201 = scmp.ne.s32.totalorder %s187, %s188
    %p202 = scmp.eq.s32.totalorder %s18, 1
    %p203 = por %p201, %p202
    %p205 = scmp.ne.s32.totalorder %s188, %s204
    %p206 = scmp.eq.s32.totalorder %s18, 0
    %p207 = por %p205, %p206
    %p208 = scmp.le.s32.totalorder 1, %s12
    %p209 = scmp.lt.s32.totalorder %s12, 3
    %p210 = pnand %p208, %p209
    %p211 = pneg %p210
    // Predicated region
    $region9: #{gen_res_blk_forward.7} parent=5 // pred_check
      _
    $region10: #{gen_res_blk_forward.7} parent=5 // pred_check_branch
      %213 = sbr.rel (%p210) target = $region12
    $region11: #{gen_res_blk_forward.7} parent=5 // pred_region
      %s214 = ssub.s32 %s12, 1
      // Predicated region
      $region13: #{gen_res_blk_forward.7} parent=11 // pred_check
        %p215 = pneg %p71
      $region14: #{gen_res_blk_forward.7} parent=11 // pred_check_branch
        %217 = sbr.rel (%p215) target = $region16
      $region15: #{gen_res_blk_forward.7} parent=11 // pred_region
        _
      $region16: #{gen_res_blk_forward.7} parent=11 // pred_fallthru
        _
      // Predicated region
      $region17: #{gen_res_blk_forward.7} parent=11 // pred_check
        %p218 = pneg %p92
      $region18: #{gen_res_blk_forward.7} parent=11 // pred_check_branch
        %220 = sbr.rel (%p218) target = $region20
      $region19: #{gen_res_blk_forward.7} parent=11 // pred_region
        _
      $region20: #{gen_res_blk_forward.7} parent=11 // pred_fallthru
        _
      // Predicated region
      $region21: #{gen_res_blk_forward.7} parent=11 // pred_check
        %p221 = pneg %p118
      $region22: #{gen_res_blk_forward.7} parent=11 // pred_check_branch
        %223 = sbr.rel (%p221) target = $region24
      $region23: #{gen_res_blk_forward.7} parent=11 // pred_region
        %p224 = scmp.lt.s32.totalorder %s22, 0
        %s225 = scalar_select %p224, %s22, 0
        %s226 = smul.addr %s225, 8
        %s227 = scalar_lea.vmem %s3, %s226
      $region24: #{gen_res_blk_forward.7} parent=11 // pred_fallthru
        _
      // Predicated region
      $region25: #{gen_res_blk_forward.7} parent=11 // pred_check
        %p228 = pneg %p144
      $region26: #{gen_res_blk_forward.7} parent=11 // pred_check_branch
        %230 = sbr.rel (%p228) target = $region28
      $region27: #{gen_res_blk_forward.7} parent=11 // pred_region
        %p231 = scmp.lt.s32.totalorder %s22, 0
        %s232 = scalar_select %p231, %s22, 0
        %s233 = scalar_lea.vmem %s4, %s232
      $region28: #{gen_res_blk_forward.7} parent=11 // pred_fallthru
        _
    $region12: #{gen_res_blk_forward.7} parent=5 // pred_fallthru
      _
    %p234 = scmp.lt.s32.totalorder %s12, 2
    // Predicated region
    $region29: #{gen_res_blk_forward.7} parent=5 // pred_check
      %p235 = pneg %p234
    $region30: #{gen_res_blk_forward.7} parent=5 // pred_check_branch
      %237 = sbr.rel (%p235) target = $region32
    $region31: #{gen_res_blk_forward.7} parent=5 // pred_region
      // Predicated region
      $region33: #{gen_res_blk_forward.7} parent=31 // pred_check
        %p238 = pneg %p44
      $region34: #{gen_res_blk_forward.7} parent=31 // pred_check_branch
        %240 = sbr.rel (%p238) target = $region36
      $region35: #{gen_res_blk_forward.7} parent=31 // pred_region
        %p241 = scmp.lt.s32.totalorder %s19, 1
        %s242 = scalar_select %p241, %s19, 1
        %s243 = smul.addr %s242, 32
        %s244 = smul.addr %s243, 8
        %s245 = scalar_lea.vmem %s0, %s244
      $region36: #{gen_res_blk_forward.7} parent=31 // pred_fallthru
        _
      // Predicated region
      $region37: #{gen_res_blk_forward.7} parent=31 // pred_check
        %p246 = pneg %p166
      $region38: #{gen_res_blk_forward.7} parent=31 // pred_check_branch
        %248 = sbr.rel (%p246) target = $region40
      $region39: #{gen_res_blk_forward.7} parent=31 // pred_region
        %p249 = scmp.lt.s32.totalorder %s19, 1
        %s250 = scalar_select %p249, %s19, 1
        %p251 = scmp.lt.s32.totalorder %s20, 0
        %s252 = scalar_select %p251, %s20, 0
        %s253 = smul.addr %s250, 32
        %s254 = sadd.s32 %s252, %s253
        %s255 = smul.addr %s254, 8
        %s256 = scalar_lea.vmem %s5, %s255
      $region40: #{gen_res_blk_forward.7} parent=31 // pred_fallthru
        _
    $region32: #{gen_res_blk_forward.7} parent=5 // pred_fallthru
      _
    %p257 = scmp.le.s32.totalorder 1, %s12
    %p258 = scmp.lt.s32.totalorder %s12, 3
    %p259 = pnand %p257, %p258
    %p260 = pneg %p259
    // Predicated region
    $region41: #{gen_res_blk_forward.7} parent=5 // pred_check
      _
    $region42: #{gen_res_blk_forward.7} parent=5 // pred_check_branch
      %262 = sbr.rel (%p259) target = $region44
    $region43: #{gen_res_blk_forward.7} parent=5 // pred_region
      %s263 = ssub.s32 %s12, 1
      %p264 = scmp.lt.s32.totalorder %s21, 1
      %s265 = scalar_select %p264, %s21, 1
      %s266 = smul.addr %s265, 32
      %s267 = smul.addr %s266, 8
      %s268 = scalar_lea.vmem %s0, %s267
      %p269 = pneg %p50
      %p270 = pneg %p47
      %p271 = pneg %p71
      %p272 = pneg %p68
      %p273 = pneg %p92
      %p274 = pneg %p89
      %p275 = scmp.lt.s32.totalorder %s22, 0
      %s276 = scalar_select %p275, %s22, 0
      %s277 = smul.addr %s276, 8
      %s278 = scalar_lea.vmem %s3, %s277
      %p279 = pneg %p118
      %p280 = pneg %p115
      %p281 = scmp.lt.s32.totalorder %s22, 0
      %s282 = scalar_select %p281, %s22, 0
      %s283 = scalar_lea.vmem %s4, %s282
      %p284 = pneg %p144
      %p285 = pneg %p141
      %p286 = scmp.lt.s32.totalorder %s21, 1
      %s287 = scalar_select %p286, %s21, 1
      %p288 = scmp.lt.s32.totalorder %s22, 0
      %s289 = scalar_select %p288, %s22, 0
      %s290 = smul.addr %s287, 32
      %s291 = sadd.s32 %s289, %s290
      %s292 = smul.addr %s291, 8
      %s293 = scalar_lea.vmem %s5, %s292
      %p294 = pneg %p172
      %p295 = pneg %p169
      %p296 = pneg %p200
      %p297 = pneg %p197
      %p298 = scmp.lt.s32.totalorder %s21, 1
      %s299 = scalar_select %p298, %s21, 1
      %p300 = scmp.lt.s32.totalorder %s22, 0
      %s301 = scalar_select %p300, %s22, 0
      %s302 = smul.addr %s299, 32
      %s303 = sadd.s32 %s301, %s302
      %s304 = smul.addr %s303, 8
      %s305 = scalar_lea.vmem %s6, %s304
      %p306 = scmp.lt.s32.totalorder %s21, 1
      %s307 = scalar_select %p306, %s21, 1
      %s308 = smul.addr %s307, 32
      %s309 = smul.addr %s308, 8
      %s310 = scalar_lea.vmem %s0, %s309
      %p311 = scmp.lt.s32.totalorder %s22, 0
      %s312 = scalar_select %p311, %s22, 0
      %s313 = smul.addr %s312, 8
      %s314 = scalar_lea.vmem %s3, %s313
      %p315 = scmp.lt.s32.totalorder %s22, 0
      %s316 = scalar_select %p315, %s22, 0
      %s317 = scalar_lea.vmem %s4, %s316
      %p318 = scmp.lt.s32.totalorder %s21, 1
      %s319 = scalar_select %p318, %s21, 1
      %p320 = scmp.lt.s32.totalorder %s22, 0
      %s321 = scalar_select %p320, %s22, 0
      %s322 = smul.addr %s319, 32
      %s323 = sadd.s32 %s321, %s322
      %s324 = smul.addr %s323, 8
      %s325 = scalar_lea.vmem %s5, %s324
      %p326 = scmp.lt.s32.totalorder %s21, 1
      %s327 = scalar_select %p326, %s21, 1
      %p328 = scmp.lt.s32.totalorder %s22, 0
      %s329 = scalar_select %p328, %s22, 0
      %s330 = smul.addr %s327, 32
      %s331 = sadd.s32 %s329, %s330
      %s332 = smul.addr %s331, 8
      %s333 = scalar_lea.vmem %s6, %s332
      %p334 = scmp.eq.s32.totalorder %s22, 0
      // Predicated region
      $region45: #{gen_res_blk_forward.7} parent=43 // pred_check
        %p335 = pneg %p334
      $region46: #{gen_res_blk_forward.7} parent=43 // pred_check_branch
        %337 = sbr.rel (%p335) target = $region48
      $region47: #{gen_res_blk_forward.7} parent=43 // pred_region
        %v338 = vld [vmem:[%s310] sm:$0xff]
        %v339 = vld [vmem:[%s310 + $0x8] sm:$0xff]
        %v340 = vld [vmem:[%s310 + $0x10] sm:$0xff]
        %v341 = vld [vmem:[%s310 + $0x18] sm:$0xff]
        %v342 = vld [vmem:[%s310 + $0x20] sm:$0xff]
        %v343 = vld [vmem:[%s310 + $0x28] sm:$0xff]
        %v344 = vld [vmem:[%s310 + $0x30] sm:$0xff]
        %v345 = vld [vmem:[%s310 + $0x38] sm:$0xff]
        %v346 = vld [vmem:[%s310 + $0x40] sm:$0xff]
        %v347 = vld [vmem:[%s310 + $0x48] sm:$0xff]
        %v348 = vld [vmem:[%s310 + $0x50] sm:$0xff]
        %v349 = vld [vmem:[%s310 + $0x58] sm:$0xff]
        %v350 = vld [vmem:[%s310 + $0x60] sm:$0xff]
        %v351 = vld [vmem:[%s310 + $0x68] sm:$0xff]
        %v352 = vld [vmem:[%s310 + $0x70] sm:$0xff]
        %v353 = vld [vmem:[%s310 + $0x78] sm:$0xff]
        %v354 = vld [vmem:[%s310 + $0x80] sm:$0xff]
        %v355 = vld [vmem:[%s310 + $0x88] sm:$0xff]
        %v356 = vld [vmem:[%s310 + $0x90] sm:$0xff]
        %v357 = vld [vmem:[%s310 + $0x98] sm:$0xff]
        %v358 = vld [vmem:[%s310 + $0xa0] sm:$0xff]
        %v359 = vld [vmem:[%s310 + $0xa8] sm:$0xff]
        %v360 = vld [vmem:[%s310 + $0xb0] sm:$0xff]
        %v361 = vld [vmem:[%s310 + $0xb8] sm:$0xff]
        %v362 = vld [vmem:[%s310 + $0xc0] sm:$0xff]
        %v363 = vld [vmem:[%s310 + $0xc8] sm:$0xff]
        %v364 = vld [vmem:[%s310 + $0xd0] sm:$0xff]
        %v365 = vld [vmem:[%s310 + $0xd8] sm:$0xff]
        %v366 = vld [vmem:[%s310 + $0xe0] sm:$0xff]
        %v367 = vld [vmem:[%s310 + $0xe8] sm:$0xff]
        %v368 = vld [vmem:[%s310 + $0xf0] sm:$0xff]
        %v369 = vld [vmem:[%s310 + $0xf8] sm:$0xff]
        %v370 = vld [vmem:[%s1] sm:$0x1]
        %v372 = vperm.slane %v370, 0
        %v374 = vmul.f32 %v338, %v372
        %v375 = vmul.f32 %v339, %v372
        %v376 = vmul.f32 %v340, %v372
        %v377 = vmul.f32 %v341, %v372
        %v378 = vmul.f32 %v342, %v372
        %v379 = vmul.f32 %v343, %v372
        %v380 = vmul.f32 %v344, %v372
        %v381 = vmul.f32 %v345, %v372
        %v382 = vmul.f32 %v346, %v372
        %v383 = vmul.f32 %v347, %v372
        %v384 = vmul.f32 %v348, %v372
        %v385 = vmul.f32 %v349, %v372
        %v386 = vmul.f32 %v350, %v372
        %v387 = vmul.f32 %v351, %v372
        %v388 = vmul.f32 %v352, %v372
        %v389 = vmul.f32 %v353, %v372
        %v390 = vmul.f32 %v354, %v372
        %v391 = vmul.f32 %v355, %v372
        %v392 = vmul.f32 %v356, %v372
        %v393 = vmul.f32 %v357, %v372
        %v394 = vmul.f32 %v358, %v372
        %v395 = vmul.f32 %v359, %v372
        %v396 = vmul.f32 %v360, %v372
        %v397 = vmul.f32 %v361, %v372
        %v398 = vmul.f32 %v362, %v372
        %v399 = vmul.f32 %v363, %v372
        %v400 = vmul.f32 %v364, %v372
        %v401 = vmul.f32 %v365, %v372
        %v402 = vmul.f32 %v366, %v372
        %v403 = vmul.f32 %v367, %v372
        %v404 = vmul.f32 %v368, %v372
        %v405 = vmul.f32 %v369, %v372
        %v406 = vld [vmem:[%s2] sm:$0x1]
        %v408 = vperm.slane %v406, 0
        %v410 = vadd.f32 %v374, %v408
        %v411 = vadd.f32 %v375, %v408
        %v412 = vadd.f32 %v376, %v408
        %v413 = vadd.f32 %v377, %v408
        %v414 = vadd.f32 %v378, %v408
        %v415 = vadd.f32 %v379, %v408
        %v416 = vadd.f32 %v380, %v408
        %v417 = vadd.f32 %v381, %v408
        %v418 = vadd.f32 %v382, %v408
        %v419 = vadd.f32 %v383, %v408
        %v420 = vadd.f32 %v384, %v408
        %v421 = vadd.f32 %v385, %v408
        %v422 = vadd.f32 %v386, %v408
        %v423 = vadd.f32 %v387, %v408
        %v424 = vadd.f32 %v388, %v408
        %v425 = vadd.f32 %v389, %v408
        %v426 = vadd.f32 %v390, %v408
        %v427 = vadd.f32 %v391, %v408
        %v428 = vadd.f32 %v392, %v408
        %v429 = vadd.f32 %v393, %v408
        %v430 = vadd.f32 %v394, %v408
        %v431 = vadd.f32 %v395, %v408
        %v432 = vadd.f32 %v396, %v408
        %v433 = vadd.f32 %v397, %v408
        %v434 = vadd.f32 %v398, %v408
        %v435 = vadd.f32 %v399, %v408
        %v436 = vadd.f32 %v400, %v408
        %v437 = vadd.f32 %v401, %v408
        %v438 = vadd.f32 %v402, %v408
        %v439 = vadd.f32 %v403, %v408
        %v440 = vadd.f32 %v404, %v408
        %v441 = vadd.f32 %v405, %v408
        %vm442 = vcmp.ge.f32.partialorder %v410, 0.0
        %vm443 = vcmp.ge.f32.partialorder %v411, 0.0
        %vm444 = vcmp.ge.f32.partialorder %v412, 0.0
        %vm445 = vcmp.ge.f32.partialorder %v413, 0.0
        %vm446 = vcmp.ge.f32.partialorder %v414, 0.0
        %vm447 = vcmp.ge.f32.partialorder %v415, 0.0
        %vm448 = vcmp.ge.f32.partialorder %v416, 0.0
        %vm449 = vcmp.ge.f32.partialorder %v417, 0.0
        %vm450 = vcmp.ge.f32.partialorder %v418, 0.0
        %vm451 = vcmp.ge.f32.partialorder %v419, 0.0
        %vm452 = vcmp.ge.f32.partialorder %v420, 0.0
        %vm453 = vcmp.ge.f32.partialorder %v421, 0.0
        %vm454 = vcmp.ge.f32.partialorder %v422, 0.0
        %vm455 = vcmp.ge.f32.partialorder %v423, 0.0
        %vm456 = vcmp.ge.f32.partialorder %v424, 0.0
        %vm457 = vcmp.ge.f32.partialorder %v425, 0.0
        %vm458 = vcmp.ge.f32.partialorder %v426, 0.0
        %vm459 = vcmp.ge.f32.partialorder %v427, 0.0
        %vm460 = vcmp.ge.f32.partialorder %v428, 0.0
        %vm461 = vcmp.ge.f32.partialorder %v429, 0.0
        %vm462 = vcmp.ge.f32.partialorder %v430, 0.0
        %vm463 = vcmp.ge.f32.partialorder %v431, 0.0
        %vm464 = vcmp.ge.f32.partialorder %v432, 0.0
        %vm465 = vcmp.ge.f32.partialorder %v433, 0.0
        %vm466 = vcmp.ge.f32.partialorder %v434, 0.0
        %vm467 = vcmp.ge.f32.partialorder %v435, 0.0
        %vm468 = vcmp.ge.f32.partialorder %v436, 0.0
        %vm469 = vcmp.ge.f32.partialorder %v437, 0.0
        %vm470 = vcmp.ge.f32.partialorder %v438, 0.0
        %vm471 = vcmp.ge.f32.partialorder %v439, 0.0
        %vm472 = vcmp.ge.f32.partialorder %v440, 0.0
        %vm473 = vcmp.ge.f32.partialorder %v441, 0.0
        %v474 = vmul.f32 %v410, 0.2
        %v475 = vmul.f32 %v411, 0.2
        %v476 = vmul.f32 %v412, 0.2
        %v477 = vmul.f32 %v413, 0.2
        %v478 = vmul.f32 %v414, 0.2
        %v479 = vmul.f32 %v415, 0.2
        %v480 = vmul.f32 %v416, 0.2
        %v481 = vmul.f32 %v417, 0.2
        %v482 = vmul.f32 %v418, 0.2
        %v483 = vmul.f32 %v419, 0.2
        %v484 = vmul.f32 %v420, 0.2
        %v485 = vmul.f32 %v421, 0.2
        %v486 = vmul.f32 %v422, 0.2
        %v487 = vmul.f32 %v423, 0.2
        %v488 = vmul.f32 %v424, 0.2
        %v489 = vmul.f32 %v425, 0.2
        %v490 = vmul.f32 %v426, 0.2
        %v491 = vmul.f32 %v427, 0.2
        %v492 = vmul.f32 %v428, 0.2
        %v493 = vmul.f32 %v429, 0.2
        %v494 = vmul.f32 %v430, 0.2
        %v495 = vmul.f32 %v431, 0.2
        %v496 = vmul.f32 %v432, 0.2
        %v497 = vmul.f32 %v433, 0.2
        %v498 = vmul.f32 %v434, 0.2
        %v499 = vmul.f32 %v435, 0.2
        %v500 = vmul.f32 %v436, 0.2
        %v501 = vmul.f32 %v437, 0.2
        %v502 = vmul.f32 %v438, 0.2
        %v503 = vmul.f32 %v439, 0.2
        %v504 = vmul.f32 %v440, 0.2
        %v505 = vmul.f32 %v441, 0.2
        %v506 = vsel %vm442, %v410, %v474
        %v507 = vsel %vm443, %v411, %v475
        %v508 = vsel %vm444, %v412, %v476
        %v509 = vsel %vm445, %v413, %v477
        %v510 = vsel %vm446, %v414, %v478
        %v511 = vsel %vm447, %v415, %v479
        %v512 = vsel %vm448, %v416, %v480
        %v513 = vsel %vm449, %v417, %v481
        %v514 = vsel %vm450, %v418, %v482
        %v515 = vsel %vm451, %v419, %v483
        %v516 = vsel %vm452, %v420, %v484
        %v517 = vsel %vm453, %v421, %v485
        %v518 = vsel %vm454, %v422, %v486
        %v519 = vsel %vm455, %v423, %v487
        %v520 = vsel %vm456, %v424, %v488
        %v521 = vsel %vm457, %v425, %v489
        %v522 = vsel %vm458, %v426, %v490
        %v523 = vsel %vm459, %v427, %v491
        %v524 = vsel %vm460, %v428, %v492
        %v525 = vsel %vm461, %v429, %v493
        %v526 = vsel %vm462, %v430, %v494
        %v527 = vsel %vm463, %v431, %v495
        %v528 = vsel %vm464, %v432, %v496
        %v529 = vsel %vm465, %v433, %v497
        %v530 = vsel %vm466, %v434, %v498
        %v531 = vsel %vm467, %v435, %v499
        %v532 = vsel %vm468, %v436, %v500
        %v533 = vsel %vm469, %v437, %v501
        %v534 = vsel %vm470, %v438, %v502
        %v535 = vsel %vm471, %v439, %v503
        %v536 = vsel %vm472, %v440, %v504
        %v537 = vsel %vm473, %v441, %v505
        %vm538 = vcmask 58368
        %539 = vst.msk [vmem:[#allocation2] sm:$0x3] %vm538, 0.0
        %540 = vst.msk [vmem:[#allocation2 + $0x18] sm:$0x3] %vm538, 0.0
        %541 = vst.msk [vmem:[#allocation2 + $0x30] sm:$0x3] %vm538, 0.0
        %542 = vst.msk [vmem:[#allocation2 + $0x48] sm:$0x3] %vm538, 0.0
        %543 = vst.msk [vmem:[#allocation2 + $0x60] sm:$0x3] %vm538, 0.0
        %544 = vst.msk [vmem:[#allocation2 + $0x78] sm:$0x3] %vm538, 0.0
        %545 = vst.msk [vmem:[#allocation2 + $0x90] sm:$0x3] %vm538, 0.0
        %546 = vst.msk [vmem:[#allocation2 + $0xa8] sm:$0x3] %vm538, 0.0
        %547 = vst.msk [vmem:[#allocation2 + $0xc0] sm:$0x3] %vm538, 0.0
        %548 = vst.msk [vmem:[#allocation2 + $0xd8] sm:$0x3] %vm538, 0.0
        %549 = vst.msk [vmem:[#allocation2 + $0xf0] sm:$0x3] %vm538, 0.0
        %550 = vst.msk [vmem:[#allocation2 + $0x108] sm:$0x3] %vm538, 0.0
        %551 = vst.msk [vmem:[#allocation2 + $0x120] sm:$0x3] %vm538, 0.0
        %552 = vst.msk [vmem:[#allocation2 + $0x138] sm:$0x3] %vm538, 0.0
        %553 = vst.msk [vmem:[#allocation2 + $0x150] sm:$0x3] %vm538, 0.0
        %554 = vst.msk [vmem:[#allocation2 + $0x168] sm:$0x3] %vm538, 0.0
        %555 = vst.msk [vmem:[#allocation2 + $0x12] sm:$0x3] %vm538, 0.0
        %556 = vst.msk [vmem:[#allocation2 + $0x2a] sm:$0x3] %vm538, 0.0
        %557 = vst.msk [vmem:[#allocation2 + $0x42] sm:$0x3] %vm538, 0.0
        %558 = vst.msk [vmem:[#allocation2 + $0x5a] sm:$0x3] %vm538, 0.0
        %559 = vst.msk [vmem:[#allocation2 + $0x72] sm:$0x3] %vm538, 0.0
        %560 = vst.msk [vmem:[#allocation2 + $0x8a] sm:$0x3] %vm538, 0.0
        %561 = vst.msk [vmem:[#allocation2 + $0xa2] sm:$0x3] %vm538, 0.0
        %562 = vst.msk [vmem:[#allocation2 + $0xba] sm:$0x3] %vm538, 0.0
        %563 = vst.msk [vmem:[#allocation2 + $0xd2] sm:$0x3] %vm538, 0.0
        %564 = vst.msk [vmem:[#allocation2 + $0xea] sm:$0x3] %vm538, 0.0
        %565 = vst.msk [vmem:[#allocation2 + $0x102] sm:$0x3] %vm538, 0.0
        %566 = vst.msk [vmem:[#allocation2 + $0x11a] sm:$0x3] %vm538, 0.0
        %567 = vst.msk [vmem:[#allocation2 + $0x132] sm:$0x3] %vm538, 0.0
        %568 = vst.msk [vmem:[#allocation2 + $0x14a] sm:$0x3] %vm538, 0.0
        %569 = vst.msk [vmem:[#allocation2 + $0x162] sm:$0x3] %vm538, 0.0
        %570 = vst.msk [vmem:[#allocation2 + $0x17a] sm:$0x3] %vm538, 0.0
        %vm571 = vcmask 64512
        %572 = vst.msk [vmem:[#allocation2 + $0x2] sm:$0xff] %vm571, %v506
        %573 = vst.msk [vmem:[#allocation2 + $0xa] sm:$0xff] %vm571, %v507
        %574 = vst.msk [vmem:[#allocation2 + $0x1a] sm:$0xff] %vm571, %v508
        %575 = vst.msk [vmem:[#allocation2 + $0x22] sm:$0xff] %vm571, %v509
        %576 = vst.msk [vmem:[#allocation2 + $0x32] sm:$0xff] %vm571, %v510
        %577 = vst.msk [vmem:[#allocation2 + $0x3a] sm:$0xff] %vm571, %v511
        %578 = vst.msk [vmem:[#allocation2 + $0x4a] sm:$0xff] %vm571, %v512
        %579 = vst.msk [vmem:[#allocation2 + $0x52] sm:$0xff] %vm571, %v513
        %580 = vst.msk [vmem:[#allocation2 + $0x62] sm:$0xff] %vm571, %v514
        %581 = vst.msk [vmem:[#allocation2 + $0x6a] sm:$0xff] %vm571, %v515
        %582 = vst.msk [vmem:[#allocation2 + $0x7a] sm:$0xff] %vm571, %v516
        %583 = vst.msk [vmem:[#allocation2 + $0x82] sm:$0xff] %vm571, %v517
        %584 = vst.msk [vmem:[#allocation2 + $0x92] sm:$0xff] %vm571, %v518
        %585 = vst.msk [vmem:[#allocation2 + $0x9a] sm:$0xff] %vm571, %v519
        %586 = vst.msk [vmem:[#allocation2 + $0xaa] sm:$0xff] %vm571, %v520
        %587 = vst.msk [vmem:[#allocation2 + $0xb2] sm:$0xff] %vm571, %v521
        %588 = vst.msk [vmem:[#allocation2 + $0xc2] sm:$0xff] %vm571, %v522
        %589 = vst.msk [vmem:[#allocation2 + $0xca] sm:$0xff] %vm571, %v523
        %590 = vst.msk [vmem:[#allocation2 + $0xda] sm:$0xff] %vm571, %v524
        %591 = vst.msk [vmem:[#allocation2 + $0xe2] sm:$0xff] %vm571, %v525
        %592 = vst.msk [vmem:[#allocation2 + $0xf2] sm:$0xff] %vm571, %v526
        %593 = vst.msk [vmem:[#allocation2 + $0xfa] sm:$0xff] %vm571, %v527
        %594 = vst.msk [vmem:[#allocation2 + $0x10a] sm:$0xff] %vm571, %v528
        %595 = vst.msk [vmem:[#allocation2 + $0x112] sm:$0xff] %vm571, %v529
        %596 = vst.msk [vmem:[#allocation2 + $0x122] sm:$0xff] %vm571, %v530
        %597 = vst.msk [vmem:[#allocation2 + $0x12a] sm:$0xff] %vm571, %v531
        %598 = vst.msk [vmem:[#allocation2 + $0x13a] sm:$0xff] %vm571, %v532
        %599 = vst.msk [vmem:[#allocation2 + $0x142] sm:$0xff] %vm571, %v533
        %600 = vst.msk [vmem:[#allocation2 + $0x152] sm:$0xff] %vm571, %v534
        %601 = vst.msk [vmem:[#allocation2 + $0x15a] sm:$0xff] %vm571, %v535
        %602 = vst.msk [vmem:[#allocation2 + $0x16a] sm:$0xff] %vm571, %v536
        %603 = vst.msk [vmem:[#allocation2 + $0x172] sm:$0xff] %vm571, %v537
        %v604 = vld [vmem:[#allocation2] sm:$0xff]
        %v605 = vld [vmem:[#allocation2 + $0x8] sm:$0xff]
        %v606 = vld [vmem:[#allocation2 + $0x10] sm:$0xf]
        %v607 = vld [vmem:[#allocation2 + $0x18] sm:$0xff]
        %v608 = vld [vmem:[#allocation2 + $0x20] sm:$0xff]
        %v609 = vld [vmem:[#allocation2 + $0x28] sm:$0xf]
        %v610 = vld [vmem:[#allocation2 + $0x30] sm:$0xff]
        %v611 = vld [vmem:[#allocation2 + $0x38] sm:$0xff]
        %v612 = vld [vmem:[#allocation2 + $0x40] sm:$0xf]
        %v613 = vld [vmem:[#allocation2 + $0x48] sm:$0xff]
        %v614 = vld [vmem:[#allocation2 + $0x50] sm:$0xff]
        %v615 = vld [vmem:[#allocation2 + $0x58] sm:$0xf]
        %v616 = vld [vmem:[#allocation2 + $0x60] sm:$0xff]
        %v617 = vld [vmem:[#allocation2 + $0x68] sm:$0xff]
        %v618 = vld [vmem:[#allocation2 + $0x70] sm:$0xf]
        %v619 = vld [vmem:[#allocation2 + $0x78] sm:$0xff]
        %v620 = vld [vmem:[#allocation2 + $0x80] sm:$0xff]
        %v621 = vld [vmem:[#allocation2 + $0x88] sm:$0xf]
        %v622 = vld [vmem:[#allocation2 + $0x90] sm:$0xff]
        %v623 = vld [vmem:[#allocation2 + $0x98] sm:$0xff]
        %v624 = vld [vmem:[#allocation2 + $0xa0] sm:$0xf]
        %v625 = vld [vmem:[#allocation2 + $0xa8] sm:$0xff]
        %v626 = vld [vmem:[#allocation2 + $0xb0] sm:$0xff]
        %v627 = vld [vmem:[#allocation2 + $0xb8] sm:$0xf]
        %v628 = vld [vmem:[#allocation2 + $0xc0] sm:$0xff]
        %v629 = vld [vmem:[#allocation2 + $0xc8] sm:$0xff]
        %v630 = vld [vmem:[#allocation2 + $0xd0] sm:$0xf]
        %v631 = vld [vmem:[#allocation2 + $0xd8] sm:$0xff]
        %v632 = vld [vmem:[#allocation2 + $0xe0] sm:$0xff]
        %v633 = vld [vmem:[#allocation2 + $0xe8] sm:$0xf]
        %v634 = vld [vmem:[#allocation2 + $0xf0] sm:$0xff]
        %v635 = vld [vmem:[#allocation2 + $0xf8] sm:$0xff]
        %v636 = vld [vmem:[#allocation2 + $0x100] sm:$0xf]
        %v637 = vld [vmem:[#allocation2 + $0x108] sm:$0xff]
        %v638 = vld [vmem:[#allocation2 + $0x110] sm:$0xff]
        %v639 = vld [vmem:[#allocation2 + $0x118] sm:$0xf]
        %v640 = vld [vmem:[#allocation2 + $0x120] sm:$0xff]
        %v641 = vld [vmem:[#allocation2 + $0x128] sm:$0xff]
        %v642 = vld [vmem:[#allocation2 + $0x130] sm:$0xf]
        %v643 = vld [vmem:[#allocation2 + $0x138] sm:$0xff]
        %v644 = vld [vmem:[#allocation2 + $0x140] sm:$0xff]
        %v645 = vld [vmem:[#allocation2 + $0x148] sm:$0xf]
        %v646 = vld [vmem:[#allocation2 + $0x150] sm:$0xff]
        %v647 = vld [vmem:[#allocation2 + $0x158] sm:$0xff]
        %v648 = vld [vmem:[#allocation2 + $0x160] sm:$0xf]
        %v649 = vld [vmem:[#allocation2 + $0x168] sm:$0xff]
        %v650 = vld [vmem:[#allocation2 + $0x170] sm:$0xff]
        %v651 = vld [vmem:[#allocation2 + $0x178] sm:$0xf]
        %vm700 = vcmask 1046528
        %v701 = vrot.slane %v604, 1
        %v702 = vrot.slane %v605, 1
        %v703 = vsel %vm700, %v701, %v702
        %v704 = vrot.slane %v606, 1
        %v705 = vsel %vm700, %v702, %v704
        %v706 = vrot.slane %v607, 1
        %v707 = vrot.slane %v608, 1
        %v708 = vsel %vm700, %v706, %v707
        %v709 = vrot.slane %v609, 1
        %v710 = vsel %vm700, %v707, %v709
        %v711 = vrot.slane %v610, 1
        %v712 = vrot.slane %v611, 1
        %v713 = vsel %vm700, %v711, %v712
        %v714 = vrot.slane %v612, 1
        %v715 = vsel %vm700, %v712, %v714
        %v716 = vrot.slane %v613, 1
        %v717 = vrot.slane %v614, 1
        %v718 = vsel %vm700, %v716, %v717
        %v719 = vrot.slane %v615, 1
        %v720 = vsel %vm700, %v717, %v719
        %v721 = vrot.slane %v616, 1
        %v722 = vrot.slane %v617, 1
        %v723 = vsel %vm700, %v721, %v722
        %v724 = vrot.slane %v618, 1
        %v725 = vsel %vm700, %v722, %v724
        %v726 = vrot.slane %v619, 1
        %v727 = vrot.slane %v620, 1
        %v728 = vsel %vm700, %v726, %v727
        %v729 = vrot.slane %v621, 1
        %v730 = vsel %vm700, %v727, %v729
        %v731 = vrot.slane %v622, 1
        %v732 = vrot.slane %v623, 1
        %v733 = vsel %vm700, %v731, %v732
        %v734 = vrot.slane %v624, 1
        %v735 = vsel %vm700, %v732, %v734
        %v736 = vrot.slane %v625, 1
        %v737 = vrot.slane %v626, 1
        %v738 = vsel %vm700, %v736, %v737
        %v739 = vrot.slane %v627, 1
        %v740 = vsel %vm700, %v737, %v739
        %v741 = vrot.slane %v628, 1
        %v742 = vrot.slane %v629, 1
        %v743 = vsel %vm700, %v741, %v742
        %v744 = vrot.slane %v630, 1
        %v745 = vsel %vm700, %v742, %v744
        %v746 = vrot.slane %v631, 1
        %v747 = vrot.slane %v632, 1
        %v748 = vsel %vm700, %v746, %v747
        %v749 = vrot.slane %v633, 1
        %v750 = vsel %vm700, %v747, %v749
        %v751 = vrot.slane %v634, 1
        %v752 = vrot.slane %v635, 1
        %v753 = vsel %vm700, %v751, %v752
        %v754 = vrot.slane %v636, 1
        %v755 = vsel %vm700, %v752, %v754
        %v756 = vrot.slane %v637, 1
        %v757 = vrot.slane %v638, 1
        %v758 = vsel %vm700, %v756, %v757
        %v759 = vrot.slane %v639, 1
        %v760 = vsel %vm700, %v757, %v759
        %v761 = vrot.slane %v640, 1
        %v762 = vrot.slane %v641, 1
        %v763 = vsel %vm700, %v761, %v762
        %v764 = vrot.slane %v642, 1
        %v765 = vsel %vm700, %v762, %v764
        %v766 = vrot.slane %v643, 1
        %v767 = vrot.slane %v644, 1
        %v768 = vsel %vm700, %v766, %v767
        %v769 = vrot.slane %v645, 1
        %v770 = vsel %vm700, %v767, %v769
        %v771 = vrot.slane %v646, 1
        %v772 = vrot.slane %v647, 1
        %v773 = vsel %vm700, %v771, %v772
        %v774 = vrot.slane %v648, 1
        %v775 = vsel %vm700, %v772, %v774
        %v776 = vrot.slane %v649, 1
        %v777 = vrot.slane %v650, 1
        %v778 = vsel %vm700, %v776, %v777
        %v779 = vrot.slane %v651, 1
        %v780 = vsel %vm700, %v777, %v779
        %781 = vrot.lane.b32.xlu0 %v703, 8
        %v782 = vpop.permute.xlu0 %781
        %783 = vrot.lane.b32.xlu0 %v705, 8
        %v784 = vpop.permute.xlu0 %783
        %785 = vrot.lane.b32.xlu0 %v708, 8
        %v786 = vpop.permute.xlu0 %785
        %787 = vrot.lane.b32.xlu0 %v710, 8
        %v788 = vpop.permute.xlu0 %787
        %789 = vrot.lane.b32.xlu0 %v713, 8
        %v790 = vpop.permute.xlu0 %789
        %791 = vrot.lane.b32.xlu0 %v715, 8
        %v792 = vpop.permute.xlu0 %791
        %793 = vrot.lane.b32.xlu0 %v718, 8
        %v794 = vpop.permute.xlu0 %793
        %795 = vrot.lane.b32.xlu0 %v720, 8
        %v796 = vpop.permute.xlu0 %795
        %797 = vrot.lane.b32.xlu0 %v723, 8
        %v798 = vpop.permute.xlu0 %797
        %799 = vrot.lane.b32.xlu0 %v725, 8
        %v800 = vpop.permute.xlu0 %799
        %801 = vrot.lane.b32.xlu0 %v728, 8
        %v802 = vpop.permute.xlu0 %801
        %803 = vrot.lane.b32.xlu0 %v730, 8
        %v804 = vpop.permute.xlu0 %803
        %805 = vrot.lane.b32.xlu0 %v733, 8
        %v806 = vpop.permute.xlu0 %805
        %807 = vrot.lane.b32.xlu0 %v735, 8
        %v808 = vpop.permute.xlu0 %807
        %809 = vrot.lane.b32.xlu0 %v738, 8
        %v810 = vpop.permute.xlu0 %809
        %811 = vrot.lane.b32.xlu0 %v740, 8
        %v812 = vpop.permute.xlu0 %811
        %813 = vrot.lane.b32.xlu0 %v743, 8
        %v814 = vpop.permute.xlu0 %813
        %815 = vrot.lane.b32.xlu0 %v745, 8
        %v816 = vpop.permute.xlu0 %815
        %817 = vrot.lane.b32.xlu0 %v748, 8
        %v818 = vpop.permute.xlu0 %817
        %819 = vrot.lane.b32.xlu0 %v750, 8
        %v820 = vpop.permute.xlu0 %819
        %821 = vrot.lane.b32.xlu0 %v753, 8
        %v822 = vpop.permute.xlu0 %821
        %823 = vrot.lane.b32.xlu0 %v755, 8
        %v824 = vpop.permute.xlu0 %823
        %825 = vrot.lane.b32.xlu0 %v758, 8
        %v826 = vpop.permute.xlu0 %825
        %827 = vrot.lane.b32.xlu0 %v760, 8
        %v828 = vpop.permute.xlu0 %827
        %829 = vrot.lane.b32.xlu0 %v763, 8
        %v830 = vpop.permute.xlu0 %829
        %831 = vrot.lane.b32.xlu0 %v765, 8
        %v832 = vpop.permute.xlu0 %831
        %833 = vrot.lane.b32.xlu0 %v768, 8
        %v834 = vpop.permute.xlu0 %833
        %835 = vrot.lane.b32.xlu0 %v770, 8
        %v836 = vpop.permute.xlu0 %835
        %837 = vrot.lane.b32.xlu0 %v773, 8
        %v838 = vpop.permute.xlu0 %837
        %839 = vrot.lane.b32.xlu0 %v775, 8
        %v840 = vpop.permute.xlu0 %839
        %841 = vrot.lane.b32.xlu0 %v778, 8
        %v842 = vpop.permute.xlu0 %841
        %843 = vrot.lane.b32.xlu0 %v780, 8
        %v844 = vpop.permute.xlu0 %843
        %vm877 = vcmask 1045504
        %v878 = vrot.slane %v604, 2
        %v879 = vrot.slane %v605, 2
        %v880 = vsel %vm877, %v878, %v879
        %v881 = vrot.slane %v606, 2
        %v882 = vsel %vm877, %v879, %v881
        %v883 = vrot.slane %v607, 2
        %v884 = vrot.slane %v608, 2
        %v885 = vsel %vm877, %v883, %v884
        %v886 = vrot.slane %v609, 2
        %v887 = vsel %vm877, %v884, %v886
        %v888 = vrot.slane %v610, 2
        %v889 = vrot.slane %v611, 2
        %v890 = vsel %vm877, %v888, %v889
        %v891 = vrot.slane %v612, 2
        %v892 = vsel %vm877, %v889, %v891
        %v893 = vrot.slane %v613, 2
        %v894 = vrot.slane %v614, 2
        %v895 = vsel %vm877, %v893, %v894
        %v896 = vrot.slane %v615, 2
        %v897 = vsel %vm877, %v894, %v896
        %v898 = vrot.slane %v616, 2
        %v899 = vrot.slane %v617, 2
        %v900 = vsel %vm877, %v898, %v899
        %v901 = vrot.slane %v618, 2
        %v902 = vsel %vm877, %v899, %v901
        %v903 = vrot.slane %v619, 2
        %v904 = vrot.slane %v620, 2
        %v905 = vsel %vm877, %v903, %v904
        %v906 = vrot.slane %v621, 2
        %v907 = vsel %vm877, %v904, %v906
        %v908 = vrot.slane %v622, 2
        %v909 = vrot.slane %v623, 2
        %v910 = vsel %vm877, %v908, %v909
        %v911 = vrot.slane %v624, 2
        %v912 = vsel %vm877, %v909, %v911
        %v913 = vrot.slane %v625, 2
        %v914 = vrot.slane %v626, 2
        %v915 = vsel %vm877, %v913, %v914
        %v916 = vrot.slane %v627, 2
        %v917 = vsel %vm877, %v914, %v916
        %v918 = vrot.slane %v628, 2
        %v919 = vrot.slane %v629, 2
        %v920 = vsel %vm877, %v918, %v919
        %v921 = vrot.slane %v630, 2
        %v922 = vsel %vm877, %v919, %v921
        %v923 = vrot.slane %v631, 2
        %v924 = vrot.slane %v632, 2
        %v925 = vsel %vm877, %v923, %v924
        %v926 = vrot.slane %v633, 2
        %v927 = vsel %vm877, %v924, %v926
        %v928 = vrot.slane %v634, 2
        %v929 = vrot.slane %v635, 2
        %v930 = vsel %vm877, %v928, %v929
        %v931 = vrot.slane %v636, 2
        %v932 = vsel %vm877, %v929, %v931
        %v933 = vrot.slane %v637, 2
        %v934 = vrot.slane %v638, 2
        %v935 = vsel %vm877, %v933, %v934
        %v936 = vrot.slane %v639, 2
        %v937 = vsel %vm877, %v934, %v936
        %v938 = vrot.slane %v640, 2
        %v939 = vrot.slane %v641, 2
        %v940 = vsel %vm877, %v938, %v939
        %v941 = vrot.slane %v642, 2
        %v942 = vsel %vm877, %v939, %v941
        %v943 = vrot.slane %v643, 2
        %v944 = vrot.slane %v644, 2
        %v945 = vsel %vm877, %v943, %v944
        %v946 = vrot.slane %v645, 2
        %v947 = vsel %vm877, %v944, %v946
        %v948 = vrot.slane %v646, 2
        %v949 = vrot.slane %v647, 2
        %v950 = vsel %vm877, %v948, %v949
        %v951 = vrot.slane %v648, 2
        %v952 = vsel %vm877, %v949, %v951
        %v953 = vrot.slane %v649, 2
        %v954 = vrot.slane %v650, 2
        %v955 = vsel %vm877, %v953, %v954
        %v956 = vrot.slane %v651, 2
        %v957 = vsel %vm877, %v954, %v956
        %958 = vrot.lane.b32.xlu0 %v880, 16
        %v959 = vpop.permute.xlu0 %958
        %960 = vrot.lane.b32.xlu0 %v882, 16
        %v961 = vpop.permute.xlu0 %960
        %962 = vrot.lane.b32.xlu0 %v885, 16
        %v963 = vpop.permute.xlu0 %962
        %964 = vrot.lane.b32.xlu0 %v887, 16
        %v965 = vpop.permute.xlu0 %964
        %966 = vrot.lane.b32.xlu0 %v890, 16
        %v967 = vpop.permute.xlu0 %966
        %968 = vrot.lane.b32.xlu0 %v892, 16
        %v969 = vpop.permute.xlu0 %968
        %970 = vrot.lane.b32.xlu0 %v895, 16
        %v971 = vpop.permute.xlu0 %970
        %972 = vrot.lane.b32.xlu0 %v897, 16
        %v973 = vpop.permute.xlu0 %972
        %974 = vrot.lane.b32.xlu0 %v900, 16
        %v975 = vpop.permute.xlu0 %974
        %976 = vrot.lane.b32.xlu0 %v902, 16
        %v977 = vpop.permute.xlu0 %976
        %978 = vrot.lane.b32.xlu0 %v905, 16
        %v979 = vpop.permute.xlu0 %978
        %980 = vrot.lane.b32.xlu0 %v907, 16
        %v981 = vpop.permute.xlu0 %980
        %982 = vrot.lane.b32.xlu0 %v910, 16
        %v983 = vpop.permute.xlu0 %982
        %984 = vrot.lane.b32.xlu0 %v912, 16
        %v985 = vpop.permute.xlu0 %984
        %986 = vrot.lane.b32.xlu0 %v915, 16
        %v987 = vpop.permute.xlu0 %986
        %988 = vrot.lane.b32.xlu0 %v917, 16
        %v989 = vpop.permute.xlu0 %988
        %990 = vrot.lane.b32.xlu0 %v920, 16
        %v991 = vpop.permute.xlu0 %990
        %992 = vrot.lane.b32.xlu0 %v922, 16
        %v993 = vpop.permute.xlu0 %992
        %994 = vrot.lane.b32.xlu0 %v925, 16
        %v995 = vpop.permute.xlu0 %994
        %996 = vrot.lane.b32.xlu0 %v927, 16
        %v997 = vpop.permute.xlu0 %996
        %998 = vrot.lane.b32.xlu0 %v930, 16
        %v999 = vpop.permute.xlu0 %998
        %1000 = vrot.lane.b32.xlu0 %v932, 16
        %v1001 = vpop.permute.xlu0 %1000
        %1002 = vrot.lane.b32.xlu0 %v935, 16
        %v1003 = vpop.permute.xlu0 %1002
        %1004 = vrot.lane.b32.xlu0 %v937, 16
        %v1005 = vpop.permute.xlu0 %1004
        %1006 = vrot.lane.b32.xlu0 %v940, 16
        %v1007 = vpop.permute.xlu0 %1006
        %1008 = vrot.lane.b32.xlu0 %v942, 16
        %v1009 = vpop.permute.xlu0 %1008
        %1010 = vrot.lane.b32.xlu0 %v945, 16
        %v1011 = vpop.permute.xlu0 %1010
        %1012 = vrot.lane.b32.xlu0 %v947, 16
        %v1013 = vpop.permute.xlu0 %1012
        %1014 = vrot.lane.b32.xlu0 %v950, 16
        %v1015 = vpop.permute.xlu0 %1014
        %1016 = vrot.lane.b32.xlu0 %v952, 16
        %v1017 = vpop.permute.xlu0 %1016
        %1018 = vrot.lane.b32.xlu0 %v955, 16
        %v1019 = vpop.permute.xlu0 %1018
        %1020 = vrot.lane.b32.xlu0 %v957, 16
        %v1021 = vpop.permute.xlu0 %1020
        %vm1054 = vcmask 1044480
        %v1055 = vrot.slane %v604, 3
        %v1056 = vrot.slane %v605, 3
        %v1057 = vsel %vm1054, %v1055, %v1056
        %v1058 = vrot.slane %v606, 3
        %v1059 = vsel %vm1054, %v1056, %v1058
        %v1060 = vrot.slane %v607, 3
        %v1061 = vrot.slane %v608, 3
        %v1062 = vsel %vm1054, %v1060, %v1061
        %v1063 = vrot.slane %v609, 3
        %v1064 = vsel %vm1054, %v1061, %v1063
        %v1065 = vrot.slane %v610, 3
        %v1066 = vrot.slane %v611, 3
        %v1067 = vsel %vm1054, %v1065, %v1066
        %v1068 = vrot.slane %v612, 3
        %v1069 = vsel %vm1054, %v1066, %v1068
        %v1070 = vrot.slane %v613, 3
        %v1071 = vrot.slane %v614, 3
        %v1072 = vsel %vm1054, %v1070, %v1071
        %v1073 = vrot.slane %v615, 3
        %v1074 = vsel %vm1054, %v1071, %v1073
        %v1075 = vrot.slane %v616, 3
        %v1076 = vrot.slane %v617, 3
        %v1077 = vsel %vm1054, %v1075, %v1076
        %v1078 = vrot.slane %v618, 3
        %v1079 = vsel %vm1054, %v1076, %v1078
        %v1080 = vrot.slane %v619, 3
        %v1081 = vrot.slane %v620, 3
        %v1082 = vsel %vm1054, %v1080, %v1081
        %v1083 = vrot.slane %v621, 3
        %v1084 = vsel %vm1054, %v1081, %v1083
        %v1085 = vrot.slane %v622, 3
        %v1086 = vrot.slane %v623, 3
        %v1087 = vsel %vm1054, %v1085, %v1086
        %v1088 = vrot.slane %v624, 3
        %v1089 = vsel %vm1054, %v1086, %v1088
        %v1090 = vrot.slane %v625, 3
        %v1091 = vrot.slane %v626, 3
        %v1092 = vsel %vm1054, %v1090, %v1091
        %v1093 = vrot.slane %v627, 3
        %v1094 = vsel %vm1054, %v1091, %v1093
        %v1095 = vrot.slane %v628, 3
        %v1096 = vrot.slane %v629, 3
        %v1097 = vsel %vm1054, %v1095, %v1096
        %v1098 = vrot.slane %v630, 3
        %v1099 = vsel %vm1054, %v1096, %v1098
        %v1100 = vrot.slane %v631, 3
        %v1101 = vrot.slane %v632, 3
        %v1102 = vsel %vm1054, %v1100, %v1101
        %v1103 = vrot.slane %v633, 3
        %v1104 = vsel %vm1054, %v1101, %v1103
        %v1105 = vrot.slane %v634, 3
        %v1106 = vrot.slane %v635, 3
        %v1107 = vsel %vm1054, %v1105, %v1106
        %v1108 = vrot.slane %v636, 3
        %v1109 = vsel %vm1054, %v1106, %v1108
        %v1110 = vrot.slane %v637, 3
        %v1111 = vrot.slane %v638, 3
        %v1112 = vsel %vm1054, %v1110, %v1111
        %v1113 = vrot.slane %v639, 3
        %v1114 = vsel %vm1054, %v1111, %v1113
        %v1115 = vrot.slane %v640, 3
        %v1116 = vrot.slane %v641, 3
        %v1117 = vsel %vm1054, %v1115, %v1116
        %v1118 = vrot.slane %v642, 3
        %v1119 = vsel %vm1054, %v1116, %v1118
        %v1120 = vrot.slane %v643, 3
        %v1121 = vrot.slane %v644, 3
        %v1122 = vsel %vm1054, %v1120, %v1121
        %v1123 = vrot.slane %v645, 3
        %v1124 = vsel %vm1054, %v1121, %v1123
        %v1125 = vrot.slane %v646, 3
        %v1126 = vrot.slane %v647, 3
        %v1127 = vsel %vm1054, %v1125, %v1126
        %v1128 = vrot.slane %v648, 3
        %v1129 = vsel %vm1054, %v1126, %v1128
        %v1130 = vrot.slane %v649, 3
        %v1131 = vrot.slane %v650, 3
        %v1132 = vsel %vm1054, %v1130, %v1131
        %v1133 = vrot.slane %v651, 3
        %v1134 = vsel %vm1054, %v1131, %v1133
        %1135 = vrot.lane.b32.xlu0 %v1057, 24
        %v1136 = vpop.permute.xlu0 %1135
        %1137 = vrot.lane.b32.xlu0 %v1059, 24
        %v1138 = vpop.permute.xlu0 %1137
        %1139 = vrot.lane.b32.xlu0 %v1062, 24
        %v1140 = vpop.permute.xlu0 %1139
        %1141 = vrot.lane.b32.xlu0 %v1064, 24
        %v1142 = vpop.permute.xlu0 %1141
        %1143 = vrot.lane.b32.xlu0 %v1067, 24
        %v1144 = vpop.permute.xlu0 %1143
        %1145 = vrot.lane.b32.xlu0 %v1069, 24
        %v1146 = vpop.permute.xlu0 %1145
        %1147 = vrot.lane.b32.xlu0 %v1072, 24
        %v1148 = vpop.permute.xlu0 %1147
        %1149 = vrot.lane.b32.xlu0 %v1074, 24
        %v1150 = vpop.permute.xlu0 %1149
        %1151 = vrot.lane.b32.xlu0 %v1077, 24
        %v1152 = vpop.permute.xlu0 %1151
        %1153 = vrot.lane.b32.xlu0 %v1079, 24
        %v1154 = vpop.permute.xlu0 %1153
        %1155 = vrot.lane.b32.xlu0 %v1082, 24
        %v1156 = vpop.permute.xlu0 %1155
        %1157 = vrot.lane.b32.xlu0 %v1084, 24
        %v1158 = vpop.permute.xlu0 %1157
        %1159 = vrot.lane.b32.xlu0 %v1087, 24
        %v1160 = vpop.permute.xlu0 %1159
        %1161 = vrot.lane.b32.xlu0 %v1089, 24
        %v1162 = vpop.permute.xlu0 %1161
        %1163 = vrot.lane.b32.xlu0 %v1092, 24
        %v1164 = vpop.permute.xlu0 %1163
        %1165 = vrot.lane.b32.xlu0 %v1094, 24
        %v1166 = vpop.permute.xlu0 %1165
        %1167 = vrot.lane.b32.xlu0 %v1097, 24
        %v1168 = vpop.permute.xlu0 %1167
        %1169 = vrot.lane.b32.xlu0 %v1099, 24
        %v1170 = vpop.permute.xlu0 %1169
        %1171 = vrot.lane.b32.xlu0 %v1102, 24
        %v1172 = vpop.permute.xlu0 %1171
        %1173 = vrot.lane.b32.xlu0 %v1104, 24
        %v1174 = vpop.permute.xlu0 %1173
        %1175 = vrot.lane.b32.xlu0 %v1107, 24
        %v1176 = vpop.permute.xlu0 %1175
        %1177 = vrot.lane.b32.xlu0 %v1109, 24
        %v1178 = vpop.permute.xlu0 %1177
        %1179 = vrot.lane.b32.xlu0 %v1112, 24
        %v1180 = vpop.permute.xlu0 %1179
        %1181 = vrot.lane.b32.xlu0 %v1114, 24
        %v1182 = vpop.permute.xlu0 %1181
        %1183 = vrot.lane.b32.xlu0 %v1117, 24
        %v1184 = vpop.permute.xlu0 %1183
        %1185 = vrot.lane.b32.xlu0 %v1119, 24
        %v1186 = vpop.permute.xlu0 %1185
        %1187 = vrot.lane.b32.xlu0 %v1122, 24
        %v1188 = vpop.permute.xlu0 %1187
        %1189 = vrot.lane.b32.xlu0 %v1124, 24
        %v1190 = vpop.permute.xlu0 %1189
        %1191 = vrot.lane.b32.xlu0 %v1127, 24
        %v1192 = vpop.permute.xlu0 %1191
        %1193 = vrot.lane.b32.xlu0 %v1129, 24
        %v1194 = vpop.permute.xlu0 %1193
        %1195 = vrot.lane.b32.xlu0 %v1132, 24
        %v1196 = vpop.permute.xlu0 %1195
        %1197 = vrot.lane.b32.xlu0 %v1134, 24
        %v1198 = vpop.permute.xlu0 %1197
        %vm1231 = vcmask 1043456
        %v1232 = vrot.slane %v604, 4
        %v1233 = vrot.slane %v605, 4
        %v1234 = vsel %vm1231, %v1232, %v1233
        %v1235 = vrot.slane %v606, 4
        %v1236 = vsel %vm1231, %v1233, %v1235
        %v1237 = vrot.slane %v607, 4
        %v1238 = vrot.slane %v608, 4
        %v1239 = vsel %vm1231, %v1237, %v1238
        %v1240 = vrot.slane %v609, 4
        %v1241 = vsel %vm1231, %v1238, %v1240
        %v1242 = vrot.slane %v610, 4
        %v1243 = vrot.slane %v611, 4
        %v1244 = vsel %vm1231, %v1242, %v1243
        %v1245 = vrot.slane %v612, 4
        %v1246 = vsel %vm1231, %v1243, %v1245
        %v1247 = vrot.slane %v613, 4
        %v1248 = vrot.slane %v614, 4
        %v1249 = vsel %vm1231, %v1247, %v1248
        %v1250 = vrot.slane %v615, 4
        %v1251 = vsel %vm1231, %v1248, %v1250
        %v1252 = vrot.slane %v616, 4
        %v1253 = vrot.slane %v617, 4
        %v1254 = vsel %vm1231, %v1252, %v1253
        %v1255 = vrot.slane %v618, 4
        %v1256 = vsel %vm1231, %v1253, %v1255
        %v1257 = vrot.slane %v619, 4
        %v1258 = vrot.slane %v620, 4
        %v1259 = vsel %vm1231, %v1257, %v1258
        %v1260 = vrot.slane %v621, 4
        %v1261 = vsel %vm1231, %v1258, %v1260
        %v1262 = vrot.slane %v622, 4
        %v1263 = vrot.slane %v623, 4
        %v1264 = vsel %vm1231, %v1262, %v1263
        %v1265 = vrot.slane %v624, 4
        %v1266 = vsel %vm1231, %v1263, %v1265
        %v1267 = vrot.slane %v625, 4
        %v1268 = vrot.slane %v626, 4
        %v1269 = vsel %vm1231, %v1267, %v1268
        %v1270 = vrot.slane %v627, 4
        %v1271 = vsel %vm1231, %v1268, %v1270
        %v1272 = vrot.slane %v628, 4
        %v1273 = vrot.slane %v629, 4
        %v1274 = vsel %vm1231, %v1272, %v1273
        %v1275 = vrot.slane %v630, 4
        %v1276 = vsel %vm1231, %v1273, %v1275
        %v1277 = vrot.slane %v631, 4
        %v1278 = vrot.slane %v632, 4
        %v1279 = vsel %vm1231, %v1277, %v1278
        %v1280 = vrot.slane %v633, 4
        %v1281 = vsel %vm1231, %v1278, %v1280
        %v1282 = vrot.slane %v634, 4
        %v1283 = vrot.slane %v635, 4
        %v1284 = vsel %vm1231, %v1282, %v1283
        %v1285 = vrot.slane %v636, 4
        %v1286 = vsel %vm1231, %v1283, %v1285
        %v1287 = vrot.slane %v637, 4
        %v1288 = vrot.slane %v638, 4
        %v1289 = vsel %vm1231, %v1287, %v1288
        %v1290 = vrot.slane %v639, 4
        %v1291 = vsel %vm1231, %v1288, %v1290
        %v1292 = vrot.slane %v640, 4
        %v1293 = vrot.slane %v641, 4
        %v1294 = vsel %vm1231, %v1292, %v1293
        %v1295 = vrot.slane %v642, 4
        %v1296 = vsel %vm1231, %v1293, %v1295
        %v1297 = vrot.slane %v643, 4
        %v1298 = vrot.slane %v644, 4
        %v1299 = vsel %vm1231, %v1297, %v1298
        %v1300 = vrot.slane %v645, 4
        %v1301 = vsel %vm1231, %v1298, %v1300
        %v1302 = vrot.slane %v646, 4
        %v1303 = vrot.slane %v647, 4
        %v1304 = vsel %vm1231, %v1302, %v1303
        %v1305 = vrot.slane %v648, 4
        %v1306 = vsel %vm1231, %v1303, %v1305
        %v1307 = vrot.slane %v649, 4
        %v1308 = vrot.slane %v650, 4
        %v1309 = vsel %vm1231, %v1307, %v1308
        %v1310 = vrot.slane %v651, 4
        %v1311 = vsel %vm1231, %v1308, %v1310
        %1312 = vrot.lane.b32.xlu0 %v1234, 32
        %v1313 = vpop.permute.xlu0 %1312
        %1314 = vrot.lane.b32.xlu0 %v1236, 32
        %v1315 = vpop.permute.xlu0 %1314
        %1316 = vrot.lane.b32.xlu0 %v1239, 32
        %v1317 = vpop.permute.xlu0 %1316
        %1318 = vrot.lane.b32.xlu0 %v1241, 32
        %v1319 = vpop.permute.xlu0 %1318
        %1320 = vrot.lane.b32.xlu0 %v1244, 32
        %v1321 = vpop.permute.xlu0 %1320
        %1322 = vrot.lane.b32.xlu0 %v1246, 32
        %v1323 = vpop.permute.xlu0 %1322
        %1324 = vrot.lane.b32.xlu0 %v1249, 32
        %v1325 = vpop.permute.xlu0 %1324
        %1326 = vrot.lane.b32.xlu0 %v1251, 32
        %v1327 = vpop.permute.xlu0 %1326
        %1328 = vrot.lane.b32.xlu0 %v1254, 32
        %v1329 = vpop.permute.xlu0 %1328
        %1330 = vrot.lane.b32.xlu0 %v1256, 32
        %v1331 = vpop.permute.xlu0 %1330
        %1332 = vrot.lane.b32.xlu0 %v1259, 32
        %v1333 = vpop.permute.xlu0 %1332
        %1334 = vrot.lane.b32.xlu0 %v1261, 32
        %v1335 = vpop.permute.xlu0 %1334
        %1336 = vrot.lane.b32.xlu0 %v1264, 32
        %v1337 = vpop.permute.xlu0 %1336
        %1338 = vrot.lane.b32.xlu0 %v1266, 32
        %v1339 = vpop.permute.xlu0 %1338
        %1340 = vrot.lane.b32.xlu0 %v1269, 32
        %v1341 = vpop.permute.xlu0 %1340
        %1342 = vrot.lane.b32.xlu0 %v1271, 32
        %v1343 = vpop.permute.xlu0 %1342
        %1344 = vrot.lane.b32.xlu0 %v1274, 32
        %v1345 = vpop.permute.xlu0 %1344
        %1346 = vrot.lane.b32.xlu0 %v1276, 32
        %v1347 = vpop.permute.xlu0 %1346
        %1348 = vrot.lane.b32.xlu0 %v1279, 32
        %v1349 = vpop.permute.xlu0 %1348
        %1350 = vrot.lane.b32.xlu0 %v1281, 32
        %v1351 = vpop.permute.xlu0 %1350
        %1352 = vrot.lane.b32.xlu0 %v1284, 32
        %v1353 = vpop.permute.xlu0 %1352
        %1354 = vrot.lane.b32.xlu0 %v1286, 32
        %v1355 = vpop.permute.xlu0 %1354
        %1356 = vrot.lane.b32.xlu0 %v1289, 32
        %v1357 = vpop.permute.xlu0 %1356
        %1358 = vrot.lane.b32.xlu0 %v1291, 32
        %v1359 = vpop.permute.xlu0 %1358
        %1360 = vrot.lane.b32.xlu0 %v1294, 32
        %v1361 = vpop.permute.xlu0 %1360
        %1362 = vrot.lane.b32.xlu0 %v1296, 32
        %v1363 = vpop.permute.xlu0 %1362
        %1364 = vrot.lane.b32.xlu0 %v1299, 32
        %v1365 = vpop.permute.xlu0 %1364
        %1366 = vrot.lane.b32.xlu0 %v1301, 32
        %v1367 = vpop.permute.xlu0 %1366
        %1368 = vrot.lane.b32.xlu0 %v1304, 32
        %v1369 = vpop.permute.xlu0 %1368
        %1370 = vrot.lane.b32.xlu0 %v1306, 32
        %v1371 = vpop.permute.xlu0 %1370
        %1372 = vrot.lane.b32.xlu0 %v1309, 32
        %v1373 = vpop.permute.xlu0 %1372
        %1374 = vrot.lane.b32.xlu0 %v1311, 32
        %v1375 = vpop.permute.xlu0 %1374
        %v1408 = vsel %vm571, %v604, %v782
        %v1409 = vsel %vm571, %v605, %v784
        %v1410 = vsel %vm571, %v607, %v786
        %v1411 = vsel %vm571, %v608, %v788
        %v1412 = vsel %vm571, %v610, %v790
        %v1413 = vsel %vm571, %v611, %v792
        %v1414 = vsel %vm571, %v613, %v794
        %v1415 = vsel %vm571, %v614, %v796
        %v1416 = vsel %vm571, %v616, %v798
        %v1417 = vsel %vm571, %v617, %v800
        %v1418 = vsel %vm571, %v619, %v802
        %v1419 = vsel %vm571, %v620, %v804
        %v1420 = vsel %vm571, %v622, %v806
        %v1421 = vsel %vm571, %v623, %v808
        %v1422 = vsel %vm571, %v625, %v810
        %v1423 = vsel %vm571, %v626, %v812
        %v1424 = vsel %vm571, %v628, %v814
        %v1425 = vsel %vm571, %v629, %v816
        %v1426 = vsel %vm571, %v631, %v818
        %v1427 = vsel %vm571, %v632, %v820
        %v1428 = vsel %vm571, %v634, %v822
        %v1429 = vsel %vm571, %v635, %v824
        %v1430 = vsel %vm571, %v637, %v826
        %v1431 = vsel %vm571, %v638, %v828
        %v1432 = vsel %vm571, %v640, %v830
        %v1433 = vsel %vm571, %v641, %v832
        %v1434 = vsel %vm571, %v643, %v834
        %v1435 = vsel %vm571, %v644, %v836
        %v1436 = vsel %vm571, %v646, %v838
        %v1437 = vsel %vm571, %v647, %v840
        %v1438 = vsel %vm571, %v649, %v842
        %v1439 = vsel %vm571, %v650, %v844
        %vm1440 = vcmask 130048
        %v1441 = vsel %vm1440, %v1408, %v959
        %v1442 = vsel %vm1440, %v1409, %v961
        %v1443 = vsel %vm1440, %v1410, %v963
        %v1444 = vsel %vm1440, %v1411, %v965
        %v1445 = vsel %vm1440, %v1412, %v967
        %v1446 = vsel %vm1440, %v1413, %v969
        %v1447 = vsel %vm1440, %v1414, %v971
        %v1448 = vsel %vm1440, %v1415, %v973
        %v1449 = vsel %vm1440, %v1416, %v975
        %v1450 = vsel %vm1440, %v1417, %v977
        %v1451 = vsel %vm1440, %v1418, %v979
        %v1452 = vsel %vm1440, %v1419, %v981
        %v1453 = vsel %vm1440, %v1420, %v983
        %v1454 = vsel %vm1440, %v1421, %v985
        %v1455 = vsel %vm1440, %v1422, %v987
        %v1456 = vsel %vm1440, %v1423, %v989
        %v1457 = vsel %vm1440, %v1424, %v991
        %v1458 = vsel %vm1440, %v1425, %v993
        %v1459 = vsel %vm1440, %v1426, %v995
        %v1460 = vsel %vm1440, %v1427, %v997
        %v1461 = vsel %vm1440, %v1428, %v999
        %v1462 = vsel %vm1440, %v1429, %v1001
        %v1463 = vsel %vm1440, %v1430, %v1003
        %v1464 = vsel %vm1440, %v1431, %v1005
        %v1465 = vsel %vm1440, %v1432, %v1007
        %v1466 = vsel %vm1440, %v1433, %v1009
        %v1467 = vsel %vm1440, %v1434, %v1011
        %v1468 = vsel %vm1440, %v1435, %v1013
        %v1469 = vsel %vm1440, %v1436, %v1015
        %v1470 = vsel %vm1440, %v1437, %v1017
        %v1471 = vsel %vm1440, %v1438, %v1019
        %v1472 = vsel %vm1440, %v1439, %v1021
        %vm1473 = vcmask 195584
        %v1474 = vsel %vm1473, %v1441, %v1136
        %v1475 = vsel %vm1473, %v1442, %v1138
        %v1476 = vsel %vm1473, %v1443, %v1140
        %v1477 = vsel %vm1473, %v1444, %v1142
        %v1478 = vsel %vm1473, %v1445, %v1144
        %v1479 = vsel %vm1473, %v1446, %v1146
        %v1480 = vsel %vm1473, %v1447, %v1148
        %v1481 = vsel %vm1473, %v1448, %v1150
        %v1482 = vsel %vm1473, %v1449, %v1152
        %v1483 = vsel %vm1473, %v1450, %v1154
        %v1484 = vsel %vm1473, %v1451, %v1156
        %v1485 = vsel %vm1473, %v1452, %v1158
        %v1486 = vsel %vm1473, %v1453, %v1160
        %v1487 = vsel %vm1473, %v1454, %v1162
        %v1488 = vsel %vm1473, %v1455, %v1164
        %v1489 = vsel %vm1473, %v1456, %v1166
        %v1490 = vsel %vm1473, %v1457, %v1168
        %v1491 = vsel %vm1473, %v1458, %v1170
        %v1492 = vsel %vm1473, %v1459, %v1172
        %v1493 = vsel %vm1473, %v1460, %v1174
        %v1494 = vsel %vm1473, %v1461, %v1176
        %v1495 = vsel %vm1473, %v1462, %v1178
        %v1496 = vsel %vm1473, %v1463, %v1180
        %v1497 = vsel %vm1473, %v1464, %v1182
        %v1498 = vsel %vm1473, %v1465, %v1184
        %v1499 = vsel %vm1473, %v1466, %v1186
        %v1500 = vsel %vm1473, %v1467, %v1188
        %v1501 = vsel %vm1473, %v1468, %v1190
        %v1502 = vsel %vm1473, %v1469, %v1192
        %v1503 = vsel %vm1473, %v1470, %v1194
        %v1504 = vsel %vm1473, %v1471, %v1196
        %v1505 = vsel %vm1473, %v1472, %v1198
        %vm1506 = vcmask 261120
        %v1507 = vsel %vm1506, %v1474, %v1313
        %v1508 = vsel %vm1506, %v1475, %v1315
        %v1509 = vsel %vm1506, %v1476, %v1317
        %v1510 = vsel %vm1506, %v1477, %v1319
        %v1511 = vsel %vm1506, %v1478, %v1321
        %v1512 = vsel %vm1506, %v1479, %v1323
        %v1513 = vsel %vm1506, %v1480, %v1325
        %v1514 = vsel %vm1506, %v1481, %v1327
        %v1515 = vsel %vm1506, %v1482, %v1329
        %v1516 = vsel %vm1506, %v1483, %v1331
        %v1517 = vsel %vm1506, %v1484, %v1333
        %v1518 = vsel %vm1506, %v1485, %v1335
        %v1519 = vsel %vm1506, %v1486, %v1337
        %v1520 = vsel %vm1506, %v1487, %v1339
        %v1521 = vsel %vm1506, %v1488, %v1341
        %v1522 = vsel %vm1506, %v1489, %v1343
        %v1523 = vsel %vm1506, %v1490, %v1345
        %v1524 = vsel %vm1506, %v1491, %v1347
        %v1525 = vsel %vm1506, %v1492, %v1349
        %v1526 = vsel %vm1506, %v1493, %v1351
        %v1527 = vsel %vm1506, %v1494, %v1353
        %v1528 = vsel %vm1506, %v1495, %v1355
        %v1529 = vsel %vm1506, %v1496, %v1357
        %v1530 = vsel %vm1506, %v1497, %v1359
        %v1531 = vsel %vm1506, %v1498, %v1361
        %v1532 = vsel %vm1506, %v1499, %v1363
        %v1533 = vsel %vm1506, %v1500, %v1365
        %v1534 = vsel %vm1506, %v1501, %v1367
        %v1535 = vsel %vm1506, %v1502, %v1369
        %v1536 = vsel %vm1506, %v1503, %v1371
        %v1537 = vsel %vm1506, %v1504, %v1373
        %v1538 = vsel %vm1506, %v1505, %v1375
        %vm1539 = vcmask 326656
        %1540 = vst.msk [vmem:[#allocation3] sm:$0xff] %vm1539, 0.0
        %1541 = vst.msk [vmem:[#allocation3 + $0x8] sm:$0xff] %vm1539, 0.0
        %1542 = vst.msk [vmem:[#allocation3 + $0x10] sm:$0xff] %vm1539, 0.0
        %1543 = vst.msk [vmem:[#allocation3 + $0x18] sm:$0xff] %vm1539, 0.0
        %s1544 = scalar_lea.vmem [#allocation3], 288
        %1545 = vst.msk [vmem:[%s1544] sm:$0xff] %vm1539, 0.0
        %1546 = vst.msk [vmem:[%s1544 + $0x8] sm:$0xff] %vm1539, 0.0
        %1547 = vst.msk [vmem:[%s1544 + $0x10] sm:$0xff] %vm1539, 0.0
        %1548 = vst.msk [vmem:[%s1544 + $0x18] sm:$0xff] %vm1539, 0.0
        %s1549 = scalar_lea.vmem [#allocation3], 32
        %1550 = vst.msk [vmem:[%s1549] sm:$0xff] %vm1539, %v1507
        %1551 = vst.msk [vmem:[%s1549 + $0x8] sm:$0xff] %vm1539, %v1508
        %1552 = vst.msk [vmem:[%s1549 + $0x10] sm:$0xff] %vm1539, %v1509
        %1553 = vst.msk [vmem:[%s1549 + $0x18] sm:$0xff] %vm1539, %v1510
        %1554 = vst.msk [vmem:[%s1549 + $0x20] sm:$0xff] %vm1539, %v1511
        %1555 = vst.msk [vmem:[%s1549 + $0x28] sm:$0xff] %vm1539, %v1512
        %1556 = vst.msk [vmem:[%s1549 + $0x30] sm:$0xff] %vm1539, %v1513
        %1557 = vst.msk [vmem:[%s1549 + $0x38] sm:$0xff] %vm1539, %v1514
        %1558 = vst.msk [vmem:[%s1549 + $0x40] sm:$0xff] %vm1539, %v1515
        %1559 = vst.msk [vmem:[%s1549 + $0x48] sm:$0xff] %vm1539, %v1516
        %1560 = vst.msk [vmem:[%s1549 + $0x50] sm:$0xff] %vm1539, %v1517
        %1561 = vst.msk [vmem:[%s1549 + $0x58] sm:$0xff] %vm1539, %v1518
        %1562 = vst.msk [vmem:[%s1549 + $0x60] sm:$0xff] %vm1539, %v1519
        %1563 = vst.msk [vmem:[%s1549 + $0x68] sm:$0xff] %vm1539, %v1520
        %1564 = vst.msk [vmem:[%s1549 + $0x70] sm:$0xff] %vm1539, %v1521
        %1565 = vst.msk [vmem:[%s1549 + $0x78] sm:$0xff] %vm1539, %v1522
        %1566 = vst.msk [vmem:[%s1549 + $0x80] sm:$0xff] %vm1539, %v1523
        %1567 = vst.msk [vmem:[%s1549 + $0x88] sm:$0xff] %vm1539, %v1524
        %1568 = vst.msk [vmem:[%s1549 + $0x90] sm:$0xff] %vm1539, %v1525
        %1569 = vst.msk [vmem:[%s1549 + $0x98] sm:$0xff] %vm1539, %v1526
        %1570 = vst.msk [vmem:[%s1549 + $0xa0] sm:$0xff] %vm1539, %v1527
        %1571 = vst.msk [vmem:[%s1549 + $0xa8] sm:$0xff] %vm1539, %v1528
        %1572 = vst.msk [vmem:[%s1549 + $0xb0] sm:$0xff] %vm1539, %v1529
        %1573 = vst.msk [vmem:[%s1549 + $0xb8] sm:$0xff] %vm1539, %v1530
        %1574 = vst.msk [vmem:[%s1549 + $0xc0] sm:$0xff] %vm1539, %v1531
        %1575 = vst.msk [vmem:[%s1549 + $0xc8] sm:$0xff] %vm1539, %v1532
        %1576 = vst.msk [vmem:[%s1549 + $0xd0] sm:$0xff] %vm1539, %v1533
        %1577 = vst.msk [vmem:[%s1549 + $0xd8] sm:$0xff] %vm1539, %v1534
        %1578 = vst.msk [vmem:[%s1549 + $0xe0] sm:$0xff] %vm1539, %v1535
        %1579 = vst.msk [vmem:[%s1549 + $0xe8] sm:$0xff] %vm1539, %v1536
        %1580 = vst.msk [vmem:[%s1549 + $0xf0] sm:$0xff] %vm1539, %v1537
        %1581 = vst.msk [vmem:[%s1549 + $0xf8] sm:$0xff] %vm1539, %v1538
      $region48: #{gen_res_blk_forward.7} parent=43 // pred_fallthru
        _
      %v1582 = vld [vmem:[#allocation3] sm:$0xff]
      %v1583 = vld [vmem:[#allocation3 + $0x8] sm:$0xff]
      %v1584 = vld [vmem:[#allocation3 + $0x10] sm:$0xff]
      %v1585 = vld [vmem:[#allocation3 + $0x18] sm:$0xff]
      %v1586 = vld [vmem:[#allocation3 + $0x20] sm:$0xff]
      %v1587 = vld [vmem:[#allocation3 + $0x28] sm:$0xff]
      %v1588 = vld [vmem:[#allocation3 + $0x30] sm:$0xff]
      %v1589 = vld [vmem:[#allocation3 + $0x38] sm:$0xff]
      %v1590 = vld [vmem:[#allocation3 + $0x40] sm:$0xff]
      %v1591 = vld [vmem:[#allocation3 + $0x48] sm:$0xff]
      %v1592 = vld [vmem:[#allocation3 + $0x50] sm:$0xff]
      %v1593 = vld [vmem:[#allocation3 + $0x58] sm:$0xff]
      %v1594 = vld [vmem:[#allocation3 + $0x60] sm:$0xff]
      %v1595 = vld [vmem:[#allocation3 + $0x68] sm:$0xff]
      %v1596 = vld [vmem:[#allocation3 + $0x70] sm:$0xff]
      %v1597 = vld [vmem:[#allocation3 + $0x78] sm:$0xff]
      %v1598 = vld [vmem:[#allocation3 + $0x80] sm:$0xff]
      %v1599 = vld [vmem:[#allocation3 + $0x88] sm:$0xff]
      %v1600 = vld [vmem:[#allocation3 + $0x90] sm:$0xff]
      %v1601 = vld [vmem:[#allocation3 + $0x98] sm:$0xff]
      %v1602 = vld [vmem:[#allocation3 + $0xa0] sm:$0xff]
      %v1603 = vld [vmem:[#allocation3 + $0xa8] sm:$0xff]
      %v1604 = vld [vmem:[#allocation3 + $0xb0] sm:$0xff]
      %v1605 = vld [vmem:[#allocation3 + $0xb8] sm:$0xff]
      %v1606 = vld [vmem:[#allocation3 + $0xc0] sm:$0xff]
      %v1607 = vld [vmem:[#allocation3 + $0xc8] sm:$0xff]
      %v1608 = vld [vmem:[#allocation3 + $0xd0] sm:$0xff]
      %v1609 = vld [vmem:[#allocation3 + $0xd8] sm:$0xff]
      %v1610 = vld [vmem:[#allocation3 + $0xe0] sm:$0xff]
      %v1611 = vld [vmem:[#allocation3 + $0xe8] sm:$0xff]
      %v1612 = vld [vmem:[#allocation3 + $0xf0] sm:$0xff]
      %v1613 = vld [vmem:[#allocation3 + $0xf8] sm:$0xff]
      %v1614 = vld [vmem:[%s314] sm:$0xff]
      %v1615 = vld [vmem:[%s314 + $0x8] sm:$0xff]
      %v1616 = vld [vmem:[%s314 + $0x10] sm:$0xff]
      %v1617 = vld [vmem:[%s314 + $0x18] sm:$0xff]
      %v1618 = vld [vmem:[%s314 + $0x20] sm:$0xff]
      %s1619 = scalar_lea.vmem [#allocation3], 16
      %v1620 = vld [vmem:[%s1619] sm:$0xff]
      %v1621 = vld [vmem:[%s1619 + $0x8] sm:$0xff]
      %v1622 = vld [vmem:[%s1619 + $0x10] sm:$0xff]
      %v1623 = vld [vmem:[%s1619 + $0x18] sm:$0xff]
      %v1624 = vld [vmem:[%s1619 + $0x20] sm:$0xff]
      %v1625 = vld [vmem:[%s1619 + $0x28] sm:$0xff]
      %v1626 = vld [vmem:[%s1619 + $0x30] sm:$0xff]
      %v1627 = vld [vmem:[%s1619 + $0x38] sm:$0xff]
      %v1628 = vld [vmem:[%s1619 + $0x40] sm:$0xff]
      %v1629 = vld [vmem:[%s1619 + $0x48] sm:$0xff]
      %v1630 = vld [vmem:[%s1619 + $0x50] sm:$0xff]
      %v1631 = vld [vmem:[%s1619 + $0x58] sm:$0xff]
      %v1632 = vld [vmem:[%s1619 + $0x60] sm:$0xff]
      %v1633 = vld [vmem:[%s1619 + $0x68] sm:$0xff]
      %v1634 = vld [vmem:[%s1619 + $0x70] sm:$0xff]
      %v1635 = vld [vmem:[%s1619 + $0x78] sm:$0xff]
      %v1636 = vld [vmem:[%s1619 + $0x80] sm:$0xff]
      %v1637 = vld [vmem:[%s1619 + $0x88] sm:$0xff]
      %v1638 = vld [vmem:[%s1619 + $0x90] sm:$0xff]
      %v1639 = vld [vmem:[%s1619 + $0x98] sm:$0xff]
      %v1640 = vld [vmem:[%s1619 + $0xa0] sm:$0xff]
      %v1641 = vld [vmem:[%s1619 + $0xa8] sm:$0xff]
      %v1642 = vld [vmem:[%s1619 + $0xb0] sm:$0xff]
      %v1643 = vld [vmem:[%s1619 + $0xb8] sm:$0xff]
      %v1644 = vld [vmem:[%s1619 + $0xc0] sm:$0xff]
      %v1645 = vld [vmem:[%s1619 + $0xc8] sm:$0xff]
      %v1646 = vld [vmem:[%s1619 + $0xd0] sm:$0xff]
      %v1647 = vld [vmem:[%s1619 + $0xd8] sm:$0xff]
      %v1648 = vld [vmem:[%s1619 + $0xe0] sm:$0xff]
      %v1649 = vld [vmem:[%s1619 + $0xe8] sm:$0xff]
      %v1650 = vld [vmem:[%s1619 + $0xf0] sm:$0xff]
      %v1651 = vld [vmem:[%s1619 + $0xf8] sm:$0xff]
      %s1652 = scalar_lea.vmem %s314, 40
      %v1653 = vld [vmem:[%s1652] sm:$0xff]
      %v1654 = vld [vmem:[%s1652 + $0x8] sm:$0xff]
      %v1655 = vld [vmem:[%s1652 + $0x10] sm:$0xff]
      %v1656 = vld [vmem:[%s1652 + $0x18] sm:$0xff]
      %v1657 = vld [vmem:[%s1652 + $0x20] sm:$0xff]
      %vm1658 = vcmask 326656
      %v1660 = vsel %vm1658, %v1620, 0
      %v1663 = vsel %vm1658, %v1621, 0
      %v1666 = vsel %vm1658, %v1622, 0
      %v1669 = vsel %vm1658, %v1623, 0
      %v1672 = vsel %vm1658, %v1624, 0
      %v1675 = vsel %vm1658, %v1625, 0
      %v1678 = vsel %vm1658, %v1626, 0
      %v1681 = vsel %vm1658, %v1627, 0
      %v1684 = vsel %vm1658, %v1628, 0
      %v1687 = vsel %vm1658, %v1629, 0
      %v1690 = vsel %vm1658, %v1630, 0
      %v1693 = vsel %vm1658, %v1631, 0
      %v1696 = vsel %vm1658, %v1632, 0
      %v1699 = vsel %vm1658, %v1633, 0
      %v1702 = vsel %vm1658, %v1634, 0
      %v1705 = vsel %vm1658, %v1635, 0
      %v1708 = vsel %vm1658, %v1636, 0
      %v1711 = vsel %vm1658, %v1637, 0
      %v1714 = vsel %vm1658, %v1638, 0
      %v1717 = vsel %vm1658, %v1639, 0
      %v1720 = vsel %vm1658, %v1640, 0
      %v1723 = vsel %vm1658, %v1641, 0
      %v1726 = vsel %vm1658, %v1642, 0
      %v1729 = vsel %vm1658, %v1643, 0
      %v1732 = vsel %vm1658, %v1644, 0
      %v1735 = vsel %vm1658, %v1645, 0
      %v1738 = vsel %vm1658, %v1646, 0
      %v1741 = vsel %vm1658, %v1647, 0
      %v1744 = vsel %vm1658, %v1648, 0
      %v1747 = vsel %vm1658, %v1649, 0
      %v1750 = vsel %vm1658, %v1650, 0
      %v1753 = vsel %vm1658, %v1651, 0
      %1755 = vmatpush.msra.mxu0 0.0
      %1756 = vmatpush.msra.mxu0 0.0
      %1757 = vmatpush.msra.mxu0 0.0
      %1758 = vmatpush.msra.mxu0 0.0
      %1759 = vmatpush.msra.mxu0 0.0
      %1760 = vmatpush.msra.mxu0 0.0
      %1761 = vmatpush.msra.mxu0 0.0
      %1762 = vmatpush.msra.mxu0 0.0
      %1763 = vmatpush.msra.mxu0 0.0
      %1764 = vmatpush.msra.mxu0 0.0
      %1765 = vmatpush.msra.mxu0 0.0
      %1766 = vmatpush.msra.mxu0 %v1657
      %1767 = vmatpush.msra.mxu0 %v1656
      %1768 = vmatpush.msra.mxu0 %v1655
      %1769 = vmatpush.msra.mxu0 %v1654
      %1770 = vmatpush.msra.mxu0 %v1653
      %1771 = vmatmul.f32.gmra.mxu0 %v1660
      %v1772 = vpop.f32.mrf.mxu0
      %v1773 = vadd.f32 0.0, %v1772
      %1774 = vmatmul.f32.gmra.mxu0 %v1663
      %v1775 = vpop.f32.mrf.mxu0
      %v1776 = vadd.f32 0.0, %v1775
      %1777 = vmatmul.f32.gmra.mxu0 %v1666
      %v1778 = vpop.f32.mrf.mxu0
      %v1779 = vadd.f32 0.0, %v1778
      %1780 = vmatmul.f32.gmra.mxu0 %v1669
      %v1781 = vpop.f32.mrf.mxu0
      %v1782 = vadd.f32 0.0, %v1781
      %1783 = vmatmul.f32.gmra.mxu0 %v1672
      %v1784 = vpop.f32.mrf.mxu0
      %v1785 = vadd.f32 0.0, %v1784
      %1786 = vmatmul.f32.gmra.mxu0 %v1675
      %v1787 = vpop.f32.mrf.mxu0
      %v1788 = vadd.f32 0.0, %v1787
      %1789 = vmatmul.f32.gmra.mxu0 %v1678
      %v1790 = vpop.f32.mrf.mxu0
      %v1791 = vadd.f32 0.0, %v1790
      %1792 = vmatmul.f32.gmra.mxu0 %v1681
      %v1793 = vpop.f32.mrf.mxu0
      %v1794 = vadd.f32 0.0, %v1793
      %1795 = vmatmul.f32.gmra.mxu0 %v1684
      %v1796 = vpop.f32.mrf.mxu0
      %v1797 = vadd.f32 0.0, %v1796
      %1798 = vmatmul.f32.gmra.mxu0 %v1687
      %v1799 = vpop.f32.mrf.mxu0
      %v1800 = vadd.f32 0.0, %v1799
      %1801 = vmatmul.f32.gmra.mxu0 %v1690
      %v1802 = vpop.f32.mrf.mxu0
      %v1803 = vadd.f32 0.0, %v1802
      %1804 = vmatmul.f32.gmra.mxu0 %v1693
      %v1805 = vpop.f32.mrf.mxu0
      %v1806 = vadd.f32 0.0, %v1805
      %1807 = vmatmul.f32.gmra.mxu0 %v1696
      %v1808 = vpop.f32.mrf.mxu0
      %v1809 = vadd.f32 0.0, %v1808
      %1810 = vmatmul.f32.gmra.mxu0 %v1699
      %v1811 = vpop.f32.mrf.mxu0
      %v1812 = vadd.f32 0.0, %v1811
      %1813 = vmatmul.f32.gmra.mxu0 %v1702
      %v1814 = vpop.f32.mrf.mxu0
      %v1815 = vadd.f32 0.0, %v1814
      %1816 = vmatmul.f32.gmra.mxu0 %v1705
      %v1817 = vpop.f32.mrf.mxu0
      %v1818 = vadd.f32 0.0, %v1817
      %1819 = vmatmul.f32.gmra.mxu0 %v1708
      %v1820 = vpop.f32.mrf.mxu0
      %v1821 = vadd.f32 0.0, %v1820
      %1822 = vmatmul.f32.gmra.mxu0 %v1711
      %v1823 = vpop.f32.mrf.mxu0
      %v1824 = vadd.f32 0.0, %v1823
      %1825 = vmatmul.f32.gmra.mxu0 %v1714
      %v1826 = vpop.f32.mrf.mxu0
      %v1827 = vadd.f32 0.0, %v1826
      %1828 = vmatmul.f32.gmra.mxu0 %v1717
      %v1829 = vpop.f32.mrf.mxu0
      %v1830 = vadd.f32 0.0, %v1829
      %1831 = vmatmul.f32.gmra.mxu0 %v1720
      %v1832 = vpop.f32.mrf.mxu0
      %v1833 = vadd.f32 0.0, %v1832
      %1834 = vmatmul.f32.gmra.mxu0 %v1723
      %v1835 = vpop.f32.mrf.mxu0
      %v1836 = vadd.f32 0.0, %v1835
      %1837 = vmatmul.f32.gmra.mxu0 %v1726
      %v1838 = vpop.f32.mrf.mxu0
      %v1839 = vadd.f32 0.0, %v1838
      %1840 = vmatmul.f32.gmra.mxu0 %v1729
      %v1841 = vpop.f32.mrf.mxu0
      %v1842 = vadd.f32 0.0, %v1841
      %1843 = vmatmul.f32.gmra.mxu0 %v1732
      %v1844 = vpop.f32.mrf.mxu0
      %v1845 = vadd.f32 0.0, %v1844
      %1846 = vmatmul.f32.gmra.mxu0 %v1735
      %v1847 = vpop.f32.mrf.mxu0
      %v1848 = vadd.f32 0.0, %v1847
      %1849 = vmatmul.f32.gmra.mxu0 %v1738
      %v1850 = vpop.f32.mrf.mxu0
      %v1851 = vadd.f32 0.0, %v1850
      %1852 = vmatmul.f32.gmra.mxu0 %v1741
      %v1853 = vpop.f32.mrf.mxu0
      %v1854 = vadd.f32 0.0, %v1853
      %1855 = vmatmul.f32.gmra.mxu0 %v1744
      %v1856 = vpop.f32.mrf.mxu0
      %v1857 = vadd.f32 0.0, %v1856
      %1858 = vmatmul.f32.gmra.mxu0 %v1747
      %v1859 = vpop.f32.mrf.mxu0
      %v1860 = vadd.f32 0.0, %v1859
      %1861 = vmatmul.f32.gmra.mxu0 %v1750
      %v1862 = vpop.f32.mrf.mxu0
      %v1863 = vadd.f32 0.0, %v1862
      %1864 = vmatmul.f32.gmra.mxu0 %v1753
      %v1865 = vpop.f32.mrf.mxu0
      %v1866 = vadd.f32 0.0, %v1865
      %1867 = vdwg.mxu0
      %v1869 = vsel %vm1658, %v1582, 0
      %v1872 = vsel %vm1658, %v1583, 0
      %v1875 = vsel %vm1658, %v1584, 0
      %v1878 = vsel %vm1658, %v1585, 0
      %v1881 = vsel %vm1658, %v1586, 0
      %v1884 = vsel %vm1658, %v1587, 0
      %v1887 = vsel %vm1658, %v1588, 0
      %v1890 = vsel %vm1658, %v1589, 0
      %v1893 = vsel %vm1658, %v1590, 0
      %v1896 = vsel %vm1658, %v1591, 0
      %v1899 = vsel %vm1658, %v1592, 0
      %v1902 = vsel %vm1658, %v1593, 0
      %v1905 = vsel %vm1658, %v1594, 0
      %v1908 = vsel %vm1658, %v1595, 0
      %v1911 = vsel %vm1658, %v1596, 0
      %v1914 = vsel %vm1658, %v1597, 0
      %v1917 = vsel %vm1658, %v1598, 0
      %v1920 = vsel %vm1658, %v1599, 0
      %v1923 = vsel %vm1658, %v1600, 0
      %v1926 = vsel %vm1658, %v1601, 0
      %v1929 = vsel %vm1658, %v1602, 0
      %v1932 = vsel %vm1658, %v1603, 0
      %v1935 = vsel %vm1658, %v1604, 0
      %v1938 = vsel %vm1658, %v1605, 0
      %v1941 = vsel %vm1658, %v1606, 0
      %v1944 = vsel %vm1658, %v1607, 0
      %v1947 = vsel %vm1658, %v1608, 0
      %v1950 = vsel %vm1658, %v1609, 0
      %v1953 = vsel %vm1658, %v1610, 0
      %v1956 = vsel %vm1658, %v1611, 0
      %v1959 = vsel %vm1658, %v1612, 0
      %v1962 = vsel %vm1658, %v1613, 0
      %1964 = vmatpush.msra.mxu0 0.0
      %1965 = vmatpush.msra.mxu0 0.0
      %1966 = vmatpush.msra.mxu0 0.0
      %1967 = vmatpush.msra.mxu0 0.0
      %1968 = vmatpush.msra.mxu0 0.0
      %1969 = vmatpush.msra.mxu0 0.0
      %1970 = vmatpush.msra.mxu0 0.0
      %1971 = vmatpush.msra.mxu0 0.0
      %1972 = vmatpush.msra.mxu0 0.0
      %1973 = vmatpush.msra.mxu0 0.0
      %1974 = vmatpush.msra.mxu0 0.0
      %1975 = vmatpush.msra.mxu0 %v1618
      %1976 = vmatpush.msra.mxu0 %v1617
      %1977 = vmatpush.msra.mxu0 %v1616
      %1978 = vmatpush.msra.mxu0 %v1615
      %1979 = vmatpush.msra.mxu0 %v1614
      %1980 = vmatmul.f32.gmra.mxu0 %v1869
      %v1981 = vpop.f32.mrf.mxu0
      %v1982 = vadd.f32 %v1773, %v1981
      %1983 = vmatmul.f32.gmra.mxu0 %v1872
      %v1984 = vpop.f32.mrf.mxu0
      %v1985 = vadd.f32 %v1776, %v1984
      %1986 = vmatmul.f32.gmra.mxu0 %v1875
      %v1987 = vpop.f32.mrf.mxu0
      %v1988 = vadd.f32 %v1779, %v1987
      %1989 = vmatmul.f32.gmra.mxu0 %v1878
      %v1990 = vpop.f32.mrf.mxu0
      %v1991 = vadd.f32 %v1782, %v1990
      %1992 = vmatmul.f32.gmra.mxu0 %v1881
      %v1993 = vpop.f32.mrf.mxu0
      %v1994 = vadd.f32 %v1785, %v1993
      %1995 = vmatmul.f32.gmra.mxu0 %v1884
      %v1996 = vpop.f32.mrf.mxu0
      %v1997 = vadd.f32 %v1788, %v1996
      %1998 = vmatmul.f32.gmra.mxu0 %v1887
      %v1999 = vpop.f32.mrf.mxu0
      %v2000 = vadd.f32 %v1791, %v1999
      %2001 = vmatmul.f32.gmra.mxu0 %v1890
      %v2002 = vpop.f32.mrf.mxu0
      %v2003 = vadd.f32 %v1794, %v2002
      %2004 = vmatmul.f32.gmra.mxu0 %v1893
      %v2005 = vpop.f32.mrf.mxu0
      %v2006 = vadd.f32 %v1797, %v2005
      %2007 = vmatmul.f32.gmra.mxu0 %v1896
      %v2008 = vpop.f32.mrf.mxu0
      %v2009 = vadd.f32 %v1800, %v2008
      %2010 = vmatmul.f32.gmra.mxu0 %v1899
      %v2011 = vpop.f32.mrf.mxu0
      %v2012 = vadd.f32 %v1803, %v2011
      %2013 = vmatmul.f32.gmra.mxu0 %v1902
      %v2014 = vpop.f32.mrf.mxu0
      %v2015 = vadd.f32 %v1806, %v2014
      %2016 = vmatmul.f32.gmra.mxu0 %v1905
      %v2017 = vpop.f32.mrf.mxu0
      %v2018 = vadd.f32 %v1809, %v2017
      %2019 = vmatmul.f32.gmra.mxu0 %v1908
      %v2020 = vpop.f32.mrf.mxu0
      %v2021 = vadd.f32 %v1812, %v2020
      %2022 = vmatmul.f32.gmra.mxu0 %v1911
      %v2023 = vpop.f32.mrf.mxu0
      %v2024 = vadd.f32 %v1815, %v2023
      %2025 = vmatmul.f32.gmra.mxu0 %v1914
      %v2026 = vpop.f32.mrf.mxu0
      %v2027 = vadd.f32 %v1818, %v2026
      %2028 = vmatmul.f32.gmra.mxu0 %v1917
      %v2029 = vpop.f32.mrf.mxu0
      %v2030 = vadd.f32 %v1821, %v2029
      %2031 = vmatmul.f32.gmra.mxu0 %v1920
      %v2032 = vpop.f32.mrf.mxu0
      %v2033 = vadd.f32 %v1824, %v2032
      %2034 = vmatmul.f32.gmra.mxu0 %v1923
      %v2035 = vpop.f32.mrf.mxu0
      %v2036 = vadd.f32 %v1827, %v2035
      %2037 = vmatmul.f32.gmra.mxu0 %v1926
      %v2038 = vpop.f32.mrf.mxu0
      %v2039 = vadd.f32 %v1830, %v2038
      %2040 = vmatmul.f32.gmra.mxu0 %v1929
      %v2041 = vpop.f32.mrf.mxu0
      %v2042 = vadd.f32 %v1833, %v2041
      %2043 = vmatmul.f32.gmra.mxu0 %v1932
      %v2044 = vpop.f32.mrf.mxu0
      %v2045 = vadd.f32 %v1836, %v2044
      %2046 = vmatmul.f32.gmra.mxu0 %v1935
      %v2047 = vpop.f32.mrf.mxu0
      %v2048 = vadd.f32 %v1839, %v2047
      %2049 = vmatmul.f32.gmra.mxu0 %v1938
      %v2050 = vpop.f32.mrf.mxu0
      %v2051 = vadd.f32 %v1842, %v2050
      %2052 = vmatmul.f32.gmra.mxu0 %v1941
      %v2053 = vpop.f32.mrf.mxu0
      %v2054 = vadd.f32 %v1845, %v2053
      %2055 = vmatmul.f32.gmra.mxu0 %v1944
      %v2056 = vpop.f32.mrf.mxu0
      %v2057 = vadd.f32 %v1848, %v2056
      %2058 = vmatmul.f32.gmra.mxu0 %v1947
      %v2059 = vpop.f32.mrf.mxu0
      %v2060 = vadd.f32 %v1851, %v2059
      %2061 = vmatmul.f32.gmra.mxu0 %v1950
      %v2062 = vpop.f32.mrf.mxu0
      %v2063 = vadd.f32 %v1854, %v2062
      %2064 = vmatmul.f32.gmra.mxu0 %v1953
      %v2065 = vpop.f32.mrf.mxu0
      %v2066 = vadd.f32 %v1857, %v2065
      %2067 = vmatmul.f32.gmra.mxu0 %v1956
      %v2068 = vpop.f32.mrf.mxu0
      %v2069 = vadd.f32 %v1860, %v2068
      %2070 = vmatmul.f32.gmra.mxu0 %v1959
      %v2071 = vpop.f32.mrf.mxu0
      %v2072 = vadd.f32 %v1863, %v2071
      %2073 = vmatmul.f32.gmra.mxu0 %v1962
      %v2074 = vpop.f32.mrf.mxu0
      %v2075 = vadd.f32 %v1866, %v2074
      %2076 = vdwg.mxu0
      %s2077 = scalar_lea.vmem [#allocation3], 32
      %v2078 = vld [vmem:[%s2077] sm:$0xff]
      %v2079 = vld [vmem:[%s2077 + $0x8] sm:$0xff]
      %v2080 = vld [vmem:[%s2077 + $0x10] sm:$0xff]
      %v2081 = vld [vmem:[%s2077 + $0x18] sm:$0xff]
      %v2082 = vld [vmem:[%s2077 + $0x20] sm:$0xff]
      %v2083 = vld [vmem:[%s2077 + $0x28] sm:$0xff]
      %v2084 = vld [vmem:[%s2077 + $0x30] sm:$0xff]
      %v2085 = vld [vmem:[%s2077 + $0x38] sm:$0xff]
      %v2086 = vld [vmem:[%s2077 + $0x40] sm:$0xff]
      %v2087 = vld [vmem:[%s2077 + $0x48] sm:$0xff]
      %v2088 = vld [vmem:[%s2077 + $0x50] sm:$0xff]
      %v2089 = vld [vmem:[%s2077 + $0x58] sm:$0xff]
      %v2090 = vld [vmem:[%s2077 + $0x60] sm:$0xff]
      %v2091 = vld [vmem:[%s2077 + $0x68] sm:$0xff]
      %v2092 = vld [vmem:[%s2077 + $0x70] sm:$0xff]
      %v2093 = vld [vmem:[%s2077 + $0x78] sm:$0xff]
      %v2094 = vld [vmem:[%s2077 + $0x80] sm:$0xff]
      %v2095 = vld [vmem:[%s2077 + $0x88] sm:$0xff]
      %v2096 = vld [vmem:[%s2077 + $0x90] sm:$0xff]
      %v2097 = vld [vmem:[%s2077 + $0x98] sm:$0xff]
      %v2098 = vld [vmem:[%s2077 + $0xa0] sm:$0xff]
      %v2099 = vld [vmem:[%s2077 + $0xa8] sm:$0xff]
      %v2100 = vld [vmem:[%s2077 + $0xb0] sm:$0xff]
      %v2101 = vld [vmem:[%s2077 + $0xb8] sm:$0xff]
      %v2102 = vld [vmem:[%s2077 + $0xc0] sm:$0xff]
      %v2103 = vld [vmem:[%s2077 + $0xc8] sm:$0xff]
      %v2104 = vld [vmem:[%s2077 + $0xd0] sm:$0xff]
      %v2105 = vld [vmem:[%s2077 + $0xd8] sm:$0xff]
      %v2106 = vld [vmem:[%s2077 + $0xe0] sm:$0xff]
      %v2107 = vld [vmem:[%s2077 + $0xe8] sm:$0xff]
      %v2108 = vld [vmem:[%s2077 + $0xf0] sm:$0xff]
      %v2109 = vld [vmem:[%s2077 + $0xf8] sm:$0xff]
      %s2110 = scalar_lea.vmem %s314, 80
      %v2111 = vld [vmem:[%s2110] sm:$0xff]
      %v2112 = vld [vmem:[%s2110 + $0x8] sm:$0xff]
      %v2113 = vld [vmem:[%s2110 + $0x10] sm:$0xff]
      %v2114 = vld [vmem:[%s2110 + $0x18] sm:$0xff]
      %v2115 = vld [vmem:[%s2110 + $0x20] sm:$0xff]
      %v2117 = vsel %vm1658, %v2078, 0
      %v2120 = vsel %vm1658, %v2079, 0
      %v2123 = vsel %vm1658, %v2080, 0
      %v2126 = vsel %vm1658, %v2081, 0
      %v2129 = vsel %vm1658, %v2082, 0
      %v2132 = vsel %vm1658, %v2083, 0
      %v2135 = vsel %vm1658, %v2084, 0
      %v2138 = vsel %vm1658, %v2085, 0
      %v2141 = vsel %vm1658, %v2086, 0
      %v2144 = vsel %vm1658, %v2087, 0
      %v2147 = vsel %vm1658, %v2088, 0
      %v2150 = vsel %vm1658, %v2089, 0
      %v2153 = vsel %vm1658, %v2090, 0
      %v2156 = vsel %vm1658, %v2091, 0
      %v2159 = vsel %vm1658, %v2092, 0
      %v2162 = vsel %vm1658, %v2093, 0
      %v2165 = vsel %vm1658, %v2094, 0
      %v2168 = vsel %vm1658, %v2095, 0
      %v2171 = vsel %vm1658, %v2096, 0
      %v2174 = vsel %vm1658, %v2097, 0
      %v2177 = vsel %vm1658, %v2098, 0
      %v2180 = vsel %vm1658, %v2099, 0
      %v2183 = vsel %vm1658, %v2100, 0
      %v2186 = vsel %vm1658, %v2101, 0
      %v2189 = vsel %vm1658, %v2102, 0
      %v2192 = vsel %vm1658, %v2103, 0
      %v2195 = vsel %vm1658, %v2104, 0
      %v2198 = vsel %vm1658, %v2105, 0
      %v2201 = vsel %vm1658, %v2106, 0
      %v2204 = vsel %vm1658, %v2107, 0
      %v2207 = vsel %vm1658, %v2108, 0
      %v2210 = vsel %vm1658, %v2109, 0
      %2212 = vmatpush.msra.mxu0 0.0
      %2213 = vmatpush.msra.mxu0 0.0
      %2214 = vmatpush.msra.mxu0 0.0
      %2215 = vmatpush.msra.mxu0 0.0
      %2216 = vmatpush.msra.mxu0 0.0
      %2217 = vmatpush.msra.mxu0 0.0
      %2218 = vmatpush.msra.mxu0 0.0
      %2219 = vmatpush.msra.mxu0 0.0
      %2220 = vmatpush.msra.mxu0 0.0
      %2221 = vmatpush.msra.mxu0 0.0
      %2222 = vmatpush.msra.mxu0 0.0
      %2223 = vmatpush.msra.mxu0 %v2115
      %2224 = vmatpush.msra.mxu0 %v2114
      %2225 = vmatpush.msra.mxu0 %v2113
      %2226 = vmatpush.msra.mxu0 %v2112
      %2227 = vmatpush.msra.mxu0 %v2111
      %2228 = vmatmul.f32.gmra.mxu0 %v2117
      %v2229 = vpop.f32.mrf.mxu0
      %v2230 = vadd.f32 0.0, %v2229
      %2231 = vmatmul.f32.gmra.mxu0 %v2120
      %v2232 = vpop.f32.mrf.mxu0
      %v2233 = vadd.f32 0.0, %v2232
      %2234 = vmatmul.f32.gmra.mxu0 %v2123
      %v2235 = vpop.f32.mrf.mxu0
      %v2236 = vadd.f32 0.0, %v2235
      %2237 = vmatmul.f32.gmra.mxu0 %v2126
      %v2238 = vpop.f32.mrf.mxu0
      %v2239 = vadd.f32 0.0, %v2238
      %2240 = vmatmul.f32.gmra.mxu0 %v2129
      %v2241 = vpop.f32.mrf.mxu0
      %v2242 = vadd.f32 0.0, %v2241
      %2243 = vmatmul.f32.gmra.mxu0 %v2132
      %v2244 = vpop.f32.mrf.mxu0
      %v2245 = vadd.f32 0.0, %v2244
      %2246 = vmatmul.f32.gmra.mxu0 %v2135
      %v2247 = vpop.f32.mrf.mxu0
      %v2248 = vadd.f32 0.0, %v2247
      %2249 = vmatmul.f32.gmra.mxu0 %v2138
      %v2250 = vpop.f32.mrf.mxu0
      %v2251 = vadd.f32 0.0, %v2250
      %2252 = vmatmul.f32.gmra.mxu0 %v2141
      %v2253 = vpop.f32.mrf.mxu0
      %v2254 = vadd.f32 0.0, %v2253
      %2255 = vmatmul.f32.gmra.mxu0 %v2144
      %v2256 = vpop.f32.mrf.mxu0
      %v2257 = vadd.f32 0.0, %v2256
      %2258 = vmatmul.f32.gmra.mxu0 %v2147
      %v2259 = vpop.f32.mrf.mxu0
      %v2260 = vadd.f32 0.0, %v2259
      %2261 = vmatmul.f32.gmra.mxu0 %v2150
      %v2262 = vpop.f32.mrf.mxu0
      %v2263 = vadd.f32 0.0, %v2262
      %2264 = vmatmul.f32.gmra.mxu0 %v2153
      %v2265 = vpop.f32.mrf.mxu0
      %v2266 = vadd.f32 0.0, %v2265
      %2267 = vmatmul.f32.gmra.mxu0 %v2156
      %v2268 = vpop.f32.mrf.mxu0
      %v2269 = vadd.f32 0.0, %v2268
      %2270 = vmatmul.f32.gmra.mxu0 %v2159
      %v2271 = vpop.f32.mrf.mxu0
      %v2272 = vadd.f32 0.0, %v2271
      %2273 = vmatmul.f32.gmra.mxu0 %v2162
      %v2274 = vpop.f32.mrf.mxu0
      %v2275 = vadd.f32 0.0, %v2274
      %2276 = vmatmul.f32.gmra.mxu0 %v2165
      %v2277 = vpop.f32.mrf.mxu0
      %v2278 = vadd.f32 0.0, %v2277
      %2279 = vmatmul.f32.gmra.mxu0 %v2168
      %v2280 = vpop.f32.mrf.mxu0
      %v2281 = vadd.f32 0.0, %v2280
      %2282 = vmatmul.f32.gmra.mxu0 %v2171
      %v2283 = vpop.f32.mrf.mxu0
      %v2284 = vadd.f32 0.0, %v2283
      %2285 = vmatmul.f32.gmra.mxu0 %v2174
      %v2286 = vpop.f32.mrf.mxu0
      %v2287 = vadd.f32 0.0, %v2286
      %2288 = vmatmul.f32.gmra.mxu0 %v2177
      %v2289 = vpop.f32.mrf.mxu0
      %v2290 = vadd.f32 0.0, %v2289
      %2291 = vmatmul.f32.gmra.mxu0 %v2180
      %v2292 = vpop.f32.mrf.mxu0
      %v2293 = vadd.f32 0.0, %v2292
      %2294 = vmatmul.f32.gmra.mxu0 %v2183
      %v2295 = vpop.f32.mrf.mxu0
      %v2296 = vadd.f32 0.0, %v2295
      %2297 = vmatmul.f32.gmra.mxu0 %v2186
      %v2298 = vpop.f32.mrf.mxu0
      %v2299 = vadd.f32 0.0, %v2298
      %2300 = vmatmul.f32.gmra.mxu0 %v2189
      %v2301 = vpop.f32.mrf.mxu0
      %v2302 = vadd.f32 0.0, %v2301
      %2303 = vmatmul.f32.gmra.mxu0 %v2192
      %v2304 = vpop.f32.mrf.mxu0
      %v2305 = vadd.f32 0.0, %v2304
      %2306 = vmatmul.f32.gmra.mxu0 %v2195
      %v2307 = vpop.f32.mrf.mxu0
      %v2308 = vadd.f32 0.0, %v2307
      %2309 = vmatmul.f32.gmra.mxu0 %v2198
      %v2310 = vpop.f32.mrf.mxu0
      %v2311 = vadd.f32 0.0, %v2310
      %2312 = vmatmul.f32.gmra.mxu0 %v2201
      %v2313 = vpop.f32.mrf.mxu0
      %v2314 = vadd.f32 0.0, %v2313
      %2315 = vmatmul.f32.gmra.mxu0 %v2204
      %v2316 = vpop.f32.mrf.mxu0
      %v2317 = vadd.f32 0.0, %v2316
      %2318 = vmatmul.f32.gmra.mxu0 %v2207
      %v2319 = vpop.f32.mrf.mxu0
      %v2320 = vadd.f32 0.0, %v2319
      %2321 = vmatmul.f32.gmra.mxu0 %v2210
      %v2322 = vpop.f32.mrf.mxu0
      %v2323 = vadd.f32 0.0, %v2322
      %2324 = vdwg.mxu0
      %v2325 = vadd.f32 %v1982, %v2230
      %v2326 = vadd.f32 %v1985, %v2233
      %v2327 = vadd.f32 %v1988, %v2236
      %v2328 = vadd.f32 %v1991, %v2239
      %v2329 = vadd.f32 %v1994, %v2242
      %v2330 = vadd.f32 %v1997, %v2245
      %v2331 = vadd.f32 %v2000, %v2248
      %v2332 = vadd.f32 %v2003, %v2251
      %v2333 = vadd.f32 %v2006, %v2254
      %v2334 = vadd.f32 %v2009, %v2257
      %v2335 = vadd.f32 %v2012, %v2260
      %v2336 = vadd.f32 %v2015, %v2263
      %v2337 = vadd.f32 %v2018, %v2266
      %v2338 = vadd.f32 %v2021, %v2269
      %v2339 = vadd.f32 %v2024, %v2272
      %v2340 = vadd.f32 %v2027, %v2275
      %v2341 = vadd.f32 %v2030, %v2278
      %v2342 = vadd.f32 %v2033, %v2281
      %v2343 = vadd.f32 %v2036, %v2284
      %v2344 = vadd.f32 %v2039, %v2287
      %v2345 = vadd.f32 %v2042, %v2290
      %v2346 = vadd.f32 %v2045, %v2293
      %v2347 = vadd.f32 %v2048, %v2296
      %v2348 = vadd.f32 %v2051, %v2299
      %v2349 = vadd.f32 %v2054, %v2302
      %v2350 = vadd.f32 %v2057, %v2305
      %v2351 = vadd.f32 %v2060, %v2308
      %v2352 = vadd.f32 %v2063, %v2311
      %v2353 = vadd.f32 %v2066, %v2314
      %v2354 = vadd.f32 %v2069, %v2317
      %v2355 = vadd.f32 %v2072, %v2320
      %v2356 = vadd.f32 %v2075, %v2323
      %s2357 = scalar_lea.vmem [#allocation3], 48
      %v2358 = vld [vmem:[%s2357] sm:$0xff]
      %v2359 = vld [vmem:[%s2357 + $0x8] sm:$0xff]
      %v2360 = vld [vmem:[%s2357 + $0x10] sm:$0xff]
      %v2361 = vld [vmem:[%s2357 + $0x18] sm:$0xff]
      %v2362 = vld [vmem:[%s2357 + $0x20] sm:$0xff]
      %v2363 = vld [vmem:[%s2357 + $0x28] sm:$0xff]
      %v2364 = vld [vmem:[%s2357 + $0x30] sm:$0xff]
      %v2365 = vld [vmem:[%s2357 + $0x38] sm:$0xff]
      %v2366 = vld [vmem:[%s2357 + $0x40] sm:$0xff]
      %v2367 = vld [vmem:[%s2357 + $0x48] sm:$0xff]
      %v2368 = vld [vmem:[%s2357 + $0x50] sm:$0xff]
      %v2369 = vld [vmem:[%s2357 + $0x58] sm:$0xff]
      %v2370 = vld [vmem:[%s2357 + $0x60] sm:$0xff]
      %v2371 = vld [vmem:[%s2357 + $0x68] sm:$0xff]
      %v2372 = vld [vmem:[%s2357 + $0x70] sm:$0xff]
      %v2373 = vld [vmem:[%s2357 + $0x78] sm:$0xff]
      %v2374 = vld [vmem:[%s2357 + $0x80] sm:$0xff]
      %v2375 = vld [vmem:[%s2357 + $0x88] sm:$0xff]
      %v2376 = vld [vmem:[%s2357 + $0x90] sm:$0xff]
      %v2377 = vld [vmem:[%s2357 + $0x98] sm:$0xff]
      %v2378 = vld [vmem:[%s2357 + $0xa0] sm:$0xff]
      %v2379 = vld [vmem:[%s2357 + $0xa8] sm:$0xff]
      %v2380 = vld [vmem:[%s2357 + $0xb0] sm:$0xff]
      %v2381 = vld [vmem:[%s2357 + $0xb8] sm:$0xff]
      %v2382 = vld [vmem:[%s2357 + $0xc0] sm:$0xff]
      %v2383 = vld [vmem:[%s2357 + $0xc8] sm:$0xff]
      %v2384 = vld [vmem:[%s2357 + $0xd0] sm:$0xff]
      %v2385 = vld [vmem:[%s2357 + $0xd8] sm:$0xff]
      %v2386 = vld [vmem:[%s2357 + $0xe0] sm:$0xff]
      %v2387 = vld [vmem:[%s2357 + $0xe8] sm:$0xff]
      %v2388 = vld [vmem:[%s2357 + $0xf0] sm:$0xff]
      %v2389 = vld [vmem:[%s2357 + $0xf8] sm:$0xff]
      %s2390 = scalar_lea.vmem %s314, 120
      %v2391 = vld [vmem:[%s2390] sm:$0xff]
      %v2392 = vld [vmem:[%s2390 + $0x8] sm:$0xff]
      %v2393 = vld [vmem:[%s2390 + $0x10] sm:$0xff]
      %v2394 = vld [vmem:[%s2390 + $0x18] sm:$0xff]
      %v2395 = vld [vmem:[%s2390 + $0x20] sm:$0xff]
      %v2397 = vsel %vm1658, %v2358, 0
      %v2400 = vsel %vm1658, %v2359, 0
      %v2403 = vsel %vm1658, %v2360, 0
      %v2406 = vsel %vm1658, %v2361, 0
      %v2409 = vsel %vm1658, %v2362, 0
      %v2412 = vsel %vm1658, %v2363, 0
      %v2415 = vsel %vm1658, %v2364, 0
      %v2418 = vsel %vm1658, %v2365, 0
      %v2421 = vsel %vm1658, %v2366, 0
      %v2424 = vsel %vm1658, %v2367, 0
      %v2427 = vsel %vm1658, %v2368, 0
      %v2430 = vsel %vm1658, %v2369, 0
      %v2433 = vsel %vm1658, %v2370, 0
      %v2436 = vsel %vm1658, %v2371, 0
      %v2439 = vsel %vm1658, %v2372, 0
      %v2442 = vsel %vm1658, %v2373, 0
      %v2445 = vsel %vm1658, %v2374, 0
      %v2448 = vsel %vm1658, %v2375, 0
      %v2451 = vsel %vm1658, %v2376, 0
      %v2454 = vsel %vm1658, %v2377, 0
      %v2457 = vsel %vm1658, %v2378, 0
      %v2460 = vsel %vm1658, %v2379, 0
      %v2463 = vsel %vm1658, %v2380, 0
      %v2466 = vsel %vm1658, %v2381, 0
      %v2469 = vsel %vm1658, %v2382, 0
      %v2472 = vsel %vm1658, %v2383, 0
      %v2475 = vsel %vm1658, %v2384, 0
      %v2478 = vsel %vm1658, %v2385, 0
      %v2481 = vsel %vm1658, %v2386, 0
      %v2484 = vsel %vm1658, %v2387, 0
      %v2487 = vsel %vm1658, %v2388, 0
      %v2490 = vsel %vm1658, %v2389, 0
      %2492 = vmatpush.msra.mxu0 0.0
      %2493 = vmatpush.msra.mxu0 0.0
      %2494 = vmatpush.msra.mxu0 0.0
      %2495 = vmatpush.msra.mxu0 0.0
      %2496 = vmatpush.msra.mxu0 0.0
      %2497 = vmatpush.msra.mxu0 0.0
      %2498 = vmatpush.msra.mxu0 0.0
      %2499 = vmatpush.msra.mxu0 0.0
      %2500 = vmatpush.msra.mxu0 0.0
      %2501 = vmatpush.msra.mxu0 0.0
      %2502 = vmatpush.msra.mxu0 0.0
      %2503 = vmatpush.msra.mxu0 %v2395
      %2504 = vmatpush.msra.mxu0 %v2394
      %2505 = vmatpush.msra.mxu0 %v2393
      %2506 = vmatpush.msra.mxu0 %v2392
      %2507 = vmatpush.msra.mxu0 %v2391
      %2508 = vmatmul.f32.gmra.mxu0 %v2397
      %v2509 = vpop.f32.mrf.mxu0
      %v2510 = vadd.f32 0.0, %v2509
      %2511 = vmatmul.f32.gmra.mxu0 %v2400
      %v2512 = vpop.f32.mrf.mxu0
      %v2513 = vadd.f32 0.0, %v2512
      %2514 = vmatmul.f32.gmra.mxu0 %v2403
      %v2515 = vpop.f32.mrf.mxu0
      %v2516 = vadd.f32 0.0, %v2515
      %2517 = vmatmul.f32.gmra.mxu0 %v2406
      %v2518 = vpop.f32.mrf.mxu0
      %v2519 = vadd.f32 0.0, %v2518
      %2520 = vmatmul.f32.gmra.mxu0 %v2409
      %v2521 = vpop.f32.mrf.mxu0
      %v2522 = vadd.f32 0.0, %v2521
      %2523 = vmatmul.f32.gmra.mxu0 %v2412
      %v2524 = vpop.f32.mrf.mxu0
      %v2525 = vadd.f32 0.0, %v2524
      %2526 = vmatmul.f32.gmra.mxu0 %v2415
      %v2527 = vpop.f32.mrf.mxu0
      %v2528 = vadd.f32 0.0, %v2527
      %2529 = vmatmul.f32.gmra.mxu0 %v2418
      %v2530 = vpop.f32.mrf.mxu0
      %v2531 = vadd.f32 0.0, %v2530
      %2532 = vmatmul.f32.gmra.mxu0 %v2421
      %v2533 = vpop.f32.mrf.mxu0
      %v2534 = vadd.f32 0.0, %v2533
      %2535 = vmatmul.f32.gmra.mxu0 %v2424
      %v2536 = vpop.f32.mrf.mxu0
      %v2537 = vadd.f32 0.0, %v2536
      %2538 = vmatmul.f32.gmra.mxu0 %v2427
      %v2539 = vpop.f32.mrf.mxu0
      %v2540 = vadd.f32 0.0, %v2539
      %2541 = vmatmul.f32.gmra.mxu0 %v2430
      %v2542 = vpop.f32.mrf.mxu0
      %v2543 = vadd.f32 0.0, %v2542
      %2544 = vmatmul.f32.gmra.mxu0 %v2433
      %v2545 = vpop.f32.mrf.mxu0
      %v2546 = vadd.f32 0.0, %v2545
      %2547 = vmatmul.f32.gmra.mxu0 %v2436
      %v2548 = vpop.f32.mrf.mxu0
      %v2549 = vadd.f32 0.0, %v2548
      %2550 = vmatmul.f32.gmra.mxu0 %v2439
      %v2551 = vpop.f32.mrf.mxu0
      %v2552 = vadd.f32 0.0, %v2551
      %2553 = vmatmul.f32.gmra.mxu0 %v2442
      %v2554 = vpop.f32.mrf.mxu0
      %v2555 = vadd.f32 0.0, %v2554
      %2556 = vmatmul.f32.gmra.mxu0 %v2445
      %v2557 = vpop.f32.mrf.mxu0
      %v2558 = vadd.f32 0.0, %v2557
      %2559 = vmatmul.f32.gmra.mxu0 %v2448
      %v2560 = vpop.f32.mrf.mxu0
      %v2561 = vadd.f32 0.0, %v2560
      %2562 = vmatmul.f32.gmra.mxu0 %v2451
      %v2563 = vpop.f32.mrf.mxu0
      %v2564 = vadd.f32 0.0, %v2563
      %2565 = vmatmul.f32.gmra.mxu0 %v2454
      %v2566 = vpop.f32.mrf.mxu0
      %v2567 = vadd.f32 0.0, %v2566
      %2568 = vmatmul.f32.gmra.mxu0 %v2457
      %v2569 = vpop.f32.mrf.mxu0
      %v2570 = vadd.f32 0.0, %v2569
      %2571 = vmatmul.f32.gmra.mxu0 %v2460
      %v2572 = vpop.f32.mrf.mxu0
      %v2573 = vadd.f32 0.0, %v2572
      %2574 = vmatmul.f32.gmra.mxu0 %v2463
      %v2575 = vpop.f32.mrf.mxu0
      %v2576 = vadd.f32 0.0, %v2575
      %2577 = vmatmul.f32.gmra.mxu0 %v2466
      %v2578 = vpop.f32.mrf.mxu0
      %v2579 = vadd.f32 0.0, %v2578
      %2580 = vmatmul.f32.gmra.mxu0 %v2469
      %v2581 = vpop.f32.mrf.mxu0
      %v2582 = vadd.f32 0.0, %v2581
      %2583 = vmatmul.f32.gmra.mxu0 %v2472
      %v2584 = vpop.f32.mrf.mxu0
      %v2585 = vadd.f32 0.0, %v2584
      %2586 = vmatmul.f32.gmra.mxu0 %v2475
      %v2587 = vpop.f32.mrf.mxu0
      %v2588 = vadd.f32 0.0, %v2587
      %2589 = vmatmul.f32.gmra.mxu0 %v2478
      %v2590 = vpop.f32.mrf.mxu0
      %v2591 = vadd.f32 0.0, %v2590
      %2592 = vmatmul.f32.gmra.mxu0 %v2481
      %v2593 = vpop.f32.mrf.mxu0
      %v2594 = vadd.f32 0.0, %v2593
      %2595 = vmatmul.f32.gmra.mxu0 %v2484
      %v2596 = vpop.f32.mrf.mxu0
      %v2597 = vadd.f32 0.0, %v2596
      %2598 = vmatmul.f32.gmra.mxu0 %v2487
      %v2599 = vpop.f32.mrf.mxu0
      %v2600 = vadd.f32 0.0, %v2599
      %2601 = vmatmul.f32.gmra.mxu0 %v2490
      %v2602 = vpop.f32.mrf.mxu0
      %v2603 = vadd.f32 0.0, %v2602
      %2604 = vdwg.mxu0
      %v2605 = vadd.f32 %v2325, %v2510
      %v2606 = vadd.f32 %v2326, %v2513
      %v2607 = vadd.f32 %v2327, %v2516
      %v2608 = vadd.f32 %v2328, %v2519
      %v2609 = vadd.f32 %v2329, %v2522
      %v2610 = vadd.f32 %v2330, %v2525
      %v2611 = vadd.f32 %v2331, %v2528
      %v2612 = vadd.f32 %v2332, %v2531
      %v2613 = vadd.f32 %v2333, %v2534
      %v2614 = vadd.f32 %v2334, %v2537
      %v2615 = vadd.f32 %v2335, %v2540
      %v2616 = vadd.f32 %v2336, %v2543
      %v2617 = vadd.f32 %v2337, %v2546
      %v2618 = vadd.f32 %v2338, %v2549
      %v2619 = vadd.f32 %v2339, %v2552
      %v2620 = vadd.f32 %v2340, %v2555
      %v2621 = vadd.f32 %v2341, %v2558
      %v2622 = vadd.f32 %v2342, %v2561
      %v2623 = vadd.f32 %v2343, %v2564
      %v2624 = vadd.f32 %v2344, %v2567
      %v2625 = vadd.f32 %v2345, %v2570
      %v2626 = vadd.f32 %v2346, %v2573
      %v2627 = vadd.f32 %v2347, %v2576
      %v2628 = vadd.f32 %v2348, %v2579
      %v2629 = vadd.f32 %v2349, %v2582
      %v2630 = vadd.f32 %v2350, %v2585
      %v2631 = vadd.f32 %v2351, %v2588
      %v2632 = vadd.f32 %v2352, %v2591
      %v2633 = vadd.f32 %v2353, %v2594
      %v2634 = vadd.f32 %v2354, %v2597
      %v2635 = vadd.f32 %v2355, %v2600
      %v2636 = vadd.f32 %v2356, %v2603
      %s2637 = scalar_lea.vmem [#allocation3], 64
      %v2638 = vld [vmem:[%s2637] sm:$0xff]
      %v2639 = vld [vmem:[%s2637 + $0x8] sm:$0xff]
      %v2640 = vld [vmem:[%s2637 + $0x10] sm:$0xff]
      %v2641 = vld [vmem:[%s2637 + $0x18] sm:$0xff]
      %v2642 = vld [vmem:[%s2637 + $0x20] sm:$0xff]
      %v2643 = vld [vmem:[%s2637 + $0x28] sm:$0xff]
      %v2644 = vld [vmem:[%s2637 + $0x30] sm:$0xff]
      %v2645 = vld [vmem:[%s2637 + $0x38] sm:$0xff]
      %v2646 = vld [vmem:[%s2637 + $0x40] sm:$0xff]
      %v2647 = vld [vmem:[%s2637 + $0x48] sm:$0xff]
      %v2648 = vld [vmem:[%s2637 + $0x50] sm:$0xff]
      %v2649 = vld [vmem:[%s2637 + $0x58] sm:$0xff]
      %v2650 = vld [vmem:[%s2637 + $0x60] sm:$0xff]
      %v2651 = vld [vmem:[%s2637 + $0x68] sm:$0xff]
      %v2652 = vld [vmem:[%s2637 + $0x70] sm:$0xff]
      %v2653 = vld [vmem:[%s2637 + $0x78] sm:$0xff]
      %v2654 = vld [vmem:[%s2637 + $0x80] sm:$0xff]
      %v2655 = vld [vmem:[%s2637 + $0x88] sm:$0xff]
      %v2656 = vld [vmem:[%s2637 + $0x90] sm:$0xff]
      %v2657 = vld [vmem:[%s2637 + $0x98] sm:$0xff]
      %v2658 = vld [vmem:[%s2637 + $0xa0] sm:$0xff]
      %v2659 = vld [vmem:[%s2637 + $0xa8] sm:$0xff]
      %v2660 = vld [vmem:[%s2637 + $0xb0] sm:$0xff]
      %v2661 = vld [vmem:[%s2637 + $0xb8] sm:$0xff]
      %v2662 = vld [vmem:[%s2637 + $0xc0] sm:$0xff]
      %v2663 = vld [vmem:[%s2637 + $0xc8] sm:$0xff]
      %v2664 = vld [vmem:[%s2637 + $0xd0] sm:$0xff]
      %v2665 = vld [vmem:[%s2637 + $0xd8] sm:$0xff]
      %v2666 = vld [vmem:[%s2637 + $0xe0] sm:$0xff]
      %v2667 = vld [vmem:[%s2637 + $0xe8] sm:$0xff]
      %v2668 = vld [vmem:[%s2637 + $0xf0] sm:$0xff]
      %v2669 = vld [vmem:[%s2637 + $0xf8] sm:$0xff]
      %s2670 = scalar_lea.vmem %s314, 160
      %v2671 = vld [vmem:[%s2670] sm:$0xff]
      %v2672 = vld [vmem:[%s2670 + $0x8] sm:$0xff]
      %v2673 = vld [vmem:[%s2670 + $0x10] sm:$0xff]
      %v2674 = vld [vmem:[%s2670 + $0x18] sm:$0xff]
      %v2675 = vld [vmem:[%s2670 + $0x20] sm:$0xff]
      %v2677 = vsel %vm1658, %v2638, 0
      %v2680 = vsel %vm1658, %v2639, 0
      %v2683 = vsel %vm1658, %v2640, 0
      %v2686 = vsel %vm1658, %v2641, 0
      %v2689 = vsel %vm1658, %v2642, 0
      %v2692 = vsel %vm1658, %v2643, 0
      %v2695 = vsel %vm1658, %v2644, 0
      %v2698 = vsel %vm1658, %v2645, 0
      %v2701 = vsel %vm1658, %v2646, 0
      %v2704 = vsel %vm1658, %v2647, 0
      %v2707 = vsel %vm1658, %v2648, 0
      %v2710 = vsel %vm1658, %v2649, 0
      %v2713 = vsel %vm1658, %v2650, 0
      %v2716 = vsel %vm1658, %v2651, 0
      %v2719 = vsel %vm1658, %v2652, 0
      %v2722 = vsel %vm1658, %v2653, 0
      %v2725 = vsel %vm1658, %v2654, 0
      %v2728 = vsel %vm1658, %v2655, 0
      %v2731 = vsel %vm1658, %v2656, 0
      %v2734 = vsel %vm1658, %v2657, 0
      %v2737 = vsel %vm1658, %v2658, 0
      %v2740 = vsel %vm1658, %v2659, 0
      %v2743 = vsel %vm1658, %v2660, 0
      %v2746 = vsel %vm1658, %v2661, 0
      %v2749 = vsel %vm1658, %v2662, 0
      %v2752 = vsel %vm1658, %v2663, 0
      %v2755 = vsel %vm1658, %v2664, 0
      %v2758 = vsel %vm1658, %v2665, 0
      %v2761 = vsel %vm1658, %v2666, 0
      %v2764 = vsel %vm1658, %v2667, 0
      %v2767 = vsel %vm1658, %v2668, 0
      %v2770 = vsel %vm1658, %v2669, 0
      %2772 = vmatpush.msra.mxu0 0.0
      %2773 = vmatpush.msra.mxu0 0.0
      %2774 = vmatpush.msra.mxu0 0.0
      %2775 = vmatpush.msra.mxu0 0.0
      %2776 = vmatpush.msra.mxu0 0.0
      %2777 = vmatpush.msra.mxu0 0.0
      %2778 = vmatpush.msra.mxu0 0.0
      %2779 = vmatpush.msra.mxu0 0.0
      %2780 = vmatpush.msra.mxu0 0.0
      %2781 = vmatpush.msra.mxu0 0.0
      %2782 = vmatpush.msra.mxu0 0.0
      %2783 = vmatpush.msra.mxu0 %v2675
      %2784 = vmatpush.msra.mxu0 %v2674
      %2785 = vmatpush.msra.mxu0 %v2673
      %2786 = vmatpush.msra.mxu0 %v2672
      %2787 = vmatpush.msra.mxu0 %v2671
      %2788 = vmatmul.f32.gmra.mxu0 %v2677
      %v2789 = vpop.f32.mrf.mxu0
      %v2790 = vadd.f32 0.0, %v2789
      %2791 = vmatmul.f32.gmra.mxu0 %v2680
      %v2792 = vpop.f32.mrf.mxu0
      %v2793 = vadd.f32 0.0, %v2792
      %2794 = vmatmul.f32.gmra.mxu0 %v2683
      %v2795 = vpop.f32.mrf.mxu0
      %v2796 = vadd.f32 0.0, %v2795
      %2797 = vmatmul.f32.gmra.mxu0 %v2686
      %v2798 = vpop.f32.mrf.mxu0
      %v2799 = vadd.f32 0.0, %v2798
      %2800 = vmatmul.f32.gmra.mxu0 %v2689
      %v2801 = vpop.f32.mrf.mxu0
      %v2802 = vadd.f32 0.0, %v2801
      %2803 = vmatmul.f32.gmra.mxu0 %v2692
      %v2804 = vpop.f32.mrf.mxu0
      %v2805 = vadd.f32 0.0, %v2804
      %2806 = vmatmul.f32.gmra.mxu0 %v2695
      %v2807 = vpop.f32.mrf.mxu0
      %v2808 = vadd.f32 0.0, %v2807
      %2809 = vmatmul.f32.gmra.mxu0 %v2698
      %v2810 = vpop.f32.mrf.mxu0
      %v2811 = vadd.f32 0.0, %v2810
      %2812 = vmatmul.f32.gmra.mxu0 %v2701
      %v2813 = vpop.f32.mrf.mxu0
      %v2814 = vadd.f32 0.0, %v2813
      %2815 = vmatmul.f32.gmra.mxu0 %v2704
      %v2816 = vpop.f32.mrf.mxu0
      %v2817 = vadd.f32 0.0, %v2816
      %2818 = vmatmul.f32.gmra.mxu0 %v2707
      %v2819 = vpop.f32.mrf.mxu0
      %v2820 = vadd.f32 0.0, %v2819
      %2821 = vmatmul.f32.gmra.mxu0 %v2710
      %v2822 = vpop.f32.mrf.mxu0
      %v2823 = vadd.f32 0.0, %v2822
      %2824 = vmatmul.f32.gmra.mxu0 %v2713
      %v2825 = vpop.f32.mrf.mxu0
      %v2826 = vadd.f32 0.0, %v2825
      %2827 = vmatmul.f32.gmra.mxu0 %v2716
      %v2828 = vpop.f32.mrf.mxu0
      %v2829 = vadd.f32 0.0, %v2828
      %2830 = vmatmul.f32.gmra.mxu0 %v2719
      %v2831 = vpop.f32.mrf.mxu0
      %v2832 = vadd.f32 0.0, %v2831
      %2833 = vmatmul.f32.gmra.mxu0 %v2722
      %v2834 = vpop.f32.mrf.mxu0
      %v2835 = vadd.f32 0.0, %v2834
      %2836 = vmatmul.f32.gmra.mxu0 %v2725
      %v2837 = vpop.f32.mrf.mxu0
      %v2838 = vadd.f32 0.0, %v2837
      %2839 = vmatmul.f32.gmra.mxu0 %v2728
      %v2840 = vpop.f32.mrf.mxu0
      %v2841 = vadd.f32 0.0, %v2840
      %2842 = vmatmul.f32.gmra.mxu0 %v2731
      %v2843 = vpop.f32.mrf.mxu0
      %v2844 = vadd.f32 0.0, %v2843
      %2845 = vmatmul.f32.gmra.mxu0 %v2734
      %v2846 = vpop.f32.mrf.mxu0
      %v2847 = vadd.f32 0.0, %v2846
      %2848 = vmatmul.f32.gmra.mxu0 %v2737
      %v2849 = vpop.f32.mrf.mxu0
      %v2850 = vadd.f32 0.0, %v2849
      %2851 = vmatmul.f32.gmra.mxu0 %v2740
      %v2852 = vpop.f32.mrf.mxu0
      %v2853 = vadd.f32 0.0, %v2852
      %2854 = vmatmul.f32.gmra.mxu0 %v2743
      %v2855 = vpop.f32.mrf.mxu0
      %v2856 = vadd.f32 0.0, %v2855
      %2857 = vmatmul.f32.gmra.mxu0 %v2746
      %v2858 = vpop.f32.mrf.mxu0
      %v2859 = vadd.f32 0.0, %v2858
      %2860 = vmatmul.f32.gmra.mxu0 %v2749
      %v2861 = vpop.f32.mrf.mxu0
      %v2862 = vadd.f32 0.0, %v2861
      %2863 = vmatmul.f32.gmra.mxu0 %v2752
      %v2864 = vpop.f32.mrf.mxu0
      %v2865 = vadd.f32 0.0, %v2864
      %2866 = vmatmul.f32.gmra.mxu0 %v2755
      %v2867 = vpop.f32.mrf.mxu0
      %v2868 = vadd.f32 0.0, %v2867
      %2869 = vmatmul.f32.gmra.mxu0 %v2758
      %v2870 = vpop.f32.mrf.mxu0
      %v2871 = vadd.f32 0.0, %v2870
      %2872 = vmatmul.f32.gmra.mxu0 %v2761
      %v2873 = vpop.f32.mrf.mxu0
      %v2874 = vadd.f32 0.0, %v2873
      %2875 = vmatmul.f32.gmra.mxu0 %v2764
      %v2876 = vpop.f32.mrf.mxu0
      %v2877 = vadd.f32 0.0, %v2876
      %2878 = vmatmul.f32.gmra.mxu0 %v2767
      %v2879 = vpop.f32.mrf.mxu0
      %v2880 = vadd.f32 0.0, %v2879
      %2881 = vmatmul.f32.gmra.mxu0 %v2770
      %v2882 = vpop.f32.mrf.mxu0
      %v2883 = vadd.f32 0.0, %v2882
      %2884 = vdwg.mxu0
      %v2885 = vadd.f32 %v2605, %v2790
      %v2886 = vadd.f32 %v2606, %v2793
      %v2887 = vadd.f32 %v2607, %v2796
      %v2888 = vadd.f32 %v2608, %v2799
      %v2889 = vadd.f32 %v2609, %v2802
      %v2890 = vadd.f32 %v2610, %v2805
      %v2891 = vadd.f32 %v2611, %v2808
      %v2892 = vadd.f32 %v2612, %v2811
      %v2893 = vadd.f32 %v2613, %v2814
      %v2894 = vadd.f32 %v2614, %v2817
      %v2895 = vadd.f32 %v2615, %v2820
      %v2896 = vadd.f32 %v2616, %v2823
      %v2897 = vadd.f32 %v2617, %v2826
      %v2898 = vadd.f32 %v2618, %v2829
      %v2899 = vadd.f32 %v2619, %v2832
      %v2900 = vadd.f32 %v2620, %v2835
      %v2901 = vadd.f32 %v2621, %v2838
      %v2902 = vadd.f32 %v2622, %v2841
      %v2903 = vadd.f32 %v2623, %v2844
      %v2904 = vadd.f32 %v2624, %v2847
      %v2905 = vadd.f32 %v2625, %v2850
      %v2906 = vadd.f32 %v2626, %v2853
      %v2907 = vadd.f32 %v2627, %v2856
      %v2908 = vadd.f32 %v2628, %v2859
      %v2909 = vadd.f32 %v2629, %v2862
      %v2910 = vadd.f32 %v2630, %v2865
      %v2911 = vadd.f32 %v2631, %v2868
      %v2912 = vadd.f32 %v2632, %v2871
      %v2913 = vadd.f32 %v2633, %v2874
      %v2914 = vadd.f32 %v2634, %v2877
      %v2915 = vadd.f32 %v2635, %v2880
      %v2916 = vadd.f32 %v2636, %v2883
      %v2917 = vld [vmem:[%s317] sm:$0x1]
      %v2919 = vperm.slane %v2917, 0
      %v2921 = vadd.f32 %v2885, %v2919
      %v2922 = vadd.f32 %v2886, %v2919
      %v2923 = vadd.f32 %v2887, %v2919
      %v2924 = vadd.f32 %v2888, %v2919
      %v2925 = vadd.f32 %v2889, %v2919
      %v2926 = vadd.f32 %v2890, %v2919
      %v2927 = vadd.f32 %v2891, %v2919
      %v2928 = vadd.f32 %v2892, %v2919
      %v2929 = vadd.f32 %v2893, %v2919
      %v2930 = vadd.f32 %v2894, %v2919
      %v2931 = vadd.f32 %v2895, %v2919
      %v2932 = vadd.f32 %v2896, %v2919
      %v2933 = vadd.f32 %v2897, %v2919
      %v2934 = vadd.f32 %v2898, %v2919
      %v2935 = vadd.f32 %v2899, %v2919
      %v2936 = vadd.f32 %v2900, %v2919
      %v2937 = vadd.f32 %v2901, %v2919
      %v2938 = vadd.f32 %v2902, %v2919
      %v2939 = vadd.f32 %v2903, %v2919
      %v2940 = vadd.f32 %v2904, %v2919
      %v2941 = vadd.f32 %v2905, %v2919
      %v2942 = vadd.f32 %v2906, %v2919
      %v2943 = vadd.f32 %v2907, %v2919
      %v2944 = vadd.f32 %v2908, %v2919
      %v2945 = vadd.f32 %v2909, %v2919
      %v2946 = vadd.f32 %v2910, %v2919
      %v2947 = vadd.f32 %v2911, %v2919
      %v2948 = vadd.f32 %v2912, %v2919
      %v2949 = vadd.f32 %v2913, %v2919
      %v2950 = vadd.f32 %v2914, %v2919
      %v2951 = vadd.f32 %v2915, %v2919
      %v2952 = vadd.f32 %v2916, %v2919
      %v2953 = vld [vmem:[%s325] sm:$0xff]
      %v2954 = vld [vmem:[%s325 + $0x8] sm:$0xff]
      %v2955 = vld [vmem:[%s325 + $0x10] sm:$0xff]
      %v2956 = vld [vmem:[%s325 + $0x18] sm:$0xff]
      %v2957 = vld [vmem:[%s325 + $0x20] sm:$0xff]
      %v2958 = vld [vmem:[%s325 + $0x28] sm:$0xff]
      %v2959 = vld [vmem:[%s325 + $0x30] sm:$0xff]
      %v2960 = vld [vmem:[%s325 + $0x38] sm:$0xff]
      %v2961 = vld [vmem:[%s325 + $0x40] sm:$0xff]
      %v2962 = vld [vmem:[%s325 + $0x48] sm:$0xff]
      %v2963 = vld [vmem:[%s325 + $0x50] sm:$0xff]
      %v2964 = vld [vmem:[%s325 + $0x58] sm:$0xff]
      %v2965 = vld [vmem:[%s325 + $0x60] sm:$0xff]
      %v2966 = vld [vmem:[%s325 + $0x68] sm:$0xff]
      %v2967 = vld [vmem:[%s325 + $0x70] sm:$0xff]
      %v2968 = vld [vmem:[%s325 + $0x78] sm:$0xff]
      %v2969 = vld [vmem:[%s325 + $0x80] sm:$0xff]
      %v2970 = vld [vmem:[%s325 + $0x88] sm:$0xff]
      %v2971 = vld [vmem:[%s325 + $0x90] sm:$0xff]
      %v2972 = vld [vmem:[%s325 + $0x98] sm:$0xff]
      %v2973 = vld [vmem:[%s325 + $0xa0] sm:$0xff]
      %v2974 = vld [vmem:[%s325 + $0xa8] sm:$0xff]
      %v2975 = vld [vmem:[%s325 + $0xb0] sm:$0xff]
      %v2976 = vld [vmem:[%s325 + $0xb8] sm:$0xff]
      %v2977 = vld [vmem:[%s325 + $0xc0] sm:$0xff]
      %v2978 = vld [vmem:[%s325 + $0xc8] sm:$0xff]
      %v2979 = vld [vmem:[%s325 + $0xd0] sm:$0xff]
      %v2980 = vld [vmem:[%s325 + $0xd8] sm:$0xff]
      %v2981 = vld [vmem:[%s325 + $0xe0] sm:$0xff]
      %v2982 = vld [vmem:[%s325 + $0xe8] sm:$0xff]
      %v2983 = vld [vmem:[%s325 + $0xf0] sm:$0xff]
      %v2984 = vld [vmem:[%s325 + $0xf8] sm:$0xff]
      %v2985 = vadd.f32 %v2921, %v2953
      %v2986 = vadd.f32 %v2922, %v2954
      %v2987 = vadd.f32 %v2923, %v2955
      %v2988 = vadd.f32 %v2924, %v2956
      %v2989 = vadd.f32 %v2925, %v2957
      %v2990 = vadd.f32 %v2926, %v2958
      %v2991 = vadd.f32 %v2927, %v2959
      %v2992 = vadd.f32 %v2928, %v2960
      %v2993 = vadd.f32 %v2929, %v2961
      %v2994 = vadd.f32 %v2930, %v2962
      %v2995 = vadd.f32 %v2931, %v2963
      %v2996 = vadd.f32 %v2932, %v2964
      %v2997 = vadd.f32 %v2933, %v2965
      %v2998 = vadd.f32 %v2934, %v2966
      %v2999 = vadd.f32 %v2935, %v2967
      %v3000 = vadd.f32 %v2936, %v2968
      %v3001 = vadd.f32 %v2937, %v2969
      %v3002 = vadd.f32 %v2938, %v2970
      %v3003 = vadd.f32 %v2939, %v2971
      %v3004 = vadd.f32 %v2940, %v2972
      %v3005 = vadd.f32 %v2941, %v2973
      %v3006 = vadd.f32 %v2942, %v2974
      %v3007 = vadd.f32 %v2943, %v2975
      %v3008 = vadd.f32 %v2944, %v2976
      %v3009 = vadd.f32 %v2945, %v2977
      %v3010 = vadd.f32 %v2946, %v2978
      %v3011 = vadd.f32 %v2947, %v2979
      %v3012 = vadd.f32 %v2948, %v2980
      %v3013 = vadd.f32 %v2949, %v2981
      %v3014 = vadd.f32 %v2950, %v2982
      %v3015 = vadd.f32 %v2951, %v2983
      %v3016 = vadd.f32 %v2952, %v2984
      %v3017 = vmul.f32 %v2985, 0.70710677
      %v3018 = vmul.f32 %v2986, 0.70710677
      %v3019 = vmul.f32 %v2987, 0.70710677
      %v3020 = vmul.f32 %v2988, 0.70710677
      %v3021 = vmul.f32 %v2989, 0.70710677
      %v3022 = vmul.f32 %v2990, 0.70710677
      %v3023 = vmul.f32 %v2991, 0.70710677
      %v3024 = vmul.f32 %v2992, 0.70710677
      %v3025 = vmul.f32 %v2993, 0.70710677
      %v3026 = vmul.f32 %v2994, 0.70710677
      %v3027 = vmul.f32 %v2995, 0.70710677
      %v3028 = vmul.f32 %v2996, 0.70710677
      %v3029 = vmul.f32 %v2997, 0.70710677
      %v3030 = vmul.f32 %v2998, 0.70710677
      %v3031 = vmul.f32 %v2999, 0.70710677
      %v3032 = vmul.f32 %v3000, 0.70710677
      %v3033 = vmul.f32 %v3001, 0.70710677
      %v3034 = vmul.f32 %v3002, 0.70710677
      %v3035 = vmul.f32 %v3003, 0.70710677
      %v3036 = vmul.f32 %v3004, 0.70710677
      %v3037 = vmul.f32 %v3005, 0.70710677
      %v3038 = vmul.f32 %v3006, 0.70710677
      %v3039 = vmul.f32 %v3007, 0.70710677
      %v3040 = vmul.f32 %v3008, 0.70710677
      %v3041 = vmul.f32 %v3009, 0.70710677
      %v3042 = vmul.f32 %v3010, 0.70710677
      %v3043 = vmul.f32 %v3011, 0.70710677
      %v3044 = vmul.f32 %v3012, 0.70710677
      %v3045 = vmul.f32 %v3013, 0.70710677
      %v3046 = vmul.f32 %v3014, 0.70710677
      %v3047 = vmul.f32 %v3015, 0.70710677
      %v3048 = vmul.f32 %v3016, 0.70710677
      %vm3049 = vcmask 64512
      %3050 = vst.msk [vmem:[%s333] sm:$0xff] %vm3049, %v3017
      %3051 = vst.msk [vmem:[%s333 + $0x8] sm:$0xff] %vm3049, %v3018
      %3052 = vst.msk [vmem:[%s333 + $0x10] sm:$0xff] %vm3049, %v3019
      %3053 = vst.msk [vmem:[%s333 + $0x18] sm:$0xff] %vm3049, %v3020
      %3054 = vst.msk [vmem:[%s333 + $0x20] sm:$0xff] %vm3049, %v3021
      %3055 = vst.msk [vmem:[%s333 + $0x28] sm:$0xff] %vm3049, %v3022
      %3056 = vst.msk [vmem:[%s333 + $0x30] sm:$0xff] %vm3049, %v3023
      %3057 = vst.msk [vmem:[%s333 + $0x38] sm:$0xff] %vm3049, %v3024
      %3058 = vst.msk [vmem:[%s333 + $0x40] sm:$0xff] %vm3049, %v3025
      %3059 = vst.msk [vmem:[%s333 + $0x48] sm:$0xff] %vm3049, %v3026
      %3060 = vst.msk [vmem:[%s333 + $0x50] sm:$0xff] %vm3049, %v3027
      %3061 = vst.msk [vmem:[%s333 + $0x58] sm:$0xff] %vm3049, %v3028
      %3062 = vst.msk [vmem:[%s333 + $0x60] sm:$0xff] %vm3049, %v3029
      %3063 = vst.msk [vmem:[%s333 + $0x68] sm:$0xff] %vm3049, %v3030
      %3064 = vst.msk [vmem:[%s333 + $0x70] sm:$0xff] %vm3049, %v3031
      %3065 = vst.msk [vmem:[%s333 + $0x78] sm:$0xff] %vm3049, %v3032
      %3066 = vst.msk [vmem:[%s333 + $0x80] sm:$0xff] %vm3049, %v3033
      %3067 = vst.msk [vmem:[%s333 + $0x88] sm:$0xff] %vm3049, %v3034
      %3068 = vst.msk [vmem:[%s333 + $0x90] sm:$0xff] %vm3049, %v3035
      %3069 = vst.msk [vmem:[%s333 + $0x98] sm:$0xff] %vm3049, %v3036
      %3070 = vst.msk [vmem:[%s333 + $0xa0] sm:$0xff] %vm3049, %v3037
      %3071 = vst.msk [vmem:[%s333 + $0xa8] sm:$0xff] %vm3049, %v3038
      %3072 = vst.msk [vmem:[%s333 + $0xb0] sm:$0xff] %vm3049, %v3039
      %3073 = vst.msk [vmem:[%s333 + $0xb8] sm:$0xff] %vm3049, %v3040
      %3074 = vst.msk [vmem:[%s333 + $0xc0] sm:$0xff] %vm3049, %v3041
      %3075 = vst.msk [vmem:[%s333 + $0xc8] sm:$0xff] %vm3049, %v3042
      %3076 = vst.msk [vmem:[%s333 + $0xd0] sm:$0xff] %vm3049, %v3043
      %3077 = vst.msk [vmem:[%s333 + $0xd8] sm:$0xff] %vm3049, %v3044
      %3078 = vst.msk [vmem:[%s333 + $0xe0] sm:$0xff] %vm3049, %v3045
      %3079 = vst.msk [vmem:[%s333 + $0xe8] sm:$0xff] %vm3049, %v3046
      %3080 = vst.msk [vmem:[%s333 + $0xf0] sm:$0xff] %vm3049, %v3047
      %3081 = vst.msk [vmem:[%s333 + $0xf8] sm:$0xff] %vm3049, %v3048
      %p3082 = scmp.lt.s32.totalorder %s21, 1
      %s3083 = scalar_select %p3082, %s21, 1
      %p3084 = scmp.lt.s32.totalorder %s22, 0
      %s3085 = scalar_select %p3084, %s22, 0
      %s3086 = smul.addr %s3083, 32
      %s3087 = sadd.s32 %s3085, %s3086
      %s3088 = smul.addr %s3087, 8
      %s3089 = scalar_lea.vmem %s6, %s3088
      // Predicated region
      $region49: #{gen_res_blk_forward.7} parent=43 // pred_check
        %p3090 = pneg %p197
      $region50: #{gen_res_blk_forward.7} parent=43 // pred_check_branch
        %3092 = sbr.rel (%p3090) target = $region52
      $region51: #{gen_res_blk_forward.7} parent=43 // pred_region
        _
      $region52: #{gen_res_blk_forward.7} parent=43 // pred_fallthru
        _
    $region44: #{gen_res_blk_forward.7} parent=5 // pred_fallthru
      _
    %p3093 = scmp.le.s32.totalorder 2, %s12
    // Predicated region
    $region53: #{gen_res_blk_forward.7} parent=5 // pred_check
      %p3094 = pneg %p3093
    $region54: #{gen_res_blk_forward.7} parent=5 // pred_check_branch
      %3096 = sbr.rel (%p3094) target = $region56
    $region55: #{gen_res_blk_forward.7} parent=5 // pred_region
      %s3097 = ssub.s32 %s12, 2
      // Predicated region
      $region57: #{gen_res_blk_forward.7} parent=55 // pred_check
        %p3098 = pneg %p203
      $region58: #{gen_res_blk_forward.7} parent=55 // pred_check_branch
        %3100 = sbr.rel (%p3098) target = $region60
      $region59: #{gen_res_blk_forward.7} parent=55 // pred_region
        %p3101 = scmp.lt.s32.totalorder %s23, 1
        %s3102 = scalar_select %p3101, %s23, 1
        %p3103 = scmp.lt.s32.totalorder %s24, 0
        %s3104 = scalar_select %p3103, %s24, 0
        %s3105 = smul.addr %s3102, 32
        %s3106 = sadd.s32 %s3104, %s3105
        %s3107 = smul.addr %s3106, 8
        %s3108 = scalar_lea.vmem %s6, %s3107
      $region60: #{gen_res_blk_forward.7} parent=55 // pred_fallthru
        _
    $region56: #{gen_res_blk_forward.7} parent=5 // pred_fallthru
      _
  $region6: #{gen_res_blk_forward.7} parent=0 // loop_footer
    %s16 = sadd.s32 1, %s12
  $region7: #{gen_res_blk_forward.7} parent=0 // loop_footer_branch
    %11 = sbr.rel target = $region3
  $region8: #{gen_res_blk_forward.7} parent=0 // loop_exit
    _

</llo_original>
